<compile_context>
chip_gen: v7x
topology: tpu7x:2x2x1
jax: 0.10.0
libtpu: 0.0.40
codegen_flags: <defaults>
</compile_context>

<pallas_src>
import functools

import jax
import jax.numpy as jnp
from jax import lax
from jax.experimental import pallas as pl
from jax.experimental.pallas import tpu as pltpu


def _round_up(x, m):
    return (x + m - 1) // m * m


# ---------------------------------------------------------------------------
# Fused Conv2d(stride=1, pad=0) + bias + ReLU + MaxPool2d(2, 2) kernel
# ---------------------------------------------------------------------------
def _conv_relu_pool_kernel(x_ref, w_ref, b_ref, o_ref, *, ksize, ph, pw,
                           cin, cout, bt):
    """bt images per grid step.

    x_ref block: (bt, H2, 2, W2, 2*cin) -- the parity view of the NHWC image
    (x[n, 2p + r, 2q + c, :] == block[n, p + r//2, r%2, q + c//2,
                                      (c%2)*cin : (c%2+1)*cin]).
    For each pooled corner (a, b) the K*K tap windows are concatenated along
    the channel axis into one (ph, pw, K*K*cin) patch and contracted against
    the (K*K*cin, cout) weight in a single batched MXU dot (batch = ph,
    f32 accumulation); the 2x2 max pool is a VPU max of the 4 corner results.
    maxpool(relu(conv + bias)) == relu(max_corners(conv) + bias).
    """
    kkc = ksize * ksize * cin
    # Hoisted once; reused by all corners and all images in this block.
    w_b = jnp.broadcast_to(w_ref[...], (ph, kkc, cout))
    bias = b_ref[...]                                  # (1, cout) f32

    for n in range(bt):
        pooled = None
        for a in (0, 1):            # pooled-window row corner
            for b in (0, 1):        # pooled-window col corner
                taps = []
                for i in range(ksize):
                    for j in range(ksize):
                        r, c = a + i, b + j
                        taps.append(
                            x_ref[n,
                                  r // 2:r // 2 + ph,
                                  r % 2,
                                  c // 2:c // 2 + pw,
                                  (c % 2) * cin:(c % 2 + 1) * cin])
                patch = jnp.concatenate(taps, axis=-1)      # (ph, pw, kkc) bf16
                part = lax.dot_general(
                    patch, w_b,
                    dimension_numbers=(((2,), (1,)), ((0,), (0,))),
                    preferred_element_type=jnp.float32)     # (ph, pw, cout) f32
                pooled = part if pooled is None else jnp.maximum(pooled, part)
        out = jnp.maximum(pooled + bias, 0.0)
        o_ref[n] = out.astype(o_ref.dtype)


def _pick_bt(n, per_image_bytes, budget_bytes=2 << 20, max_bt=8):
    """Images per grid step: biggest divisor of n within VMEM / unroll budget."""
    bt = max(1, min(n, max_bt, budget_bytes // max(per_image_bytes, 1)))
    while n % bt:
        bt -= 1
    return bt


def conv_relu_pool(x_nhwc, w_k, b_k, *, ksize):
    """x_nhwc: (N, H, W, Cin) bf16.  w_k: (K*K*Cin, Cout) bf16 (HWIO-flattened).
    b_k: (1, Cout) f32.  Returns pooled activations (N, PH, PW, Cout) bf16 with
    PH = (H - K + 1) // 2, PW = (W - K + 1) // 2 (PyTorch floor-mode pooling).
    """
    n, h, w, cin = x_nhwc.shape
    kkc, cout = w_k.shape
    assert kkc == ksize * ksize * cin, (w_k.shape, cin, ksize)
    oh, ow = h - ksize + 1, w - ksize + 1
    ph, pw = oh // 2, ow // 2
    assert ph >= 1 and pw >= 1, (ph, pw)

    # Pad spatial dims to even (tiny, only when odd), then take the FREE
    # (contiguity-preserving) reshape to the parity view.
    hp, wp = _round_up(h, 2), _round_up(w, 2)
    if (hp, wp) != (h, w):
        x_nhwc = jnp.pad(x_nhwc, ((0, 0), (0, hp - h), (0, wp - w), (0, 0)))
    x5 = x_nhwc.reshape(n, hp // 2, 2, wp // 2, 2 * cin)
    assert ksize // 2 + ph <= hp // 2, "conv/pool row window out of bounds"
    assert ksize // 2 + pw <= wp // 2, "conv/pool col window out of bounds"

    per_image_bytes = hp * wp * cin * 2
    bt = _pick_bt(n, per_image_bytes)

    kernel = functools.partial(_conv_relu_pool_kernel, ksize=ksize, ph=ph,
                               pw=pw, cin=cin, cout=cout, bt=bt)

    flops = 2 * n * 4 * ph * pw * cout * kkc
    bytes_accessed = (x5.size * 2 + w_k.size * 2 + b_k.size * 4
                      + n * ph * pw * cout * 2)

    return pl.pallas_call(
        kernel,
        grid=(n // bt,),
        in_specs=[
            pl.BlockSpec((bt, hp // 2, 2, wp // 2, 2 * cin),
                         lambda i: (i, 0, 0, 0, 0)),
            pl.BlockSpec((kkc, cout), lambda i: (0, 0)),   # resident weights
            pl.BlockSpec((1, cout), lambda i: (0, 0)),     # resident bias
        ],
        out_specs=pl.BlockSpec((bt, ph, pw, cout), lambda i: (i, 0, 0, 0)),
        out_shape=jax.ShapeDtypeStruct((n, ph, pw, cout), jnp.bfloat16),
        compiler_params=pltpu.CompilerParams(
            dimension_semantics=("parallel",),
            vmem_limit_bytes=64 * 1024 * 1024),
        cost_estimate=pl.CostEstimate(flops=flops, transcendentals=0,
                                      bytes_accessed=bytes_accessed),
    )(x5, w_k, b_k)


# ---------------------------------------------------------------------------
# Fused fc1 + ReLU + fc2 kernel
#   grid = (M "parallel", K "arbitrary"); single-K-block fast path
# ---------------------------------------------------------------------------
def _fc_fused_single_kernel(x_ref, w1_ref, b1_ref, w2_ref, b2_ref, o_ref):
    h = jnp.dot(x_ref[...], w1_ref[...], preferred_element_type=jnp.float32)
    h = jnp.maximum(h + b1_ref[...], 0.0)
    out = jnp.dot(h.astype(w2_ref.dtype), w2_ref[...],
                  preferred_element_type=jnp.float32) + b2_ref[...]
    o_ref[...] = out.astype(o_ref.dtype)


def _fc_fused_acc_kernel(x_ref, w1_ref, b1_ref, w2_ref, b2_ref, o_ref, h_acc):
    k = pl.program_id(1)

    @pl.when(k == 0)
    def _():
        h_acc[...] = jnp.zeros_like(h_acc)

    h_acc[...] += jnp.dot(x_ref[...], w1_ref[...],
                          preferred_element_type=jnp.float32)

    @pl.when(k == pl.num_programs(1) - 1)
    def _():
        h = jnp.maximum(h_acc[...] + b1_ref[...], 0.0)
        out = jnp.dot(h.astype(w2_ref.dtype), w2_ref[...],
                      preferred_element_type=jnp.float32) + b2_ref[...]
        o_ref[...] = out.astype(o_ref.dtype)


def _pick_tk(k):
    for t in (512, 256, 128):
        if k % t == 0:
            return t
    return None   # take the whole K as a single block


def fc_fused(x, w1, b1, w2, b2):
    """x: (M, K) bf16; w1: (K, H1p) bf16; w2: (H1p, Lp) bf16; biases f32 (1, .).
    Returns (M, Lp) f32 logits (padded lane-dense; caller slices real labels)."""
    m, k = x.shape
    kw, h1p = w1.shape
    assert k == kw, (k, kw)
    lp = w2.shape[1]

    tm = 128 if m % 128 == 0 else m
    gm = m // tm
    tk = _pick_tk(k)

    flops = 2 * m * k * h1p + 2 * m * h1p * lp
    bytes_accessed = (x.size * 2 + w1.size * 2 + w2.size * 2
                      + b1.size * 4 + b2.size * 4 + m * lp * 4)
    ce = pl.CostEstimate(flops=flops, transcendentals=0,
                         bytes_accessed=bytes_accessed)

    if tk is None or k // tk == 1:
        # Single K block: no accumulator scratch, no pl.when init/finalize.
        return pl.pallas_call(
            _fc_fused_single_kernel,
            grid=(gm,),
            in_specs=[
                pl.BlockSpec((tm, k), lambda i: (i, 0)),
                pl.BlockSpec((k, h1p), lambda i: (0, 0)),
                pl.BlockSpec((1, h1p), lambda i: (0, 0)),
                pl.BlockSpec((h1p, lp), lambda i: (0, 0)),
                pl.BlockSpec((1, lp), lambda i: (0, 0)),
            ],
            out_specs=pl.BlockSpec((tm, lp), lambda i: (i, 0)),
            out_shape=jax.ShapeDtypeStruct((m, lp), jnp.float32),
            compiler_params=pltpu.CompilerParams(
                dimension_semantics=("parallel",),
                vmem_limit_bytes=64 * 1024 * 1024),
            cost_estimate=ce,
        )(x, w1, b1, w2, b2)

    return pl.pallas_call(
        _fc_fused_acc_kernel,
        grid=(gm, k // tk),
        in_specs=[
            pl.BlockSpec((tm, tk), lambda i, j: (i, j)),
            pl.BlockSpec((tk, h1p), lambda i, j: (j, 0)),
            pl.BlockSpec((1, h1p), lambda i, j: (0, 0)),
            pl.BlockSpec((h1p, lp), lambda i, j: (0, 0)),
            pl.BlockSpec((1, lp), lambda i, j: (0, 0)),
        ],
        out_specs=pl.BlockSpec((tm, lp), lambda i, j: (i, 0)),
        out_shape=jax.ShapeDtypeStruct((m, lp), jnp.float32),
        scratch_shapes=[pltpu.VMEM((tm, h1p), jnp.float32)],
        compiler_params=pltpu.CompilerParams(
            dimension_semantics=("parallel", "arbitrary"),
            vmem_limit_bytes=64 * 1024 * 1024),
        cost_estimate=ce,
    )(x, w1, b1, w2, b2)


# ---------------------------------------------------------------------------
# Parameters: PyTorch-layout init + one-time conversion to kernel layouts
# ---------------------------------------------------------------------------
def init_params(key, *, x_shape, k0, k1, kernel_size, fc_hidden, label_length):
    cin, h, w = x_shape
    ks = jax.random.split(key, 8)
    scale = 0.1

    conv1_w = scale * jax.random.normal(ks[0], (k0, cin, kernel_size, kernel_size), jnp.float32)
    conv1_b = scale * jax.random.normal(ks[1], (k0,), jnp.float32)
    conv2_w = scale * jax.random.normal(ks[2], (k1, k0, kernel_size, kernel_size), jnp.float32)
    conv2_b = scale * jax.random.normal(ks[3], (k1,), jnp.float32)

    # Shape trace of the conv stack -> _to_linear (same as the PyTorch probe).
    oh1, ow1 = (h - kernel_size + 1) // 2, (w - kernel_size + 1) // 2
    oh2, ow2 = (oh1 - kernel_size + 1) // 2, (ow1 - kernel_size + 1) // 2
    to_linear = k1 * oh2 * ow2

    fc1_w = scale * jax.random.normal(ks[4], (fc_hidden, to_linear), jnp.float32)
    fc1_b = scale * jax.random.normal(ks[5], (fc_hidden,), jnp.float32)
    fc2_w = scale * jax.random.normal(ks[6], (label_length, fc_hidden), jnp.float32)
    fc2_b = scale * jax.random.normal(ks[7], (fc_hidden if False else label_length,), jnp.float32)

    return dict(conv1_w=conv1_w, conv1_b=conv1_b,
                conv2_w=conv2_w, conv2_b=conv2_b,
                fc1_w=fc1_w, fc1_b=fc1_b,
                fc2_w=fc2_w, fc2_b=fc2_b)


def prepare_params(params, *, x_shape, kernel_size):
    """One-time conversion from PyTorch layouts to kernel layouts:
    conv weights -> (K*K*Cin, Cout) bf16 (HWIO-flattened); fc weights
    pre-transposed to (in, out); fc1 columns pre-permuted from NCHW flatten to
    NHWC flatten; hidden/logit dims padded to 128; biases f32."""
    ks = kernel_size
    _, h, w = x_shape

    def prep_conv(wo, bo):
        cout, cin, kh, kw_ = wo.shape
        wk = jnp.transpose(wo, (2, 3, 1, 0)).reshape(kh * kw_ * cin, cout)
        return wk.astype(jnp.bfloat16), bo.reshape(1, cout).astype(jnp.float32)

    c1w, c1b = prep_conv(params["conv1_w"], params["conv1_b"])
    c2w, c2b = prep_conv(params["conv2_w"], params["conv2_b"])

    ph1, pw1 = (h - ks + 1) // 2, (w - ks + 1) // 2
    ph2, pw2 = (ph1 - ks + 1) // 2, (pw1 - ks + 1) // 2
    c2 = params["conv2_w"].shape[0]
    to_linear = c2 * ph2 * pw2
    fc_hidden, to_linear_w = params["fc1_w"].shape
    assert to_linear == to_linear_w, (to_linear, to_linear_w)
    label_length = params["fc2_w"].shape[0]

    h1p = _round_up(fc_hidden, 128)
    lp = _round_up(label_length, 128)

    # fc1: reorder input columns from NCHW flatten (torch .view) to NHWC flatten.
    w1 = params["fc1_w"].reshape(fc_hidden, c2, ph2, pw2)
    w1 = jnp.transpose(w1, (2, 3, 1, 0)).reshape(to_linear, fc_hidden)
    w1p = jnp.zeros((to_linear, h1p), jnp.bfloat16).at[:, :fc_hidden].set(
        w1.astype(jnp.bfloat16))
    b1p = jnp.zeros((1, h1p), jnp.float32).at[0, :fc_hidden].set(
        params["fc1_b"].astype(jnp.float32))

    w2 = params["fc2_w"].T
    w2p = jnp.zeros((h1p, lp), jnp.bfloat16).at[:fc_hidden, :label_length].set(
        w2.astype(jnp.bfloat16))
    b2p = jnp.zeros((1, lp), jnp.float32).at[0, :label_length].set(
        params["fc2_b"].astype(jnp.float32))

    return dict(conv1_w=c1w, conv1_b=c1b, conv2_w=c2w, conv2_b=c2b,
                fc_w1=w1p, fc_b1=b1p, fc_w2=w2p, fc_b2=b2p)


# ---------------------------------------------------------------------------
# Forward
# ---------------------------------------------------------------------------
def forward(p, x_nchw, *, kernel_size, label_length):
    # NCHW (PyTorch) -> NHWC (kernel layout), bf16 operands, f32 accumulation.
    x = jnp.transpose(x_nchw, (0, 2, 3, 1)).astype(jnp.bfloat16)

    # features: two fused conv+bias+ReLU+maxpool kernels
    x = conv_relu_pool(x, p["conv1_w"], p["conv1_b"], ksize=kernel_size)
    x = conv_relu_pool(x, p["conv2_w"], p["conv2_b"], ksize=kernel_size)

    # flatten in NHWC order (free reshape; fc1 columns were pre-permuted so
    # this matches torch's NCHW x.view(N, -1) semantics).
    n = x.shape[0]
    xf = x.reshape(n, -1).astype(jnp.bfloat16)

    # linearMapping: Dropout -> Linear -> ReLU -> Dropout -> Linear
    # (dropout = identity, eval mode), fused into a single kernel.
    logits = fc_fused(xf, p["fc_w1"], p["fc_b1"], p["fc_w2"], p["fc_b2"])
    return logits[:, :label_length]


if __name__ == "__main__":
    # small, self-consistent shapes
    batch = 2
    x_shape = (3, 16, 16)      # (C, H, W)
    label_length = 10
    fc_hidden = 32
    kernel_size = 3
    k0, k1 = 16, 32

    key = jax.random.PRNGKey(0)
    kx, kparam = jax.random.split(key)
    x = jax.random.normal(kx, (batch,) + x_shape, jnp.float32)

    params = init_params(kparam, x_shape=x_shape, k0=k0, k1=k1,
                         kernel_size=kernel_size, fc_hidden=fc_hidden,
                         label_length=label_length)
    prepared = prepare_params(params, x_shape=x_shape, kernel_size=kernel_size)

    fwd = jax.jit(functools.partial(forward, kernel_size=kernel_size,
                                    label_length=label_length))
    out = fwd(prepared, x)
    out = jax.block_until_ready(out)
    assert out.shape == (batch, label_length), out.shape
    assert bool(jnp.all(jnp.isfinite(out)))
    print("KERNEL_OK")
</pallas_src>

<mosaic_0001>
module attributes {stable_mosaic.version = 11 : i64} {
  func.func @_conv_relu_pool_kernel(%arg0: i32, %arg1: memref<2x8x2x8x6xbf16, #tpu.memory_space<vmem>>, %arg2: memref<27x16xbf16, #tpu.memory_space<vmem>>, %arg3: memref<1x16xf32, #tpu.memory_space<vmem>>, %arg4: memref<2x7x7x16xbf16, #tpu.memory_space<vmem>>) attributes {dimension_semantics = [#tpu.dimension_semantics<parallel>], iteration_bounds = array<i64: 1>, scalar_prefetch = 0 : i64, scratch_operands = 0 : i64, tpu.core_type = #tpu.core_type<tc>, window_params = [{transform_indices = @transform_0, window_bounds = array<i64: 2, 8, 2, 8, 6>}, {pipeline_mode = #tpu.pipeline_mode<synchronous>, transform_indices = @transform_1, window_bounds = array<i64: 27, 16>}, {pipeline_mode = #tpu.pipeline_mode<synchronous>, transform_indices = @transform_2, window_bounds = array<i64: 1, 16>}, {transform_indices = @transform_3, window_bounds = array<i64: 2, 7, 7, 16>}]} {
    %c0 = arith.constant 0 : index
    %c0_0 = arith.constant 0 : index
    %0 = vector.load %arg2[%c0, %c0_0] : memref<27x16xbf16, #tpu.memory_space<vmem>>, vector<27x16xbf16>
    %1 = vector.shape_cast %0 : vector<27x16xbf16> to vector<1x27x16xbf16>
    %2 = vector.broadcast %1 : vector<1x27x16xbf16> to vector<7x27x16xbf16>
    %c0_1 = arith.constant 0 : index
    %c0_2 = arith.constant 0 : index
    %3 = vector.load %arg3[%c0_1, %c0_2] : memref<1x16xf32, #tpu.memory_space<vmem>>, vector<1x16xf32>
    %c0_3 = arith.constant 0 : index
    %c0_4 = arith.constant 0 : index
    %c0_5 = arith.constant 0 : index
    %c0_6 = arith.constant 0 : index
    %c0_7 = arith.constant 0 : index
    %4 = vector.load %arg1[%c0_3, %c0_4, %c0_5, %c0_6, %c0_7] : memref<2x8x2x8x6xbf16, #tpu.memory_space<vmem>>, vector<1x7x1x7x3xbf16>
    %5 = vector.shape_cast %4 : vector<1x7x1x7x3xbf16> to vector<7x7x3xbf16>
    %c0_8 = arith.constant 0 : index
    %c0_9 = arith.constant 0 : index
    %c0_10 = arith.constant 0 : index
    %c0_11 = arith.constant 0 : index
    %c3 = arith.constant 3 : index
    %6 = vector.load %arg1[%c0_8, %c0_9, %c0_10, %c0_11, %c3] : memref<2x8x2x8x6xbf16, #tpu.memory_space<vmem>>, vector<1x7x1x7x3xbf16>
    %7 = vector.shape_cast %6 : vector<1x7x1x7x3xbf16> to vector<7x7x3xbf16>
    %c0_12 = arith.constant 0 : index
    %c0_13 = arith.constant 0 : index
    %c0_14 = arith.constant 0 : index
    %c1 = arith.constant 1 : index
    %c0_15 = arith.constant 0 : index
    %8 = vector.load %arg1[%c0_12, %c0_13, %c0_14, %c1, %c0_15] : memref<2x8x2x8x6xbf16, #tpu.memory_space<vmem>>, vector<1x7x1x7x3xbf16>
    %9 = vector.shape_cast %8 : vector<1x7x1x7x3xbf16> to vector<7x7x3xbf16>
    %c0_16 = arith.constant 0 : index
    %c0_17 = arith.constant 0 : index
    %c1_18 = arith.constant 1 : index
    %c0_19 = arith.constant 0 : index
    %c0_20 = arith.constant 0 : index
    %10 = vector.load %arg1[%c0_16, %c0_17, %c1_18, %c0_19, %c0_20] : memref<2x8x2x8x6xbf16, #tpu.memory_space<vmem>>, vector<1x7x1x7x3xbf16>
    %11 = vector.shape_cast %10 : vector<1x7x1x7x3xbf16> to vector<7x7x3xbf16>
    %c0_21 = arith.constant 0 : index
    %c0_22 = arith.constant 0 : index
    %c1_23 = arith.constant 1 : index
    %c0_24 = arith.constant 0 : index
    %c3_25 = arith.constant 3 : index
    %12 = vector.load %arg1[%c0_21, %c0_22, %c1_23, %c0_24, %c3_25] : memref<2x8x2x8x6xbf16, #tpu.memory_space<vmem>>, vector<1x7x1x7x3xbf16>
    %13 = vector.shape_cast %12 : vector<1x7x1x7x3xbf16> to vector<7x7x3xbf16>
    %c0_26 = arith.constant 0 : index
    %c0_27 = arith.constant 0 : index
    %c1_28 = arith.constant 1 : index
    %c1_29 = arith.constant 1 : index
    %c0_30 = arith.constant 0 : index
    %14 = vector.load %arg1[%c0_26, %c0_27, %c1_28, %c1_29, %c0_30] : memref<2x8x2x8x6xbf16, #tpu.memory_space<vmem>>, vector<1x7x1x7x3xbf16>
    %15 = vector.shape_cast %14 : vector<1x7x1x7x3xbf16> to vector<7x7x3xbf16>
    %c0_31 = arith.constant 0 : index
    %c1_32 = arith.constant 1 : index
    %c0_33 = arith.constant 0 : index
    %c0_34 = arith.constant 0 : index
    %c0_35 = arith.constant 0 : index
    %16 = vector.load %arg1[%c0_31, %c1_32, %c0_33, %c0_34, %c0_35] : memref<2x8x2x8x6xbf16, #tpu.memory_space<vmem>>, vector<1x7x1x7x3xbf16>
    %17 = vector.shape_cast %16 : vector<1x7x1x7x3xbf16> to vector<7x7x3xbf16>
    %c0_36 = arith.constant 0 : index
    %c1_37 = arith.constant 1 : index
    %c0_38 = arith.constant 0 : index
    %c0_39 = arith.constant 0 : index
    %c3_40 = arith.constant 3 : index
    %18 = vector.load %arg1[%c0_36, %c1_37, %c0_38, %c0_39, %c3_40] : memref<2x8x2x8x6xbf16, #tpu.memory_space<vmem>>, vector<1x7x1x7x3xbf16>
    %19 = vector.shape_cast %18 : vector<1x7x1x7x3xbf16> to vector<7x7x3xbf16>
    %c0_41 = arith.constant 0 : index
    %c1_42 = arith.constant 1 : index
    %c0_43 = arith.constant 0 : index
    %c1_44 = arith.constant 1 : index
    %c0_45 = arith.constant 0 : index
    %20 = vector.load %arg1[%c0_41, %c1_42, %c0_43, %c1_44, %c0_45] : memref<2x8x2x8x6xbf16, #tpu.memory_space<vmem>>, vector<1x7x1x7x3xbf16>
    %21 = vector.shape_cast %20 : vector<1x7x1x7x3xbf16> to vector<7x7x3xbf16>
    %22 = tpu.concatenate %5, %7, %9, %11, %13, %15, %17, %19, %21 in 2 : vector<7x7x3xbf16>, vector<7x7x3xbf16>, vector<7x7x3xbf16>, vector<7x7x3xbf16>, vector<7x7x3xbf16>, vector<7x7x3xbf16>, vector<7x7x3xbf16>, vector<7x7x3xbf16>, vector<7x7x3xbf16> -> vector<7x7x27xbf16>
    %cst = arith.constant dense<0.000000e+00> : vector<7x7x16xf32>
    %23 = tpu.matmul %22, %2, %cst {dimension_numbers = #tpu.dot_dimension_numbers<[2], [1], [1], [2], [0, 0, 0, 1, 1, 2], [0], [0]>} : vector<7x7x27xbf16>, vector<7x27x16xbf16>, vector<7x7x16xf32> -> vector<7x7x16xf32>
    %c0_46 = arith.constant 0 : index
    %c0_47 = arith.constant 0 : index
    %c0_48 = arith.constant 0 : index
    %c0_49 = arith.constant 0 : index
    %c3_50 = arith.constant 3 : index
    %24 = vector.load %arg1[%c0_46, %c0_47, %c0_48, %c0_49, %c3_50] : memref<2x8x2x8x6xbf16, #tpu.memory_space<vmem>>, vector<1x7x1x7x3xbf16>
    %25 = vector.shape_cast %24 : vector<1x7x1x7x3xbf16> to vector<7x7x3xbf16>
    %c0_51 = arith.constant 0 : index
    %c0_52 = arith.constant 0 : index
    %c0_53 = arith.constant 0 : index
    %c1_54 = arith.constant 1 : index
    %c0_55 = arith.constant 0 : index
    %26 = vector.load %arg1[%c0_51, %c0_52, %c0_53, %c1_54, %c0_55] : memref<2x8x2x8x6xbf16, #tpu.memory_space<vmem>>, vector<1x7x1x7x3xbf16>
    %27 = vector.shape_cast %26 : vector<1x7x1x7x3xbf16> to vector<7x7x3xbf16>
    %c0_56 = arith.constant 0 : index
    %c0_57 = arith.constant 0 : index
    %c0_58 = arith.constant 0 : index
    %c1_59 = arith.constant 1 : index
    %c3_60 = arith.constant 3 : index
    %28 = vector.load %arg1[%c0_56, %c0_57, %c0_58, %c1_59, %c3_60] : memref<2x8x2x8x6xbf16, #tpu.memory_space<vmem>>, vector<1x7x1x7x3xbf16>
    %29 = vector.shape_cast %28 : vector<1x7x1x7x3xbf16> to vector<7x7x3xbf16>
    %c0_61 = arith.constant 0 : index
    %c0_62 = arith.constant 0 : index
    %c1_63 = arith.constant 1 : index
    %c0_64 = arith.constant 0 : index
    %c3_65 = arith.constant 3 : index
    %30 = vector.load %arg1[%c0_61, %c0_62, %c1_63, %c0_64, %c3_65] : memref<2x8x2x8x6xbf16, #tpu.memory_space<vmem>>, vector<1x7x1x7x3xbf16>
    %31 = vector.shape_cast %30 : vector<1x7x1x7x3xbf16> to vector<7x7x3xbf16>
    %c0_66 = arith.constant 0 : index
    %c0_67 = arith.constant 0 : index
    %c1_68 = arith.constant 1 : index
    %c1_69 = arith.constant 1 : index
    %c0_70 = arith.constant 0 : index
    %32 = vector.load %arg1[%c0_66, %c0_67, %c1_68, %c1_69, %c0_70] : memref<2x8x2x8x6xbf16, #tpu.memory_space<vmem>>, vector<1x7x1x7x3xbf16>
    %33 = vector.shape_cast %32 : vector<1x7x1x7x3xbf16> to vector<7x7x3xbf16>
    %c0_71 = arith.constant 0 : index
    %c0_72 = arith.constant 0 : index
    %c1_73 = arith.constant 1 : index
    %c1_74 = arith.constant 1 : index
    %c3_75 = arith.constant 3 : index
    %34 = vector.load %arg1[%c0_71, %c0_72, %c1_73, %c1_74, %c3_75] : memref<2x8x2x8x6xbf16, #tpu.memory_space<vmem>>, vector<1x7x1x7x3xbf16>
    %35 = vector.shape_cast %34 : vector<1x7x1x7x3xbf16> to vector<7x7x3xbf16>
    %c0_76 = arith.constant 0 : index
    %c1_77 = arith.constant 1 : index
    %c0_78 = arith.constant 0 : index
    %c0_79 = arith.constant 0 : index
    %c3_80 = arith.constant 3 : index
    %36 = vector.load %arg1[%c0_76, %c1_77, %c0_78, %c0_79, %c3_80] : memref<2x8x2x8x6xbf16, #tpu.memory_space<vmem>>, vector<1x7x1x7x3xbf16>
    %37 = vector.shape_cast %36 : vector<1x7x1x7x3xbf16> to vector<7x7x3xbf16>
    %c0_81 = arith.constant 0 : index
    %c1_82 = arith.constant 1 : index
    %c0_83 = arith.constant 0 : index
    %c1_84 = arith.constant 1 : index
    %c0_85 = arith.constant 0 : index
    %38 = vector.load %arg1[%c0_81, %c1_82, %c0_83, %c1_84, %c0_85] : memref<2x8x2x8x6xbf16, #tpu.memory_space<vmem>>, vector<1x7x1x7x3xbf16>
    %39 = vector.shape_cast %38 : vector<1x7x1x7x3xbf16> to vector<7x7x3xbf16>
    %c0_86 = arith.constant 0 : index
    %c1_87 = arith.constant 1 : index
    %c0_88 = arith.constant 0 : index
    %c1_89 = arith.constant 1 : index
    %c3_90 = arith.constant 3 : index
    %40 = vector.load %arg1[%c0_86, %c1_87, %c0_88, %c1_89, %c3_90] : memref<2x8x2x8x6xbf16, #tpu.memory_space<vmem>>, vector<1x7x1x7x3xbf16>
    %41 = vector.shape_cast %40 : vector<1x7x1x7x3xbf16> to vector<7x7x3xbf16>
    %42 = tpu.concatenate %25, %27, %29, %31, %33, %35, %37, %39, %41 in 2 : vector<7x7x3xbf16>, vector<7x7x3xbf16>, vector<7x7x3xbf16>, vector<7x7x3xbf16>, vector<7x7x3xbf16>, vector<7x7x3xbf16>, vector<7x7x3xbf16>, vector<7x7x3xbf16>, vector<7x7x3xbf16> -> vector<7x7x27xbf16>
    %cst_91 = arith.constant dense<0.000000e+00> : vector<7x7x16xf32>
    %43 = tpu.matmul %42, %2, %cst_91 {dimension_numbers = #tpu.dot_dimension_numbers<[2], [1], [1], [2], [0, 0, 0, 1, 1, 2], [0], [0]>} : vector<7x7x27xbf16>, vector<7x27x16xbf16>, vector<7x7x16xf32> -> vector<7x7x16xf32>
    %44 = arith.maximumf %23, %43 : vector<7x7x16xf32>
    %c0_92 = arith.constant 0 : index
    %c0_93 = arith.constant 0 : index
    %c1_94 = arith.constant 1 : index
    %c0_95 = arith.constant 0 : index
    %c0_96 = arith.constant 0 : index
    %45 = vector.load %arg1[%c0_92, %c0_93, %c1_94, %c0_95, %c0_96] : memref<2x8x2x8x6xbf16, #tpu.memory_space<vmem>>, vector<1x7x1x7x3xbf16>
    %46 = vector.shape_cast %45 : vector<1x7x1x7x3xbf16> to vector<7x7x3xbf16>
    %c0_97 = arith.constant 0 : index
    %c0_98 = arith.constant 0 : index
    %c1_99 = arith.constant 1 : index
    %c0_100 = arith.constant 0 : index
    %c3_101 = arith.constant 3 : index
    %47 = vector.load %arg1[%c0_97, %c0_98, %c1_99, %c0_100, %c3_101] : memref<2x8x2x8x6xbf16, #tpu.memory_space<vmem>>, vector<1x7x1x7x3xbf16>
    %48 = vector.shape_cast %47 : vector<1x7x1x7x3xbf16> to vector<7x7x3xbf16>
    %c0_102 = arith.constant 0 : index
    %c0_103 = arith.constant 0 : index
    %c1_104 = arith.constant 1 : index
    %c1_105 = arith.constant 1 : index
    %c0_106 = arith.constant 0 : index
    %49 = vector.load %arg1[%c0_102, %c0_103, %c1_104, %c1_105, %c0_106] : memref<2x8x2x8x6xbf16, #tpu.memory_space<vmem>>, vector<1x7x1x7x3xbf16>
    %50 = vector.shape_cast %49 : vector<1x7x1x7x3xbf16> to vector<7x7x3xbf16>
    %c0_107 = arith.constant 0 : index
    %c1_108 = arith.constant 1 : index
    %c0_109 = arith.constant 0 : index
    %c0_110 = arith.constant 0 : index
    %c0_111 = arith.constant 0 : index
    %51 = vector.load %arg1[%c0_107, %c1_108, %c0_109, %c0_110, %c0_111] : memref<2x8x2x8x6xbf16, #tpu.memory_space<vmem>>, vector<1x7x1x7x3xbf16>
    %52 = vector.shape_cast %51 : vector<1x7x1x7x3xbf16> to vector<7x7x3xbf16>
    %c0_112 = arith.constant 0 : index
    %c1_113 = arith.constant 1 : index
    %c0_114 = arith.constant 0 : index
    %c0_115 = arith.constant 0 : index
    %c3_116 = arith.constant 3 : index
    %53 = vector.load %arg1[%c0_112, %c1_113, %c0_114, %c0_115, %c3_116] : memref<2x8x2x8x6xbf16, #tpu.memory_space<vmem>>, vector<1x7x1x7x3xbf16>
    %54 = vector.shape_cast %53 : vector<1x7x1x7x3xbf16> to vector<7x7x3xbf16>
    %c0_117 = arith.constant 0 : index
    %c1_118 = arith.constant 1 : index
    %c0_119 = arith.constant 0 : index
    %c1_120 = arith.constant 1 : index
    %c0_121 = arith.constant 0 : index
    %55 = vector.load %arg1[%c0_117, %c1_118, %c0_119, %c1_120, %c0_121] : memref<2x8x2x8x6xbf16, #tpu.memory_space<vmem>>, vector<1x7x1x7x3xbf16>
    %56 = vector.shape_cast %55 : vector<1x7x1x7x3xbf16> to vector<7x7x3xbf16>
    %c0_122 = arith.constant 0 : index
    %c1_123 = arith.constant 1 : index
    %c1_124 = arith.constant 1 : index
    %c0_125 = arith.constant 0 : index
    %c0_126 = arith.constant 0 : index
    %57 = vector.load %arg1[%c0_122, %c1_123, %c1_124, %c0_125, %c0_126] : memref<2x8x2x8x6xbf16, #tpu.memory_space<vmem>>, vector<1x7x1x7x3xbf16>
    %58 = vector.shape_cast %57 : vector<1x7x1x7x3xbf16> to vector<7x7x3xbf16>
    %c0_127 = arith.constant 0 : index
    %c1_128 = arith.constant 1 : index
    %c1_129 = arith.constant 1 : index
    %c0_130 = arith.constant 0 : index
    %c3_131 = arith.constant 3 : index
    %59 = vector.load %arg1[%c0_127, %c1_128, %c1_129, %c0_130, %c3_131] : memref<2x8x2x8x6xbf16, #tpu.memory_space<vmem>>, vector<1x7x1x7x3xbf16>
    %60 = vector.shape_cast %59 : vector<1x7x1x7x3xbf16> to vector<7x7x3xbf16>
    %c0_132 = arith.constant 0 : index
    %c1_133 = arith.constant 1 : index
    %c1_134 = arith.constant 1 : index
    %c1_135 = arith.constant 1 : index
    %c0_136 = arith.constant 0 : index
    %61 = vector.load %arg1[%c0_132, %c1_133, %c1_134, %c1_135, %c0_136] : memref<2x8x2x8x6xbf16, #tpu.memory_space<vmem>>, vector<1x7x1x7x3xbf16>
    %62 = vector.shape_cast %61 : vector<1x7x1x7x3xbf16> to vector<7x7x3xbf16>
    %63 = tpu.concatenate %46, %48, %50, %52, %54, %56, %58, %60, %62 in 2 : vector<7x7x3xbf16>, vector<7x7x3xbf16>, vector<7x7x3xbf16>, vector<7x7x3xbf16>, vector<7x7x3xbf16>, vector<7x7x3xbf16>, vector<7x7x3xbf16>, vector<7x7x3xbf16>, vector<7x7x3xbf16> -> vector<7x7x27xbf16>
    %cst_137 = arith.constant dense<0.000000e+00> : vector<7x7x16xf32>
    %64 = tpu.matmul %63, %2, %cst_137 {dimension_numbers = #tpu.dot_dimension_numbers<[2], [1], [1], [2], [0, 0, 0, 1, 1, 2], [0], [0]>} : vector<7x7x27xbf16>, vector<7x27x16xbf16>, vector<7x7x16xf32> -> vector<7x7x16xf32>
    %65 = arith.maximumf %44, %64 : vector<7x7x16xf32>
    %c0_138 = arith.constant 0 : index
    %c0_139 = arith.constant 0 : index
    %c1_140 = arith.constant 1 : index
    %c0_141 = arith.constant 0 : index
    %c3_142 = arith.constant 3 : index
    %66 = vector.load %arg1[%c0_138, %c0_139, %c1_140, %c0_141, %c3_142] : memref<2x8x2x8x6xbf16, #tpu.memory_space<vmem>>, vector<1x7x1x7x3xbf16>
    %67 = vector.shape_cast %66 : vector<1x7x1x7x3xbf16> to vector<7x7x3xbf16>
    %c0_143 = arith.constant 0 : index
    %c0_144 = arith.constant 0 : index
    %c1_145 = arith.constant 1 : index
    %c1_146 = arith.constant 1 : index
    %c0_147 = arith.constant 0 : index
    %68 = vector.load %arg1[%c0_143, %c0_144, %c1_145, %c1_146, %c0_147] : memref<2x8x2x8x6xbf16, #tpu.memory_space<vmem>>, vector<1x7x1x7x3xbf16>
    %69 = vector.shape_cast %68 : vector<1x7x1x7x3xbf16> to vector<7x7x3xbf16>
    %c0_148 = arith.constant 0 : index
    %c0_149 = arith.constant 0 : index
    %c1_150 = arith.constant 1 : index
    %c1_151 = arith.constant 1 : index
    %c3_152 = arith.constant 3 : index
    %70 = vector.load %arg1[%c0_148, %c0_149, %c1_150, %c1_151, %c3_152] : memref<2x8x2x8x6xbf16, #tpu.memory_space<vmem>>, vector<1x7x1x7x3xbf16>
    %71 = vector.shape_cast %70 : vector<1x7x1x7x3xbf16> to vector<7x7x3xbf16>
    %c0_153 = arith.constant 0 : index
    %c1_154 = arith.constant 1 : index
    %c0_155 = arith.constant 0 : index
    %c0_156 = arith.constant 0 : index
    %c3_157 = arith.constant 3 : index
    %72 = vector.load %arg1[%c0_153, %c1_154, %c0_155, %c0_156, %c3_157] : memref<2x8x2x8x6xbf16, #tpu.memory_space<vmem>>, vector<1x7x1x7x3xbf16>
    %73 = vector.shape_cast %72 : vector<1x7x1x7x3xbf16> to vector<7x7x3xbf16>
    %c0_158 = arith.constant 0 : index
    %c1_159 = arith.constant 1 : index
    %c0_160 = arith.constant 0 : index
    %c1_161 = arith.constant 1 : index
    %c0_162 = arith.constant 0 : index
    %74 = vector.load %arg1[%c0_158, %c1_159, %c0_160, %c1_161, %c0_162] : memref<2x8x2x8x6xbf16, #tpu.memory_space<vmem>>, vector<1x7x1x7x3xbf16>
    %75 = vector.shape_cast %74 : vector<1x7x1x7x3xbf16> to vector<7x7x3xbf16>
    %c0_163 = arith.constant 0 : index
    %c1_164 = arith.constant 1 : index
    %c0_165 = arith.constant 0 : index
    %c1_166 = arith.constant 1 : index
    %c3_167 = arith.constant 3 : index
    %76 = vector.load %arg1[%c0_163, %c1_164, %c0_165, %c1_166, %c3_167] : memref<2x8x2x8x6xbf16, #tpu.memory_space<vmem>>, vector<1x7x1x7x3xbf16>
    %77 = vector.shape_cast %76 : vector<1x7x1x7x3xbf16> to vector<7x7x3xbf16>
    %c0_168 = arith.constant 0 : index
    %c1_169 = arith.constant 1 : index
    %c1_170 = arith.constant 1 : index
    %c0_171 = arith.constant 0 : index
    %c3_172 = arith.constant 3 : index
    %78 = vector.load %arg1[%c0_168, %c1_169, %c1_170, %c0_171, %c3_172] : memref<2x8x2x8x6xbf16, #tpu.memory_space<vmem>>, vector<1x7x1x7x3xbf16>
    %79 = vector.shape_cast %78 : vector<1x7x1x7x3xbf16> to vector<7x7x3xbf16>
    %c0_173 = arith.constant 0 : index
    %c1_174 = arith.constant 1 : index
    %c1_175 = arith.constant 1 : index
    %c1_176 = arith.constant 1 : index
    %c0_177 = arith.constant 0 : index
    %80 = vector.load %arg1[%c0_173, %c1_174, %c1_175, %c1_176, %c0_177] : memref<2x8x2x8x6xbf16, #tpu.memory_space<vmem>>, vector<1x7x1x7x3xbf16>
    %81 = vector.shape_cast %80 : vector<1x7x1x7x3xbf16> to vector<7x7x3xbf16>
    %c0_178 = arith.constant 0 : index
    %c1_179 = arith.constant 1 : index
    %c1_180 = arith.constant 1 : index
    %c1_181 = arith.constant 1 : index
    %c3_182 = arith.constant 3 : index
    %82 = vector.load %arg1[%c0_178, %c1_179, %c1_180, %c1_181, %c3_182] : memref<2x8x2x8x6xbf16, #tpu.memory_space<vmem>>, vector<1x7x1x7x3xbf16>
    %83 = vector.shape_cast %82 : vector<1x7x1x7x3xbf16> to vector<7x7x3xbf16>
    %84 = tpu.concatenate %67, %69, %71, %73, %75, %77, %79, %81, %83 in 2 : vector<7x7x3xbf16>, vector<7x7x3xbf16>, vector<7x7x3xbf16>, vector<7x7x3xbf16>, vector<7x7x3xbf16>, vector<7x7x3xbf16>, vector<7x7x3xbf16>, vector<7x7x3xbf16>, vector<7x7x3xbf16> -> vector<7x7x27xbf16>
    %cst_183 = arith.constant dense<0.000000e+00> : vector<7x7x16xf32>
    %85 = tpu.matmul %84, %2, %cst_183 {dimension_numbers = #tpu.dot_dimension_numbers<[2], [1], [1], [2], [0, 0, 0, 1, 1, 2], [0], [0]>} : vector<7x7x27xbf16>, vector<7x27x16xbf16>, vector<7x7x16xf32> -> vector<7x7x16xf32>
    %86 = arith.maximumf %65, %85 : vector<7x7x16xf32>
    %87 = vector.shape_cast %3 : vector<1x16xf32> to vector<1x1x16xf32>
    %88 = vector.broadcast %87 : vector<1x1x16xf32> to vector<7x7x16xf32>
    %89 = arith.addf %86, %88 : vector<7x7x16xf32>
    %cst_184 = arith.constant 0.000000e+00 : f32
    %90 = vector.broadcast %cst_184 : f32 to vector<7x7x16xf32>
    %91 = arith.maximumf %89, %90 : vector<7x7x16xf32>
    %92 = arith.truncf %91 : vector<7x7x16xf32> to vector<7x7x16xbf16>
    %c0_185 = arith.constant 0 : index
    %c0_186 = arith.constant 0 : index
    %c0_187 = arith.constant 0 : index
    %c0_188 = arith.constant 0 : index
    %93 = vector.load %arg4[%c0_185, %c0_186, %c0_187, %c0_188] : memref<2x7x7x16xbf16, #tpu.memory_space<vmem>>, vector<1x7x7x16xbf16>
    %94 = vector.shape_cast %93 : vector<1x7x7x16xbf16> to vector<7x7x16xbf16>
    %95 = vector.shape_cast %92 : vector<7x7x16xbf16> to vector<1x7x7x16xbf16>
    tpu.vector_store %arg4[%c0_185, %c0_186, %c0_187, %c0_188], %95 {strides = array<i32>} : memref<2x7x7x16xbf16, #tpu.memory_space<vmem>>, vector<1x7x7x16xbf16>,
    %c1_189 = arith.constant 1 : index
    %c0_190 = arith.constant 0 : index
    %c0_191 = arith.constant 0 : index
    %c0_192 = arith.constant 0 : index
    %c0_193 = arith.constant 0 : index
    %96 = vector.load %arg1[%c1_189, %c0_190, %c0_191, %c0_192, %c0_193] : memref<2x8x2x8x6xbf16, #tpu.memory_space<vmem>>, vector<1x7x1x7x3xbf16>
    %97 = vector.shape_cast %96 : vector<1x7x1x7x3xbf16> to vector<7x7x3xbf16>
    %c1_194 = arith.constant 1 : index
    %c0_195 = arith.constant 0 : index
    %c0_196 = arith.constant 0 : index
    %c0_197 = arith.constant 0 : index
    %c3_198 = arith.constant 3 : index
    %98 = vector.load %arg1[%c1_194, %c0_195, %c0_196, %c0_197, %c3_198] : memref<2x8x2x8x6xbf16, #tpu.memory_space<vmem>>, vector<1x7x1x7x3xbf16>
    %99 = vector.shape_cast %98 : vector<1x7x1x7x3xbf16> to vector<7x7x3xbf16>
    %c1_199 = arith.constant 1 : index
    %c0_200 = arith.constant 0 : index
    %c0_201 = arith.constant 0 : index
    %c1_202 = arith.constant 1 : index
    %c0_203 = arith.constant 0 : index
    %100 = vector.load %arg1[%c1_199, %c0_200, %c0_201, %c1_202, %c0_203] : memref<2x8x2x8x6xbf16, #tpu.memory_space<vmem>>, vector<1x7x1x7x3xbf16>
    %101 = vector.shape_cast %100 : vector<1x7x1x7x3xbf16> to vector<7x7x3xbf16>
    %c1_204 = arith.constant 1 : index
    %c0_205 = arith.constant 0 : index
    %c1_206 = arith.constant 1 : index
    %c0_207 = arith.constant 0 : index
    %c0_208 = arith.constant 0 : index
    %102 = vector.load %arg1[%c1_204, %c0_205, %c1_206, %c0_207, %c0_208] : memref<2x8x2x8x6xbf16, #tpu.memory_space<vmem>>, vector<1x7x1x7x3xbf16>
    %103 = vector.shape_cast %102 : vector<1x7x1x7x3xbf16> to vector<7x7x3xbf16>
    %c1_209 = arith.constant 1 : index
    %c0_210 = arith.constant 0 : index
    %c1_211 = arith.constant 1 : index
    %c0_212 = arith.constant 0 : index
    %c3_213 = arith.constant 3 : index
    %104 = vector.load %arg1[%c1_209, %c0_210, %c1_211, %c0_212, %c3_213] : memref<2x8x2x8x6xbf16, #tpu.memory_space<vmem>>, vector<1x7x1x7x3xbf16>
    %105 = vector.shape_cast %104 : vector<1x7x1x7x3xbf16> to vector<7x7x3xbf16>
    %c1_214 = arith.constant 1 : index
    %c0_215 = arith.constant 0 : index
    %c1_216 = arith.constant 1 : index
    %c1_217 = arith.constant 1 : index
    %c0_218 = arith.constant 0 : index
    %106 = vector.load %arg1[%c1_214, %c0_215, %c1_216, %c1_217, %c0_218] : memref<2x8x2x8x6xbf16, #tpu.memory_space<vmem>>, vector<1x7x1x7x3xbf16>
    %107 = vector.shape_cast %106 : vector<1x7x1x7x3xbf16> to vector<7x7x3xbf16>
    %c1_219 = arith.constant 1 : index
    %c1_220 = arith.constant 1 : index
    %c0_221 = arith.constant 0 : index
    %c0_222 = arith.constant 0 : index
    %c0_223 = arith.constant 0 : index
    %108 = vector.load %arg1[%c1_219, %c1_220, %c0_221, %c0_222, %c0_223] : memref<2x8x2x8x6xbf16, #tpu.memory_space<vmem>>, vector<1x7x1x7x3xbf16>
    %109 = vector.shape_cast %108 : vector<1x7x1x7x3xbf16> to vector<7x7x3xbf16>
    %c1_224 = arith.constant 1 : index
    %c1_225 = arith.constant 1 : index
    %c0_226 = arith.constant 0 : index
    %c0_227 = arith.constant 0 : index
    %c3_228 = arith.constant 3 : index
    %110 = vector.load %arg1[%c1_224, %c1_225, %c0_226, %c0_227, %c3_228] : memref<2x8x2x8x6xbf16, #tpu.memory_space<vmem>>, vector<1x7x1x7x3xbf16>
    %111 = vector.shape_cast %110 : vector<1x7x1x7x3xbf16> to vector<7x7x3xbf16>
    %c1_229 = arith.constant 1 : index
    %c1_230 = arith.constant 1 : index
    %c0_231 = arith.constant 0 : index
    %c1_232 = arith.constant 1 : index
    %c0_233 = arith.constant 0 : index
    %112 = vector.load %arg1[%c1_229, %c1_230, %c0_231, %c1_232, %c0_233] : memref<2x8x2x8x6xbf16, #tpu.memory_space<vmem>>, vector<1x7x1x7x3xbf16>
    %113 = vector.shape_cast %112 : vector<1x7x1x7x3xbf16> to vector<7x7x3xbf16>
    %114 = tpu.concatenate %97, %99, %101, %103, %105, %107, %109, %111, %113 in 2 : vector<7x7x3xbf16>, vector<7x7x3xbf16>, vector<7x7x3xbf16>, vector<7x7x3xbf16>, vector<7x7x3xbf16>, vector<7x7x3xbf16>, vector<7x7x3xbf16>, vector<7x7x3xbf16>, vector<7x7x3xbf16> -> vector<7x7x27xbf16>
    %cst_234 = arith.constant dense<0.000000e+00> : vector<7x7x16xf32>
    %115 = tpu.matmul %114, %2, %cst_234 {dimension_numbers = #tpu.dot_dimension_numbers<[2], [1], [1], [2], [0, 0, 0, 1, 1, 2], [0], [0]>} : vector<7x7x27xbf16>, vector<7x27x16xbf16>, vector<7x7x16xf32> -> vector<7x7x16xf32>
    %c1_235 = arith.constant 1 : index
    %c0_236 = arith.constant 0 : index
    %c0_237 = arith.constant 0 : index
    %c0_238 = arith.constant 0 : index
    %c3_239 = arith.constant 3 : index
    %116 = vector.load %arg1[%c1_235, %c0_236, %c0_237, %c0_238, %c3_239] : memref<2x8x2x8x6xbf16, #tpu.memory_space<vmem>>, vector<1x7x1x7x3xbf16>
    %117 = vector.shape_cast %116 : vector<1x7x1x7x3xbf16> to vector<7x7x3xbf16>
    %c1_240 = arith.constant 1 : index
    %c0_241 = arith.constant 0 : index
    %c0_242 = arith.constant 0 : index
    %c1_243 = arith.constant 1 : index
    %c0_244 = arith.constant 0 : index
    %118 = vector.load %arg1[%c1_240, %c0_241, %c0_242, %c1_243, %c0_244] : memref<2x8x2x8x6xbf16, #tpu.memory_space<vmem>>, vector<1x7x1x7x3xbf16>
    %119 = vector.shape_cast %118 : vector<1x7x1x7x3xbf16> to vector<7x7x3xbf16>
    %c1_245 = arith.constant 1 : index
    %c0_246 = arith.constant 0 : index
    %c0_247 = arith.constant 0 : index
    %c1_248 = arith.constant 1 : index
    %c3_249 = arith.constant 3 : index
    %120 = vector.load %arg1[%c1_245, %c0_246, %c0_247, %c1_248, %c3_249] : memref<2x8x2x8x6xbf16, #tpu.memory_space<vmem>>, vector<1x7x1x7x3xbf16>
    %121 = vector.shape_cast %120 : vector<1x7x1x7x3xbf16> to vector<7x7x3xbf16>
    %c1_250 = arith.constant 1 : index
    %c0_251 = arith.constant 0 : index
    %c1_252 = arith.constant 1 : index
    %c0_253 = arith.constant 0 : index
    %c3_254 = arith.constant 3 : index
    %122 = vector.load %arg1[%c1_250, %c0_251, %c1_252, %c0_253, %c3_254] : memref<2x8x2x8x6xbf16, #tpu.memory_space<vmem>>, vector<1x7x1x7x3xbf16>
    %123 = vector.shape_cast %122 : vector<1x7x1x7x3xbf16> to vector<7x7x3xbf16>
    %c1_255 = arith.constant 1 : index
    %c0_256 = arith.constant 0 : index
    %c1_257 = arith.constant 1 : index
    %c1_258 = arith.constant 1 : index
    %c0_259 = arith.constant 0 : index
    %124 = vector.load %arg1[%c1_255, %c0_256, %c1_257, %c1_258, %c0_259] : memref<2x8x2x8x6xbf16, #tpu.memory_space<vmem>>, vector<1x7x1x7x3xbf16>
    %125 = vector.shape_cast %124 : vector<1x7x1x7x3xbf16> to vector<7x7x3xbf16>
    %c1_260 = arith.constant 1 : index
    %c0_261 = arith.constant 0 : index
    %c1_262 = arith.constant 1 : index
    %c1_263 = arith.constant 1 : index
    %c3_264 = arith.constant 3 : index
    %126 = vector.load %arg1[%c1_260, %c0_261, %c1_262, %c1_263, %c3_264] : memref<2x8x2x8x6xbf16, #tpu.memory_space<vmem>>, vector<1x7x1x7x3xbf16>
    %127 = vector.shape_cast %126 : vector<1x7x1x7x3xbf16> to vector<7x7x3xbf16>
    %c1_265 = arith.constant 1 : index
    %c1_266 = arith.constant 1 : index
    %c0_267 = arith.constant 0 : index
    %c0_268 = arith.constant 0 : index
    %c3_269 = arith.constant 3 : index
    %128 = vector.load %arg1[%c1_265, %c1_266, %c0_267, %c0_268, %c3_269] : memref<2x8x2x8x6xbf16, #tpu.memory_space<vmem>>, vector<1x7x1x7x3xbf16>
    %129 = vector.shape_cast %128 : vector<1x7x1x7x3xbf16> to vector<7x7x3xbf16>
    %c1_270 = arith.constant 1 : index
    %c1_271 = arith.constant 1 : index
    %c0_272 = arith.constant 0 : index
    %c1_273 = arith.constant 1 : index
    %c0_274 = arith.constant 0 : index
    %130 = vector.load %arg1[%c1_270, %c1_271, %c0_272, %c1_273, %c0_274] : memref<2x8x2x8x6xbf16, #tpu.memory_space<vmem>>, vector<1x7x1x7x3xbf16>
    %131 = vector.shape_cast %130 : vector<1x7x1x7x3xbf16> to vector<7x7x3xbf16>
    %c1_275 = arith.constant 1 : index
    %c1_276 = arith.constant 1 : index
    %c0_277 = arith.constant 0 : index
    %c1_278 = arith.constant 1 : index
    %c3_279 = arith.constant 3 : index
    %132 = vector.load %arg1[%c1_275, %c1_276, %c0_277, %c1_278, %c3_279] : memref<2x8x2x8x6xbf16, #tpu.memory_space<vmem>>, vector<1x7x1x7x3xbf16>
    %133 = vector.shape_cast %132 : vector<1x7x1x7x3xbf16> to vector<7x7x3xbf16>
    %134 = tpu.concatenate %117, %119, %121, %123, %125, %127, %129, %131, %133 in 2 : vector<7x7x3xbf16>, vector<7x7x3xbf16>, vector<7x7x3xbf16>, vector<7x7x3xbf16>, vector<7x7x3xbf16>, vector<7x7x3xbf16>, vector<7x7x3xbf16>, vector<7x7x3xbf16>, vector<7x7x3xbf16> -> vector<7x7x27xbf16>
    %cst_280 = arith.constant dense<0.000000e+00> : vector<7x7x16xf32>
    %135 = tpu.matmul %134, %2, %cst_280 {dimension_numbers = #tpu.dot_dimension_numbers<[2], [1], [1], [2], [0, 0, 0, 1, 1, 2], [0], [0]>} : vector<7x7x27xbf16>, vector<7x27x16xbf16>, vector<7x7x16xf32> -> vector<7x7x16xf32>
    %136 = arith.maximumf %115, %135 : vector<7x7x16xf32>
    %c1_281 = arith.constant 1 : index
    %c0_282 = arith.constant 0 : index
    %c1_283 = arith.constant 1 : index
    %c0_284 = arith.constant 0 : index
    %c0_285 = arith.constant 0 : index
    %137 = vector.load %arg1[%c1_281, %c0_282, %c1_283, %c0_284, %c0_285] : memref<2x8x2x8x6xbf16, #tpu.memory_space<vmem>>, vector<1x7x1x7x3xbf16>
    %138 = vector.shape_cast %137 : vector<1x7x1x7x3xbf16> to vector<7x7x3xbf16>
    %c1_286 = arith.constant 1 : index
    %c0_287 = arith.constant 0 : index
    %c1_288 = arith.constant 1 : index
    %c0_289 = arith.constant 0 : index
    %c3_290 = arith.constant 3 : index
    %139 = vector.load %arg1[%c1_286, %c0_287, %c1_288, %c0_289, %c3_290] : memref<2x8x2x8x6xbf16, #tpu.memory_space<vmem>>, vector<1x7x1x7x3xbf16>
    %140 = vector.shape_cast %139 : vector<1x7x1x7x3xbf16> to vector<7x7x3xbf16>
    %c1_291 = arith.constant 1 : index
    %c0_292 = arith.constant 0 : index
    %c1_293 = arith.constant 1 : index
    %c1_294 = arith.constant 1 : index
    %c0_295 = arith.constant 0 : index
    %141 = vector.load %arg1[%c1_291, %c0_292, %c1_293, %c1_294, %c0_295] : memref<2x8x2x8x6xbf16, #tpu.memory_space<vmem>>, vector<1x7x1x7x3xbf16>
    %142 = vector.shape_cast %141 : vector<1x7x1x7x3xbf16> to vector<7x7x3xbf16>
    %c1_296 = arith.constant 1 : index
    %c1_297 = arith.constant 1 : index
    %c0_298 = arith.constant 0 : index
    %c0_299 = arith.constant 0 : index
    %c0_300 = arith.constant 0 : index
    %143 = vector.load %arg1[%c1_296, %c1_297, %c0_298, %c0_299, %c0_300] : memref<2x8x2x8x6xbf16, #tpu.memory_space<vmem>>, vector<1x7x1x7x3xbf16>
    %144 = vector.shape_cast %143 : vector<1x7x1x7x3xbf16> to vector<7x7x3xbf16>
    %c1_301 = arith.constant 1 : index
    %c1_302 = arith.constant 1 : index
    %c0_303 = arith.constant 0 : index
    %c0_304 = arith.constant 0 : index
    %c3_305 = arith.constant 3 : index
    %145 = vector.load %arg1[%c1_301, %c1_302, %c0_303, %c0_304, %c3_305] : memref<2x8x2x8x6xbf16, #tpu.memory_space<vmem>>, vector<1x7x1x7x3xbf16>
    %146 = vector.shape_cast %145 : vector<1x7x1x7x3xbf16> to vector<7x7x3xbf16>
    %c1_306 = arith.constant 1 : index
    %c1_307 = arith.constant 1 : index
    %c0_308 = arith.constant 0 : index
    %c1_309 = arith.constant 1 : index
    %c0_310 = arith.constant 0 : index
    %147 = vector.load %arg1[%c1_306, %c1_307, %c0_308, %c1_309, %c0_310] : memref<2x8x2x8x6xbf16, #tpu.memory_space<vmem>>, vector<1x7x1x7x3xbf16>
    %148 = vector.shape_cast %147 : vector<1x7x1x7x3xbf16> to vector<7x7x3xbf16>
    %c1_311 = arith.constant 1 : index
    %c1_312 = arith.constant 1 : index
    %c1_313 = arith.constant 1 : index
    %c0_314 = arith.constant 0 : index
    %c0_315 = arith.constant 0 : index
    %149 = vector.load %arg1[%c1_311, %c1_312, %c1_313, %c0_314, %c0_315] : memref<2x8x2x8x6xbf16, #tpu.memory_space<vmem>>, vector<1x7x1x7x3xbf16>
    %150 = vector.shape_cast %149 : vector<1x7x1x7x3xbf16> to vector<7x7x3xbf16>
    %c1_316 = arith.constant 1 : index
    %c1_317 = arith.constant 1 : index
    %c1_318 = arith.constant 1 : index
    %c0_319 = arith.constant 0 : index
    %c3_320 = arith.constant 3 : index
    %151 = vector.load %arg1[%c1_316, %c1_317, %c1_318, %c0_319, %c3_320] : memref<2x8x2x8x6xbf16, #tpu.memory_space<vmem>>, vector<1x7x1x7x3xbf16>
    %152 = vector.shape_cast %151 : vector<1x7x1x7x3xbf16> to vector<7x7x3xbf16>
    %c1_321 = arith.constant 1 : index
    %c1_322 = arith.constant 1 : index
    %c1_323 = arith.constant 1 : index
    %c1_324 = arith.constant 1 : index
    %c0_325 = arith.constant 0 : index
    %153 = vector.load %arg1[%c1_321, %c1_322, %c1_323, %c1_324, %c0_325] : memref<2x8x2x8x6xbf16, #tpu.memory_space<vmem>>, vector<1x7x1x7x3xbf16>
    %154 = vector.shape_cast %153 : vector<1x7x1x7x3xbf16> to vector<7x7x3xbf16>
    %155 = tpu.concatenate %138, %140, %142, %144, %146, %148, %150, %152, %154 in 2 : vector<7x7x3xbf16>, vector<7x7x3xbf16>, vector<7x7x3xbf16>, vector<7x7x3xbf16>, vector<7x7x3xbf16>, vector<7x7x3xbf16>, vector<7x7x3xbf16>, vector<7x7x3xbf16>, vector<7x7x3xbf16> -> vector<7x7x27xbf16>
    %cst_326 = arith.constant dense<0.000000e+00> : vector<7x7x16xf32>
    %156 = tpu.matmul %155, %2, %cst_326 {dimension_numbers = #tpu.dot_dimension_numbers<[2], [1], [1], [2], [0, 0, 0, 1, 1, 2], [0], [0]>} : vector<7x7x27xbf16>, vector<7x27x16xbf16>, vector<7x7x16xf32> -> vector<7x7x16xf32>
    %157 = arith.maximumf %136, %156 : vector<7x7x16xf32>
    %c1_327 = arith.constant 1 : index
    %c0_328 = arith.constant 0 : index
    %c1_329 = arith.constant 1 : index
    %c0_330 = arith.constant 0 : index
    %c3_331 = arith.constant 3 : index
    %158 = vector.load %arg1[%c1_327, %c0_328, %c1_329, %c0_330, %c3_331] : memref<2x8x2x8x6xbf16, #tpu.memory_space<vmem>>, vector<1x7x1x7x3xbf16>
    %159 = vector.shape_cast %158 : vector<1x7x1x7x3xbf16> to vector<7x7x3xbf16>
    %c1_332 = arith.constant 1 : index
    %c0_333 = arith.constant 0 : index
    %c1_334 = arith.constant 1 : index
    %c1_335 = arith.constant 1 : index
    %c0_336 = arith.constant 0 : index
    %160 = vector.load %arg1[%c1_332, %c0_333, %c1_334, %c1_335, %c0_336] : memref<2x8x2x8x6xbf16, #tpu.memory_space<vmem>>, vector<1x7x1x7x3xbf16>
    %161 = vector.shape_cast %160 : vector<1x7x1x7x3xbf16> to vector<7x7x3xbf16>
    %c1_337 = arith.constant 1 : index
    %c0_338 = arith.constant 0 : index
    %c1_339 = arith.constant 1 : index
    %c1_340 = arith.constant 1 : index
    %c3_341 = arith.constant 3 : index
    %162 = vector.load %arg1[%c1_337, %c0_338, %c1_339, %c1_340, %c3_341] : memref<2x8x2x8x6xbf16, #tpu.memory_space<vmem>>, vector<1x7x1x7x3xbf16>
    %163 = vector.shape_cast %162 : vector<1x7x1x7x3xbf16> to vector<7x7x3xbf16>
    %c1_342 = arith.constant 1 : index
    %c1_343 = arith.constant 1 : index
    %c0_344 = arith.constant 0 : index
    %c0_345 = arith.constant 0 : index
    %c3_346 = arith.constant 3 : index
    %164 = vector.load %arg1[%c1_342, %c1_343, %c0_344, %c0_345, %c3_346] : memref<2x8x2x8x6xbf16, #tpu.memory_space<vmem>>, vector<1x7x1x7x3xbf16>
    %165 = vector.shape_cast %164 : vector<1x7x1x7x3xbf16> to vector<7x7x3xbf16>
    %c1_347 = arith.constant 1 : index
    %c1_348 = arith.constant 1 : index
    %c0_349 = arith.constant 0 : index
    %c1_350 = arith.constant 1 : index
    %c0_351 = arith.constant 0 : index
    %166 = vector.load %arg1[%c1_347, %c1_348, %c0_349, %c1_350, %c0_351] : memref<2x8x2x8x6xbf16, #tpu.memory_space<vmem>>, vector<1x7x1x7x3xbf16>
    %167 = vector.shape_cast %166 : vector<1x7x1x7x3xbf16> to vector<7x7x3xbf16>
    %c1_352 = arith.constant 1 : index
    %c1_353 = arith.constant 1 : index
    %c0_354 = arith.constant 0 : index
    %c1_355 = arith.constant 1 : index
    %c3_356 = arith.constant 3 : index
    %168 = vector.load %arg1[%c1_352, %c1_353, %c0_354, %c1_355, %c3_356] : memref<2x8x2x8x6xbf16, #tpu.memory_space<vmem>>, vector<1x7x1x7x3xbf16>
    %169 = vector.shape_cast %168 : vector<1x7x1x7x3xbf16> to vector<7x7x3xbf16>
    %c1_357 = arith.constant 1 : index
    %c1_358 = arith.constant 1 : index
    %c1_359 = arith.constant 1 : index
    %c0_360 = arith.constant 0 : index
    %c3_361 = arith.constant 3 : index
    %170 = vector.load %arg1[%c1_357, %c1_358, %c1_359, %c0_360, %c3_361] : memref<2x8x2x8x6xbf16, #tpu.memory_space<vmem>>, vector<1x7x1x7x3xbf16>
    %171 = vector.shape_cast %170 : vector<1x7x1x7x3xbf16> to vector<7x7x3xbf16>
    %c1_362 = arith.constant 1 : index
    %c1_363 = arith.constant 1 : index
    %c1_364 = arith.constant 1 : index
    %c1_365 = arith.constant 1 : index
    %c0_366 = arith.constant 0 : index
    %172 = vector.load %arg1[%c1_362, %c1_363, %c1_364, %c1_365, %c0_366] : memref<2x8x2x8x6xbf16, #tpu.memory_space<vmem>>, vector<1x7x1x7x3xbf16>
    %173 = vector.shape_cast %172 : vector<1x7x1x7x3xbf16> to vector<7x7x3xbf16>
    %c1_367 = arith.constant 1 : index
    %c1_368 = arith.constant 1 : index
    %c1_369 = arith.constant 1 : index
    %c1_370 = arith.constant 1 : index
    %c3_371 = arith.constant 3 : index
    %174 = vector.load %arg1[%c1_367, %c1_368, %c1_369, %c1_370, %c3_371] : memref<2x8x2x8x6xbf16, #tpu.memory_space<vmem>>, vector<1x7x1x7x3xbf16>
    %175 = vector.shape_cast %174 : vector<1x7x1x7x3xbf16> to vector<7x7x3xbf16>
    %176 = tpu.concatenate %159, %161, %163, %165, %167, %169, %171, %173, %175 in 2 : vector<7x7x3xbf16>, vector<7x7x3xbf16>, vector<7x7x3xbf16>, vector<7x7x3xbf16>, vector<7x7x3xbf16>, vector<7x7x3xbf16>, vector<7x7x3xbf16>, vector<7x7x3xbf16>, vector<7x7x3xbf16> -> vector<7x7x27xbf16>
    %cst_372 = arith.constant dense<0.000000e+00> : vector<7x7x16xf32>
    %177 = tpu.matmul %176, %2, %cst_372 {dimension_numbers = #tpu.dot_dimension_numbers<[2], [1], [1], [2], [0, 0, 0, 1, 1, 2], [0], [0]>} : vector<7x7x27xbf16>, vector<7x27x16xbf16>, vector<7x7x16xf32> -> vector<7x7x16xf32>
    %178 = arith.maximumf %157, %177 : vector<7x7x16xf32>
    %179 = vector.shape_cast %3 : vector<1x16xf32> to vector<1x1x16xf32>
    %180 = vector.broadcast %179 : vector<1x1x16xf32> to vector<7x7x16xf32>
    %181 = arith.addf %178, %180 : vector<7x7x16xf32>
    %cst_373 = arith.constant 0.000000e+00 : f32
    %182 = vector.broadcast %cst_373 : f32 to vector<7x7x16xf32>
    %183 = arith.maximumf %181, %182 : vector<7x7x16xf32>
    %184 = arith.truncf %183 : vector<7x7x16xf32> to vector<7x7x16xbf16>
    %c1_374 = arith.constant 1 : index
    %c0_375 = arith.constant 0 : index
    %c0_376 = arith.constant 0 : index
    %c0_377 = arith.constant 0 : index
    %185 = vector.load %arg4[%c1_374, %c0_375, %c0_376, %c0_377] : memref<2x7x7x16xbf16, #tpu.memory_space<vmem>>, vector<1x7x7x16xbf16>
    %186 = vector.shape_cast %185 : vector<1x7x7x16xbf16> to vector<7x7x16xbf16>
    %187 = vector.shape_cast %184 : vector<7x7x16xbf16> to vector<1x7x7x16xbf16>
    tpu.vector_store %arg4[%c1_374, %c0_375, %c0_376, %c0_377], %187 {strides = array<i32>} : memref<2x7x7x16xbf16, #tpu.memory_space<vmem>>, vector<1x7x7x16xbf16>,
    return
  }
  func.func @transform_0(%arg0: i32) -> (i32, i32, i32, i32, i32) {
    %c0_i32 = arith.constant 0 : i32
    %c0_i32_0 = arith.constant 0 : i32
    %c0_i32_1 = arith.constant 0 : i32
    %c0_i32_2 = arith.constant 0 : i32
    %c0_i32_3 = arith.constant 0 : i32
    return %arg0, %c0_i32, %c0_i32_0, %c0_i32_1, %c0_i32_2 : i32, i32, i32, i32, i32
  }
  func.func @transform_1(%arg0: i32) -> (i32, i32) {
    %c0_i32 = arith.constant 0 : i32
    %c0_i32_0 = arith.constant 0 : i32
    %c0_i32_1 = arith.constant 0 : i32
    return %c0_i32, %c0_i32_0 : i32, i32
  }
  func.func @transform_2(%arg0: i32) -> (i32, i32) {
    %c0_i32 = arith.constant 0 : i32
    %c0_i32_0 = arith.constant 0 : i32
    %c0_i32_1 = arith.constant 0 : i32
    return %c0_i32, %c0_i32_0 : i32, i32
  }
  func.func @transform_3(%arg0: i32) -> (i32, i32, i32, i32) {
    %c0_i32 = arith.constant 0 : i32
    %c0_i32_0 = arith.constant 0 : i32
    %c0_i32_1 = arith.constant 0 : i32
    %c0_i32_2 = arith.constant 0 : i32
    return %arg0, %c0_i32, %c0_i32_0, %c0_i32_1 : i32, i32, i32, i32
  }
}

module attributes {stable_mosaic.version = 11 : i64} {
  func.func @_conv_relu_pool_kernel(%arg0: i32, %arg1: memref<2x4x2x4x32xbf16, #tpu.memory_space<vmem>>, %arg2: memref<144x32xbf16, #tpu.memory_space<vmem>>, %arg3: memref<1x32xf32, #tpu.memory_space<vmem>>, %arg4: memref<2x2x2x32xbf16, #tpu.memory_space<vmem>>) attributes {dimension_semantics = [#tpu.dimension_semantics<parallel>], iteration_bounds = array<i64: 1>, scalar_prefetch = 0 : i64, scratch_operands = 0 : i64, tpu.core_type = #tpu.core_type<tc>, window_params = [{transform_indices = @transform_0, window_bounds = array<i64: 2, 4, 2, 4, 32>}, {pipeline_mode = #tpu.pipeline_mode<synchronous>, transform_indices = @transform_1, window_bounds = array<i64: 144, 32>}, {pipeline_mode = #tpu.pipeline_mode<synchronous>, transform_indices = @transform_2, window_bounds = array<i64: 1, 32>}, {transform_indices = @transform_3, window_bounds = array<i64: 2, 2, 2, 32>}]} {
    %c0 = arith.constant 0 : index
    %c0_0 = arith.constant 0 : index
    %0 = vector.load %arg2[%c0, %c0_0] : memref<144x32xbf16, #tpu.memory_space<vmem>>, vector<144x32xbf16>
    %1 = vector.shape_cast %0 : vector<144x32xbf16> to vector<1x144x32xbf16>
    %2 = vector.broadcast %1 : vector<1x144x32xbf16> to vector<2x144x32xbf16>
    %c0_1 = arith.constant 0 : index
    %c0_2 = arith.constant 0 : index
    %3 = vector.load %arg3[%c0_1, %c0_2] : memref<1x32xf32, #tpu.memory_space<vmem>>, vector<1x32xf32>
    %c0_3 = arith.constant 0 : index
    %c0_4 = arith.constant 0 : index
    %c0_5 = arith.constant 0 : index
    %c0_6 = arith.constant 0 : index
    %c0_7 = arith.constant 0 : index
    %4 = vector.load %arg1[%c0_3, %c0_4, %c0_5, %c0_6, %c0_7] : memref<2x4x2x4x32xbf16, #tpu.memory_space<vmem>>, vector<1x2x1x2x16xbf16>
    %5 = vector.shape_cast %4 : vector<1x2x1x2x16xbf16> to vector<2x2x16xbf16>
    %c0_8 = arith.constant 0 : index
    %c0_9 = arith.constant 0 : index
    %c0_10 = arith.constant 0 : index
    %c0_11 = arith.constant 0 : index
    %c16 = arith.constant 16 : index
    %6 = vector.load %arg1[%c0_8, %c0_9, %c0_10, %c0_11, %c16] : memref<2x4x2x4x32xbf16, #tpu.memory_space<vmem>>, vector<1x2x1x2x16xbf16>
    %7 = vector.shape_cast %6 : vector<1x2x1x2x16xbf16> to vector<2x2x16xbf16>
    %c0_12 = arith.constant 0 : index
    %c0_13 = arith.constant 0 : index
    %c0_14 = arith.constant 0 : index
    %c1 = arith.constant 1 : index
    %c0_15 = arith.constant 0 : index
    %8 = vector.load %arg1[%c0_12, %c0_13, %c0_14, %c1, %c0_15] : memref<2x4x2x4x32xbf16, #tpu.memory_space<vmem>>, vector<1x2x1x2x16xbf16>
    %9 = vector.shape_cast %8 : vector<1x2x1x2x16xbf16> to vector<2x2x16xbf16>
    %c0_16 = arith.constant 0 : index
    %c0_17 = arith.constant 0 : index
    %c1_18 = arith.constant 1 : index
    %c0_19 = arith.constant 0 : index
    %c0_20 = arith.constant 0 : index
    %10 = vector.load %arg1[%c0_16, %c0_17, %c1_18, %c0_19, %c0_20] : memref<2x4x2x4x32xbf16, #tpu.memory_space<vmem>>, vector<1x2x1x2x16xbf16>
    %11 = vector.shape_cast %10 : vector<1x2x1x2x16xbf16> to vector<2x2x16xbf16>
    %c0_21 = arith.constant 0 : index
    %c0_22 = arith.constant 0 : index
    %c1_23 = arith.constant 1 : index
    %c0_24 = arith.constant 0 : index
    %c16_25 = arith.constant 16 : index
    %12 = vector.load %arg1[%c0_21, %c0_22, %c1_23, %c0_24, %c16_25] : memref<2x4x2x4x32xbf16, #tpu.memory_space<vmem>>, vector<1x2x1x2x16xbf16>
    %13 = vector.shape_cast %12 : vector<1x2x1x2x16xbf16> to vector<2x2x16xbf16>
    %c0_26 = arith.constant 0 : index
    %c0_27 = arith.constant 0 : index
    %c1_28 = arith.constant 1 : index
    %c1_29 = arith.constant 1 : index
    %c0_30 = arith.constant 0 : index
    %14 = vector.load %arg1[%c0_26, %c0_27, %c1_28, %c1_29, %c0_30] : memref<2x4x2x4x32xbf16, #tpu.memory_space<vmem>>, vector<1x2x1x2x16xbf16>
    %15 = vector.shape_cast %14 : vector<1x2x1x2x16xbf16> to vector<2x2x16xbf16>
    %c0_31 = arith.constant 0 : index
    %c1_32 = arith.constant 1 : index
    %c0_33 = arith.constant 0 : index
    %c0_34 = arith.constant 0 : index
    %c0_35 = arith.constant 0 : index
    %16 = vector.load %arg1[%c0_31, %c1_32, %c0_33, %c0_34, %c0_35] : memref<2x4x2x4x32xbf16, #tpu.memory_space<vmem>>, vector<1x2x1x2x16xbf16>
    %17 = vector.shape_cast %16 : vector<1x2x1x2x16xbf16> to vector<2x2x16xbf16>
    %c0_36 = arith.constant 0 : index
    %c1_37 = arith.constant 1 : index
    %c0_38 = arith.constant 0 : index
    %c0_39 = arith.constant 0 : index
    %c16_40 = arith.constant 16 : index
    %18 = vector.load %arg1[%c0_36, %c1_37, %c0_38, %c0_39, %c16_40] : memref<2x4x2x4x32xbf16, #tpu.memory_space<vmem>>, vector<1x2x1x2x16xbf16>
    %19 = vector.shape_cast %18 : vector<1x2x1x2x16xbf16> to vector<2x2x16xbf16>
    %c0_41 = arith.constant 0 : index
    %c1_42 = arith.constant 1 : index
    %c0_43 = arith.constant 0 : index
    %c1_44 = arith.constant 1 : index
    %c0_45 = arith.constant 0 : index
    %20 = vector.load %arg1[%c0_41, %c1_42, %c0_43, %c1_44, %c0_45] : memref<2x4x2x4x32xbf16, #tpu.memory_space<vmem>>, vector<1x2x1x2x16xbf16>
    %21 = vector.shape_cast %20 : vector<1x2x1x2x16xbf16> to vector<2x2x16xbf16>
    %22 = tpu.concatenate %5, %7, %9, %11, %13, %15, %17, %19, %21 in 2 : vector<2x2x16xbf16>, vector<2x2x16xbf16>, vector<2x2x16xbf16>, vector<2x2x16xbf16>, vector<2x2x16xbf16>, vector<2x2x16xbf16>, vector<2x2x16xbf16>, vector<2x2x16xbf16>, vector<2x2x16xbf16> -> vector<2x2x144xbf16>
    %cst = arith.constant dense<0.000000e+00> : vector<2x2x32xf32>
    %23 = tpu.matmul %22, %2, %cst {dimension_numbers = #tpu.dot_dimension_numbers<[2], [1], [1], [2], [0, 0, 0, 1, 1, 2], [0], [0]>} : vector<2x2x144xbf16>, vector<2x144x32xbf16>, vector<2x2x32xf32> -> vector<2x2x32xf32>
    %c0_46 = arith.constant 0 : index
    %c0_47 = arith.constant 0 : index
    %c0_48 = arith.constant 0 : index
    %c0_49 = arith.constant 0 : index
    %c16_50 = arith.constant 16 : index
    %24 = vector.load %arg1[%c0_46, %c0_47, %c0_48, %c0_49, %c16_50] : memref<2x4x2x4x32xbf16, #tpu.memory_space<vmem>>, vector<1x2x1x2x16xbf16>
    %25 = vector.shape_cast %24 : vector<1x2x1x2x16xbf16> to vector<2x2x16xbf16>
    %c0_51 = arith.constant 0 : index
    %c0_52 = arith.constant 0 : index
    %c0_53 = arith.constant 0 : index
    %c1_54 = arith.constant 1 : index
    %c0_55 = arith.constant 0 : index
    %26 = vector.load %arg1[%c0_51, %c0_52, %c0_53, %c1_54, %c0_55] : memref<2x4x2x4x32xbf16, #tpu.memory_space<vmem>>, vector<1x2x1x2x16xbf16>
    %27 = vector.shape_cast %26 : vector<1x2x1x2x16xbf16> to vector<2x2x16xbf16>
    %c0_56 = arith.constant 0 : index
    %c0_57 = arith.constant 0 : index
    %c0_58 = arith.constant 0 : index
    %c1_59 = arith.constant 1 : index
    %c16_60 = arith.constant 16 : index
    %28 = vector.load %arg1[%c0_56, %c0_57, %c0_58, %c1_59, %c16_60] : memref<2x4x2x4x32xbf16, #tpu.memory_space<vmem>>, vector<1x2x1x2x16xbf16>
    %29 = vector.shape_cast %28 : vector<1x2x1x2x16xbf16> to vector<2x2x16xbf16>
    %c0_61 = arith.constant 0 : index
    %c0_62 = arith.constant 0 : index
    %c1_63 = arith.constant 1 : index
    %c0_64 = arith.constant 0 : index
    %c16_65 = arith.constant 16 : index
    %30 = vector.load %arg1[%c0_61, %c0_62, %c1_63, %c0_64, %c16_65] : memref<2x4x2x4x32xbf16, #tpu.memory_space<vmem>>, vector<1x2x1x2x16xbf16>
    %31 = vector.shape_cast %30 : vector<1x2x1x2x16xbf16> to vector<2x2x16xbf16>
    %c0_66 = arith.constant 0 : index
    %c0_67 = arith.constant 0 : index
    %c1_68 = arith.constant 1 : index
    %c1_69 = arith.constant 1 : index
    %c0_70 = arith.constant 0 : index
    %32 = vector.load %arg1[%c0_66, %c0_67, %c1_68, %c1_69, %c0_70] : memref<2x4x2x4x32xbf16, #tpu.memory_space<vmem>>, vector<1x2x1x2x16xbf16>
    %33 = vector.shape_cast %32 : vector<1x2x1x2x16xbf16> to vector<2x2x16xbf16>
    %c0_71 = arith.constant 0 : index
    %c0_72 = arith.constant 0 : index
    %c1_73 = arith.constant 1 : index
    %c1_74 = arith.constant 1 : index
    %c16_75 = arith.constant 16 : index
    %34 = vector.load %arg1[%c0_71, %c0_72, %c1_73, %c1_74, %c16_75] : memref<2x4x2x4x32xbf16, #tpu.memory_space<vmem>>, vector<1x2x1x2x16xbf16>
    %35 = vector.shape_cast %34 : vector<1x2x1x2x16xbf16> to vector<2x2x16xbf16>
    %c0_76 = arith.constant 0 : index
    %c1_77 = arith.constant 1 : index
    %c0_78 = arith.constant 0 : index
    %c0_79 = arith.constant 0 : index
    %c16_80 = arith.constant 16 : index
    %36 = vector.load %arg1[%c0_76, %c1_77, %c0_78, %c0_79, %c16_80] : memref<2x4x2x4x32xbf16, #tpu.memory_space<vmem>>, vector<1x2x1x2x16xbf16>
    %37 = vector.shape_cast %36 : vector<1x2x1x2x16xbf16> to vector<2x2x16xbf16>
    %c0_81 = arith.constant 0 : index
    %c1_82 = arith.constant 1 : index
    %c0_83 = arith.constant 0 : index
    %c1_84 = arith.constant 1 : index
    %c0_85 = arith.constant 0 : index
    %38 = vector.load %arg1[%c0_81, %c1_82, %c0_83, %c1_84, %c0_85] : memref<2x4x2x4x32xbf16, #tpu.memory_space<vmem>>, vector<1x2x1x2x16xbf16>
    %39 = vector.shape_cast %38 : vector<1x2x1x2x16xbf16> to vector<2x2x16xbf16>
    %c0_86 = arith.constant 0 : index
    %c1_87 = arith.constant 1 : index
    %c0_88 = arith.constant 0 : index
    %c1_89 = arith.constant 1 : index
    %c16_90 = arith.constant 16 : index
    %40 = vector.load %arg1[%c0_86, %c1_87, %c0_88, %c1_89, %c16_90] : memref<2x4x2x4x32xbf16, #tpu.memory_space<vmem>>, vector<1x2x1x2x16xbf16>
    %41 = vector.shape_cast %40 : vector<1x2x1x2x16xbf16> to vector<2x2x16xbf16>
    %42 = tpu.concatenate %25, %27, %29, %31, %33, %35, %37, %39, %41 in 2 : vector<2x2x16xbf16>, vector<2x2x16xbf16>, vector<2x2x16xbf16>, vector<2x2x16xbf16>, vector<2x2x16xbf16>, vector<2x2x16xbf16>, vector<2x2x16xbf16>, vector<2x2x16xbf16>, vector<2x2x16xbf16> -> vector<2x2x144xbf16>
    %cst_91 = arith.constant dense<0.000000e+00> : vector<2x2x32xf32>
    %43 = tpu.matmul %42, %2, %cst_91 {dimension_numbers = #tpu.dot_dimension_numbers<[2], [1], [1], [2], [0, 0, 0, 1, 1, 2], [0], [0]>} : vector<2x2x144xbf16>, vector<2x144x32xbf16>, vector<2x2x32xf32> -> vector<2x2x32xf32>
    %44 = arith.maximumf %23, %43 : vector<2x2x32xf32>
    %c0_92 = arith.constant 0 : index
    %c0_93 = arith.constant 0 : index
    %c1_94 = arith.constant 1 : index
    %c0_95 = arith.constant 0 : index
    %c0_96 = arith.constant 0 : index
    %45 = vector.load %arg1[%c0_92, %c0_93, %c1_94, %c0_95, %c0_96] : memref<2x4x2x4x32xbf16, #tpu.memory_space<vmem>>, vector<1x2x1x2x16xbf16>
    %46 = vector.shape_cast %45 : vector<1x2x1x2x16xbf16> to vector<2x2x16xbf16>
    %c0_97 = arith.constant 0 : index
    %c0_98 = arith.constant 0 : index
    %c1_99 = arith.constant 1 : index
    %c0_100 = arith.constant 0 : index
    %c16_101 = arith.constant 16 : index
    %47 = vector.load %arg1[%c0_97, %c0_98, %c1_99, %c0_100, %c16_101] : memref<2x4x2x4x32xbf16, #tpu.memory_space<vmem>>, vector<1x2x1x2x16xbf16>
    %48 = vector.shape_cast %47 : vector<1x2x1x2x16xbf16> to vector<2x2x16xbf16>
    %c0_102 = arith.constant 0 : index
    %c0_103 = arith.constant 0 : index
    %c1_104 = arith.constant 1 : index
    %c1_105 = arith.constant 1 : index
    %c0_106 = arith.constant 0 : index
    %49 = vector.load %arg1[%c0_102, %c0_103, %c1_104, %c1_105, %c0_106] : memref<2x4x2x4x32xbf16, #tpu.memory_space<vmem>>, vector<1x2x1x2x16xbf16>
    %50 = vector.shape_cast %49 : vector<1x2x1x2x16xbf16> to vector<2x2x16xbf16>
    %c0_107 = arith.constant 0 : index
    %c1_108 = arith.constant 1 : index
    %c0_109 = arith.constant 0 : index
    %c0_110 = arith.constant 0 : index
    %c0_111 = arith.constant 0 : index
    %51 = vector.load %arg1[%c0_107, %c1_108, %c0_109, %c0_110, %c0_111] : memref<2x4x2x4x32xbf16, #tpu.memory_space<vmem>>, vector<1x2x1x2x16xbf16>
    %52 = vector.shape_cast %51 : vector<1x2x1x2x16xbf16> to vector<2x2x16xbf16>
    %c0_112 = arith.constant 0 : index
    %c1_113 = arith.constant 1 : index
    %c0_114 = arith.constant 0 : index
    %c0_115 = arith.constant 0 : index
    %c16_116 = arith.constant 16 : index
    %53 = vector.load %arg1[%c0_112, %c1_113, %c0_114, %c0_115, %c16_116] : memref<2x4x2x4x32xbf16, #tpu.memory_space<vmem>>, vector<1x2x1x2x16xbf16>
    %54 = vector.shape_cast %53 : vector<1x2x1x2x16xbf16> to vector<2x2x16xbf16>
    %c0_117 = arith.constant 0 : index
    %c1_118 = arith.constant 1 : index
    %c0_119 = arith.constant 0 : index
    %c1_120 = arith.constant 1 : index
    %c0_121 = arith.constant 0 : index
    %55 = vector.load %arg1[%c0_117, %c1_118, %c0_119, %c1_120, %c0_121] : memref<2x4x2x4x32xbf16, #tpu.memory_space<vmem>>, vector<1x2x1x2x16xbf16>
    %56 = vector.shape_cast %55 : vector<1x2x1x2x16xbf16> to vector<2x2x16xbf16>
    %c0_122 = arith.constant 0 : index
    %c1_123 = arith.constant 1 : index
    %c1_124 = arith.constant 1 : index
    %c0_125 = arith.constant 0 : index
    %c0_126 = arith.constant 0 : index
    %57 = vector.load %arg1[%c0_122, %c1_123, %c1_124, %c0_125, %c0_126] : memref<2x4x2x4x32xbf16, #tpu.memory_space<vmem>>, vector<1x2x1x2x16xbf16>
    %58 = vector.shape_cast %57 : vector<1x2x1x2x16xbf16> to vector<2x2x16xbf16>
    %c0_127 = arith.constant 0 : index
    %c1_128 = arith.constant 1 : index
    %c1_129 = arith.constant 1 : index
    %c0_130 = arith.constant 0 : index
    %c16_131 = arith.constant 16 : index
    %59 = vector.load %arg1[%c0_127, %c1_128, %c1_129, %c0_130, %c16_131] : memref<2x4x2x4x32xbf16, #tpu.memory_space<vmem>>, vector<1x2x1x2x16xbf16>
    %60 = vector.shape_cast %59 : vector<1x2x1x2x16xbf16> to vector<2x2x16xbf16>
    %c0_132 = arith.constant 0 : index
    %c1_133 = arith.constant 1 : index
    %c1_134 = arith.constant 1 : index
    %c1_135 = arith.constant 1 : index
    %c0_136 = arith.constant 0 : index
    %61 = vector.load %arg1[%c0_132, %c1_133, %c1_134, %c1_135, %c0_136] : memref<2x4x2x4x32xbf16, #tpu.memory_space<vmem>>, vector<1x2x1x2x16xbf16>
    %62 = vector.shape_cast %61 : vector<1x2x1x2x16xbf16> to vector<2x2x16xbf16>
    %63 = tpu.concatenate %46, %48, %50, %52, %54, %56, %58, %60, %62 in 2 : vector<2x2x16xbf16>, vector<2x2x16xbf16>, vector<2x2x16xbf16>, vector<2x2x16xbf16>, vector<2x2x16xbf16>, vector<2x2x16xbf16>, vector<2x2x16xbf16>, vector<2x2x16xbf16>, vector<2x2x16xbf16> -> vector<2x2x144xbf16>
    %cst_137 = arith.constant dense<0.000000e+00> : vector<2x2x32xf32>
    %64 = tpu.matmul %63, %2, %cst_137 {dimension_numbers = #tpu.dot_dimension_numbers<[2], [1], [1], [2], [0, 0, 0, 1, 1, 2], [0], [0]>} : vector<2x2x144xbf16>, vector<2x144x32xbf16>, vector<2x2x32xf32> -> vector<2x2x32xf32>
    %65 = arith.maximumf %44, %64 : vector<2x2x32xf32>
    %c0_138 = arith.constant 0 : index
    %c0_139 = arith.constant 0 : index
    %c1_140 = arith.constant 1 : index
    %c0_141 = arith.constant 0 : index
    %c16_142 = arith.constant 16 : index
    %66 = vector.load %arg1[%c0_138, %c0_139, %c1_140, %c0_141, %c16_142] : memref<2x4x2x4x32xbf16, #tpu.memory_space<vmem>>, vector<1x2x1x2x16xbf16>
    %67 = vector.shape_cast %66 : vector<1x2x1x2x16xbf16> to vector<2x2x16xbf16>
    %c0_143 = arith.constant 0 : index
    %c0_144 = arith.constant 0 : index
    %c1_145 = arith.constant 1 : index
    %c1_146 = arith.constant 1 : index
    %c0_147 = arith.constant 0 : index
    %68 = vector.load %arg1[%c0_143, %c0_144, %c1_145, %c1_146, %c0_147] : memref<2x4x2x4x32xbf16, #tpu.memory_space<vmem>>, vector<1x2x1x2x16xbf16>
    %69 = vector.shape_cast %68 : vector<1x2x1x2x16xbf16> to vector<2x2x16xbf16>
    %c0_148 = arith.constant 0 : index
    %c0_149 = arith.constant 0 : index
    %c1_150 = arith.constant 1 : index
    %c1_151 = arith.constant 1 : index
    %c16_152 = arith.constant 16 : index
    %70 = vector.load %arg1[%c0_148, %c0_149, %c1_150, %c1_151, %c16_152] : memref<2x4x2x4x32xbf16, #tpu.memory_space<vmem>>, vector<1x2x1x2x16xbf16>
    %71 = vector.shape_cast %70 : vector<1x2x1x2x16xbf16> to vector<2x2x16xbf16>
    %c0_153 = arith.constant 0 : index
    %c1_154 = arith.constant 1 : index
    %c0_155 = arith.constant 0 : index
    %c0_156 = arith.constant 0 : index
    %c16_157 = arith.constant 16 : index
    %72 = vector.load %arg1[%c0_153, %c1_154, %c0_155, %c0_156, %c16_157] : memref<2x4x2x4x32xbf16, #tpu.memory_space<vmem>>, vector<1x2x1x2x16xbf16>
    %73 = vector.shape_cast %72 : vector<1x2x1x2x16xbf16> to vector<2x2x16xbf16>
    %c0_158 = arith.constant 0 : index
    %c1_159 = arith.constant 1 : index
    %c0_160 = arith.constant 0 : index
    %c1_161 = arith.constant 1 : index
    %c0_162 = arith.constant 0 : index
    %74 = vector.load %arg1[%c0_158, %c1_159, %c0_160, %c1_161, %c0_162] : memref<2x4x2x4x32xbf16, #tpu.memory_space<vmem>>, vector<1x2x1x2x16xbf16>
    %75 = vector.shape_cast %74 : vector<1x2x1x2x16xbf16> to vector<2x2x16xbf16>
    %c0_163 = arith.constant 0 : index
    %c1_164 = arith.constant 1 : index
    %c0_165 = arith.constant 0 : index
    %c1_166 = arith.constant 1 : index
    %c16_167 = arith.constant 16 : index
    %76 = vector.load %arg1[%c0_163, %c1_164, %c0_165, %c1_166, %c16_167] : memref<2x4x2x4x32xbf16, #tpu.memory_space<vmem>>, vector<1x2x1x2x16xbf16>
    %77 = vector.shape_cast %76 : vector<1x2x1x2x16xbf16> to vector<2x2x16xbf16>
    %c0_168 = arith.constant 0 : index
    %c1_169 = arith.constant 1 : index
    %c1_170 = arith.constant 1 : index
    %c0_171 = arith.constant 0 : index
    %c16_172 = arith.constant 16 : index
    %78 = vector.load %arg1[%c0_168, %c1_169, %c1_170, %c0_171, %c16_172] : memref<2x4x2x4x32xbf16, #tpu.memory_space<vmem>>, vector<1x2x1x2x16xbf16>
    %79 = vector.shape_cast %78 : vector<1x2x1x2x16xbf16> to vector<2x2x16xbf16>
    %c0_173 = arith.constant 0 : index
    %c1_174 = arith.constant 1 : index
    %c1_175 = arith.constant 1 : index
    %c1_176 = arith.constant 1 : index
    %c0_177 = arith.constant 0 : index
    %80 = vector.load %arg1[%c0_173, %c1_174, %c1_175, %c1_176, %c0_177] : memref<2x4x2x4x32xbf16, #tpu.memory_space<vmem>>, vector<1x2x1x2x16xbf16>
    %81 = vector.shape_cast %80 : vector<1x2x1x2x16xbf16> to vector<2x2x16xbf16>
    %c0_178 = arith.constant 0 : index
    %c1_179 = arith.constant 1 : index
    %c1_180 = arith.constant 1 : index
    %c1_181 = arith.constant 1 : index
    %c16_182 = arith.constant 16 : index
    %82 = vector.load %arg1[%c0_178, %c1_179, %c1_180, %c1_181, %c16_182] : memref<2x4x2x4x32xbf16, #tpu.memory_space<vmem>>, vector<1x2x1x2x16xbf16>
    %83 = vector.shape_cast %82 : vector<1x2x1x2x16xbf16> to vector<2x2x16xbf16>
    %84 = tpu.concatenate %67, %69, %71, %73, %75, %77, %79, %81, %83 in 2 : vector<2x2x16xbf16>, vector<2x2x16xbf16>, vector<2x2x16xbf16>, vector<2x2x16xbf16>, vector<2x2x16xbf16>, vector<2x2x16xbf16>, vector<2x2x16xbf16>, vector<2x2x16xbf16>, vector<2x2x16xbf16> -> vector<2x2x144xbf16>
    %cst_183 = arith.constant dense<0.000000e+00> : vector<2x2x32xf32>
    %85 = tpu.matmul %84, %2, %cst_183 {dimension_numbers = #tpu.dot_dimension_numbers<[2], [1], [1], [2], [0, 0, 0, 1, 1, 2], [0], [0]>} : vector<2x2x144xbf16>, vector<2x144x32xbf16>, vector<2x2x32xf32> -> vector<2x2x32xf32>
    %86 = arith.maximumf %65, %85 : vector<2x2x32xf32>
    %87 = vector.shape_cast %3 : vector<1x32xf32> to vector<1x1x32xf32>
    %88 = vector.broadcast %87 : vector<1x1x32xf32> to vector<2x2x32xf32>
    %89 = arith.addf %86, %88 : vector<2x2x32xf32>
    %cst_184 = arith.constant 0.000000e+00 : f32
    %90 = vector.broadcast %cst_184 : f32 to vector<2x2x32xf32>
    %91 = arith.maximumf %89, %90 : vector<2x2x32xf32>
    %92 = arith.truncf %91 : vector<2x2x32xf32> to vector<2x2x32xbf16>
    %c0_185 = arith.constant 0 : index
    %c0_186 = arith.constant 0 : index
    %c0_187 = arith.constant 0 : index
    %c0_188 = arith.constant 0 : index
    %93 = vector.load %arg4[%c0_185, %c0_186, %c0_187, %c0_188] : memref<2x2x2x32xbf16, #tpu.memory_space<vmem>>, vector<1x2x2x32xbf16>
    %94 = vector.shape_cast %93 : vector<1x2x2x32xbf16> to vector<2x2x32xbf16>
    %95 = vector.shape_cast %92 : vector<2x2x32xbf16> to vector<1x2x2x32xbf16>
    tpu.vector_store %arg4[%c0_185, %c0_186, %c0_187, %c0_188], %95 {strides = array<i32>} : memref<2x2x2x32xbf16, #tpu.memory_space<vmem>>, vector<1x2x2x32xbf16>,
    %c1_189 = arith.constant 1 : index
    %c0_190 = arith.constant 0 : index
    %c0_191 = arith.constant 0 : index
    %c0_192 = arith.constant 0 : index
    %c0_193 = arith.constant 0 : index
    %96 = vector.load %arg1[%c1_189, %c0_190, %c0_191, %c0_192, %c0_193] : memref<2x4x2x4x32xbf16, #tpu.memory_space<vmem>>, vector<1x2x1x2x16xbf16>
    %97 = vector.shape_cast %96 : vector<1x2x1x2x16xbf16> to vector<2x2x16xbf16>
    %c1_194 = arith.constant 1 : index
    %c0_195 = arith.constant 0 : index
    %c0_196 = arith.constant 0 : index
    %c0_197 = arith.constant 0 : index
    %c16_198 = arith.constant 16 : index
    %98 = vector.load %arg1[%c1_194, %c0_195, %c0_196, %c0_197, %c16_198] : memref<2x4x2x4x32xbf16, #tpu.memory_space<vmem>>, vector<1x2x1x2x16xbf16>
    %99 = vector.shape_cast %98 : vector<1x2x1x2x16xbf16> to vector<2x2x16xbf16>
    %c1_199 = arith.constant 1 : index
    %c0_200 = arith.constant 0 : index
    %c0_201 = arith.constant 0 : index
    %c1_202 = arith.constant 1 : index
    %c0_203 = arith.constant 0 : index
    %100 = vector.load %arg1[%c1_199, %c0_200, %c0_201, %c1_202, %c0_203] : memref<2x4x2x4x32xbf16, #tpu.memory_space<vmem>>, vector<1x2x1x2x16xbf16>
    %101 = vector.shape_cast %100 : vector<1x2x1x2x16xbf16> to vector<2x2x16xbf16>
    %c1_204 = arith.constant 1 : index
    %c0_205 = arith.constant 0 : index
    %c1_206 = arith.constant 1 : index
    %c0_207 = arith.constant 0 : index
    %c0_208 = arith.constant 0 : index
    %102 = vector.load %arg1[%c1_204, %c0_205, %c1_206, %c0_207, %c0_208] : memref<2x4x2x4x32xbf16, #tpu.memory_space<vmem>>, vector<1x2x1x2x16xbf16>
    %103 = vector.shape_cast %102 : vector<1x2x1x2x16xbf16> to vector<2x2x16xbf16>
    %c1_209 = arith.constant 1 : index
    %c0_210 = arith.constant 0 : index
    %c1_211 = arith.constant 1 : index
    %c0_212 = arith.constant 0 : index
    %c16_213 = arith.constant 16 : index
    %104 = vector.load %arg1[%c1_209, %c0_210, %c1_211, %c0_212, %c16_213] : memref<2x4x2x4x32xbf16, #tpu.memory_space<vmem>>, vector<1x2x1x2x16xbf16>
    %105 = vector.shape_cast %104 : vector<1x2x1x2x16xbf16> to vector<2x2x16xbf16>
    %c1_214 = arith.constant 1 : index
    %c0_215 = arith.constant 0 : index
    %c1_216 = arith.constant 1 : index
    %c1_217 = arith.constant 1 : index
    %c0_218 = arith.constant 0 : index
    %106 = vector.load %arg1[%c1_214, %c0_215, %c1_216, %c1_217, %c0_218] : memref<2x4x2x4x32xbf16, #tpu.memory_space<vmem>>, vector<1x2x1x2x16xbf16>
    %107 = vector.shape_cast %106 : vector<1x2x1x2x16xbf16> to vector<2x2x16xbf16>
    %c1_219 = arith.constant 1 : index
    %c1_220 = arith.constant 1 : index
    %c0_221 = arith.constant 0 : index
    %c0_222 = arith.constant 0 : index
    %c0_223 = arith.constant 0 : index
    %108 = vector.load %arg1[%c1_219, %c1_220, %c0_221, %c0_222, %c0_223] : memref<2x4x2x4x32xbf16, #tpu.memory_space<vmem>>, vector<1x2x1x2x16xbf16>
    %109 = vector.shape_cast %108 : vector<1x2x1x2x16xbf16> to vector<2x2x16xbf16>
    %c1_224 = arith.constant 1 : index
    %c1_225 = arith.constant 1 : index
    %c0_226 = arith.constant 0 : index
    %c0_227 = arith.constant 0 : index
    %c16_228 = arith.constant 16 : index
    %110 = vector.load %arg1[%c1_224, %c1_225, %c0_226, %c0_227, %c16_228] : memref<2x4x2x4x32xbf16, #tpu.memory_space<vmem>>, vector<1x2x1x2x16xbf16>
    %111 = vector.shape_cast %110 : vector<1x2x1x2x16xbf16> to vector<2x2x16xbf16>
    %c1_229 = arith.constant 1 : index
    %c1_230 = arith.constant 1 : index
    %c0_231 = arith.constant 0 : index
    %c1_232 = arith.constant 1 : index
    %c0_233 = arith.constant 0 : index
    %112 = vector.load %arg1[%c1_229, %c1_230, %c0_231, %c1_232, %c0_233] : memref<2x4x2x4x32xbf16, #tpu.memory_space<vmem>>, vector<1x2x1x2x16xbf16>
    %113 = vector.shape_cast %112 : vector<1x2x1x2x16xbf16> to vector<2x2x16xbf16>
    %114 = tpu.concatenate %97, %99, %101, %103, %105, %107, %109, %111, %113 in 2 : vector<2x2x16xbf16>, vector<2x2x16xbf16>, vector<2x2x16xbf16>, vector<2x2x16xbf16>, vector<2x2x16xbf16>, vector<2x2x16xbf16>, vector<2x2x16xbf16>, vector<2x2x16xbf16>, vector<2x2x16xbf16> -> vector<2x2x144xbf16>
    %cst_234 = arith.constant dense<0.000000e+00> : vector<2x2x32xf32>
    %115 = tpu.matmul %114, %2, %cst_234 {dimension_numbers = #tpu.dot_dimension_numbers<[2], [1], [1], [2], [0, 0, 0, 1, 1, 2], [0], [0]>} : vector<2x2x144xbf16>, vector<2x144x32xbf16>, vector<2x2x32xf32> -> vector<2x2x32xf32>
    %c1_235 = arith.constant 1 : index
    %c0_236 = arith.constant 0 : index
    %c0_237 = arith.constant 0 : index
    %c0_238 = arith.constant 0 : index
    %c16_239 = arith.constant 16 : index
    %116 = vector.load %arg1[%c1_235, %c0_236, %c0_237, %c0_238, %c16_239] : memref<2x4x2x4x32xbf16, #tpu.memory_space<vmem>>, vector<1x2x1x2x16xbf16>
    %117 = vector.shape_cast %116 : vector<1x2x1x2x16xbf16> to vector<2x2x16xbf16>
    %c1_240 = arith.constant 1 : index
    %c0_241 = arith.constant 0 : index
    %c0_242 = arith.constant 0 : index
    %c1_243 = arith.constant 1 : index
    %c0_244 = arith.constant 0 : index
    %118 = vector.load %arg1[%c1_240, %c0_241, %c0_242, %c1_243, %c0_244] : memref<2x4x2x4x32xbf16, #tpu.memory_space<vmem>>, vector<1x2x1x2x16xbf16>
    %119 = vector.shape_cast %118 : vector<1x2x1x2x16xbf16> to vector<2x2x16xbf16>
    %c1_245 = arith.constant 1 : index
    %c0_246 = arith.constant 0 : index
    %c0_247 = arith.constant 0 : index
    %c1_248 = arith.constant 1 : index
    %c16_249 = arith.constant 16 : index
    %120 = vector.load %arg1[%c1_245, %c0_246, %c0_247, %c1_248, %c16_249] : memref<2x4x2x4x32xbf16, #tpu.memory_space<vmem>>, vector<1x2x1x2x16xbf16>
    %121 = vector.shape_cast %120 : vector<1x2x1x2x16xbf16> to vector<2x2x16xbf16>
    %c1_250 = arith.constant 1 : index
    %c0_251 = arith.constant 0 : index
    %c1_252 = arith.constant 1 : index
    %c0_253 = arith.constant 0 : index
    %c16_254 = arith.constant 16 : index
    %122 = vector.load %arg1[%c1_250, %c0_251, %c1_252, %c0_253, %c16_254] : memref<2x4x2x4x32xbf16, #tpu.memory_space<vmem>>, vector<1x2x1x2x16xbf16>
    %123 = vector.shape_cast %122 : vector<1x2x1x2x16xbf16> to vector<2x2x16xbf16>
    %c1_255 = arith.constant 1 : index
    %c0_256 = arith.constant 0 : index
    %c1_257 = arith.constant 1 : index
    %c1_258 = arith.constant 1 : index
    %c0_259 = arith.constant 0 : index
    %124 = vector.load %arg1[%c1_255, %c0_256, %c1_257, %c1_258, %c0_259] : memref<2x4x2x4x32xbf16, #tpu.memory_space<vmem>>, vector<1x2x1x2x16xbf16>
    %125 = vector.shape_cast %124 : vector<1x2x1x2x16xbf16> to vector<2x2x16xbf16>
    %c1_260 = arith.constant 1 : index
    %c0_261 = arith.constant 0 : index
    %c1_262 = arith.constant 1 : index
    %c1_263 = arith.constant 1 : index
    %c16_264 = arith.constant 16 : index
    %126 = vector.load %arg1[%c1_260, %c0_261, %c1_262, %c1_263, %c16_264] : memref<2x4x2x4x32xbf16, #tpu.memory_space<vmem>>, vector<1x2x1x2x16xbf16>
    %127 = vector.shape_cast %126 : vector<1x2x1x2x16xbf16> to vector<2x2x16xbf16>
    %c1_265 = arith.constant 1 : index
    %c1_266 = arith.constant 1 : index
    %c0_267 = arith.constant 0 : index
    %c0_268 = arith.constant 0 : index
    %c16_269 = arith.constant 16 : index
    %128 = vector.load %arg1[%c1_265, %c1_266, %c0_267, %c0_268, %c16_269] : memref<2x4x2x4x32xbf16, #tpu.memory_space<vmem>>, vector<1x2x1x2x16xbf16>
    %129 = vector.shape_cast %128 : vector<1x2x1x2x16xbf16> to vector<2x2x16xbf16>
    %c1_270 = arith.constant 1 : index
    %c1_271 = arith.constant 1 : index
    %c0_272 = arith.constant 0 : index
    %c1_273 = arith.constant 1 : index
    %c0_274 = arith.constant 0 : index
    %130 = vector.load %arg1[%c1_270, %c1_271, %c0_272, %c1_273, %c0_274] : memref<2x4x2x4x32xbf16, #tpu.memory_space<vmem>>, vector<1x2x1x2x16xbf16>
    %131 = vector.shape_cast %130 : vector<1x2x1x2x16xbf16> to vector<2x2x16xbf16>
    %c1_275 = arith.constant 1 : index
    %c1_276 = arith.constant 1 : index
    %c0_277 = arith.constant 0 : index
    %c1_278 = arith.constant 1 : index
    %c16_279 = arith.constant 16 : index
    %132 = vector.load %arg1[%c1_275, %c1_276, %c0_277, %c1_278, %c16_279] : memref<2x4x2x4x32xbf16, #tpu.memory_space<vmem>>, vector<1x2x1x2x16xbf16>
    %133 = vector.shape_cast %132 : vector<1x2x1x2x16xbf16> to vector<2x2x16xbf16>
    %134 = tpu.concatenate %117, %119, %121, %123, %125, %127, %129, %131, %133 in 2 : vector<2x2x16xbf16>, vector<2x2x16xbf16>, vector<2x2x16xbf16>, vector<2x2x16xbf16>, vector<2x2x16xbf16>, vector<2x2x16xbf16>, vector<2x2x16xbf16>, vector<2x2x16xbf16>, vector<2x2x16xbf16> -> vector<2x2x144xbf16>
    %cst_280 = arith.constant dense<0.000000e+00> : vector<2x2x32xf32>
    %135 = tpu.matmul %134, %2, %cst_280 {dimension_numbers = #tpu.dot_dimension_numbers<[2], [1], [1], [2], [0, 0, 0, 1, 1, 2], [0], [0]>} : vector<2x2x144xbf16>, vector<2x144x32xbf16>, vector<2x2x32xf32> -> vector<2x2x32xf32>
    %136 = arith.maximumf %115, %135 : vector<2x2x32xf32>
    %c1_281 = arith.constant 1 : index
    %c0_282 = arith.constant 0 : index
    %c1_283 = arith.constant 1 : index
    %c0_284 = arith.constant 0 : index
    %c0_285 = arith.constant 0 : index
    %137 = vector.load %arg1[%c1_281, %c0_282, %c1_283, %c0_284, %c0_285] : memref<2x4x2x4x32xbf16, #tpu.memory_space<vmem>>, vector<1x2x1x2x16xbf16>
    %138 = vector.shape_cast %137 : vector<1x2x1x2x16xbf16> to vector<2x2x16xbf16>
    %c1_286 = arith.constant 1 : index
    %c0_287 = arith.constant 0 : index
    %c1_288 = arith.constant 1 : index
    %c0_289 = arith.constant 0 : index
    %c16_290 = arith.constant 16 : index
    %139 = vector.load %arg1[%c1_286, %c0_287, %c1_288, %c0_289, %c16_290] : memref<2x4x2x4x32xbf16, #tpu.memory_space<vmem>>, vector<1x2x1x2x16xbf16>
    %140 = vector.shape_cast %139 : vector<1x2x1x2x16xbf16> to vector<2x2x16xbf16>
    %c1_291 = arith.constant 1 : index
    %c0_292 = arith.constant 0 : index
    %c1_293 = arith.constant 1 : index
    %c1_294 = arith.constant 1 : index
    %c0_295 = arith.constant 0 : index
    %141 = vector.load %arg1[%c1_291, %c0_292, %c1_293, %c1_294, %c0_295] : memref<2x4x2x4x32xbf16, #tpu.memory_space<vmem>>, vector<1x2x1x2x16xbf16>
    %142 = vector.shape_cast %141 : vector<1x2x1x2x16xbf16> to vector<2x2x16xbf16>
    %c1_296 = arith.constant 1 : index
    %c1_297 = arith.constant 1 : index
    %c0_298 = arith.constant 0 : index
    %c0_299 = arith.constant 0 : index
    %c0_300 = arith.constant 0 : index
    %143 = vector.load %arg1[%c1_296, %c1_297, %c0_298, %c0_299, %c0_300] : memref<2x4x2x4x32xbf16, #tpu.memory_space<vmem>>, vector<1x2x1x2x16xbf16>
    %144 = vector.shape_cast %143 : vector<1x2x1x2x16xbf16> to vector<2x2x16xbf16>
    %c1_301 = arith.constant 1 : index
    %c1_302 = arith.constant 1 : index
    %c0_303 = arith.constant 0 : index
    %c0_304 = arith.constant 0 : index
    %c16_305 = arith.constant 16 : index
    %145 = vector.load %arg1[%c1_301, %c1_302, %c0_303, %c0_304, %c16_305] : memref<2x4x2x4x32xbf16, #tpu.memory_space<vmem>>, vector<1x2x1x2x16xbf16>
    %146 = vector.shape_cast %145 : vector<1x2x1x2x16xbf16> to vector<2x2x16xbf16>
    %c1_306 = arith.constant 1 : index
    %c1_307 = arith.constant 1 : index
    %c0_308 = arith.constant 0 : index
    %c1_309 = arith.constant 1 : index
    %c0_310 = arith.constant 0 : index
    %147 = vector.load %arg1[%c1_306, %c1_307, %c0_308, %c1_309, %c0_310] : memref<2x4x2x4x32xbf16, #tpu.memory_space<vmem>>, vector<1x2x1x2x16xbf16>
    %148 = vector.shape_cast %147 : vector<1x2x1x2x16xbf16> to vector<2x2x16xbf16>
    %c1_311 = arith.constant 1 : index
    %c1_312 = arith.constant 1 : index
    %c1_313 = arith.constant 1 : index
    %c0_314 = arith.constant 0 : index
    %c0_315 = arith.constant 0 : index
    %149 = vector.load %arg1[%c1_311, %c1_312, %c1_313, %c0_314, %c0_315] : memref<2x4x2x4x32xbf16, #tpu.memory_space<vmem>>, vector<1x2x1x2x16xbf16>
    %150 = vector.shape_cast %149 : vector<1x2x1x2x16xbf16> to vector<2x2x16xbf16>
    %c1_316 = arith.constant 1 : index
    %c1_317 = arith.constant 1 : index
    %c1_318 = arith.constant 1 : index
    %c0_319 = arith.constant 0 : index
    %c16_320 = arith.constant 16 : index
    %151 = vector.load %arg1[%c1_316, %c1_317, %c1_318, %c0_319, %c16_320] : memref<2x4x2x4x32xbf16, #tpu.memory_space<vmem>>, vector<1x2x1x2x16xbf16>
    %152 = vector.shape_cast %151 : vector<1x2x1x2x16xbf16> to vector<2x2x16xbf16>
    %c1_321 = arith.constant 1 : index
    %c1_322 = arith.constant 1 : index
    %c1_323 = arith.constant 1 : index
    %c1_324 = arith.constant 1 : index
    %c0_325 = arith.constant 0 : index
    %153 = vector.load %arg1[%c1_321, %c1_322, %c1_323, %c1_324, %c0_325] : memref<2x4x2x4x32xbf16, #tpu.memory_space<vmem>>, vector<1x2x1x2x16xbf16>
    %154 = vector.shape_cast %153 : vector<1x2x1x2x16xbf16> to vector<2x2x16xbf16>
    %155 = tpu.concatenate %138, %140, %142, %144, %146, %148, %150, %152, %154 in 2 : vector<2x2x16xbf16>, vector<2x2x16xbf16>, vector<2x2x16xbf16>, vector<2x2x16xbf16>, vector<2x2x16xbf16>, vector<2x2x16xbf16>, vector<2x2x16xbf16>, vector<2x2x16xbf16>, vector<2x2x16xbf16> -> vector<2x2x144xbf16>
    %cst_326 = arith.constant dense<0.000000e+00> : vector<2x2x32xf32>
    %156 = tpu.matmul %155, %2, %cst_326 {dimension_numbers = #tpu.dot_dimension_numbers<[2], [1], [1], [2], [0, 0, 0, 1, 1, 2], [0], [0]>} : vector<2x2x144xbf16>, vector<2x144x32xbf16>, vector<2x2x32xf32> -> vector<2x2x32xf32>
    %157 = arith.maximumf %136, %156 : vector<2x2x32xf32>
    %c1_327 = arith.constant 1 : index
    %c0_328 = arith.constant 0 : index
    %c1_329 = arith.constant 1 : index
    %c0_330 = arith.constant 0 : index
    %c16_331 = arith.constant 16 : index
    %158 = vector.load %arg1[%c1_327, %c0_328, %c1_329, %c0_330, %c16_331] : memref<2x4x2x4x32xbf16, #tpu.memory_space<vmem>>, vector<1x2x1x2x16xbf16>
    %159 = vector.shape_cast %158 : vector<1x2x1x2x16xbf16> to vector<2x2x16xbf16>
    %c1_332 = arith.constant 1 : index
    %c0_333 = arith.constant 0 : index
    %c1_334 = arith.constant 1 : index
    %c1_335 = arith.constant 1 : index
    %c0_336 = arith.constant 0 : index
    %160 = vector.load %arg1[%c1_332, %c0_333, %c1_334, %c1_335, %c0_336] : memref<2x4x2x4x32xbf16, #tpu.memory_space<vmem>>, vector<1x2x1x2x16xbf16>
    %161 = vector.shape_cast %160 : vector<1x2x1x2x16xbf16> to vector<2x2x16xbf16>
    %c1_337 = arith.constant 1 : index
    %c0_338 = arith.constant 0 : index
    %c1_339 = arith.constant 1 : index
    %c1_340 = arith.constant 1 : index
    %c16_341 = arith.constant 16 : index
    %162 = vector.load %arg1[%c1_337, %c0_338, %c1_339, %c1_340, %c16_341] : memref<2x4x2x4x32xbf16, #tpu.memory_space<vmem>>, vector<1x2x1x2x16xbf16>
    %163 = vector.shape_cast %162 : vector<1x2x1x2x16xbf16> to vector<2x2x16xbf16>
    %c1_342 = arith.constant 1 : index
    %c1_343 = arith.constant 1 : index
    %c0_344 = arith.constant 0 : index
    %c0_345 = arith.constant 0 : index
    %c16_346 = arith.constant 16 : index
    %164 = vector.load %arg1[%c1_342, %c1_343, %c0_344, %c0_345, %c16_346] : memref<2x4x2x4x32xbf16, #tpu.memory_space<vmem>>, vector<1x2x1x2x16xbf16>
    %165 = vector.shape_cast %164 : vector<1x2x1x2x16xbf16> to vector<2x2x16xbf16>
    %c1_347 = arith.constant 1 : index
    %c1_348 = arith.constant 1 : index
    %c0_349 = arith.constant 0 : index
    %c1_350 = arith.constant 1 : index
    %c0_351 = arith.constant 0 : index
    %166 = vector.load %arg1[%c1_347, %c1_348, %c0_349, %c1_350, %c0_351] : memref<2x4x2x4x32xbf16, #tpu.memory_space<vmem>>, vector<1x2x1x2x16xbf16>
    %167 = vector.shape_cast %166 : vector<1x2x1x2x16xbf16> to vector<2x2x16xbf16>
    %c1_352 = arith.constant 1 : index
    %c1_353 = arith.constant 1 : index
    %c0_354 = arith.constant 0 : index
    %c1_355 = arith.constant 1 : index
    %c16_356 = arith.constant 16 : index
    %168 = vector.load %arg1[%c1_352, %c1_353, %c0_354, %c1_355, %c16_356] : memref<2x4x2x4x32xbf16, #tpu.memory_space<vmem>>, vector<1x2x1x2x16xbf16>
    %169 = vector.shape_cast %168 : vector<1x2x1x2x16xbf16> to vector<2x2x16xbf16>
    %c1_357 = arith.constant 1 : index
    %c1_358 = arith.constant 1 : index
    %c1_359 = arith.constant 1 : index
    %c0_360 = arith.constant 0 : index
    %c16_361 = arith.constant 16 : index
    %170 = vector.load %arg1[%c1_357, %c1_358, %c1_359, %c0_360, %c16_361] : memref<2x4x2x4x32xbf16, #tpu.memory_space<vmem>>, vector<1x2x1x2x16xbf16>
    %171 = vector.shape_cast %170 : vector<1x2x1x2x16xbf16> to vector<2x2x16xbf16>
    %c1_362 = arith.constant 1 : index
    %c1_363 = arith.constant 1 : index
    %c1_364 = arith.constant 1 : index
    %c1_365 = arith.constant 1 : index
    %c0_366 = arith.constant 0 : index
    %172 = vector.load %arg1[%c1_362, %c1_363, %c1_364, %c1_365, %c0_366] : memref<2x4x2x4x32xbf16, #tpu.memory_space<vmem>>, vector<1x2x1x2x16xbf16>
    %173 = vector.shape_cast %172 : vector<1x2x1x2x16xbf16> to vector<2x2x16xbf16>
    %c1_367 = arith.constant 1 : index
    %c1_368 = arith.constant 1 : index
    %c1_369 = arith.constant 1 : index
    %c1_370 = arith.constant 1 : index
    %c16_371 = arith.constant 16 : index
    %174 = vector.load %arg1[%c1_367, %c1_368, %c1_369, %c1_370, %c16_371] : memref<2x4x2x4x32xbf16, #tpu.memory_space<vmem>>, vector<1x2x1x2x16xbf16>
    %175 = vector.shape_cast %174 : vector<1x2x1x2x16xbf16> to vector<2x2x16xbf16>
    %176 = tpu.concatenate %159, %161, %163, %165, %167, %169, %171, %173, %175 in 2 : vector<2x2x16xbf16>, vector<2x2x16xbf16>, vector<2x2x16xbf16>, vector<2x2x16xbf16>, vector<2x2x16xbf16>, vector<2x2x16xbf16>, vector<2x2x16xbf16>, vector<2x2x16xbf16>, vector<2x2x16xbf16> -> vector<2x2x144xbf16>
    %cst_372 = arith.constant dense<0.000000e+00> : vector<2x2x32xf32>
    %177 = tpu.matmul %176, %2, %cst_372 {dimension_numbers = #tpu.dot_dimension_numbers<[2], [1], [1], [2], [0, 0, 0, 1, 1, 2], [0], [0]>} : vector<2x2x144xbf16>, vector<2x144x32xbf16>, vector<2x2x32xf32> -> vector<2x2x32xf32>
    %178 = arith.maximumf %157, %177 : vector<2x2x32xf32>
    %179 = vector.shape_cast %3 : vector<1x32xf32> to vector<1x1x32xf32>
    %180 = vector.broadcast %179 : vector<1x1x32xf32> to vector<2x2x32xf32>
    %181 = arith.addf %178, %180 : vector<2x2x32xf32>
    %cst_373 = arith.constant 0.000000e+00 : f32
    %182 = vector.broadcast %cst_373 : f32 to vector<2x2x32xf32>
    %183 = arith.maximumf %181, %182 : vector<2x2x32xf32>
    %184 = arith.truncf %183 : vector<2x2x32xf32> to vector<2x2x32xbf16>
    %c1_374 = arith.constant 1 : index
    %c0_375 = arith.constant 0 : index
    %c0_376 = arith.constant 0 : index
    %c0_377 = arith.constant 0 : index
    %185 = vector.load %arg4[%c1_374, %c0_375, %c0_376, %c0_377] : memref<2x2x2x32xbf16, #tpu.memory_space<vmem>>, vector<1x2x2x32xbf16>
    %186 = vector.shape_cast %185 : vector<1x2x2x32xbf16> to vector<2x2x32xbf16>
    %187 = vector.shape_cast %184 : vector<2x2x32xbf16> to vector<1x2x2x32xbf16>
    tpu.vector_store %arg4[%c1_374, %c0_375, %c0_376, %c0_377], %187 {strides = array<i32>} : memref<2x2x2x32xbf16, #tpu.memory_space<vmem>>, vector<1x2x2x32xbf16>,
    return
  }
  func.func @transform_0(%arg0: i32) -> (i32, i32, i32, i32, i32) {
    %c0_i32 = arith.constant 0 : i32
    %c0_i32_0 = arith.constant 0 : i32
    %c0_i32_1 = arith.constant 0 : i32
    %c0_i32_2 = arith.constant 0 : i32
    %c0_i32_3 = arith.constant 0 : i32
    return %arg0, %c0_i32, %c0_i32_0, %c0_i32_1, %c0_i32_2 : i32, i32, i32, i32, i32
  }
  func.func @transform_1(%arg0: i32) -> (i32, i32) {
    %c0_i32 = arith.constant 0 : i32
    %c0_i32_0 = arith.constant 0 : i32
    %c0_i32_1 = arith.constant 0 : i32
    return %c0_i32, %c0_i32_0 : i32, i32
  }
  func.func @transform_2(%arg0: i32) -> (i32, i32) {
    %c0_i32 = arith.constant 0 : i32
    %c0_i32_0 = arith.constant 0 : i32
    %c0_i32_1 = arith.constant 0 : i32
    return %c0_i32, %c0_i32_0 : i32, i32
  }
  func.func @transform_3(%arg0: i32) -> (i32, i32, i32, i32) {
    %c0_i32 = arith.constant 0 : i32
    %c0_i32_0 = arith.constant 0 : i32
    %c0_i32_1 = arith.constant 0 : i32
    %c0_i32_2 = arith.constant 0 : i32
    return %arg0, %c0_i32, %c0_i32_0, %c0_i32_1 : i32, i32, i32, i32
  }
}

module attributes {stable_mosaic.version = 11 : i64} {
  func.func @_fc_fused_single_kernel(%arg0: i32, %arg1: memref<2x128xbf16, #tpu.memory_space<vmem>>, %arg2: memref<128x128xbf16, #tpu.memory_space<vmem>>, %arg3: memref<1x128xf32, #tpu.memory_space<vmem>>, %arg4: memref<128x128xbf16, #tpu.memory_space<vmem>>, %arg5: memref<1x128xf32, #tpu.memory_space<vmem>>, %arg6: memref<2x128xf32, #tpu.memory_space<vmem>>) attributes {dimension_semantics = [#tpu.dimension_semantics<parallel>], iteration_bounds = array<i64: 1>, scalar_prefetch = 0 : i64, scratch_operands = 0 : i64, tpu.core_type = #tpu.core_type<tc>, window_params = [{transform_indices = @transform_0, window_bounds = array<i64: 2, 128>}, {pipeline_mode = #tpu.pipeline_mode<synchronous>, transform_indices = @transform_1, window_bounds = array<i64: 128, 128>}, {pipeline_mode = #tpu.pipeline_mode<synchronous>, transform_indices = @transform_2, window_bounds = array<i64: 1, 128>}, {pipeline_mode = #tpu.pipeline_mode<synchronous>, transform_indices = @transform_3, window_bounds = array<i64: 128, 128>}, {pipeline_mode = #tpu.pipeline_mode<synchronous>, transform_indices = @transform_4, window_bounds = array<i64: 1, 128>}, {transform_indices = @transform_5, window_bounds = array<i64: 2, 128>}]} {
    %c0 = arith.constant 0 : index
    %c0_0 = arith.constant 0 : index
    %0 = vector.load %arg1[%c0, %c0_0] : memref<2x128xbf16, #tpu.memory_space<vmem>>, vector<2x128xbf16>
    %c0_1 = arith.constant 0 : index
    %c0_2 = arith.constant 0 : index
    %1 = vector.load %arg2[%c0_1, %c0_2] : memref<128x128xbf16, #tpu.memory_space<vmem>>, vector<128x128xbf16>
    %cst = arith.constant dense<0.000000e+00> : vector<2x128xf32>
    %2 = tpu.matmul %0, %1, %cst {dimension_numbers = #tpu.dot_dimension_numbers<[1], [0], [0], [1], [0, 0, 1, 1], [], []>} : vector<2x128xbf16>, vector<128x128xbf16>, vector<2x128xf32> -> vector<2x128xf32>
    %c0_3 = arith.constant 0 : index
    %c0_4 = arith.constant 0 : index
    %3 = vector.load %arg3[%c0_3, %c0_4] : memref<1x128xf32, #tpu.memory_space<vmem>>, vector<1x128xf32>
    %4 = vector.broadcast %3 : vector<1x128xf32> to vector<2x128xf32>
    %5 = arith.addf %2, %4 : vector<2x128xf32>
    %cst_5 = arith.constant 0.000000e+00 : f32
    %6 = vector.broadcast %cst_5 : f32 to vector<2x128xf32>
    %7 = arith.maximumf %5, %6 : vector<2x128xf32>
    %8 = arith.truncf %7 : vector<2x128xf32> to vector<2x128xbf16>
    %c0_6 = arith.constant 0 : index
    %c0_7 = arith.constant 0 : index
    %9 = vector.load %arg4[%c0_6, %c0_7] : memref<128x128xbf16, #tpu.memory_space<vmem>>, vector<128x128xbf16>
    %cst_8 = arith.constant dense<0.000000e+00> : vector<2x128xf32>
    %10 = tpu.matmul %8, %9, %cst_8 {dimension_numbers = #tpu.dot_dimension_numbers<[1], [0], [0], [1], [0, 0, 1, 1], [], []>} : vector<2x128xbf16>, vector<128x128xbf16>, vector<2x128xf32> -> vector<2x128xf32>
    %c0_9 = arith.constant 0 : index
    %c0_10 = arith.constant 0 : index
    %11 = vector.load %arg5[%c0_9, %c0_10] : memref<1x128xf32, #tpu.memory_space<vmem>>, vector<1x128xf32>
    %12 = vector.broadcast %11 : vector<1x128xf32> to vector<2x128xf32>
    %13 = arith.addf %10, %12 : vector<2x128xf32>
    %c0_11 = arith.constant 0 : index
    %c0_12 = arith.constant 0 : index
    %14 = vector.load %arg6[%c0_11, %c0_12] : memref<2x128xf32, #tpu.memory_space<vmem>>, vector<2x128xf32>
    tpu.vector_store %arg6[%c0_11, %c0_12], %13 {strides = array<i32>} : memref<2x128xf32, #tpu.memory_space<vmem>>, vector<2x128xf32>,
    return
  }
  func.func @transform_0(%arg0: i32) -> (i32, i32) {
    %c0_i32 = arith.constant 0 : i32
    %c0_i32_0 = arith.constant 0 : i32
    return %arg0, %c0_i32 : i32, i32
  }
  func.func @transform_1(%arg0: i32) -> (i32, i32) {
    %c0_i32 = arith.constant 0 : i32
    %c0_i32_0 = arith.constant 0 : i32
    %c0_i32_1 = arith.constant 0 : i32
    return %c0_i32, %c0_i32_0 : i32, i32
  }
  func.func @transform_2(%arg0: i32) -> (i32, i32) {
    %c0_i32 = arith.constant 0 : i32
    %c0_i32_0 = arith.constant 0 : i32
    %c0_i32_1 = arith.constant 0 : i32
    return %c0_i32, %c0_i32_0 : i32, i32
  }
  func.func @transform_3(%arg0: i32) -> (i32, i32) {
    %c0_i32 = arith.constant 0 : i32
    %c0_i32_0 = arith.constant 0 : i32
    %c0_i32_1 = arith.constant 0 : i32
    return %c0_i32, %c0_i32_0 : i32, i32
  }
  func.func @transform_4(%arg0: i32) -> (i32, i32) {
    %c0_i32 = arith.constant 0 : i32
    %c0_i32_0 = arith.constant 0 : i32
    %c0_i32_1 = arith.constant 0 : i32
    return %c0_i32, %c0_i32_0 : i32, i32
  }
  func.func @transform_5(%arg0: i32) -> (i32, i32) {
    %c0_i32 = arith.constant 0 : i32
    %c0_i32_0 = arith.constant 0 : i32
    return %arg0, %c0_i32 : i32, i32
  }
}

</mosaic_0001>

<llo_original>
// kernel: forward.5
$region0: #{forward.5}
  #allocation0 [shape = 'u32[]', space=smem, size = 0x4, offset = 0x4, fixed_abs, tag = 'smem constant byte address 0x4 - core index']
  #allocation1 [shape = 'u32[144,128]{1,0:T(1,128)}', space=vmem, size = 0x12000, scoped, tag = 'internal scratch']
  %s0 = inlined_call_operand.hbm [shape: bf16[2,128], index: 0, kind: input, shape index: {}]
  %s1 = inlined_call_operand.hbm [shape: bf16[128,128], index: 1, kind: input, shape index: {}]
  %s2 = inlined_call_operand.hbm [shape: f32[1,128], index: 2, kind: input, shape index: {}]
  %s3 = inlined_call_operand.hbm [shape: bf16[128,128], index: 3, kind: input, shape index: {}]
  %s4 = inlined_call_operand.hbm [shape: f32[1,128], index: 4, kind: input, shape index: {}]
  %s5 = inlined_call_operand.hbm [shape: f32[2,128], index: 5, kind: output, shape index: {}]
  %s6 = sld [smem:[#allocation0]]
  $region50: #{forward.5} parent=0
    _
  %s8 = ssub.s32 1, %s6
  %s9 = scalar_select 0, %s8, %s6
  $region1: #{forward.5} parent=0
    #allocation2 [shape = 'u8[512]{0}', space=vmem, size = 0x400, scoped, tag = 'input window, operand 0, single buffered']
    #allocation3 [shape = 's32[1]{0}', space=sflag, size = 0x4, scoped, tag = 'scoped memory for forward.5']
    #allocation4 [shape = 's32[1]{0}', space=sflag, size = 0x4, scoped, tag = 'scoped memory for forward.5']
    #allocation5 [shape = 'u8[32768]{0}', space=vmem, size = 0x8000, scoped, tag = 'input window, operand 1, single buffered']
    #allocation6 [shape = 's32[1]{0}', space=sflag, size = 0x4, scoped, tag = 'scoped memory for forward.5']
    #allocation7 [shape = 'u8[512]{0}', space=vmem, size = 0x400, scoped, tag = 'input window, operand 2, single buffered']
    #allocation8 [shape = 'u8[32768]{0}', space=vmem, size = 0x8000, scoped, tag = 'input window, operand 3, single buffered']
    #allocation9 [shape = 's32[1]{0}', space=sflag, size = 0x4, scoped, tag = 'scoped memory for forward.5']
    #allocation10 [shape = 'u8[512]{0}', space=vmem, size = 0x400, scoped, tag = 'input window, operand 4, single buffered']
    #allocation11 [shape = 'u8[1024]{0}', space=vmem, size = 0x400, scoped, tag = 'output window, operand 0, single buffered']
    %10 = vsyncpa [#allocation3], 0
    %11 = vsyncpa [#allocation6], 0
    %12 = vsyncpa [#allocation9], 0
    %13 = vsyncpa [#allocation4], 0
    // Predicated region
    $region2: #{forward.5} parent=1 // pred_check
      _
    $region3: #{forward.5} parent=1 // pred_check_branch
      %15 = sbr.rel (0) target = $region5
    $region4: #{forward.5} parent=1 // pred_region
      %s17 = ssub.s32 16, 16
      %18 = vsyncadd [#allocation3], %s17
      %s20 = sshll.u32 [#allocation2], 4
      %s21 = int_to_ptr.vmem [resolvable:$true] %s20
      %23 = dma.hbm_to_vmem [thread:$0]  %s0, 16, %s21, [#allocation3]
    $region5: #{forward.5} parent=1 // pred_fallthru
      _
    // Predicated region
    $region6: #{forward.5} parent=1 // pred_check
      _
    $region7: #{forward.5} parent=1 // pred_check_branch
      %25 = sbr.rel (0) target = $region9
    $region8: #{forward.5} parent=1 // pred_region
      %s27 = ssub.s32 1024, 1024
      %28 = vsyncadd [#allocation6], %s27
      %s29 = sshll.u32 [#allocation5], 4
      %s30 = int_to_ptr.vmem [resolvable:$true] %s29
      %35 = dma.hbm_to_vmem [thread:$0]  %s1, 1024, %s30, [#allocation6], 64, 64, 4
    $region9: #{forward.5} parent=1 // pred_fallthru
      _
    // Predicated region
    $region10: #{forward.5} parent=1 // pred_check
      _
    $region11: #{forward.5} parent=1 // pred_check_branch
      %37 = sbr.rel (0) target = $region13
    $region12: #{forward.5} parent=1 // pred_region
      %s39 = ssub.s32 16, 16
      %40 = vsyncadd [#allocation6], %s39
      %s42 = sshll.u32 [#allocation7], 4
      %s43 = int_to_ptr.vmem [resolvable:$true] %s42
      %45 = dma.hbm_to_vmem [thread:$0]  %s2, 16, %s43, [#allocation6]
    $region13: #{forward.5} parent=1 // pred_fallthru
      _
    // Predicated region
    $region14: #{forward.5} parent=1 // pred_check
      _
    $region15: #{forward.5} parent=1 // pred_check_branch
      %47 = sbr.rel (0) target = $region17
    $region16: #{forward.5} parent=1 // pred_region
      %s49 = ssub.s32 1024, 1024
      %50 = vsyncadd [#allocation9], %s49
      %s51 = sshll.u32 [#allocation8], 4
      %s52 = int_to_ptr.vmem [resolvable:$true] %s51
      %57 = dma.hbm_to_vmem [thread:$0]  %s3, 1024, %s52, [#allocation9], 64, 64, 4
    $region17: #{forward.5} parent=1 // pred_fallthru
      _
    // Predicated region
    $region18: #{forward.5} parent=1 // pred_check
      _
    $region19: #{forward.5} parent=1 // pred_check_branch
      %59 = sbr.rel (0) target = $region21
    $region20: #{forward.5} parent=1 // pred_region
      %s61 = ssub.s32 16, 16
      %62 = vsyncadd [#allocation9], %s61
      %s64 = sshll.u32 [#allocation10], 4
      %s65 = int_to_ptr.vmem [resolvable:$true] %s64
      %67 = dma.hbm_to_vmem [thread:$0]  %s4, 16, %s65, [#allocation9]
    $region21: #{forward.5} parent=1 // pred_fallthru
      _
    // Predicated region
    $region22: #{forward.5} parent=1 // pred_check
      _
    $region23: #{forward.5} parent=1 // pred_check_branch
      %69 = sbr.rel (0) target = $region25
    $region24: #{forward.5} parent=1 // pred_region
      %70 = dma.done [#allocation3], 16
    $region25: #{forward.5} parent=1 // pred_fallthru
      _
    // Predicated region
    $region26: #{forward.5} parent=1 // pred_check
      _
    $region27: #{forward.5} parent=1 // pred_check_branch
      %72 = sbr.rel (0) target = $region29
    $region28: #{forward.5} parent=1 // pred_region
      %73 = dma.done [#allocation6], 1024
    $region29: #{forward.5} parent=1 // pred_fallthru
      _
    // Predicated region
    $region30: #{forward.5} parent=1 // pred_check
      _
    $region31: #{forward.5} parent=1 // pred_check_branch
      %75 = sbr.rel (0) target = $region33
    $region32: #{forward.5} parent=1 // pred_region
      %76 = dma.done [#allocation6], 16
    $region33: #{forward.5} parent=1 // pred_fallthru
      _
    // Predicated region
    $region34: #{forward.5} parent=1 // pred_check
      _
    $region35: #{forward.5} parent=1 // pred_check_branch
      %78 = sbr.rel (0) target = $region37
    $region36: #{forward.5} parent=1 // pred_region
      %79 = dma.done [#allocation9], 1024
    $region37: #{forward.5} parent=1 // pred_fallthru
      _
    // Predicated region
    $region38: #{forward.5} parent=1 // pred_check
      _
    $region39: #{forward.5} parent=1 // pred_check_branch
      %81 = sbr.rel (0) target = $region41
    $region40: #{forward.5} parent=1 // pred_region
      %82 = dma.done [#allocation9], 16
    $region41: #{forward.5} parent=1 // pred_fallthru
      _
    %v84 = vld [vmem:[#allocation2] sm:$0x1]
    %v85 = vld [vmem:[#allocation5] sm:$0xf]
    %v86 = vld [vmem:[#allocation5 + $0x4] sm:$0xf]
    %v87 = vld [vmem:[#allocation5 + $0x8] sm:$0xf]
    %v88 = vld [vmem:[#allocation5 + $0xc] sm:$0xf]
    %v89 = vld [vmem:[#allocation5 + $0x10] sm:$0xf]
    %v90 = vld [vmem:[#allocation5 + $0x14] sm:$0xf]
    %v91 = vld [vmem:[#allocation5 + $0x18] sm:$0xf]
    %v92 = vld [vmem:[#allocation5 + $0x1c] sm:$0xf]
    %v93 = vld [vmem:[#allocation5 + $0x20] sm:$0xf]
    %v94 = vld [vmem:[#allocation5 + $0x24] sm:$0xf]
    %v95 = vld [vmem:[#allocation5 + $0x28] sm:$0xf]
    %v96 = vld [vmem:[#allocation5 + $0x2c] sm:$0xf]
    %v97 = vld [vmem:[#allocation5 + $0x30] sm:$0xf]
    %v98 = vld [vmem:[#allocation5 + $0x34] sm:$0xf]
    %v99 = vld [vmem:[#allocation5 + $0x38] sm:$0xf]
    %v100 = vld [vmem:[#allocation5 + $0x3c] sm:$0xf]
    %v101 = vld [vmem:[#allocation7] sm:$0x1]
    %v103 = vlaneseq
    %v104 = vshrl.u32 %v103, 7
    %v105 = vsub.s32 0, %v104
    %v106 = vrot.slane %v101, %v105
    %v124 = vunpack.c.l.b16 %v85
    %v125 = vunpack.c.l.b16 %v86
    %v126 = vunpack.c.l.b16 %v87
    %v127 = vunpack.c.l.b16 %v88
    %v128 = vunpack.c.l.b16 %v89
    %v129 = vunpack.c.l.b16 %v90
    %v130 = vunpack.c.l.b16 %v91
    %v131 = vunpack.c.l.b16 %v92
    %v132 = vunpack.c.l.b16 %v93
    %v133 = vunpack.c.l.b16 %v94
    %v134 = vunpack.c.l.b16 %v95
    %v135 = vunpack.c.l.b16 %v96
    %v136 = vunpack.c.l.b16 %v97
    %v137 = vunpack.c.l.b16 %v98
    %v138 = vunpack.c.l.b16 %v99
    %v139 = vunpack.c.l.b16 %v100
    %v140 = vpack.c.b16 %v125, %v124
    %v141 = vpack.c.b16 %v127, %v126
    %v142 = vpack.c.b16 %v129, %v128
    %v143 = vpack.c.b16 %v131, %v130
    %v144 = vpack.c.b16 %v133, %v132
    %v145 = vpack.c.b16 %v135, %v134
    %v146 = vpack.c.b16 %v137, %v136
    %v147 = vpack.c.b16 %v139, %v138
    %156 = vmatprep.subr.bf16.mxu0 0
    %157 = vmatpush1.bf16.msra.mxu0 %v140
    %158 = vmatprep.subr.bf16.mxu0 0
    %159 = vmatpush1.bf16.msra.mxu0 %v141
    %160 = vmatprep.subr.bf16.mxu0 0
    %161 = vmatpush1.bf16.msra.mxu0 %v142
    %162 = vmatprep.subr.bf16.mxu0 0
    %163 = vmatpush1.bf16.msra.mxu0 %v143
    %164 = vmatprep.subr.bf16.mxu0 0
    %165 = vmatpush1.bf16.msra.mxu0 %v144
    %166 = vmatprep.subr.bf16.mxu0 0
    %167 = vmatpush1.bf16.msra.mxu0 %v145
    %168 = vmatprep.subr.bf16.mxu0 0
    %169 = vmatpush1.bf16.msra.mxu0 %v146
    %170 = vmatprep.subr.bf16.mxu0 0
    %171 = vmatpush1.bf16.msra.mxu0 %v147
    %172 = vmatprep.subr.bf16.mxu0 0
    %173 = vmatpush1.bf16.msra.mxu0 0
    %174 = vmatprep.subr.bf16.mxu0 0
    %175 = vmatpush1.bf16.msra.mxu0 0
    %176 = vmatprep.subr.bf16.mxu0 0
    %177 = vmatpush1.bf16.msra.mxu0 0
    %178 = vmatprep.subr.bf16.mxu0 0
    %179 = vmatpush1.bf16.msra.mxu0 0
    %180 = vmatprep.subr.bf16.mxu0 0
    %181 = vmatpush1.bf16.msra.mxu0 0
    %182 = vmatprep.subr.bf16.mxu0 0
    %183 = vmatpush1.bf16.msra.mxu0 0
    %184 = vmatprep.subr.bf16.mxu0 0
    %185 = vmatpush1.bf16.msra.mxu0 0
    %186 = vmatprep.subr.bf16.mxu0 0
    %187 = vmatpush1.bf16.msra.mxu0 0
    %188 = vmatprep.mubr.bf16.mxu0 0
    %189 = vmatmul.mubr.bf16.gmra.mrb[0].mxu0 %v84
    %v190 = vpop.f32.mrb[0].mxu0
    %v191 = vadd.f32 %v106, %v190
    %v192 = vpop.f32.mrb[0].mxu0
    %v193 = vpop.f32.mrb[0].mxu0
    %v194 = vpop.f32.mrb[0].mxu0
    %195 = vdwg.mxu0
    %v196 = vmax.f32 %v191, 0.0
    %v197 = vpack.c.bf16 %v196, %v196
    %v198 = vld [vmem:[#allocation8] sm:$0xf]
    %v199 = vld [vmem:[#allocation8 + $0x4] sm:$0xf]
    %v200 = vld [vmem:[#allocation8 + $0x8] sm:$0xf]
    %v201 = vld [vmem:[#allocation8 + $0xc] sm:$0xf]
    %v202 = vld [vmem:[#allocation8 + $0x10] sm:$0xf]
    %v203 = vld [vmem:[#allocation8 + $0x14] sm:$0xf]
    %v204 = vld [vmem:[#allocation8 + $0x18] sm:$0xf]
    %v205 = vld [vmem:[#allocation8 + $0x1c] sm:$0xf]
    %v206 = vld [vmem:[#allocation8 + $0x20] sm:$0xf]
    %v207 = vld [vmem:[#allocation8 + $0x24] sm:$0xf]
    %v208 = vld [vmem:[#allocation8 + $0x28] sm:$0xf]
    %v209 = vld [vmem:[#allocation8 + $0x2c] sm:$0xf]
    %v210 = vld [vmem:[#allocation8 + $0x30] sm:$0xf]
    %v211 = vld [vmem:[#allocation8 + $0x34] sm:$0xf]
    %v212 = vld [vmem:[#allocation8 + $0x38] sm:$0xf]
    %v213 = vld [vmem:[#allocation8 + $0x3c] sm:$0xf]
    %v214 = vld [vmem:[#allocation10] sm:$0x1]
    %v216 = vlaneseq
    %v217 = vshrl.u32 %v216, 7
    %v218 = vsub.s32 0, %v217
    %v219 = vrot.slane %v214, %v218
    %v237 = vunpack.c.l.b16 %v198
    %v238 = vunpack.c.l.b16 %v199
    %v239 = vunpack.c.l.b16 %v200
    %v240 = vunpack.c.l.b16 %v201
    %v241 = vunpack.c.l.b16 %v202
    %v242 = vunpack.c.l.b16 %v203
    %v243 = vunpack.c.l.b16 %v204
    %v244 = vunpack.c.l.b16 %v205
    %v245 = vunpack.c.l.b16 %v206
    %v246 = vunpack.c.l.b16 %v207
    %v247 = vunpack.c.l.b16 %v208
    %v248 = vunpack.c.l.b16 %v209
    %v249 = vunpack.c.l.b16 %v210
    %v250 = vunpack.c.l.b16 %v211
    %v251 = vunpack.c.l.b16 %v212
    %v252 = vunpack.c.l.b16 %v213
    %v253 = vpack.c.b16 %v238, %v237
    %v254 = vpack.c.b16 %v240, %v239
    %v255 = vpack.c.b16 %v242, %v241
    %v256 = vpack.c.b16 %v244, %v243
    %v257 = vpack.c.b16 %v246, %v245
    %v258 = vpack.c.b16 %v248, %v247
    %v259 = vpack.c.b16 %v250, %v249
    %v260 = vpack.c.b16 %v252, %v251
    %269 = vmatprep.subr.bf16.mxu0 0
    %270 = vmatpush1.bf16.msra.mxu0 %v253
    %271 = vmatprep.subr.bf16.mxu0 0
    %272 = vmatpush1.bf16.msra.mxu0 %v254
    %273 = vmatprep.subr.bf16.mxu0 0
    %274 = vmatpush1.bf16.msra.mxu0 %v255
    %275 = vmatprep.subr.bf16.mxu0 0
    %276 = vmatpush1.bf16.msra.mxu0 %v256
    %277 = vmatprep.subr.bf16.mxu0 0
    %278 = vmatpush1.bf16.msra.mxu0 %v257
    %279 = vmatprep.subr.bf16.mxu0 0
    %280 = vmatpush1.bf16.msra.mxu0 %v258
    %281 = vmatprep.subr.bf16.mxu0 0
    %282 = vmatpush1.bf16.msra.mxu0 %v259
    %283 = vmatprep.subr.bf16.mxu0 0
    %284 = vmatpush1.bf16.msra.mxu0 %v260
    %285 = vmatprep.subr.bf16.mxu0 0
    %286 = vmatpush1.bf16.msra.mxu0 0
    %287 = vmatprep.subr.bf16.mxu0 0
    %288 = vmatpush1.bf16.msra.mxu0 0
    %289 = vmatprep.subr.bf16.mxu0 0
    %290 = vmatpush1.bf16.msra.mxu0 0
    %291 = vmatprep.subr.bf16.mxu0 0
    %292 = vmatpush1.bf16.msra.mxu0 0
    %293 = vmatprep.subr.bf16.mxu0 0
    %294 = vmatpush1.bf16.msra.mxu0 0
    %295 = vmatprep.subr.bf16.mxu0 0
    %296 = vmatpush1.bf16.msra.mxu0 0
    %297 = vmatprep.subr.bf16.mxu0 0
    %298 = vmatpush1.bf16.msra.mxu0 0
    %299 = vmatprep.subr.bf16.mxu0 0
    %300 = vmatpush1.bf16.msra.mxu0 0
    %301 = vmatprep.mubr.bf16.mxu0 0
    %302 = vmatmul.mubr.bf16.gmra.mrb[0].mxu0 %v197
    %v303 = vpop.f32.mrb[0].mxu0
    %v304 = vadd.f32 %v219, %v303
    %v305 = vpop.f32.mrb[0].mxu0
    %v306 = vpop.f32.mrb[0].mxu0
    %v307 = vpop.f32.mrb[0].mxu0
    %308 = vdwg.mxu0
    %309 = vst [vmem:[#allocation11] sm:$0x3] %v304
    // Predicated region
    $region42: #{forward.5} parent=1 // pred_check
      _
    $region43: #{forward.5} parent=1 // pred_check_branch
      %311 = sbr.rel (0) target = $region45
    $region44: #{forward.5} parent=1 // pred_region
      %s313 = ssub.s32 32, 32
      %314 = vsyncadd [#allocation4], %s313
      %s316 = sshll.u32 [#allocation11], 4
      %s317 = int_to_ptr.vmem [resolvable:$true] %s316
      %319 = dma.vmem_to_hbm [thread:$0]  %s317, 32, %s5, [#allocation4]
    $region45: #{forward.5} parent=1 // pred_fallthru
      _
    // Predicated region
    $region46: #{forward.5} parent=1 // pred_check
      _
    $region47: #{forward.5} parent=1 // pred_check_branch
      %321 = sbr.rel (0) target = $region49
    $region48: #{forward.5} parent=1 // pred_region
      %322 = dma.done [#allocation4], 32
    $region49: #{forward.5} parent=1 // pred_fallthru
      _
    %323 = vsyncpa [#allocation3], 1
    %324 = vsyncpa [#allocation6], 1
    %325 = vsyncpa [#allocation9], 1
    %326 = vsyncpa [#allocation4], 1

// kernel: forward.4
$region0: #{forward.4}
  #allocation0 [shape = 'u32[]', space=smem, size = 0x4, offset = 0x4, fixed_abs, tag = 'smem constant byte address 0x4 - core index']
  #allocation1 [shape = 'u32[144,128]{1,0:T(1,128)}', space=vmem, size = 0x12000, scoped, tag = 'internal scratch']
  %s0 = inlined_call_operand.hbm [shape: bf16[2,4,2,4,32], index: 0, kind: input, shape index: {}]
  %s1 = inlined_call_operand.hbm [shape: bf16[144,32], index: 1, kind: input, shape index: {}]
  %s2 = inlined_call_operand.hbm [shape: f32[1,32], index: 2, kind: input, shape index: {}]
  %s3 = inlined_call_operand.hbm [shape: bf16[2,2,2,32], index: 3, kind: output, shape index: {}]
  %s4 = sld [smem:[#allocation0]]
  $region34: #{forward.4} parent=0
    _
  %s6 = ssub.s32 1, %s4
  %s7 = scalar_select 0, %s6, %s4
  $region1: #{forward.4} parent=0
    #allocation2 [shape = 'u8[16384]{0}', space=vmem, size = 0x4000, scoped, tag = 'input window, operand 0, single buffered']
    #allocation3 [shape = 's32[1]{0}', space=sflag, size = 0x4, scoped, tag = 'scoped memory for forward.4']
    #allocation4 [shape = 's32[1]{0}', space=sflag, size = 0x4, scoped, tag = 'scoped memory for forward.4']
    #allocation5 [shape = 'u8[36864]{0}', space=vmem, size = 0x9000, scoped, tag = 'input window, operand 1, single buffered']
    #allocation6 [shape = 's32[1]{0}', space=sflag, size = 0x4, scoped, tag = 'scoped memory for forward.4']
    #allocation7 [shape = 'u8[512]{0}', space=vmem, size = 0x400, scoped, tag = 'input window, operand 2, single buffered']
    #allocation8 [shape = 'u8[2048]{0}', space=vmem, size = 0x800, scoped, tag = 'output window, operand 0, single buffered']
    %8 = vsyncpa [#allocation3], 0
    %9 = vsyncpa [#allocation6], 0
    %10 = vsyncpa [#allocation4], 0
    // Predicated region
    $region2: #{forward.4} parent=1 // pred_check
      _
    $region3: #{forward.4} parent=1 // pred_check_branch
      %12 = sbr.rel (0) target = $region5
    $region4: #{forward.4} parent=1 // pred_region
      %s14 = ssub.s32 512, 512
      %15 = vsyncadd [#allocation3], %s14
      %s16 = sshll.u32 [#allocation2], 4
      %s17 = int_to_ptr.vmem [resolvable:$true] %s16
      %22 = dma.hbm_to_vmem [thread:$0]  %s0, 512, %s17, [#allocation3], 32, 32, 2
    $region5: #{forward.4} parent=1 // pred_fallthru
      _
    // Predicated region
    $region6: #{forward.4} parent=1 // pred_check
      _
    $region7: #{forward.4} parent=1 // pred_check_branch
      %24 = sbr.rel (0) target = $region9
    $region8: #{forward.4} parent=1 // pred_region
      %s26 = ssub.s32 1152, 1152
      %27 = vsyncadd [#allocation6], %s26
      %s28 = sshll.u32 [#allocation5], 4
      %s29 = int_to_ptr.vmem [resolvable:$true] %s28
      %34 = dma.hbm_to_vmem [thread:$0]  %s1, 1152, %s29, [#allocation6], 64, 64, 4
    $region9: #{forward.4} parent=1 // pred_fallthru
      _
    // Predicated region
    $region10: #{forward.4} parent=1 // pred_check
      _
    $region11: #{forward.4} parent=1 // pred_check_branch
      %36 = sbr.rel (0) target = $region13
    $region12: #{forward.4} parent=1 // pred_region
      %s38 = ssub.s32 16, 16
      %39 = vsyncadd [#allocation6], %s38
      %s41 = sshll.u32 [#allocation7], 4
      %s42 = int_to_ptr.vmem [resolvable:$true] %s41
      %44 = dma.hbm_to_vmem [thread:$0]  %s2, 16, %s42, [#allocation6]
    $region13: #{forward.4} parent=1 // pred_fallthru
      _
    // Predicated region
    $region14: #{forward.4} parent=1 // pred_check
      _
    $region15: #{forward.4} parent=1 // pred_check_branch
      %46 = sbr.rel (0) target = $region17
    $region16: #{forward.4} parent=1 // pred_region
      %47 = dma.done [#allocation3], 512
    $region17: #{forward.4} parent=1 // pred_fallthru
      _
    // Predicated region
    $region18: #{forward.4} parent=1 // pred_check
      _
    $region19: #{forward.4} parent=1 // pred_check_branch
      %49 = sbr.rel (0) target = $region21
    $region20: #{forward.4} parent=1 // pred_region
      %50 = dma.done [#allocation6], 1152
    $region21: #{forward.4} parent=1 // pred_fallthru
      _
    // Predicated region
    $region22: #{forward.4} parent=1 // pred_check
      _
    $region23: #{forward.4} parent=1 // pred_check_branch
      %52 = sbr.rel (0) target = $region25
    $region24: #{forward.4} parent=1 // pred_region
      %53 = dma.done [#allocation6], 16
    $region25: #{forward.4} parent=1 // pred_fallthru
      _
    %v55 = vld [vmem:[#allocation5] sm:$0xf]
    %v56 = vld [vmem:[#allocation5 + $0x4] sm:$0xf]
    %v57 = vld [vmem:[#allocation5 + $0x8] sm:$0xf]
    %v58 = vld [vmem:[#allocation5 + $0xc] sm:$0xf]
    %v59 = vld [vmem:[#allocation5 + $0x10] sm:$0xf]
    %v60 = vld [vmem:[#allocation5 + $0x14] sm:$0xf]
    %v61 = vld [vmem:[#allocation5 + $0x18] sm:$0xf]
    %v62 = vld [vmem:[#allocation5 + $0x1c] sm:$0xf]
    %v63 = vld [vmem:[#allocation5 + $0x20] sm:$0xf]
    %v64 = vld [vmem:[#allocation5 + $0x24] sm:$0xf]
    %v65 = vld [vmem:[#allocation5 + $0x28] sm:$0xf]
    %v66 = vld [vmem:[#allocation5 + $0x2c] sm:$0xf]
    %v67 = vld [vmem:[#allocation5 + $0x30] sm:$0xf]
    %v68 = vld [vmem:[#allocation5 + $0x34] sm:$0xf]
    %v69 = vld [vmem:[#allocation5 + $0x38] sm:$0xf]
    %v70 = vld [vmem:[#allocation5 + $0x3c] sm:$0xf]
    %v71 = vld [vmem:[#allocation5 + $0x40] sm:$0xf]
    %v72 = vld [vmem:[#allocation5 + $0x44] sm:$0xf]
    %v73 = vld [vmem:[#allocation7] sm:$0x1]
    %v74 = vld [vmem:[#allocation2] sm:$0x1]
    %v75 = vld [vmem:[#allocation2 + $0x4] sm:$0x1]
    %v76 = vld [vmem:[#allocation2] sm:$0x3]
    %v77 = vld [vmem:[#allocation2 + $0x4] sm:$0x3]
    %s78 = scalar_lea.vmem [#allocation2], 2
    %v79 = vld [vmem:[%s78] sm:$0x1]
    %v80 = vld [vmem:[%s78 + $0x4] sm:$0x1]
    %v81 = vld [vmem:[%s78] sm:$0x3]
    %v82 = vld [vmem:[%s78 + $0x4] sm:$0x3]
    %s83 = scalar_lea.vmem [#allocation2], 4
    %v84 = vld [vmem:[%s83] sm:$0x1]
    %v85 = vld [vmem:[%s83 + $0x4] sm:$0x1]
    %v86 = vld [vmem:[%s83] sm:$0x3]
    %v87 = vld [vmem:[%s83 + $0x4] sm:$0x3]
    %v91 = vunpack.c.l.s4 1983009808
    %v92 = vunpack.c.0.s8 %v91
    %v93 = vlaneseq
    %v94 = vshrl.u32 %v93, 7
    %v95 = vsub.s32 %v92, %v94
    %v96 = vrot.slane %v76, %v95
    %v98 = vunpack.c.l.s4 1983009808
    %v99 = vunpack.c.0.s8 %v98
    %v100 = vlaneseq
    %v101 = vshrl.u32 %v100, 7
    %v102 = vsub.s32 %v99, %v101
    %v103 = vrot.slane %v77, %v102
    %v105 = vshrl.u32 %v96, 16
    %v107 = vshll.u32 %v96, 16
    %v109 = vrot.slane %v107, 1
    %v110 = vor.u32 %v105, %v109
    %v112 = vshrl.u32 %v103, 16
    %v114 = vshll.u32 %v103, 16
    %v116 = vrot.slane %v114, 1
    %v117 = vor.u32 %v112, %v116
    %118 = vrot.lane.b32.xlu0 %v110, 32
    %v119 = vpop.permute.xlu0 %118
    %120 = vrot.lane.b32.xlu0 %v117, 32
    %v121 = vpop.permute.xlu0 %120
    %v125 = vunpack.c.l.s4 1983009808
    %v126 = vunpack.c.0.s8 %v125
    %v127 = vlaneseq
    %v128 = vshrl.u32 %v127, 7
    %v129 = vsub.s32 %v126, %v128
    %v130 = vrot.slane %v79, %v129
    %v132 = vunpack.c.l.s4 1983009808
    %v133 = vunpack.c.0.s8 %v132
    %v134 = vlaneseq
    %v135 = vshrl.u32 %v134, 7
    %v136 = vsub.s32 %v133, %v135
    %v137 = vrot.slane %v80, %v136
    %138 = vrot.lane.b32.xlu0 %v130, 48
    %v139 = vpop.permute.xlu0 %138
    %140 = vrot.lane.b32.xlu0 %v137, 48
    %v141 = vpop.permute.xlu0 %140
    %v145 = vunpack.c.l.s4 1983009808
    %v146 = vunpack.c.0.s8 %v145
    %v147 = vlaneseq
    %v148 = vshrl.u32 %v147, 7
    %v149 = vsub.s32 %v146, %v148
    %v150 = vrot.slane %v81, %v149
    %v152 = vunpack.c.l.s4 1983009808
    %v153 = vunpack.c.0.s8 %v152
    %v154 = vlaneseq
    %v155 = vshrl.u32 %v154, 7
    %v156 = vsub.s32 %v153, %v155
    %v157 = vrot.slane %v82, %v156
    %v159 = vshrl.u32 %v150, 16
    %v161 = vshll.u32 %v150, 16
    %v163 = vrot.slane %v161, 1
    %v164 = vor.u32 %v159, %v163
    %v166 = vshrl.u32 %v157, 16
    %v168 = vshll.u32 %v157, 16
    %v170 = vrot.slane %v168, 1
    %v171 = vor.u32 %v166, %v170
    %172 = vrot.lane.b32.xlu0 %v164, 80
    %v173 = vpop.permute.xlu0 %172
    %174 = vrot.lane.b32.xlu0 %v171, 80
    %v175 = vpop.permute.xlu0 %174
    %v179 = vunpack.c.l.s4 1983009808
    %v180 = vunpack.c.0.s8 %v179
    %v181 = vlaneseq
    %v182 = vshrl.u32 %v181, 7
    %v183 = vsub.s32 %v180, %v182
    %v184 = vrot.slane %v84, %v183
    %v186 = vunpack.c.l.s4 1983009808
    %v187 = vunpack.c.0.s8 %v186
    %v188 = vlaneseq
    %v189 = vshrl.u32 %v188, 7
    %v190 = vsub.s32 %v187, %v189
    %v191 = vrot.slane %v85, %v190
    %192 = vrot.lane.b32.xlu0 %v184, 96
    %v193 = vpop.permute.xlu0 %192
    %194 = vrot.lane.b32.xlu0 %v191, 96
    %v195 = vpop.permute.xlu0 %194
    %v199 = vunpack.c.l.s4 1983009808
    %v200 = vunpack.c.0.s8 %v199
    %v201 = vlaneseq
    %v202 = vshrl.u32 %v201, 7
    %v203 = vsub.s32 %v200, %v202
    %v204 = vrot.slane %v86, %v203
    %v206 = vunpack.c.l.s4 1983009808
    %v207 = vunpack.c.0.s8 %v206
    %v208 = vlaneseq
    %v209 = vshrl.u32 %v208, 7
    %v210 = vsub.s32 %v207, %v209
    %v211 = vrot.slane %v87, %v210
    %v213 = vshrl.u32 %v204, 16
    %v215 = vshll.u32 %v204, 16
    %v217 = vrot.slane %v215, 1
    %v218 = vor.u32 %v213, %v217
    %v220 = vshrl.u32 %v211, 16
    %v222 = vshll.u32 %v211, 16
    %v224 = vrot.slane %v222, 1
    %v225 = vor.u32 %v220, %v224
    %vm226 = vcmask 130048
    %vm229 = vcmask 261120
    %v231 = vsel %vm229, %v74, %v119
    %v233 = vsel %vm229, %v75, %v121
    %vm234 = vcmask 392192
    %v236 = vsel %vm234, %v231, %v139
    %v238 = vsel %vm234, %v233, %v141
    %vm239 = vcmask 523264
    %v240 = vsel %vm239, %v236, %v139
    %v241 = vsel %vm239, %v238, %v141
    %vm242 = vcmask 654336
    %v244 = vsel %vm242, %v240, %v173
    %v246 = vsel %vm242, %v241, %v175
    %vm247 = vcmask 785408
    %v249 = vsel %vm247, %v244, %v193
    %v251 = vsel %vm247, %v246, %v195
    %vm252 = vcmask 916480
    %v253 = vsel %vm252, %v249, %v193
    %v255 = vsel %vm252, %v251, %v195
    %v275 = vunpack.c.l.b16 %v55
    %v276 = vunpack.c.l.b16 %v56
    %v277 = vunpack.c.l.b16 %v57
    %v278 = vunpack.c.l.b16 %v58
    %v279 = vunpack.c.l.b16 %v59
    %v280 = vunpack.c.l.b16 %v60
    %v281 = vunpack.c.l.b16 %v61
    %v282 = vunpack.c.l.b16 %v62
    %v283 = vunpack.c.l.b16 %v63
    %v284 = vunpack.c.l.b16 %v64
    %v285 = vunpack.c.l.b16 %v65
    %v286 = vunpack.c.l.b16 %v66
    %v287 = vunpack.c.l.b16 %v67
    %v288 = vunpack.c.l.b16 %v68
    %v289 = vunpack.c.l.b16 %v69
    %v290 = vunpack.c.l.b16 %v70
    %v291 = vunpack.c.l.b16 %v71
    %v292 = vunpack.c.l.b16 %v72
    %v293 = vpack.c.b16 %v276, %v275
    %v294 = vpack.c.b16 %v278, %v277
    %v295 = vpack.c.b16 %v280, %v279
    %v296 = vpack.c.b16 %v282, %v281
    %v297 = vpack.c.b16 %v284, %v283
    %v298 = vpack.c.b16 %v286, %v285
    %v299 = vpack.c.b16 %v288, %v287
    %v300 = vpack.c.b16 %v290, %v289
    %v301 = vpack.c.b16 %v292, %v291
    %v312 = vsel %vm226, %v218, 0
    %314 = vmatprep.subr.bf16.mxu0 0
    %315 = vmatpush1.bf16.msra.mxu0 %v293
    %316 = vmatprep.subr.bf16.mxu0 0
    %317 = vmatpush1.bf16.msra.mxu0 %v294
    %318 = vmatprep.subr.bf16.mxu0 0
    %319 = vmatpush1.bf16.msra.mxu0 %v295
    %320 = vmatprep.subr.bf16.mxu0 0
    %321 = vmatpush1.bf16.msra.mxu0 %v296
    %322 = vmatprep.subr.bf16.mxu0 0
    %323 = vmatpush1.bf16.msra.mxu0 %v297
    %324 = vmatprep.subr.bf16.mxu0 0
    %325 = vmatpush1.bf16.msra.mxu0 %v298
    %326 = vmatprep.subr.bf16.mxu0 0
    %327 = vmatpush1.bf16.msra.mxu0 %v299
    %328 = vmatprep.subr.bf16.mxu0 0
    %329 = vmatpush1.bf16.msra.mxu0 %v300
    %330 = vmatprep.subr.bf16.mxu0 0
    %331 = vmatpush1.bf16.msra.mxu0 %v301
    %332 = vmatprep.subr.bf16.mxu0 0
    %333 = vmatpush1.bf16.msra.mxu0 0
    %334 = vmatprep.subr.bf16.mxu0 0
    %335 = vmatpush1.bf16.msra.mxu0 0
    %336 = vmatprep.subr.bf16.mxu0 0
    %337 = vmatpush1.bf16.msra.mxu0 0
    %338 = vmatprep.subr.bf16.mxu0 0
    %339 = vmatpush1.bf16.msra.mxu0 0
    %340 = vmatprep.subr.bf16.mxu0 0
    %341 = vmatpush1.bf16.msra.mxu0 0
    %342 = vmatprep.subr.bf16.mxu0 0
    %343 = vmatpush1.bf16.msra.mxu0 0
    %344 = vmatprep.subr.bf16.mxu0 0
    %345 = vmatpush1.bf16.msra.mxu0 0
    %346 = vmatprep.mubr.bf16.mxu0 %v312
    %347 = vmatmul.mubr.bf16.gmra.mrb[0].mxu0 %v253
    %v348 = vpop.f32.mrb[0].mxu0
    %v349 = vadd.f32 0.0, %v348
    %v350 = vpop.f32.mrb[0].mxu0
    %v351 = vpop.f32.mrb[0].mxu0
    %v352 = vpop.f32.mrb[0].mxu0
    %353 = vdwg.mxu0
    %v355 = vsel %vm226, %v225, 0
    %357 = vmatprep.subr.bf16.mxu0 0
    %358 = vmatpush1.bf16.msra.mxu0 %v293
    %359 = vmatprep.subr.bf16.mxu0 0
    %360 = vmatpush1.bf16.msra.mxu0 %v294
    %361 = vmatprep.subr.bf16.mxu0 0
    %362 = vmatpush1.bf16.msra.mxu0 %v295
    %363 = vmatprep.subr.bf16.mxu0 0
    %364 = vmatpush1.bf16.msra.mxu0 %v296
    %365 = vmatprep.subr.bf16.mxu0 0
    %366 = vmatpush1.bf16.msra.mxu0 %v297
    %367 = vmatprep.subr.bf16.mxu0 0
    %368 = vmatpush1.bf16.msra.mxu0 %v298
    %369 = vmatprep.subr.bf16.mxu0 0
    %370 = vmatpush1.bf16.msra.mxu0 %v299
    %371 = vmatprep.subr.bf16.mxu0 0
    %372 = vmatpush1.bf16.msra.mxu0 %v300
    %373 = vmatprep.subr.bf16.mxu0 0
    %374 = vmatpush1.bf16.msra.mxu0 %v301
    %375 = vmatprep.subr.bf16.mxu0 0
    %376 = vmatpush1.bf16.msra.mxu0 0
    %377 = vmatprep.subr.bf16.mxu0 0
    %378 = vmatpush1.bf16.msra.mxu0 0
    %379 = vmatprep.subr.bf16.mxu0 0
    %380 = vmatpush1.bf16.msra.mxu0 0
    %381 = vmatprep.subr.bf16.mxu0 0
    %382 = vmatpush1.bf16.msra.mxu0 0
    %383 = vmatprep.subr.bf16.mxu0 0
    %384 = vmatpush1.bf16.msra.mxu0 0
    %385 = vmatprep.subr.bf16.mxu0 0
    %386 = vmatpush1.bf16.msra.mxu0 0
    %387 = vmatprep.subr.bf16.mxu0 0
    %388 = vmatpush1.bf16.msra.mxu0 0
    %389 = vmatprep.mubr.bf16.mxu0 %v355
    %390 = vmatmul.mubr.bf16.gmra.mrb[0].mxu0 %v255
    %v391 = vpop.f32.mrb[0].mxu0
    %v392 = vadd.f32 0.0, %v391
    %v393 = vpop.f32.mrb[0].mxu0
    %v394 = vpop.f32.mrb[0].mxu0
    %v395 = vpop.f32.mrb[0].mxu0
    %396 = vdwg.mxu0
    %v397 = vld [vmem:[#allocation2] sm:$0x3]
    %v398 = vld [vmem:[#allocation2 + $0x4] sm:$0x3]
    %v399 = vld [vmem:[%s78] sm:$0x3]
    %v400 = vld [vmem:[%s78 + $0x4] sm:$0x3]
    %v401 = vld [vmem:[%s83] sm:$0x3]
    %v402 = vld [vmem:[%s83 + $0x4] sm:$0x3]
    %v406 = vunpack.c.l.s4 1983009808
    %v407 = vunpack.c.0.s8 %v406
    %v408 = vlaneseq
    %v409 = vshrl.u32 %v408, 7
    %v410 = vsub.s32 %v407, %v409
    %v411 = vrot.slane %v74, %v410
    %v413 = vunpack.c.l.s4 1983009808
    %v414 = vunpack.c.0.s8 %v413
    %v415 = vlaneseq
    %v416 = vshrl.u32 %v415, 7
    %v417 = vsub.s32 %v414, %v416
    %v418 = vrot.slane %v75, %v417
    %419 = vrot.lane.b32.xlu0 %v411, 112
    %v420 = vpop.permute.xlu0 %419
    %421 = vrot.lane.b32.xlu0 %v418, 112
    %v422 = vpop.permute.xlu0 %421
    %423 = vrot.lane.b32.xlu0 %v110, 16
    %v424 = vpop.permute.xlu0 %423
    %425 = vrot.lane.b32.xlu0 %v117, 16
    %v426 = vpop.permute.xlu0 %425
    %v430 = vunpack.c.l.s4 1983009808
    %v431 = vunpack.c.0.s8 %v430
    %v432 = vlaneseq
    %v433 = vshrl.u32 %v432, 7
    %v434 = vsub.s32 %v431, %v433
    %v435 = vrot.slane %v397, %v434
    %v437 = vunpack.c.l.s4 1983009808
    %v438 = vunpack.c.0.s8 %v437
    %v439 = vlaneseq
    %v440 = vshrl.u32 %v439, 7
    %v441 = vsub.s32 %v438, %v440
    %v442 = vrot.slane %v398, %v441
    %v444 = vshrl.u32 %v435, 16
    %v446 = vshll.u32 %v435, 16
    %v448 = vrot.slane %v446, 1
    %v449 = vor.u32 %v444, %v448
    %v451 = vshrl.u32 %v442, 16
    %v453 = vshll.u32 %v442, 16
    %v455 = vrot.slane %v453, 1
    %v456 = vor.u32 %v451, %v455
    %457 = vrot.lane.b32.xlu0 %v449, 16
    %v458 = vpop.permute.xlu0 %457
    %459 = vrot.lane.b32.xlu0 %v456, 16
    %v460 = vpop.permute.xlu0 %459
    %461 = vrot.lane.b32.xlu0 %v130, 32
    %v462 = vpop.permute.xlu0 %461
    %463 = vrot.lane.b32.xlu0 %v137, 32
    %v464 = vpop.permute.xlu0 %463
    %465 = vrot.lane.b32.xlu0 %v164, 64
    %v466 = vpop.permute.xlu0 %465
    %467 = vrot.lane.b32.xlu0 %v171, 64
    %v468 = vpop.permute.xlu0 %467
    %v472 = vunpack.c.l.s4 1983009808
    %v473 = vunpack.c.0.s8 %v472
    %v474 = vlaneseq
    %v475 = vshrl.u32 %v474, 7
    %v476 = vsub.s32 %v473, %v475
    %v477 = vrot.slane %v399, %v476
    %v479 = vunpack.c.l.s4 1983009808
    %v480 = vunpack.c.0.s8 %v479
    %v481 = vlaneseq
    %v482 = vshrl.u32 %v481, 7
    %v483 = vsub.s32 %v480, %v482
    %v484 = vrot.slane %v400, %v483
    %v486 = vshrl.u32 %v477, 16
    %v488 = vshll.u32 %v477, 16
    %v490 = vrot.slane %v488, 1
    %v491 = vor.u32 %v486, %v490
    %v493 = vshrl.u32 %v484, 16
    %v495 = vshll.u32 %v484, 16
    %v497 = vrot.slane %v495, 1
    %v498 = vor.u32 %v493, %v497
    %499 = vrot.lane.b32.xlu0 %v491, 64
    %v500 = vpop.permute.xlu0 %499
    %501 = vrot.lane.b32.xlu0 %v498, 64
    %v502 = vpop.permute.xlu0 %501
    %503 = vrot.lane.b32.xlu0 %v184, 80
    %v504 = vpop.permute.xlu0 %503
    %505 = vrot.lane.b32.xlu0 %v191, 80
    %v506 = vpop.permute.xlu0 %505
    %507 = vrot.lane.b32.xlu0 %v218, 112
    %v508 = vpop.permute.xlu0 %507
    %509 = vrot.lane.b32.xlu0 %v225, 112
    %v510 = vpop.permute.xlu0 %509
    %v514 = vunpack.c.l.s4 1983009808
    %v515 = vunpack.c.0.s8 %v514
    %v516 = vlaneseq
    %v517 = vshrl.u32 %v516, 7
    %v518 = vsub.s32 %v515, %v517
    %v519 = vrot.slane %v401, %v518
    %v521 = vunpack.c.l.s4 1983009808
    %v522 = vunpack.c.0.s8 %v521
    %v523 = vlaneseq
    %v524 = vshrl.u32 %v523, 7
    %v525 = vsub.s32 %v522, %v524
    %v526 = vrot.slane %v402, %v525
    %v528 = vshrl.u32 %v519, 16
    %v530 = vshll.u32 %v519, 16
    %v532 = vrot.slane %v530, 1
    %v533 = vor.u32 %v528, %v532
    %v535 = vshrl.u32 %v526, 16
    %v537 = vshll.u32 %v526, 16
    %v539 = vrot.slane %v537, 1
    %v540 = vor.u32 %v535, %v539
    %541 = vrot.lane.b32.xlu0 %v533, 112
    %v542 = vpop.permute.xlu0 %541
    %543 = vrot.lane.b32.xlu0 %v540, 112
    %v544 = vpop.permute.xlu0 %543
    %v547 = vsel %vm226, %v420, %v424
    %v550 = vsel %vm226, %v422, %v426
    %v552 = vsel %vm229, %v547, %v458
    %v554 = vsel %vm229, %v550, %v460
    %v556 = vsel %vm234, %v552, %v462
    %v558 = vsel %vm234, %v554, %v464
    %v560 = vsel %vm239, %v556, %v466
    %v562 = vsel %vm239, %v558, %v468
    %v564 = vsel %vm242, %v560, %v500
    %v566 = vsel %vm242, %v562, %v502
    %v568 = vsel %vm247, %v564, %v504
    %v570 = vsel %vm247, %v566, %v506
    %v572 = vsel %vm252, %v568, %v508
    %v575 = vsel %vm252, %v570, %v510
    %v578 = vsel %vm226, %v542, 0
    %580 = vmatprep.subr.bf16.mxu0 0
    %581 = vmatpush1.bf16.msra.mxu0 %v293
    %582 = vmatprep.subr.bf16.mxu0 0
    %583 = vmatpush1.bf16.msra.mxu0 %v294
    %584 = vmatprep.subr.bf16.mxu0 0
    %585 = vmatpush1.bf16.msra.mxu0 %v295
    %586 = vmatprep.subr.bf16.mxu0 0
    %587 = vmatpush1.bf16.msra.mxu0 %v296
    %588 = vmatprep.subr.bf16.mxu0 0
    %589 = vmatpush1.bf16.msra.mxu0 %v297
    %590 = vmatprep.subr.bf16.mxu0 0
    %591 = vmatpush1.bf16.msra.mxu0 %v298
    %592 = vmatprep.subr.bf16.mxu0 0
    %593 = vmatpush1.bf16.msra.mxu0 %v299
    %594 = vmatprep.subr.bf16.mxu0 0
    %595 = vmatpush1.bf16.msra.mxu0 %v300
    %596 = vmatprep.subr.bf16.mxu0 0
    %597 = vmatpush1.bf16.msra.mxu0 %v301
    %598 = vmatprep.subr.bf16.mxu0 0
    %599 = vmatpush1.bf16.msra.mxu0 0
    %600 = vmatprep.subr.bf16.mxu0 0
    %601 = vmatpush1.bf16.msra.mxu0 0
    %602 = vmatprep.subr.bf16.mxu0 0
    %603 = vmatpush1.bf16.msra.mxu0 0
    %604 = vmatprep.subr.bf16.mxu0 0
    %605 = vmatpush1.bf16.msra.mxu0 0
    %606 = vmatprep.subr.bf16.mxu0 0
    %607 = vmatpush1.bf16.msra.mxu0 0
    %608 = vmatprep.subr.bf16.mxu0 0
    %609 = vmatpush1.bf16.msra.mxu0 0
    %610 = vmatprep.subr.bf16.mxu0 0
    %611 = vmatpush1.bf16.msra.mxu0 0
    %612 = vmatprep.mubr.bf16.mxu0 %v578
    %613 = vmatmul.mubr.bf16.gmra.mrb[0].mxu0 %v572
    %v614 = vpop.f32.mrb[0].mxu0
    %v615 = vadd.f32 0.0, %v614
    %v616 = vpop.f32.mrb[0].mxu0
    %v617 = vpop.f32.mrb[0].mxu0
    %v618 = vpop.f32.mrb[0].mxu0
    %619 = vdwg.mxu0
    %v621 = vsel %vm226, %v544, 0
    %623 = vmatprep.subr.bf16.mxu0 0
    %624 = vmatpush1.bf16.msra.mxu0 %v293
    %625 = vmatprep.subr.bf16.mxu0 0
    %626 = vmatpush1.bf16.msra.mxu0 %v294
    %627 = vmatprep.subr.bf16.mxu0 0
    %628 = vmatpush1.bf16.msra.mxu0 %v295
    %629 = vmatprep.subr.bf16.mxu0 0
    %630 = vmatpush1.bf16.msra.mxu0 %v296
    %631 = vmatprep.subr.bf16.mxu0 0
    %632 = vmatpush1.bf16.msra.mxu0 %v297
    %633 = vmatprep.subr.bf16.mxu0 0
    %634 = vmatpush1.bf16.msra.mxu0 %v298
    %635 = vmatprep.subr.bf16.mxu0 0
    %636 = vmatpush1.bf16.msra.mxu0 %v299
    %637 = vmatprep.subr.bf16.mxu0 0
    %638 = vmatpush1.bf16.msra.mxu0 %v300
    %639 = vmatprep.subr.bf16.mxu0 0
    %640 = vmatpush1.bf16.msra.mxu0 %v301
    %641 = vmatprep.subr.bf16.mxu0 0
    %642 = vmatpush1.bf16.msra.mxu0 0
    %643 = vmatprep.subr.bf16.mxu0 0
    %644 = vmatpush1.bf16.msra.mxu0 0
    %645 = vmatprep.subr.bf16.mxu0 0
    %646 = vmatpush1.bf16.msra.mxu0 0
    %647 = vmatprep.subr.bf16.mxu0 0
    %648 = vmatpush1.bf16.msra.mxu0 0
    %649 = vmatprep.subr.bf16.mxu0 0
    %650 = vmatpush1.bf16.msra.mxu0 0
    %651 = vmatprep.subr.bf16.mxu0 0
    %652 = vmatpush1.bf16.msra.mxu0 0
    %653 = vmatprep.subr.bf16.mxu0 0
    %654 = vmatpush1.bf16.msra.mxu0 0
    %655 = vmatprep.mubr.bf16.mxu0 %v621
    %656 = vmatmul.mubr.bf16.gmra.mrb[0].mxu0 %v575
    %v657 = vpop.f32.mrb[0].mxu0
    %v658 = vadd.f32 0.0, %v657
    %v659 = vpop.f32.mrb[0].mxu0
    %v660 = vpop.f32.mrb[0].mxu0
    %v661 = vpop.f32.mrb[0].mxu0
    %662 = vdwg.mxu0
    %v663 = vmax.f32 %v349, %v615
    %v664 = vmax.f32 %v392, %v658
    %s665 = scalar_lea.vmem [#allocation2], 6
    %v666 = vld [vmem:[%s665] sm:$0x1]
    %v667 = vld [vmem:[%s665 + $0x4] sm:$0x1]
    %v668 = vld [vmem:[%s665] sm:$0x3]
    %v669 = vld [vmem:[%s665 + $0x4] sm:$0x3]
    %670 = vrot.lane.b32.xlu0 %v164, 32
    %v671 = vpop.permute.xlu0 %670
    %672 = vrot.lane.b32.xlu0 %v171, 32
    %v673 = vpop.permute.xlu0 %672
    %674 = vrot.lane.b32.xlu0 %v184, 48
    %v675 = vpop.permute.xlu0 %674
    %676 = vrot.lane.b32.xlu0 %v191, 48
    %v677 = vpop.permute.xlu0 %676
    %678 = vrot.lane.b32.xlu0 %v218, 80
    %v679 = vpop.permute.xlu0 %678
    %680 = vrot.lane.b32.xlu0 %v225, 80
    %v681 = vpop.permute.xlu0 %680
    %v685 = vunpack.c.l.s4 1983009808
    %v686 = vunpack.c.0.s8 %v685
    %v687 = vlaneseq
    %v688 = vshrl.u32 %v687, 7
    %v689 = vsub.s32 %v686, %v688
    %v690 = vrot.slane %v666, %v689
    %v692 = vunpack.c.l.s4 1983009808
    %v693 = vunpack.c.0.s8 %v692
    %v694 = vlaneseq
    %v695 = vshrl.u32 %v694, 7
    %v696 = vsub.s32 %v693, %v695
    %v697 = vrot.slane %v667, %v696
    %698 = vrot.lane.b32.xlu0 %v690, 96
    %v699 = vpop.permute.xlu0 %698
    %700 = vrot.lane.b32.xlu0 %v697, 96
    %v701 = vpop.permute.xlu0 %700
    %v705 = vunpack.c.l.s4 1983009808
    %v706 = vunpack.c.0.s8 %v705
    %v707 = vlaneseq
    %v708 = vshrl.u32 %v707, 7
    %v709 = vsub.s32 %v706, %v708
    %v710 = vrot.slane %v668, %v709
    %v712 = vunpack.c.l.s4 1983009808
    %v713 = vunpack.c.0.s8 %v712
    %v714 = vlaneseq
    %v715 = vshrl.u32 %v714, 7
    %v716 = vsub.s32 %v713, %v715
    %v717 = vrot.slane %v669, %v716
    %v719 = vshrl.u32 %v710, 16
    %v721 = vshll.u32 %v710, 16
    %v723 = vrot.slane %v721, 1
    %v724 = vor.u32 %v719, %v723
    %v726 = vshrl.u32 %v717, 16
    %v728 = vshll.u32 %v717, 16
    %v730 = vrot.slane %v728, 1
    %v731 = vor.u32 %v726, %v730
    %v735 = vsel %vm229, %v79, %v671
    %v737 = vsel %vm229, %v80, %v673
    %v739 = vsel %vm234, %v735, %v675
    %v741 = vsel %vm234, %v737, %v677
    %v742 = vsel %vm239, %v739, %v675
    %v743 = vsel %vm239, %v741, %v677
    %v745 = vsel %vm242, %v742, %v679
    %v747 = vsel %vm242, %v743, %v681
    %v749 = vsel %vm247, %v745, %v699
    %v751 = vsel %vm247, %v747, %v701
    %v752 = vsel %vm252, %v749, %v699
    %v754 = vsel %vm252, %v751, %v701
    %v757 = vsel %vm226, %v724, 0
    %759 = vmatprep.subr.bf16.mxu0 0
    %760 = vmatpush1.bf16.msra.mxu0 %v293
    %761 = vmatprep.subr.bf16.mxu0 0
    %762 = vmatpush1.bf16.msra.mxu0 %v294
    %763 = vmatprep.subr.bf16.mxu0 0
    %764 = vmatpush1.bf16.msra.mxu0 %v295
    %765 = vmatprep.subr.bf16.mxu0 0
    %766 = vmatpush1.bf16.msra.mxu0 %v296
    %767 = vmatprep.subr.bf16.mxu0 0
    %768 = vmatpush1.bf16.msra.mxu0 %v297
    %769 = vmatprep.subr.bf16.mxu0 0
    %770 = vmatpush1.bf16.msra.mxu0 %v298
    %771 = vmatprep.subr.bf16.mxu0 0
    %772 = vmatpush1.bf16.msra.mxu0 %v299
    %773 = vmatprep.subr.bf16.mxu0 0
    %774 = vmatpush1.bf16.msra.mxu0 %v300
    %775 = vmatprep.subr.bf16.mxu0 0
    %776 = vmatpush1.bf16.msra.mxu0 %v301
    %777 = vmatprep.subr.bf16.mxu0 0
    %778 = vmatpush1.bf16.msra.mxu0 0
    %779 = vmatprep.subr.bf16.mxu0 0
    %780 = vmatpush1.bf16.msra.mxu0 0
    %781 = vmatprep.subr.bf16.mxu0 0
    %782 = vmatpush1.bf16.msra.mxu0 0
    %783 = vmatprep.subr.bf16.mxu0 0
    %784 = vmatpush1.bf16.msra.mxu0 0
    %785 = vmatprep.subr.bf16.mxu0 0
    %786 = vmatpush1.bf16.msra.mxu0 0
    %787 = vmatprep.subr.bf16.mxu0 0
    %788 = vmatpush1.bf16.msra.mxu0 0
    %789 = vmatprep.subr.bf16.mxu0 0
    %790 = vmatpush1.bf16.msra.mxu0 0
    %791 = vmatprep.mubr.bf16.mxu0 %v757
    %792 = vmatmul.mubr.bf16.gmra.mrb[0].mxu0 %v752
    %v793 = vpop.f32.mrb[0].mxu0
    %v794 = vadd.f32 0.0, %v793
    %v795 = vpop.f32.mrb[0].mxu0
    %v796 = vpop.f32.mrb[0].mxu0
    %v797 = vpop.f32.mrb[0].mxu0
    %798 = vdwg.mxu0
    %v800 = vsel %vm226, %v731, 0
    %802 = vmatprep.subr.bf16.mxu0 0
    %803 = vmatpush1.bf16.msra.mxu0 %v293
    %804 = vmatprep.subr.bf16.mxu0 0
    %805 = vmatpush1.bf16.msra.mxu0 %v294
    %806 = vmatprep.subr.bf16.mxu0 0
    %807 = vmatpush1.bf16.msra.mxu0 %v295
    %808 = vmatprep.subr.bf16.mxu0 0
    %809 = vmatpush1.bf16.msra.mxu0 %v296
    %810 = vmatprep.subr.bf16.mxu0 0
    %811 = vmatpush1.bf16.msra.mxu0 %v297
    %812 = vmatprep.subr.bf16.mxu0 0
    %813 = vmatpush1.bf16.msra.mxu0 %v298
    %814 = vmatprep.subr.bf16.mxu0 0
    %815 = vmatpush1.bf16.msra.mxu0 %v299
    %816 = vmatprep.subr.bf16.mxu0 0
    %817 = vmatpush1.bf16.msra.mxu0 %v300
    %818 = vmatprep.subr.bf16.mxu0 0
    %819 = vmatpush1.bf16.msra.mxu0 %v301
    %820 = vmatprep.subr.bf16.mxu0 0
    %821 = vmatpush1.bf16.msra.mxu0 0
    %822 = vmatprep.subr.bf16.mxu0 0
    %823 = vmatpush1.bf16.msra.mxu0 0
    %824 = vmatprep.subr.bf16.mxu0 0
    %825 = vmatpush1.bf16.msra.mxu0 0
    %826 = vmatprep.subr.bf16.mxu0 0
    %827 = vmatpush1.bf16.msra.mxu0 0
    %828 = vmatprep.subr.bf16.mxu0 0
    %829 = vmatpush1.bf16.msra.mxu0 0
    %830 = vmatprep.subr.bf16.mxu0 0
    %831 = vmatpush1.bf16.msra.mxu0 0
    %832 = vmatprep.subr.bf16.mxu0 0
    %833 = vmatpush1.bf16.msra.mxu0 0
    %834 = vmatprep.mubr.bf16.mxu0 %v800
    %835 = vmatmul.mubr.bf16.gmra.mrb[0].mxu0 %v754
    %v836 = vpop.f32.mrb[0].mxu0
    %v837 = vadd.f32 0.0, %v836
    %v838 = vpop.f32.mrb[0].mxu0
    %v839 = vpop.f32.mrb[0].mxu0
    %v840 = vpop.f32.mrb[0].mxu0
    %841 = vdwg.mxu0
    %v842 = vmax.f32 %v663, %v794
    %v843 = vmax.f32 %v664, %v837
    %v844 = vld [vmem:[%s665] sm:$0x3]
    %v845 = vld [vmem:[%s665 + $0x4] sm:$0x3]
    %846 = vrot.lane.b32.xlu0 %v130, 112
    %v847 = vpop.permute.xlu0 %846
    %848 = vrot.lane.b32.xlu0 %v137, 112
    %v849 = vpop.permute.xlu0 %848
    %850 = vrot.lane.b32.xlu0 %v164, 16
    %v851 = vpop.permute.xlu0 %850
    %852 = vrot.lane.b32.xlu0 %v171, 16
    %v853 = vpop.permute.xlu0 %852
    %854 = vrot.lane.b32.xlu0 %v491, 16
    %v855 = vpop.permute.xlu0 %854
    %856 = vrot.lane.b32.xlu0 %v498, 16
    %v857 = vpop.permute.xlu0 %856
    %858 = vrot.lane.b32.xlu0 %v184, 32
    %v859 = vpop.permute.xlu0 %858
    %860 = vrot.lane.b32.xlu0 %v191, 32
    %v861 = vpop.permute.xlu0 %860
    %862 = vrot.lane.b32.xlu0 %v218, 64
    %v863 = vpop.permute.xlu0 %862
    %864 = vrot.lane.b32.xlu0 %v225, 64
    %v865 = vpop.permute.xlu0 %864
    %866 = vrot.lane.b32.xlu0 %v533, 64
    %v867 = vpop.permute.xlu0 %866
    %868 = vrot.lane.b32.xlu0 %v540, 64
    %v869 = vpop.permute.xlu0 %868
    %870 = vrot.lane.b32.xlu0 %v690, 80
    %v871 = vpop.permute.xlu0 %870
    %872 = vrot.lane.b32.xlu0 %v697, 80
    %v873 = vpop.permute.xlu0 %872
    %874 = vrot.lane.b32.xlu0 %v724, 112
    %v875 = vpop.permute.xlu0 %874
    %876 = vrot.lane.b32.xlu0 %v731, 112
    %v877 = vpop.permute.xlu0 %876
    %v881 = vunpack.c.l.s4 1983009808
    %v882 = vunpack.c.0.s8 %v881
    %v883 = vlaneseq
    %v884 = vshrl.u32 %v883, 7
    %v885 = vsub.s32 %v882, %v884
    %v886 = vrot.slane %v844, %v885
    %v888 = vunpack.c.l.s4 1983009808
    %v889 = vunpack.c.0.s8 %v888
    %v890 = vlaneseq
    %v891 = vshrl.u32 %v890, 7
    %v892 = vsub.s32 %v889, %v891
    %v893 = vrot.slane %v845, %v892
    %v895 = vshrl.u32 %v886, 16
    %v897 = vshll.u32 %v886, 16
    %v899 = vrot.slane %v897, 1
    %v900 = vor.u32 %v895, %v899
    %v902 = vshrl.u32 %v893, 16
    %v904 = vshll.u32 %v893, 16
    %v906 = vrot.slane %v904, 1
    %v907 = vor.u32 %v902, %v906
    %908 = vrot.lane.b32.xlu0 %v900, 112
    %v909 = vpop.permute.xlu0 %908
    %910 = vrot.lane.b32.xlu0 %v907, 112
    %v911 = vpop.permute.xlu0 %910
    %v914 = vsel %vm226, %v847, %v851
    %v917 = vsel %vm226, %v849, %v853
    %v919 = vsel %vm229, %v914, %v855
    %v921 = vsel %vm229, %v917, %v857
    %v923 = vsel %vm234, %v919, %v859
    %v925 = vsel %vm234, %v921, %v861
    %v927 = vsel %vm239, %v923, %v863
    %v929 = vsel %vm239, %v925, %v865
    %v931 = vsel %vm242, %v927, %v867
    %v933 = vsel %vm242, %v929, %v869
    %v935 = vsel %vm247, %v931, %v871
    %v937 = vsel %vm247, %v933, %v873
    %v939 = vsel %vm252, %v935, %v875
    %v942 = vsel %vm252, %v937, %v877
    %v945 = vsel %vm226, %v909, 0
    %947 = vmatprep.subr.bf16.mxu0 0
    %948 = vmatpush1.bf16.msra.mxu0 %v293
    %949 = vmatprep.subr.bf16.mxu0 0
    %950 = vmatpush1.bf16.msra.mxu0 %v294
    %951 = vmatprep.subr.bf16.mxu0 0
    %952 = vmatpush1.bf16.msra.mxu0 %v295
    %953 = vmatprep.subr.bf16.mxu0 0
    %954 = vmatpush1.bf16.msra.mxu0 %v296
    %955 = vmatprep.subr.bf16.mxu0 0
    %956 = vmatpush1.bf16.msra.mxu0 %v297
    %957 = vmatprep.subr.bf16.mxu0 0
    %958 = vmatpush1.bf16.msra.mxu0 %v298
    %959 = vmatprep.subr.bf16.mxu0 0
    %960 = vmatpush1.bf16.msra.mxu0 %v299
    %961 = vmatprep.subr.bf16.mxu0 0
    %962 = vmatpush1.bf16.msra.mxu0 %v300
    %963 = vmatprep.subr.bf16.mxu0 0
    %964 = vmatpush1.bf16.msra.mxu0 %v301
    %965 = vmatprep.subr.bf16.mxu0 0
    %966 = vmatpush1.bf16.msra.mxu0 0
    %967 = vmatprep.subr.bf16.mxu0 0
    %968 = vmatpush1.bf16.msra.mxu0 0
    %969 = vmatprep.subr.bf16.mxu0 0
    %970 = vmatpush1.bf16.msra.mxu0 0
    %971 = vmatprep.subr.bf16.mxu0 0
    %972 = vmatpush1.bf16.msra.mxu0 0
    %973 = vmatprep.subr.bf16.mxu0 0
    %974 = vmatpush1.bf16.msra.mxu0 0
    %975 = vmatprep.subr.bf16.mxu0 0
    %976 = vmatpush1.bf16.msra.mxu0 0
    %977 = vmatprep.subr.bf16.mxu0 0
    %978 = vmatpush1.bf16.msra.mxu0 0
    %979 = vmatprep.mubr.bf16.mxu0 %v945
    %980 = vmatmul.mubr.bf16.gmra.mrb[0].mxu0 %v939
    %v981 = vpop.f32.mrb[0].mxu0
    %v982 = vadd.f32 0.0, %v981
    %v983 = vpop.f32.mrb[0].mxu0
    %v984 = vpop.f32.mrb[0].mxu0
    %v985 = vpop.f32.mrb[0].mxu0
    %986 = vdwg.mxu0
    %v988 = vsel %vm226, %v911, 0
    %990 = vmatprep.subr.bf16.mxu0 0
    %991 = vmatpush1.bf16.msra.mxu0 %v293
    %992 = vmatprep.subr.bf16.mxu0 0
    %993 = vmatpush1.bf16.msra.mxu0 %v294
    %994 = vmatprep.subr.bf16.mxu0 0
    %995 = vmatpush1.bf16.msra.mxu0 %v295
    %996 = vmatprep.subr.bf16.mxu0 0
    %997 = vmatpush1.bf16.msra.mxu0 %v296
    %998 = vmatprep.subr.bf16.mxu0 0
    %999 = vmatpush1.bf16.msra.mxu0 %v297
    %1000 = vmatprep.subr.bf16.mxu0 0
    %1001 = vmatpush1.bf16.msra.mxu0 %v298
    %1002 = vmatprep.subr.bf16.mxu0 0
    %1003 = vmatpush1.bf16.msra.mxu0 %v299
    %1004 = vmatprep.subr.bf16.mxu0 0
    %1005 = vmatpush1.bf16.msra.mxu0 %v300
    %1006 = vmatprep.subr.bf16.mxu0 0
    %1007 = vmatpush1.bf16.msra.mxu0 %v301
    %1008 = vmatprep.subr.bf16.mxu0 0
    %1009 = vmatpush1.bf16.msra.mxu0 0
    %1010 = vmatprep.subr.bf16.mxu0 0
    %1011 = vmatpush1.bf16.msra.mxu0 0
    %1012 = vmatprep.subr.bf16.mxu0 0
    %1013 = vmatpush1.bf16.msra.mxu0 0
    %1014 = vmatprep.subr.bf16.mxu0 0
    %1015 = vmatpush1.bf16.msra.mxu0 0
    %1016 = vmatprep.subr.bf16.mxu0 0
    %1017 = vmatpush1.bf16.msra.mxu0 0
    %1018 = vmatprep.subr.bf16.mxu0 0
    %1019 = vmatpush1.bf16.msra.mxu0 0
    %1020 = vmatprep.subr.bf16.mxu0 0
    %1021 = vmatpush1.bf16.msra.mxu0 0
    %1022 = vmatprep.mubr.bf16.mxu0 %v988
    %1023 = vmatmul.mubr.bf16.gmra.mrb[0].mxu0 %v942
    %v1024 = vpop.f32.mrb[0].mxu0
    %v1025 = vadd.f32 0.0, %v1024
    %v1026 = vpop.f32.mrb[0].mxu0
    %v1027 = vpop.f32.mrb[0].mxu0
    %v1028 = vpop.f32.mrb[0].mxu0
    %1029 = vdwg.mxu0
    %v1030 = vmax.f32 %v842, %v982
    %v1031 = vmax.f32 %v843, %v1025
    %v1033 = vlaneseq
    %v1034 = vshrl.u32 %v1033, 7
    %v1035 = vsub.s32 0, %v1034
    %v1036 = vrot.slane %v73, %v1035
    %v1038 = vadd.f32 %v1030, %v1036
    %v1039 = vadd.f32 %v1031, %v1036
    %v1040 = vmax.f32 %v1038, 0.0
    %v1041 = vmax.f32 %v1039, 0.0
    %v1042 = vpack.c.bf16 %v1040, %v1040
    %v1043 = vpack.c.bf16 %v1041, %v1041
    %vm1044 = vcmask 253952
    %1045 = vst.msk [vmem:[#allocation8] sm:$0x1] %vm1044, %v1042
    %1046 = vst.msk [vmem:[#allocation8 + $0x1] sm:$0x1] %vm1044, %v1043
    %s1047 = scalar_lea.vmem [#allocation2], 16
    %v1048 = vld [vmem:[%s1047] sm:$0x1]
    %v1049 = vld [vmem:[%s1047 + $0x4] sm:$0x1]
    %v1050 = vld [vmem:[%s1047] sm:$0x3]
    %v1051 = vld [vmem:[%s1047 + $0x4] sm:$0x3]
    %s1052 = scalar_lea.vmem [#allocation2], 18
    %v1053 = vld [vmem:[%s1052] sm:$0x1]
    %v1054 = vld [vmem:[%s1052 + $0x4] sm:$0x1]
    %v1055 = vld [vmem:[%s1052] sm:$0x3]
    %v1056 = vld [vmem:[%s1052 + $0x4] sm:$0x3]
    %s1057 = scalar_lea.vmem [#allocation2], 20
    %v1058 = vld [vmem:[%s1057] sm:$0x1]
    %v1059 = vld [vmem:[%s1057 + $0x4] sm:$0x1]
    %v1060 = vld [vmem:[%s1057] sm:$0x3]
    %v1061 = vld [vmem:[%s1057 + $0x4] sm:$0x3]
    %v1065 = vunpack.c.l.s4 1983009808
    %v1066 = vunpack.c.0.s8 %v1065
    %v1067 = vlaneseq
    %v1068 = vshrl.u32 %v1067, 7
    %v1069 = vsub.s32 %v1066, %v1068
    %v1070 = vrot.slane %v1050, %v1069
    %v1072 = vunpack.c.l.s4 1983009808
    %v1073 = vunpack.c.0.s8 %v1072
    %v1074 = vlaneseq
    %v1075 = vshrl.u32 %v1074, 7
    %v1076 = vsub.s32 %v1073, %v1075
    %v1077 = vrot.slane %v1051, %v1076
    %v1079 = vshrl.u32 %v1070, 16
    %v1081 = vshll.u32 %v1070, 16
    %v1083 = vrot.slane %v1081, 1
    %v1084 = vor.u32 %v1079, %v1083
    %v1086 = vshrl.u32 %v1077, 16
    %v1088 = vshll.u32 %v1077, 16
    %v1090 = vrot.slane %v1088, 1
    %v1091 = vor.u32 %v1086, %v1090
    %1092 = vrot.lane.b32.xlu0 %v1084, 32
    %v1093 = vpop.permute.xlu0 %1092
    %1094 = vrot.lane.b32.xlu0 %v1091, 32
    %v1095 = vpop.permute.xlu0 %1094
    %v1099 = vunpack.c.l.s4 1983009808
    %v1100 = vunpack.c.0.s8 %v1099
    %v1101 = vlaneseq
    %v1102 = vshrl.u32 %v1101, 7
    %v1103 = vsub.s32 %v1100, %v1102
    %v1104 = vrot.slane %v1053, %v1103
    %v1106 = vunpack.c.l.s4 1983009808
    %v1107 = vunpack.c.0.s8 %v1106
    %v1108 = vlaneseq
    %v1109 = vshrl.u32 %v1108, 7
    %v1110 = vsub.s32 %v1107, %v1109
    %v1111 = vrot.slane %v1054, %v1110
    %1112 = vrot.lane.b32.xlu0 %v1104, 48
    %v1113 = vpop.permute.xlu0 %1112
    %1114 = vrot.lane.b32.xlu0 %v1111, 48
    %v1115 = vpop.permute.xlu0 %1114
    %v1119 = vunpack.c.l.s4 1983009808
    %v1120 = vunpack.c.0.s8 %v1119
    %v1121 = vlaneseq
    %v1122 = vshrl.u32 %v1121, 7
    %v1123 = vsub.s32 %v1120, %v1122
    %v1124 = vrot.slane %v1055, %v1123
    %v1126 = vunpack.c.l.s4 1983009808
    %v1127 = vunpack.c.0.s8 %v1126
    %v1128 = vlaneseq
    %v1129 = vshrl.u32 %v1128, 7
    %v1130 = vsub.s32 %v1127, %v1129
    %v1131 = vrot.slane %v1056, %v1130
    %v1133 = vshrl.u32 %v1124, 16
    %v1135 = vshll.u32 %v1124, 16
    %v1137 = vrot.slane %v1135, 1
    %v1138 = vor.u32 %v1133, %v1137
    %v1140 = vshrl.u32 %v1131, 16
    %v1142 = vshll.u32 %v1131, 16
    %v1144 = vrot.slane %v1142, 1
    %v1145 = vor.u32 %v1140, %v1144
    %1146 = vrot.lane.b32.xlu0 %v1138, 80
    %v1147 = vpop.permute.xlu0 %1146
    %1148 = vrot.lane.b32.xlu0 %v1145, 80
    %v1149 = vpop.permute.xlu0 %1148
    %v1153 = vunpack.c.l.s4 1983009808
    %v1154 = vunpack.c.0.s8 %v1153
    %v1155 = vlaneseq
    %v1156 = vshrl.u32 %v1155, 7
    %v1157 = vsub.s32 %v1154, %v1156
    %v1158 = vrot.slane %v1058, %v1157
    %v1160 = vunpack.c.l.s4 1983009808
    %v1161 = vunpack.c.0.s8 %v1160
    %v1162 = vlaneseq
    %v1163 = vshrl.u32 %v1162, 7
    %v1164 = vsub.s32 %v1161, %v1163
    %v1165 = vrot.slane %v1059, %v1164
    %1166 = vrot.lane.b32.xlu0 %v1158, 96
    %v1167 = vpop.permute.xlu0 %1166
    %1168 = vrot.lane.b32.xlu0 %v1165, 96
    %v1169 = vpop.permute.xlu0 %1168
    %v1173 = vunpack.c.l.s4 1983009808
    %v1174 = vunpack.c.0.s8 %v1173
    %v1175 = vlaneseq
    %v1176 = vshrl.u32 %v1175, 7
    %v1177 = vsub.s32 %v1174, %v1176
    %v1178 = vrot.slane %v1060, %v1177
    %v1180 = vunpack.c.l.s4 1983009808
    %v1181 = vunpack.c.0.s8 %v1180
    %v1182 = vlaneseq
    %v1183 = vshrl.u32 %v1182, 7
    %v1184 = vsub.s32 %v1181, %v1183
    %v1185 = vrot.slane %v1061, %v1184
    %v1187 = vshrl.u32 %v1178, 16
    %v1189 = vshll.u32 %v1178, 16
    %v1191 = vrot.slane %v1189, 1
    %v1192 = vor.u32 %v1187, %v1191
    %v1194 = vshrl.u32 %v1185, 16
    %v1196 = vshll.u32 %v1185, 16
    %v1198 = vrot.slane %v1196, 1
    %v1199 = vor.u32 %v1194, %v1198
    %v1203 = vsel %vm229, %v1048, %v1093
    %v1205 = vsel %vm229, %v1049, %v1095
    %v1207 = vsel %vm234, %v1203, %v1113
    %v1209 = vsel %vm234, %v1205, %v1115
    %v1210 = vsel %vm239, %v1207, %v1113
    %v1211 = vsel %vm239, %v1209, %v1115
    %v1213 = vsel %vm242, %v1210, %v1147
    %v1215 = vsel %vm242, %v1211, %v1149
    %v1217 = vsel %vm247, %v1213, %v1167
    %v1219 = vsel %vm247, %v1215, %v1169
    %v1220 = vsel %vm252, %v1217, %v1167
    %v1222 = vsel %vm252, %v1219, %v1169
    %v1225 = vsel %vm226, %v1192, 0
    %1227 = vmatprep.subr.bf16.mxu0 0
    %1228 = vmatpush1.bf16.msra.mxu0 %v293
    %1229 = vmatprep.subr.bf16.mxu0 0
    %1230 = vmatpush1.bf16.msra.mxu0 %v294
    %1231 = vmatprep.subr.bf16.mxu0 0
    %1232 = vmatpush1.bf16.msra.mxu0 %v295
    %1233 = vmatprep.subr.bf16.mxu0 0
    %1234 = vmatpush1.bf16.msra.mxu0 %v296
    %1235 = vmatprep.subr.bf16.mxu0 0
    %1236 = vmatpush1.bf16.msra.mxu0 %v297
    %1237 = vmatprep.subr.bf16.mxu0 0
    %1238 = vmatpush1.bf16.msra.mxu0 %v298
    %1239 = vmatprep.subr.bf16.mxu0 0
    %1240 = vmatpush1.bf16.msra.mxu0 %v299
    %1241 = vmatprep.subr.bf16.mxu0 0
    %1242 = vmatpush1.bf16.msra.mxu0 %v300
    %1243 = vmatprep.subr.bf16.mxu0 0
    %1244 = vmatpush1.bf16.msra.mxu0 %v301
    %1245 = vmatprep.subr.bf16.mxu0 0
    %1246 = vmatpush1.bf16.msra.mxu0 0
    %1247 = vmatprep.subr.bf16.mxu0 0
    %1248 = vmatpush1.bf16.msra.mxu0 0
    %1249 = vmatprep.subr.bf16.mxu0 0
    %1250 = vmatpush1.bf16.msra.mxu0 0
    %1251 = vmatprep.subr.bf16.mxu0 0
    %1252 = vmatpush1.bf16.msra.mxu0 0
    %1253 = vmatprep.subr.bf16.mxu0 0
    %1254 = vmatpush1.bf16.msra.mxu0 0
    %1255 = vmatprep.subr.bf16.mxu0 0
    %1256 = vmatpush1.bf16.msra.mxu0 0
    %1257 = vmatprep.subr.bf16.mxu0 0
    %1258 = vmatpush1.bf16.msra.mxu0 0
    %1259 = vmatprep.mubr.bf16.mxu0 %v1225
    %1260 = vmatmul.mubr.bf16.gmra.mrb[0].mxu0 %v1220
    %v1261 = vpop.f32.mrb[0].mxu0
    %v1262 = vadd.f32 0.0, %v1261
    %v1263 = vpop.f32.mrb[0].mxu0
    %v1264 = vpop.f32.mrb[0].mxu0
    %v1265 = vpop.f32.mrb[0].mxu0
    %1266 = vdwg.mxu0
    %v1268 = vsel %vm226, %v1199, 0
    %1270 = vmatprep.subr.bf16.mxu0 0
    %1271 = vmatpush1.bf16.msra.mxu0 %v293
    %1272 = vmatprep.subr.bf16.mxu0 0
    %1273 = vmatpush1.bf16.msra.mxu0 %v294
    %1274 = vmatprep.subr.bf16.mxu0 0
    %1275 = vmatpush1.bf16.msra.mxu0 %v295
    %1276 = vmatprep.subr.bf16.mxu0 0
    %1277 = vmatpush1.bf16.msra.mxu0 %v296
    %1278 = vmatprep.subr.bf16.mxu0 0
    %1279 = vmatpush1.bf16.msra.mxu0 %v297
    %1280 = vmatprep.subr.bf16.mxu0 0
    %1281 = vmatpush1.bf16.msra.mxu0 %v298
    %1282 = vmatprep.subr.bf16.mxu0 0
    %1283 = vmatpush1.bf16.msra.mxu0 %v299
    %1284 = vmatprep.subr.bf16.mxu0 0
    %1285 = vmatpush1.bf16.msra.mxu0 %v300
    %1286 = vmatprep.subr.bf16.mxu0 0
    %1287 = vmatpush1.bf16.msra.mxu0 %v301
    %1288 = vmatprep.subr.bf16.mxu0 0
    %1289 = vmatpush1.bf16.msra.mxu0 0
    %1290 = vmatprep.subr.bf16.mxu0 0
    %1291 = vmatpush1.bf16.msra.mxu0 0
    %1292 = vmatprep.subr.bf16.mxu0 0
    %1293 = vmatpush1.bf16.msra.mxu0 0
    %1294 = vmatprep.subr.bf16.mxu0 0
    %1295 = vmatpush1.bf16.msra.mxu0 0
    %1296 = vmatprep.subr.bf16.mxu0 0
    %1297 = vmatpush1.bf16.msra.mxu0 0
    %1298 = vmatprep.subr.bf16.mxu0 0
    %1299 = vmatpush1.bf16.msra.mxu0 0
    %1300 = vmatprep.subr.bf16.mxu0 0
    %1301 = vmatpush1.bf16.msra.mxu0 0
    %1302 = vmatprep.mubr.bf16.mxu0 %v1268
    %1303 = vmatmul.mubr.bf16.gmra.mrb[0].mxu0 %v1222
    %v1304 = vpop.f32.mrb[0].mxu0
    %v1305 = vadd.f32 0.0, %v1304
    %v1306 = vpop.f32.mrb[0].mxu0
    %v1307 = vpop.f32.mrb[0].mxu0
    %v1308 = vpop.f32.mrb[0].mxu0
    %1309 = vdwg.mxu0
    %v1310 = vld [vmem:[%s1047] sm:$0x3]
    %v1311 = vld [vmem:[%s1047 + $0x4] sm:$0x3]
    %v1312 = vld [vmem:[%s1052] sm:$0x3]
    %v1313 = vld [vmem:[%s1052 + $0x4] sm:$0x3]
    %v1314 = vld [vmem:[%s1057] sm:$0x3]
    %v1315 = vld [vmem:[%s1057 + $0x4] sm:$0x3]
    %v1319 = vunpack.c.l.s4 1983009808
    %v1320 = vunpack.c.0.s8 %v1319
    %v1321 = vlaneseq
    %v1322 = vshrl.u32 %v1321, 7
    %v1323 = vsub.s32 %v1320, %v1322
    %v1324 = vrot.slane %v1048, %v1323
    %v1326 = vunpack.c.l.s4 1983009808
    %v1327 = vunpack.c.0.s8 %v1326
    %v1328 = vlaneseq
    %v1329 = vshrl.u32 %v1328, 7
    %v1330 = vsub.s32 %v1327, %v1329
    %v1331 = vrot.slane %v1049, %v1330
    %1332 = vrot.lane.b32.xlu0 %v1324, 112
    %v1333 = vpop.permute.xlu0 %1332
    %1334 = vrot.lane.b32.xlu0 %v1331, 112
    %v1335 = vpop.permute.xlu0 %1334
    %1336 = vrot.lane.b32.xlu0 %v1084, 16
    %v1337 = vpop.permute.xlu0 %1336
    %1338 = vrot.lane.b32.xlu0 %v1091, 16
    %v1339 = vpop.permute.xlu0 %1338
    %v1343 = vunpack.c.l.s4 1983009808
    %v1344 = vunpack.c.0.s8 %v1343
    %v1345 = vlaneseq
    %v1346 = vshrl.u32 %v1345, 7
    %v1347 = vsub.s32 %v1344, %v1346
    %v1348 = vrot.slane %v1310, %v1347
    %v1350 = vunpack.c.l.s4 1983009808
    %v1351 = vunpack.c.0.s8 %v1350
    %v1352 = vlaneseq
    %v1353 = vshrl.u32 %v1352, 7
    %v1354 = vsub.s32 %v1351, %v1353
    %v1355 = vrot.slane %v1311, %v1354
    %v1357 = vshrl.u32 %v1348, 16
    %v1359 = vshll.u32 %v1348, 16
    %v1361 = vrot.slane %v1359, 1
    %v1362 = vor.u32 %v1357, %v1361
    %v1364 = vshrl.u32 %v1355, 16
    %v1366 = vshll.u32 %v1355, 16
    %v1368 = vrot.slane %v1366, 1
    %v1369 = vor.u32 %v1364, %v1368
    %1370 = vrot.lane.b32.xlu0 %v1362, 16
    %v1371 = vpop.permute.xlu0 %1370
    %1372 = vrot.lane.b32.xlu0 %v1369, 16
    %v1373 = vpop.permute.xlu0 %1372
    %1374 = vrot.lane.b32.xlu0 %v1104, 32
    %v1375 = vpop.permute.xlu0 %1374
    %1376 = vrot.lane.b32.xlu0 %v1111, 32
    %v1377 = vpop.permute.xlu0 %1376
    %1378 = vrot.lane.b32.xlu0 %v1138, 64
    %v1379 = vpop.permute.xlu0 %1378
    %1380 = vrot.lane.b32.xlu0 %v1145, 64
    %v1381 = vpop.permute.xlu0 %1380
    %v1385 = vunpack.c.l.s4 1983009808
    %v1386 = vunpack.c.0.s8 %v1385
    %v1387 = vlaneseq
    %v1388 = vshrl.u32 %v1387, 7
    %v1389 = vsub.s32 %v1386, %v1388
    %v1390 = vrot.slane %v1312, %v1389
    %v1392 = vunpack.c.l.s4 1983009808
    %v1393 = vunpack.c.0.s8 %v1392
    %v1394 = vlaneseq
    %v1395 = vshrl.u32 %v1394, 7
    %v1396 = vsub.s32 %v1393, %v1395
    %v1397 = vrot.slane %v1313, %v1396
    %v1399 = vshrl.u32 %v1390, 16
    %v1401 = vshll.u32 %v1390, 16
    %v1403 = vrot.slane %v1401, 1
    %v1404 = vor.u32 %v1399, %v1403
    %v1406 = vshrl.u32 %v1397, 16
    %v1408 = vshll.u32 %v1397, 16
    %v1410 = vrot.slane %v1408, 1
    %v1411 = vor.u32 %v1406, %v1410
    %1412 = vrot.lane.b32.xlu0 %v1404, 64
    %v1413 = vpop.permute.xlu0 %1412
    %1414 = vrot.lane.b32.xlu0 %v1411, 64
    %v1415 = vpop.permute.xlu0 %1414
    %1416 = vrot.lane.b32.xlu0 %v1158, 80
    %v1417 = vpop.permute.xlu0 %1416
    %1418 = vrot.lane.b32.xlu0 %v1165, 80
    %v1419 = vpop.permute.xlu0 %1418
    %1420 = vrot.lane.b32.xlu0 %v1192, 112
    %v1421 = vpop.permute.xlu0 %1420
    %1422 = vrot.lane.b32.xlu0 %v1199, 112
    %v1423 = vpop.permute.xlu0 %1422
    %v1427 = vunpack.c.l.s4 1983009808
    %v1428 = vunpack.c.0.s8 %v1427
    %v1429 = vlaneseq
    %v1430 = vshrl.u32 %v1429, 7
    %v1431 = vsub.s32 %v1428, %v1430
    %v1432 = vrot.slane %v1314, %v1431
    %v1434 = vunpack.c.l.s4 1983009808
    %v1435 = vunpack.c.0.s8 %v1434
    %v1436 = vlaneseq
    %v1437 = vshrl.u32 %v1436, 7
    %v1438 = vsub.s32 %v1435, %v1437
    %v1439 = vrot.slane %v1315, %v1438
    %v1441 = vshrl.u32 %v1432, 16
    %v1443 = vshll.u32 %v1432, 16
    %v1445 = vrot.slane %v1443, 1
    %v1446 = vor.u32 %v1441, %v1445
    %v1448 = vshrl.u32 %v1439, 16
    %v1450 = vshll.u32 %v1439, 16
    %v1452 = vrot.slane %v1450, 1
    %v1453 = vor.u32 %v1448, %v1452
    %1454 = vrot.lane.b32.xlu0 %v1446, 112
    %v1455 = vpop.permute.xlu0 %1454
    %1456 = vrot.lane.b32.xlu0 %v1453, 112
    %v1457 = vpop.permute.xlu0 %1456
    %v1460 = vsel %vm226, %v1333, %v1337
    %v1463 = vsel %vm226, %v1335, %v1339
    %v1465 = vsel %vm229, %v1460, %v1371
    %v1467 = vsel %vm229, %v1463, %v1373
    %v1469 = vsel %vm234, %v1465, %v1375
    %v1471 = vsel %vm234, %v1467, %v1377
    %v1473 = vsel %vm239, %v1469, %v1379
    %v1475 = vsel %vm239, %v1471, %v1381
    %v1477 = vsel %vm242, %v1473, %v1413
    %v1479 = vsel %vm242, %v1475, %v1415
    %v1481 = vsel %vm247, %v1477, %v1417
    %v1483 = vsel %vm247, %v1479, %v1419
    %v1485 = vsel %vm252, %v1481, %v1421
    %v1488 = vsel %vm252, %v1483, %v1423
    %v1491 = vsel %vm226, %v1455, 0
    %1493 = vmatprep.subr.bf16.mxu0 0
    %1494 = vmatpush1.bf16.msra.mxu0 %v293
    %1495 = vmatprep.subr.bf16.mxu0 0
    %1496 = vmatpush1.bf16.msra.mxu0 %v294
    %1497 = vmatprep.subr.bf16.mxu0 0
    %1498 = vmatpush1.bf16.msra.mxu0 %v295
    %1499 = vmatprep.subr.bf16.mxu0 0
    %1500 = vmatpush1.bf16.msra.mxu0 %v296
    %1501 = vmatprep.subr.bf16.mxu0 0
    %1502 = vmatpush1.bf16.msra.mxu0 %v297
    %1503 = vmatprep.subr.bf16.mxu0 0
    %1504 = vmatpush1.bf16.msra.mxu0 %v298
    %1505 = vmatprep.subr.bf16.mxu0 0
    %1506 = vmatpush1.bf16.msra.mxu0 %v299
    %1507 = vmatprep.subr.bf16.mxu0 0
    %1508 = vmatpush1.bf16.msra.mxu0 %v300
    %1509 = vmatprep.subr.bf16.mxu0 0
    %1510 = vmatpush1.bf16.msra.mxu0 %v301
    %1511 = vmatprep.subr.bf16.mxu0 0
    %1512 = vmatpush1.bf16.msra.mxu0 0
    %1513 = vmatprep.subr.bf16.mxu0 0
    %1514 = vmatpush1.bf16.msra.mxu0 0
    %1515 = vmatprep.subr.bf16.mxu0 0
    %1516 = vmatpush1.bf16.msra.mxu0 0
    %1517 = vmatprep.subr.bf16.mxu0 0
    %1518 = vmatpush1.bf16.msra.mxu0 0
    %1519 = vmatprep.subr.bf16.mxu0 0
    %1520 = vmatpush1.bf16.msra.mxu0 0
    %1521 = vmatprep.subr.bf16.mxu0 0
    %1522 = vmatpush1.bf16.msra.mxu0 0
    %1523 = vmatprep.subr.bf16.mxu0 0
    %1524 = vmatpush1.bf16.msra.mxu0 0
    %1525 = vmatprep.mubr.bf16.mxu0 %v1491
    %1526 = vmatmul.mubr.bf16.gmra.mrb[0].mxu0 %v1485
    %v1527 = vpop.f32.mrb[0].mxu0
    %v1528 = vadd.f32 0.0, %v1527
    %v1529 = vpop.f32.mrb[0].mxu0
    %v1530 = vpop.f32.mrb[0].mxu0
    %v1531 = vpop.f32.mrb[0].mxu0
    %1532 = vdwg.mxu0
    %v1534 = vsel %vm226, %v1457, 0
    %1536 = vmatprep.subr.bf16.mxu0 0
    %1537 = vmatpush1.bf16.msra.mxu0 %v293
    %1538 = vmatprep.subr.bf16.mxu0 0
    %1539 = vmatpush1.bf16.msra.mxu0 %v294
    %1540 = vmatprep.subr.bf16.mxu0 0
    %1541 = vmatpush1.bf16.msra.mxu0 %v295
    %1542 = vmatprep.subr.bf16.mxu0 0
    %1543 = vmatpush1.bf16.msra.mxu0 %v296
    %1544 = vmatprep.subr.bf16.mxu0 0
    %1545 = vmatpush1.bf16.msra.mxu0 %v297
    %1546 = vmatprep.subr.bf16.mxu0 0
    %1547 = vmatpush1.bf16.msra.mxu0 %v298
    %1548 = vmatprep.subr.bf16.mxu0 0
    %1549 = vmatpush1.bf16.msra.mxu0 %v299
    %1550 = vmatprep.subr.bf16.mxu0 0
    %1551 = vmatpush1.bf16.msra.mxu0 %v300
    %1552 = vmatprep.subr.bf16.mxu0 0
    %1553 = vmatpush1.bf16.msra.mxu0 %v301
    %1554 = vmatprep.subr.bf16.mxu0 0
    %1555 = vmatpush1.bf16.msra.mxu0 0
    %1556 = vmatprep.subr.bf16.mxu0 0
    %1557 = vmatpush1.bf16.msra.mxu0 0
    %1558 = vmatprep.subr.bf16.mxu0 0
    %1559 = vmatpush1.bf16.msra.mxu0 0
    %1560 = vmatprep.subr.bf16.mxu0 0
    %1561 = vmatpush1.bf16.msra.mxu0 0
    %1562 = vmatprep.subr.bf16.mxu0 0
    %1563 = vmatpush1.bf16.msra.mxu0 0
    %1564 = vmatprep.subr.bf16.mxu0 0
    %1565 = vmatpush1.bf16.msra.mxu0 0
    %1566 = vmatprep.subr.bf16.mxu0 0
    %1567 = vmatpush1.bf16.msra.mxu0 0
    %1568 = vmatprep.mubr.bf16.mxu0 %v1534
    %1569 = vmatmul.mubr.bf16.gmra.mrb[0].mxu0 %v1488
    %v1570 = vpop.f32.mrb[0].mxu0
    %v1571 = vadd.f32 0.0, %v1570
    %v1572 = vpop.f32.mrb[0].mxu0
    %v1573 = vpop.f32.mrb[0].mxu0
    %v1574 = vpop.f32.mrb[0].mxu0
    %1575 = vdwg.mxu0
    %v1576 = vmax.f32 %v1262, %v1528
    %v1577 = vmax.f32 %v1305, %v1571
    %s1578 = scalar_lea.vmem [#allocation2], 22
    %v1579 = vld [vmem:[%s1578] sm:$0x1]
    %v1580 = vld [vmem:[%s1578 + $0x4] sm:$0x1]
    %v1581 = vld [vmem:[%s1578] sm:$0x3]
    %v1582 = vld [vmem:[%s1578 + $0x4] sm:$0x3]
    %1583 = vrot.lane.b32.xlu0 %v1138, 32
    %v1584 = vpop.permute.xlu0 %1583
    %1585 = vrot.lane.b32.xlu0 %v1145, 32
    %v1586 = vpop.permute.xlu0 %1585
    %1587 = vrot.lane.b32.xlu0 %v1158, 48
    %v1588 = vpop.permute.xlu0 %1587
    %1589 = vrot.lane.b32.xlu0 %v1165, 48
    %v1590 = vpop.permute.xlu0 %1589
    %1591 = vrot.lane.b32.xlu0 %v1192, 80
    %v1592 = vpop.permute.xlu0 %1591
    %1593 = vrot.lane.b32.xlu0 %v1199, 80
    %v1594 = vpop.permute.xlu0 %1593
    %v1598 = vunpack.c.l.s4 1983009808
    %v1599 = vunpack.c.0.s8 %v1598
    %v1600 = vlaneseq
    %v1601 = vshrl.u32 %v1600, 7
    %v1602 = vsub.s32 %v1599, %v1601
    %v1603 = vrot.slane %v1579, %v1602
    %v1605 = vunpack.c.l.s4 1983009808
    %v1606 = vunpack.c.0.s8 %v1605
    %v1607 = vlaneseq
    %v1608 = vshrl.u32 %v1607, 7
    %v1609 = vsub.s32 %v1606, %v1608
    %v1610 = vrot.slane %v1580, %v1609
    %1611 = vrot.lane.b32.xlu0 %v1603, 96
    %v1612 = vpop.permute.xlu0 %1611
    %1613 = vrot.lane.b32.xlu0 %v1610, 96
    %v1614 = vpop.permute.xlu0 %1613
    %v1618 = vunpack.c.l.s4 1983009808
    %v1619 = vunpack.c.0.s8 %v1618
    %v1620 = vlaneseq
    %v1621 = vshrl.u32 %v1620, 7
    %v1622 = vsub.s32 %v1619, %v1621
    %v1623 = vrot.slane %v1581, %v1622
    %v1625 = vunpack.c.l.s4 1983009808
    %v1626 = vunpack.c.0.s8 %v1625
    %v1627 = vlaneseq
    %v1628 = vshrl.u32 %v1627, 7
    %v1629 = vsub.s32 %v1626, %v1628
    %v1630 = vrot.slane %v1582, %v1629
    %v1632 = vshrl.u32 %v1623, 16
    %v1634 = vshll.u32 %v1623, 16
    %v1636 = vrot.slane %v1634, 1
    %v1637 = vor.u32 %v1632, %v1636
    %v1639 = vshrl.u32 %v1630, 16
    %v1641 = vshll.u32 %v1630, 16
    %v1643 = vrot.slane %v1641, 1
    %v1644 = vor.u32 %v1639, %v1643
    %v1648 = vsel %vm229, %v1053, %v1584
    %v1650 = vsel %vm229, %v1054, %v1586
    %v1652 = vsel %vm234, %v1648, %v1588
    %v1654 = vsel %vm234, %v1650, %v1590
    %v1655 = vsel %vm239, %v1652, %v1588
    %v1656 = vsel %vm239, %v1654, %v1590
    %v1658 = vsel %vm242, %v1655, %v1592
    %v1660 = vsel %vm242, %v1656, %v1594
    %v1662 = vsel %vm247, %v1658, %v1612
    %v1664 = vsel %vm247, %v1660, %v1614
    %v1665 = vsel %vm252, %v1662, %v1612
    %v1667 = vsel %vm252, %v1664, %v1614
    %v1670 = vsel %vm226, %v1637, 0
    %1672 = vmatprep.subr.bf16.mxu0 0
    %1673 = vmatpush1.bf16.msra.mxu0 %v293
    %1674 = vmatprep.subr.bf16.mxu0 0
    %1675 = vmatpush1.bf16.msra.mxu0 %v294
    %1676 = vmatprep.subr.bf16.mxu0 0
    %1677 = vmatpush1.bf16.msra.mxu0 %v295
    %1678 = vmatprep.subr.bf16.mxu0 0
    %1679 = vmatpush1.bf16.msra.mxu0 %v296
    %1680 = vmatprep.subr.bf16.mxu0 0
    %1681 = vmatpush1.bf16.msra.mxu0 %v297
    %1682 = vmatprep.subr.bf16.mxu0 0
    %1683 = vmatpush1.bf16.msra.mxu0 %v298
    %1684 = vmatprep.subr.bf16.mxu0 0
    %1685 = vmatpush1.bf16.msra.mxu0 %v299
    %1686 = vmatprep.subr.bf16.mxu0 0
    %1687 = vmatpush1.bf16.msra.mxu0 %v300
    %1688 = vmatprep.subr.bf16.mxu0 0
    %1689 = vmatpush1.bf16.msra.mxu0 %v301
    %1690 = vmatprep.subr.bf16.mxu0 0
    %1691 = vmatpush1.bf16.msra.mxu0 0
    %1692 = vmatprep.subr.bf16.mxu0 0
    %1693 = vmatpush1.bf16.msra.mxu0 0
    %1694 = vmatprep.subr.bf16.mxu0 0
    %1695 = vmatpush1.bf16.msra.mxu0 0
    %1696 = vmatprep.subr.bf16.mxu0 0
    %1697 = vmatpush1.bf16.msra.mxu0 0
    %1698 = vmatprep.subr.bf16.mxu0 0
    %1699 = vmatpush1.bf16.msra.mxu0 0
    %1700 = vmatprep.subr.bf16.mxu0 0
    %1701 = vmatpush1.bf16.msra.mxu0 0
    %1702 = vmatprep.subr.bf16.mxu0 0
    %1703 = vmatpush1.bf16.msra.mxu0 0
    %1704 = vmatprep.mubr.bf16.mxu0 %v1670
    %1705 = vmatmul.mubr.bf16.gmra.mrb[0].mxu0 %v1665
    %v1706 = vpop.f32.mrb[0].mxu0
    %v1707 = vadd.f32 0.0, %v1706
    %v1708 = vpop.f32.mrb[0].mxu0
    %v1709 = vpop.f32.mrb[0].mxu0
    %v1710 = vpop.f32.mrb[0].mxu0
    %1711 = vdwg.mxu0
    %v1713 = vsel %vm226, %v1644, 0
    %1715 = vmatprep.subr.bf16.mxu0 0
    %1716 = vmatpush1.bf16.msra.mxu0 %v293
    %1717 = vmatprep.subr.bf16.mxu0 0
    %1718 = vmatpush1.bf16.msra.mxu0 %v294
    %1719 = vmatprep.subr.bf16.mxu0 0
    %1720 = vmatpush1.bf16.msra.mxu0 %v295
    %1721 = vmatprep.subr.bf16.mxu0 0
    %1722 = vmatpush1.bf16.msra.mxu0 %v296
    %1723 = vmatprep.subr.bf16.mxu0 0
    %1724 = vmatpush1.bf16.msra.mxu0 %v297
    %1725 = vmatprep.subr.bf16.mxu0 0
    %1726 = vmatpush1.bf16.msra.mxu0 %v298
    %1727 = vmatprep.subr.bf16.mxu0 0
    %1728 = vmatpush1.bf16.msra.mxu0 %v299
    %1729 = vmatprep.subr.bf16.mxu0 0
    %1730 = vmatpush1.bf16.msra.mxu0 %v300
    %1731 = vmatprep.subr.bf16.mxu0 0
    %1732 = vmatpush1.bf16.msra.mxu0 %v301
    %1733 = vmatprep.subr.bf16.mxu0 0
    %1734 = vmatpush1.bf16.msra.mxu0 0
    %1735 = vmatprep.subr.bf16.mxu0 0
    %1736 = vmatpush1.bf16.msra.mxu0 0
    %1737 = vmatprep.subr.bf16.mxu0 0
    %1738 = vmatpush1.bf16.msra.mxu0 0
    %1739 = vmatprep.subr.bf16.mxu0 0
    %1740 = vmatpush1.bf16.msra.mxu0 0
    %1741 = vmatprep.subr.bf16.mxu0 0
    %1742 = vmatpush1.bf16.msra.mxu0 0
    %1743 = vmatprep.subr.bf16.mxu0 0
    %1744 = vmatpush1.bf16.msra.mxu0 0
    %1745 = vmatprep.subr.bf16.mxu0 0
    %1746 = vmatpush1.bf16.msra.mxu0 0
    %1747 = vmatprep.mubr.bf16.mxu0 %v1713
    %1748 = vmatmul.mubr.bf16.gmra.mrb[0].mxu0 %v1667
    %v1749 = vpop.f32.mrb[0].mxu0
    %v1750 = vadd.f32 0.0, %v1749
    %v1751 = vpop.f32.mrb[0].mxu0
    %v1752 = vpop.f32.mrb[0].mxu0
    %v1753 = vpop.f32.mrb[0].mxu0
    %1754 = vdwg.mxu0
    %v1755 = vmax.f32 %v1576, %v1707
    %v1756 = vmax.f32 %v1577, %v1750
    %v1757 = vld [vmem:[%s1578] sm:$0x3]
    %v1758 = vld [vmem:[%s1578 + $0x4] sm:$0x3]
    %1759 = vrot.lane.b32.xlu0 %v1104, 112
    %v1760 = vpop.permute.xlu0 %1759
    %1761 = vrot.lane.b32.xlu0 %v1111, 112
    %v1762 = vpop.permute.xlu0 %1761
    %1763 = vrot.lane.b32.xlu0 %v1138, 16
    %v1764 = vpop.permute.xlu0 %1763
    %1765 = vrot.lane.b32.xlu0 %v1145, 16
    %v1766 = vpop.permute.xlu0 %1765
    %1767 = vrot.lane.b32.xlu0 %v1404, 16
    %v1768 = vpop.permute.xlu0 %1767
    %1769 = vrot.lane.b32.xlu0 %v1411, 16
    %v1770 = vpop.permute.xlu0 %1769
    %1771 = vrot.lane.b32.xlu0 %v1158, 32
    %v1772 = vpop.permute.xlu0 %1771
    %1773 = vrot.lane.b32.xlu0 %v1165, 32
    %v1774 = vpop.permute.xlu0 %1773
    %1775 = vrot.lane.b32.xlu0 %v1192, 64
    %v1776 = vpop.permute.xlu0 %1775
    %1777 = vrot.lane.b32.xlu0 %v1199, 64
    %v1778 = vpop.permute.xlu0 %1777
    %1779 = vrot.lane.b32.xlu0 %v1446, 64
    %v1780 = vpop.permute.xlu0 %1779
    %1781 = vrot.lane.b32.xlu0 %v1453, 64
    %v1782 = vpop.permute.xlu0 %1781
    %1783 = vrot.lane.b32.xlu0 %v1603, 80
    %v1784 = vpop.permute.xlu0 %1783
    %1785 = vrot.lane.b32.xlu0 %v1610, 80
    %v1786 = vpop.permute.xlu0 %1785
    %1787 = vrot.lane.b32.xlu0 %v1637, 112
    %v1788 = vpop.permute.xlu0 %1787
    %1789 = vrot.lane.b32.xlu0 %v1644, 112
    %v1790 = vpop.permute.xlu0 %1789
    %v1794 = vunpack.c.l.s4 1983009808
    %v1795 = vunpack.c.0.s8 %v1794
    %v1796 = vlaneseq
    %v1797 = vshrl.u32 %v1796, 7
    %v1798 = vsub.s32 %v1795, %v1797
    %v1799 = vrot.slane %v1757, %v1798
    %v1801 = vunpack.c.l.s4 1983009808
    %v1802 = vunpack.c.0.s8 %v1801
    %v1803 = vlaneseq
    %v1804 = vshrl.u32 %v1803, 7
    %v1805 = vsub.s32 %v1802, %v1804
    %v1806 = vrot.slane %v1758, %v1805
    %v1808 = vshrl.u32 %v1799, 16
    %v1810 = vshll.u32 %v1799, 16
    %v1812 = vrot.slane %v1810, 1
    %v1813 = vor.u32 %v1808, %v1812
    %v1815 = vshrl.u32 %v1806, 16
    %v1817 = vshll.u32 %v1806, 16
    %v1819 = vrot.slane %v1817, 1
    %v1820 = vor.u32 %v1815, %v1819
    %1821 = vrot.lane.b32.xlu0 %v1813, 112
    %v1822 = vpop.permute.xlu0 %1821
    %1823 = vrot.lane.b32.xlu0 %v1820, 112
    %v1824 = vpop.permute.xlu0 %1823
    %v1827 = vsel %vm226, %v1760, %v1764
    %v1830 = vsel %vm226, %v1762, %v1766
    %v1832 = vsel %vm229, %v1827, %v1768
    %v1834 = vsel %vm229, %v1830, %v1770
    %v1836 = vsel %vm234, %v1832, %v1772
    %v1838 = vsel %vm234, %v1834, %v1774
    %v1840 = vsel %vm239, %v1836, %v1776
    %v1842 = vsel %vm239, %v1838, %v1778
    %v1844 = vsel %vm242, %v1840, %v1780
    %v1846 = vsel %vm242, %v1842, %v1782
    %v1848 = vsel %vm247, %v1844, %v1784
    %v1850 = vsel %vm247, %v1846, %v1786
    %v1852 = vsel %vm252, %v1848, %v1788
    %v1855 = vsel %vm252, %v1850, %v1790
    %v1858 = vsel %vm226, %v1822, 0
    %1860 = vmatprep.subr.bf16.mxu0 0
    %1861 = vmatpush1.bf16.msra.mxu0 %v293
    %1862 = vmatprep.subr.bf16.mxu0 0
    %1863 = vmatpush1.bf16.msra.mxu0 %v294
    %1864 = vmatprep.subr.bf16.mxu0 0
    %1865 = vmatpush1.bf16.msra.mxu0 %v295
    %1866 = vmatprep.subr.bf16.mxu0 0
    %1867 = vmatpush1.bf16.msra.mxu0 %v296
    %1868 = vmatprep.subr.bf16.mxu0 0
    %1869 = vmatpush1.bf16.msra.mxu0 %v297
    %1870 = vmatprep.subr.bf16.mxu0 0
    %1871 = vmatpush1.bf16.msra.mxu0 %v298
    %1872 = vmatprep.subr.bf16.mxu0 0
    %1873 = vmatpush1.bf16.msra.mxu0 %v299
    %1874 = vmatprep.subr.bf16.mxu0 0
    %1875 = vmatpush1.bf16.msra.mxu0 %v300
    %1876 = vmatprep.subr.bf16.mxu0 0
    %1877 = vmatpush1.bf16.msra.mxu0 %v301
    %1878 = vmatprep.subr.bf16.mxu0 0
    %1879 = vmatpush1.bf16.msra.mxu0 0
    %1880 = vmatprep.subr.bf16.mxu0 0
    %1881 = vmatpush1.bf16.msra.mxu0 0
    %1882 = vmatprep.subr.bf16.mxu0 0
    %1883 = vmatpush1.bf16.msra.mxu0 0
    %1884 = vmatprep.subr.bf16.mxu0 0
    %1885 = vmatpush1.bf16.msra.mxu0 0
    %1886 = vmatprep.subr.bf16.mxu0 0
    %1887 = vmatpush1.bf16.msra.mxu0 0
    %1888 = vmatprep.subr.bf16.mxu0 0
    %1889 = vmatpush1.bf16.msra.mxu0 0
    %1890 = vmatprep.subr.bf16.mxu0 0
    %1891 = vmatpush1.bf16.msra.mxu0 0
    %1892 = vmatprep.mubr.bf16.mxu0 %v1858
    %1893 = vmatmul.mubr.bf16.gmra.mrb[0].mxu0 %v1852
    %v1894 = vpop.f32.mrb[0].mxu0
    %v1895 = vadd.f32 0.0, %v1894
    %v1896 = vpop.f32.mrb[0].mxu0
    %v1897 = vpop.f32.mrb[0].mxu0
    %v1898 = vpop.f32.mrb[0].mxu0
    %1899 = vdwg.mxu0
    %v1901 = vsel %vm226, %v1824, 0
    %1903 = vmatprep.subr.bf16.mxu0 0
    %1904 = vmatpush1.bf16.msra.mxu0 %v293
    %1905 = vmatprep.subr.bf16.mxu0 0
    %1906 = vmatpush1.bf16.msra.mxu0 %v294
    %1907 = vmatprep.subr.bf16.mxu0 0
    %1908 = vmatpush1.bf16.msra.mxu0 %v295
    %1909 = vmatprep.subr.bf16.mxu0 0
    %1910 = vmatpush1.bf16.msra.mxu0 %v296
    %1911 = vmatprep.subr.bf16.mxu0 0
    %1912 = vmatpush1.bf16.msra.mxu0 %v297
    %1913 = vmatprep.subr.bf16.mxu0 0
    %1914 = vmatpush1.bf16.msra.mxu0 %v298
    %1915 = vmatprep.subr.bf16.mxu0 0
    %1916 = vmatpush1.bf16.msra.mxu0 %v299
    %1917 = vmatprep.subr.bf16.mxu0 0
    %1918 = vmatpush1.bf16.msra.mxu0 %v300
    %1919 = vmatprep.subr.bf16.mxu0 0
    %1920 = vmatpush1.bf16.msra.mxu0 %v301
    %1921 = vmatprep.subr.bf16.mxu0 0
    %1922 = vmatpush1.bf16.msra.mxu0 0
    %1923 = vmatprep.subr.bf16.mxu0 0
    %1924 = vmatpush1.bf16.msra.mxu0 0
    %1925 = vmatprep.subr.bf16.mxu0 0
    %1926 = vmatpush1.bf16.msra.mxu0 0
    %1927 = vmatprep.subr.bf16.mxu0 0
    %1928 = vmatpush1.bf16.msra.mxu0 0
    %1929 = vmatprep.subr.bf16.mxu0 0
    %1930 = vmatpush1.bf16.msra.mxu0 0
    %1931 = vmatprep.subr.bf16.mxu0 0
    %1932 = vmatpush1.bf16.msra.mxu0 0
    %1933 = vmatprep.subr.bf16.mxu0 0
    %1934 = vmatpush1.bf16.msra.mxu0 0
    %1935 = vmatprep.mubr.bf16.mxu0 %v1901
    %1936 = vmatmul.mubr.bf16.gmra.mrb[0].mxu0 %v1855
    %v1937 = vpop.f32.mrb[0].mxu0
    %v1938 = vadd.f32 0.0, %v1937
    %v1939 = vpop.f32.mrb[0].mxu0
    %v1940 = vpop.f32.mrb[0].mxu0
    %v1941 = vpop.f32.mrb[0].mxu0
    %1942 = vdwg.mxu0
    %v1943 = vmax.f32 %v1755, %v1895
    %v1944 = vmax.f32 %v1756, %v1938
    %v1945 = vadd.f32 %v1943, %v1036
    %v1946 = vadd.f32 %v1944, %v1036
    %v1947 = vmax.f32 %v1945, 0.0
    %v1948 = vmax.f32 %v1946, 0.0
    %v1949 = vpack.c.bf16 %v1947, %v1947
    %v1950 = vpack.c.bf16 %v1948, %v1948
    %s1951 = scalar_lea.vmem [#allocation8], 2
    %1952 = vst.msk [vmem:[%s1951] sm:$0x1] %vm1044, %v1949
    %1953 = vst.msk [vmem:[%s1951 + $0x1] sm:$0x1] %vm1044, %v1950
    // Predicated region
    $region26: #{forward.4} parent=1 // pred_check
      _
    $region27: #{forward.4} parent=1 // pred_check_branch
      %1955 = sbr.rel (0) target = $region29
    $region28: #{forward.4} parent=1 // pred_region
      %s1957 = ssub.s32 64, 64
      %1958 = vsyncadd [#allocation4], %s1957
      %s1959 = sshll.u32 [#allocation8], 4
      %s1960 = int_to_ptr.vmem [resolvable:$true] %s1959
      %1965 = dma.vmem_to_hbm [thread:$0]  %s1960, 64, %s3, [#allocation4], 16, 16, 1
    $region29: #{forward.4} parent=1 // pred_fallthru
      _
    // Predicated region
    $region30: #{forward.4} parent=1 // pred_check
      _
    $region31: #{forward.4} parent=1 // pred_check_branch
      %1967 = sbr.rel (0) target = $region33
    $region32: #{forward.4} parent=1 // pred_region
      %1968 = dma.done [#allocation4], 64
    $region33: #{forward.4} parent=1 // pred_fallthru
      _
    %1969 = vsyncpa [#allocation3], 1
    %1970 = vsyncpa [#allocation6], 1
    %1971 = vsyncpa [#allocation4], 1

// kernel: forward.3
$region0: #{forward.3}
  #allocation0 [shape = 'u32[]', space=smem, size = 0x4, offset = 0x4, fixed_abs, tag = 'smem constant byte address 0x4 - core index']
  #allocation1 [shape = 'u32[144,128]{1,0:T(1,128)}', space=vmem, size = 0x12000, scoped, tag = 'internal scratch']
  %s0 = inlined_call_operand.hbm [shape: bf16[2,8,2,8,6], index: 0, kind: input, shape index: {}]
  %s1 = inlined_call_operand.hbm [shape: bf16[27,16], index: 1, kind: input, shape index: {}]
  %s2 = inlined_call_operand.hbm [shape: f32[1,16], index: 2, kind: input, shape index: {}]
  %s3 = inlined_call_operand.hbm [shape: bf16[2,7,7,16], index: 3, kind: output, shape index: {}]
  %s4 = sld [smem:[#allocation0]]
  $region34: #{forward.3} parent=0
    _
  %s6 = ssub.s32 1, %s4
  %s7 = scalar_select 0, %s6, %s4
  $region1: #{forward.3} parent=0
    #allocation2 [shape = 'u8[65536]{0}', space=vmem, size = 0x10000, scoped, tag = 'input window, operand 0, single buffered']
    #allocation3 [shape = 's32[1]{0}', space=sflag, size = 0x4, scoped, tag = 'scoped memory for forward.3']
    #allocation4 [shape = 's32[1]{0}', space=sflag, size = 0x4, scoped, tag = 'scoped memory for forward.3']
    #allocation5 [shape = 'u8[8192]{0}', space=vmem, size = 0x2000, scoped, tag = 'input window, operand 1, single buffered']
    #allocation6 [shape = 's32[1]{0}', space=sflag, size = 0x4, scoped, tag = 'scoped memory for forward.3']
    #allocation7 [shape = 'u8[512]{0}', space=vmem, size = 0x400, scoped, tag = 'input window, operand 2, single buffered']
    #allocation8 [shape = 'u8[28672]{0}', space=vmem, size = 0x7000, scoped, tag = 'output window, operand 0, single buffered']
    %8 = vsyncpa [#allocation3], 0
    %9 = vsyncpa [#allocation6], 0
    %10 = vsyncpa [#allocation4], 0
    // Predicated region
    $region2: #{forward.3} parent=1 // pred_check
      _
    $region3: #{forward.3} parent=1 // pred_check_branch
      %12 = sbr.rel (0) target = $region5
    $region4: #{forward.3} parent=1 // pred_region
      %s14 = ssub.s32 2048, 2048
      %15 = vsyncadd [#allocation3], %s14
      %s16 = sshll.u32 [#allocation2], 4
      %s17 = int_to_ptr.vmem [resolvable:$true] %s16
      %22 = dma.hbm_to_vmem [thread:$0]  %s0, 2048, %s17, [#allocation3], 64, 64, 4
    $region5: #{forward.3} parent=1 // pred_fallthru
      _
    // Predicated region
    $region6: #{forward.3} parent=1 // pred_check
      _
    $region7: #{forward.3} parent=1 // pred_check_branch
      %24 = sbr.rel (0) target = $region9
    $region8: #{forward.3} parent=1 // pred_region
      %s26 = ssub.s32 256, 256
      %27 = vsyncadd [#allocation6], %s26
      %s28 = sshll.u32 [#allocation5], 4
      %s29 = int_to_ptr.vmem [resolvable:$true] %s28
      %34 = dma.hbm_to_vmem [thread:$0]  %s1, 256, %s29, [#allocation6], 64, 64, 4
    $region9: #{forward.3} parent=1 // pred_fallthru
      _
    // Predicated region
    $region10: #{forward.3} parent=1 // pred_check
      _
    $region11: #{forward.3} parent=1 // pred_check_branch
      %36 = sbr.rel (0) target = $region13
    $region12: #{forward.3} parent=1 // pred_region
      %s38 = ssub.s32 16, 16
      %39 = vsyncadd [#allocation6], %s38
      %s41 = sshll.u32 [#allocation7], 4
      %s42 = int_to_ptr.vmem [resolvable:$true] %s41
      %44 = dma.hbm_to_vmem [thread:$0]  %s2, 16, %s42, [#allocation6]
    $region13: #{forward.3} parent=1 // pred_fallthru
      _
    // Predicated region
    $region14: #{forward.3} parent=1 // pred_check
      _
    $region15: #{forward.3} parent=1 // pred_check_branch
      %46 = sbr.rel (0) target = $region17
    $region16: #{forward.3} parent=1 // pred_region
      %47 = dma.done [#allocation3], 2048
    $region17: #{forward.3} parent=1 // pred_fallthru
      _
    // Predicated region
    $region18: #{forward.3} parent=1 // pred_check
      _
    $region19: #{forward.3} parent=1 // pred_check_branch
      %49 = sbr.rel (0) target = $region21
    $region20: #{forward.3} parent=1 // pred_region
      %50 = dma.done [#allocation6], 256
    $region21: #{forward.3} parent=1 // pred_fallthru
      _
    // Predicated region
    $region22: #{forward.3} parent=1 // pred_check
      _
    $region23: #{forward.3} parent=1 // pred_check_branch
      %52 = sbr.rel (0) target = $region25
    $region24: #{forward.3} parent=1 // pred_region
      %53 = dma.done [#allocation6], 16
    $region25: #{forward.3} parent=1 // pred_fallthru
      _
    %v55 = vld [vmem:[#allocation5] sm:$0xf]
    %v56 = vld [vmem:[#allocation5 + $0x4] sm:$0xf]
    %v57 = vld [vmem:[#allocation5 + $0x8] sm:$0xf]
    %v58 = vld [vmem:[#allocation5 + $0xc] sm:$0x3]
    %v59 = vld [vmem:[#allocation7] sm:$0x1]
    %v60 = vld [vmem:[#allocation2] sm:$0xf]
    %v61 = vld [vmem:[#allocation2 + $0x8] sm:$0xf]
    %v62 = vld [vmem:[#allocation2 + $0x10] sm:$0xf]
    %v63 = vld [vmem:[#allocation2 + $0x18] sm:$0xf]
    %v64 = vld [vmem:[#allocation2 + $0x20] sm:$0xf]
    %v65 = vld [vmem:[#allocation2 + $0x28] sm:$0xf]
    %v66 = vld [vmem:[#allocation2 + $0x30] sm:$0xf]
    %s67 = scalar_lea.vmem [#allocation2], 4
    %v68 = vld [vmem:[%s67] sm:$0xf]
    %v69 = vld [vmem:[%s67 + $0x8] sm:$0xf]
    %v70 = vld [vmem:[%s67 + $0x10] sm:$0xf]
    %v71 = vld [vmem:[%s67 + $0x18] sm:$0xf]
    %v72 = vld [vmem:[%s67 + $0x20] sm:$0xf]
    %v73 = vld [vmem:[%s67 + $0x28] sm:$0xf]
    %v74 = vld [vmem:[%s67 + $0x30] sm:$0xf]
    %s75 = scalar_lea.vmem [#allocation2], 8
    %v76 = vld [vmem:[%s75] sm:$0xf]
    %v77 = vld [vmem:[%s75 + $0x8] sm:$0xf]
    %v78 = vld [vmem:[%s75 + $0x10] sm:$0xf]
    %v79 = vld [vmem:[%s75 + $0x18] sm:$0xf]
    %v80 = vld [vmem:[%s75 + $0x20] sm:$0xf]
    %v81 = vld [vmem:[%s75 + $0x28] sm:$0xf]
    %v82 = vld [vmem:[%s75 + $0x30] sm:$0xf]
    %v90 = vunpack.c.l.b16 %v60
    %v91 = vunpack.c.l.b16 %v61
    %v92 = vunpack.c.l.b16 %v62
    %v93 = vunpack.c.l.b16 %v63
    %v94 = vunpack.c.l.b16 %v64
    %v95 = vunpack.c.l.b16 %v65
    %v96 = vunpack.c.l.b16 %v66
    %v97 = vpack.c.b16 %v90, %v90
    %v98 = vpack.c.b16 %v91, %v91
    %v99 = vpack.c.b16 %v92, %v92
    %v100 = vpack.c.b16 %v93, %v93
    %v101 = vpack.c.b16 %v94, %v94
    %v102 = vpack.c.b16 %v95, %v95
    %v103 = vpack.c.b16 %v96, %v96
    %v105 = vshrl.u32 %v97, 16
    %v107 = vshll.u32 %v97, 16
    %v109 = vrot.slane %v107, 1
    %v110 = vor.u32 %v105, %v109
    %v112 = vshrl.u32 %v98, 16
    %v114 = vshll.u32 %v98, 16
    %v116 = vrot.slane %v114, 1
    %v117 = vor.u32 %v112, %v116
    %v119 = vshrl.u32 %v99, 16
    %v121 = vshll.u32 %v99, 16
    %v123 = vrot.slane %v121, 1
    %v124 = vor.u32 %v119, %v123
    %v126 = vshrl.u32 %v100, 16
    %v128 = vshll.u32 %v100, 16
    %v130 = vrot.slane %v128, 1
    %v131 = vor.u32 %v126, %v130
    %v133 = vshrl.u32 %v101, 16
    %v135 = vshll.u32 %v101, 16
    %v137 = vrot.slane %v135, 1
    %v138 = vor.u32 %v133, %v137
    %v140 = vshrl.u32 %v102, 16
    %v142 = vshll.u32 %v102, 16
    %v144 = vrot.slane %v142, 1
    %v145 = vor.u32 %v140, %v144
    %v147 = vshrl.u32 %v103, 16
    %v149 = vshll.u32 %v103, 16
    %v151 = vrot.slane %v149, 1
    %v152 = vor.u32 %v147, %v151
    %153 = vrot.lane.b32.xlu0 %v110, 6
    %v154 = vpop.permute.xlu0 %153
    %155 = vrot.lane.b32.xlu0 %v117, 6
    %v156 = vpop.permute.xlu0 %155
    %157 = vrot.lane.b32.xlu0 %v124, 6
    %v158 = vpop.permute.xlu0 %157
    %159 = vrot.lane.b32.xlu0 %v131, 6
    %v160 = vpop.permute.xlu0 %159
    %161 = vrot.lane.b32.xlu0 %v138, 6
    %v162 = vpop.permute.xlu0 %161
    %163 = vrot.lane.b32.xlu0 %v145, 6
    %v164 = vpop.permute.xlu0 %163
    %165 = vrot.lane.b32.xlu0 %v152, 6
    %v166 = vpop.permute.xlu0 %165
    %v174 = vunpack.c.l.b16 %v68
    %v175 = vunpack.c.l.b16 %v69
    %v176 = vunpack.c.l.b16 %v70
    %v177 = vunpack.c.l.b16 %v71
    %v178 = vunpack.c.l.b16 %v72
    %v179 = vunpack.c.l.b16 %v73
    %v180 = vunpack.c.l.b16 %v74
    %v181 = vpack.c.b16 %v174, %v174
    %v182 = vpack.c.b16 %v175, %v175
    %v183 = vpack.c.b16 %v176, %v176
    %v184 = vpack.c.b16 %v177, %v177
    %v185 = vpack.c.b16 %v178, %v178
    %v186 = vpack.c.b16 %v179, %v179
    %v187 = vpack.c.b16 %v180, %v180
    %188 = vrot.lane.b32.xlu0 %v181, 9
    %v189 = vpop.permute.xlu0 %188
    %190 = vrot.lane.b32.xlu0 %v182, 9
    %v191 = vpop.permute.xlu0 %190
    %192 = vrot.lane.b32.xlu0 %v183, 9
    %v193 = vpop.permute.xlu0 %192
    %194 = vrot.lane.b32.xlu0 %v184, 9
    %v195 = vpop.permute.xlu0 %194
    %196 = vrot.lane.b32.xlu0 %v185, 9
    %v197 = vpop.permute.xlu0 %196
    %198 = vrot.lane.b32.xlu0 %v186, 9
    %v199 = vpop.permute.xlu0 %198
    %200 = vrot.lane.b32.xlu0 %v187, 9
    %v201 = vpop.permute.xlu0 %200
    %v203 = vshrl.u32 %v181, 16
    %v205 = vshll.u32 %v181, 16
    %v207 = vrot.slane %v205, 1
    %v208 = vor.u32 %v203, %v207
    %v210 = vshrl.u32 %v182, 16
    %v212 = vshll.u32 %v182, 16
    %v214 = vrot.slane %v212, 1
    %v215 = vor.u32 %v210, %v214
    %v217 = vshrl.u32 %v183, 16
    %v219 = vshll.u32 %v183, 16
    %v221 = vrot.slane %v219, 1
    %v222 = vor.u32 %v217, %v221
    %v224 = vshrl.u32 %v184, 16
    %v226 = vshll.u32 %v184, 16
    %v228 = vrot.slane %v226, 1
    %v229 = vor.u32 %v224, %v228
    %v231 = vshrl.u32 %v185, 16
    %v233 = vshll.u32 %v185, 16
    %v235 = vrot.slane %v233, 1
    %v236 = vor.u32 %v231, %v235
    %v238 = vshrl.u32 %v186, 16
    %v240 = vshll.u32 %v186, 16
    %v242 = vrot.slane %v240, 1
    %v243 = vor.u32 %v238, %v242
    %v245 = vshrl.u32 %v187, 16
    %v247 = vshll.u32 %v187, 16
    %v249 = vrot.slane %v247, 1
    %v250 = vor.u32 %v245, %v249
    %251 = vrot.lane.b32.xlu0 %v208, 15
    %v252 = vpop.permute.xlu0 %251
    %253 = vrot.lane.b32.xlu0 %v215, 15
    %v254 = vpop.permute.xlu0 %253
    %255 = vrot.lane.b32.xlu0 %v222, 15
    %v256 = vpop.permute.xlu0 %255
    %257 = vrot.lane.b32.xlu0 %v229, 15
    %v258 = vpop.permute.xlu0 %257
    %259 = vrot.lane.b32.xlu0 %v236, 15
    %v260 = vpop.permute.xlu0 %259
    %261 = vrot.lane.b32.xlu0 %v243, 15
    %v262 = vpop.permute.xlu0 %261
    %263 = vrot.lane.b32.xlu0 %v250, 15
    %v264 = vpop.permute.xlu0 %263
    %v272 = vunpack.c.l.b16 %v76
    %v273 = vunpack.c.l.b16 %v77
    %v274 = vunpack.c.l.b16 %v78
    %v275 = vunpack.c.l.b16 %v79
    %v276 = vunpack.c.l.b16 %v80
    %v277 = vunpack.c.l.b16 %v81
    %v278 = vunpack.c.l.b16 %v82
    %v279 = vpack.c.b16 %v272, %v272
    %v280 = vpack.c.b16 %v273, %v273
    %v281 = vpack.c.b16 %v274, %v274
    %v282 = vpack.c.b16 %v275, %v275
    %v283 = vpack.c.b16 %v276, %v276
    %v284 = vpack.c.b16 %v277, %v277
    %v285 = vpack.c.b16 %v278, %v278
    %286 = vrot.lane.b32.xlu0 %v279, 18
    %v287 = vpop.permute.xlu0 %286
    %288 = vrot.lane.b32.xlu0 %v280, 18
    %v289 = vpop.permute.xlu0 %288
    %290 = vrot.lane.b32.xlu0 %v281, 18
    %v291 = vpop.permute.xlu0 %290
    %292 = vrot.lane.b32.xlu0 %v282, 18
    %v293 = vpop.permute.xlu0 %292
    %294 = vrot.lane.b32.xlu0 %v283, 18
    %v295 = vpop.permute.xlu0 %294
    %296 = vrot.lane.b32.xlu0 %v284, 18
    %v297 = vpop.permute.xlu0 %296
    %298 = vrot.lane.b32.xlu0 %v285, 18
    %v299 = vpop.permute.xlu0 %298
    %v301 = vshrl.u32 %v279, 16
    %v303 = vshll.u32 %v279, 16
    %v305 = vrot.slane %v303, 1
    %v306 = vor.u32 %v301, %v305
    %v308 = vshrl.u32 %v280, 16
    %v310 = vshll.u32 %v280, 16
    %v312 = vrot.slane %v310, 1
    %v313 = vor.u32 %v308, %v312
    %v315 = vshrl.u32 %v281, 16
    %v317 = vshll.u32 %v281, 16
    %v319 = vrot.slane %v317, 1
    %v320 = vor.u32 %v315, %v319
    %v322 = vshrl.u32 %v282, 16
    %v324 = vshll.u32 %v282, 16
    %v326 = vrot.slane %v324, 1
    %v327 = vor.u32 %v322, %v326
    %v329 = vshrl.u32 %v283, 16
    %v331 = vshll.u32 %v283, 16
    %v333 = vrot.slane %v331, 1
    %v334 = vor.u32 %v329, %v333
    %v336 = vshrl.u32 %v284, 16
    %v338 = vshll.u32 %v284, 16
    %v340 = vrot.slane %v338, 1
    %v341 = vor.u32 %v336, %v340
    %v343 = vshrl.u32 %v285, 16
    %v345 = vshll.u32 %v285, 16
    %v347 = vrot.slane %v345, 1
    %v348 = vor.u32 %v343, %v347
    %349 = vrot.lane.b32.xlu0 %v306, 24
    %v350 = vpop.permute.xlu0 %349
    %351 = vrot.lane.b32.xlu0 %v313, 24
    %v352 = vpop.permute.xlu0 %351
    %353 = vrot.lane.b32.xlu0 %v320, 24
    %v354 = vpop.permute.xlu0 %353
    %355 = vrot.lane.b32.xlu0 %v327, 24
    %v356 = vpop.permute.xlu0 %355
    %357 = vrot.lane.b32.xlu0 %v334, 24
    %v358 = vpop.permute.xlu0 %357
    %359 = vrot.lane.b32.xlu0 %v341, 24
    %v360 = vpop.permute.xlu0 %359
    %361 = vrot.lane.b32.xlu0 %v348, 24
    %v362 = vpop.permute.xlu0 %361
    %vm363 = vcmask 23552
    %vm371 = vcmask 48128
    %v373 = vsel %vm371, %v60, %v154
    %v375 = vsel %vm371, %v61, %v156
    %v377 = vsel %vm371, %v62, %v158
    %v379 = vsel %vm371, %v63, %v160
    %v381 = vsel %vm371, %v64, %v162
    %v383 = vsel %vm371, %v65, %v164
    %v385 = vsel %vm371, %v66, %v166
    %vm386 = vcmask 72704
    %v388 = vsel %vm386, %v373, %v189
    %v390 = vsel %vm386, %v375, %v191
    %v392 = vsel %vm386, %v377, %v193
    %v394 = vsel %vm386, %v379, %v195
    %v396 = vsel %vm386, %v381, %v197
    %v398 = vsel %vm386, %v383, %v199
    %v400 = vsel %vm386, %v385, %v201
    %vm401 = vcmask 97280
    %v402 = vsel %vm401, %v388, %v189
    %v403 = vsel %vm401, %v390, %v191
    %v404 = vsel %vm401, %v392, %v193
    %v405 = vsel %vm401, %v394, %v195
    %v406 = vsel %vm401, %v396, %v197
    %v407 = vsel %vm401, %v398, %v199
    %v408 = vsel %vm401, %v400, %v201
    %vm409 = vcmask 121856
    %v411 = vsel %vm409, %v402, %v252
    %v413 = vsel %vm409, %v403, %v254
    %v415 = vsel %vm409, %v404, %v256
    %v417 = vsel %vm409, %v405, %v258
    %v419 = vsel %vm409, %v406, %v260
    %v421 = vsel %vm409, %v407, %v262
    %v423 = vsel %vm409, %v408, %v264
    %vm424 = vcmask 146432
    %v426 = vsel %vm424, %v411, %v287
    %v428 = vsel %vm424, %v413, %v289
    %v430 = vsel %vm424, %v415, %v291
    %v432 = vsel %vm424, %v417, %v293
    %v434 = vsel %vm424, %v419, %v295
    %v436 = vsel %vm424, %v421, %v297
    %v438 = vsel %vm424, %v423, %v299
    %vm439 = vcmask 171008
    %v440 = vsel %vm439, %v426, %v287
    %v441 = vsel %vm439, %v428, %v289
    %v442 = vsel %vm439, %v430, %v291
    %v443 = vsel %vm439, %v432, %v293
    %v444 = vsel %vm439, %v434, %v295
    %v445 = vsel %vm439, %v436, %v297
    %v446 = vsel %vm439, %v438, %v299
    %vm447 = vcmask 195584
    %v449 = vsel %vm447, %v440, %v350
    %v451 = vsel %vm447, %v441, %v352
    %v453 = vsel %vm447, %v442, %v354
    %v455 = vsel %vm447, %v443, %v356
    %v457 = vsel %vm447, %v444, %v358
    %v459 = vsel %vm447, %v445, %v360
    %v461 = vsel %vm447, %v446, %v362
    %v466 = vunpack.c.l.b16 %v55
    %v467 = vunpack.c.l.b16 %v56
    %v468 = vunpack.c.l.b16 %v57
    %v469 = vunpack.c.l.b16 %v58
    %v470 = vpack.c.b16 %v467, %v466
    %v471 = vpack.c.b16 %v469, %v468
    %vm473 = vcmask 220160
    %v474 = vsel %vm473, %v449, 0
    %vm476 = vcmask 1044480
    %vm477 = vcmask 1045504
    %v478 = vsel %vm476, 4294967295, 65535
    %v479 = vsel %vm477, %v478, 0
    %v481 = vand.u32 %v471, %v479
    %483 = vmatprep.subr.bf16.mxu0 0
    %484 = vmatpush1.bf16.msra.mxu0 %v470
    %485 = vmatprep.subr.bf16.mxu0 0
    %486 = vmatpush1.bf16.msra.mxu0 %v481
    %487 = vmatprep.subr.bf16.mxu0 0
    %488 = vmatpush1.bf16.msra.mxu0 0
    %489 = vmatprep.subr.bf16.mxu0 0
    %490 = vmatpush1.bf16.msra.mxu0 0
    %491 = vmatprep.subr.bf16.mxu0 0
    %492 = vmatpush1.bf16.msra.mxu0 0
    %493 = vmatprep.subr.bf16.mxu0 0
    %494 = vmatpush1.bf16.msra.mxu0 0
    %495 = vmatprep.subr.bf16.mxu0 0
    %496 = vmatpush1.bf16.msra.mxu0 0
    %497 = vmatprep.subr.bf16.mxu0 0
    %498 = vmatpush1.bf16.msra.mxu0 0
    %499 = vmatprep.subr.bf16.mxu0 0
    %500 = vmatpush1.bf16.msra.mxu0 0
    %501 = vmatprep.subr.bf16.mxu0 0
    %502 = vmatpush1.bf16.msra.mxu0 0
    %503 = vmatprep.subr.bf16.mxu0 0
    %504 = vmatpush1.bf16.msra.mxu0 0
    %505 = vmatprep.subr.bf16.mxu0 0
    %506 = vmatpush1.bf16.msra.mxu0 0
    %507 = vmatprep.subr.bf16.mxu0 0
    %508 = vmatpush1.bf16.msra.mxu0 0
    %509 = vmatprep.subr.bf16.mxu0 0
    %510 = vmatpush1.bf16.msra.mxu0 0
    %511 = vmatprep.subr.bf16.mxu0 0
    %512 = vmatpush1.bf16.msra.mxu0 0
    %513 = vmatprep.subr.bf16.mxu0 0
    %514 = vmatpush1.bf16.msra.mxu0 0
    %515 = vmatprep.mubr.bf16.mxu0 0
    %516 = vmatmul.mubr.bf16.gmra.mrb[0].mxu0 %v474
    %v517 = vpop.f32.mrb[0].mxu0
    %v518 = vadd.f32 0.0, %v517
    %v519 = vpop.f32.mrb[0].mxu0
    %v520 = vpop.f32.mrb[0].mxu0
    %v521 = vpop.f32.mrb[0].mxu0
    %522 = vdwg.mxu0
    %v523 = vsel %vm473, %v451, 0
    %525 = vmatprep.subr.bf16.mxu0 0
    %526 = vmatpush1.bf16.msra.mxu0 %v470
    %527 = vmatprep.subr.bf16.mxu0 0
    %528 = vmatpush1.bf16.msra.mxu0 %v481
    %529 = vmatprep.subr.bf16.mxu0 0
    %530 = vmatpush1.bf16.msra.mxu0 0
    %531 = vmatprep.subr.bf16.mxu0 0
    %532 = vmatpush1.bf16.msra.mxu0 0
    %533 = vmatprep.subr.bf16.mxu0 0
    %534 = vmatpush1.bf16.msra.mxu0 0
    %535 = vmatprep.subr.bf16.mxu0 0
    %536 = vmatpush1.bf16.msra.mxu0 0
    %537 = vmatprep.subr.bf16.mxu0 0
    %538 = vmatpush1.bf16.msra.mxu0 0
    %539 = vmatprep.subr.bf16.mxu0 0
    %540 = vmatpush1.bf16.msra.mxu0 0
    %541 = vmatprep.subr.bf16.mxu0 0
    %542 = vmatpush1.bf16.msra.mxu0 0
    %543 = vmatprep.subr.bf16.mxu0 0
    %544 = vmatpush1.bf16.msra.mxu0 0
    %545 = vmatprep.subr.bf16.mxu0 0
    %546 = vmatpush1.bf16.msra.mxu0 0
    %547 = vmatprep.subr.bf16.mxu0 0
    %548 = vmatpush1.bf16.msra.mxu0 0
    %549 = vmatprep.subr.bf16.mxu0 0
    %550 = vmatpush1.bf16.msra.mxu0 0
    %551 = vmatprep.subr.bf16.mxu0 0
    %552 = vmatpush1.bf16.msra.mxu0 0
    %553 = vmatprep.subr.bf16.mxu0 0
    %554 = vmatpush1.bf16.msra.mxu0 0
    %555 = vmatprep.subr.bf16.mxu0 0
    %556 = vmatpush1.bf16.msra.mxu0 0
    %557 = vmatprep.mubr.bf16.mxu0 0
    %558 = vmatmul.mubr.bf16.gmra.mrb[0].mxu0 %v523
    %v559 = vpop.f32.mrb[0].mxu0
    %v560 = vadd.f32 0.0, %v559
    %v561 = vpop.f32.mrb[0].mxu0
    %v562 = vpop.f32.mrb[0].mxu0
    %v563 = vpop.f32.mrb[0].mxu0
    %564 = vdwg.mxu0
    %v565 = vsel %vm473, %v453, 0
    %567 = vmatprep.subr.bf16.mxu0 0
    %568 = vmatpush1.bf16.msra.mxu0 %v470
    %569 = vmatprep.subr.bf16.mxu0 0
    %570 = vmatpush1.bf16.msra.mxu0 %v481
    %571 = vmatprep.subr.bf16.mxu0 0
    %572 = vmatpush1.bf16.msra.mxu0 0
    %573 = vmatprep.subr.bf16.mxu0 0
    %574 = vmatpush1.bf16.msra.mxu0 0
    %575 = vmatprep.subr.bf16.mxu0 0
    %576 = vmatpush1.bf16.msra.mxu0 0
    %577 = vmatprep.subr.bf16.mxu0 0
    %578 = vmatpush1.bf16.msra.mxu0 0
    %579 = vmatprep.subr.bf16.mxu0 0
    %580 = vmatpush1.bf16.msra.mxu0 0
    %581 = vmatprep.subr.bf16.mxu0 0
    %582 = vmatpush1.bf16.msra.mxu0 0
    %583 = vmatprep.subr.bf16.mxu0 0
    %584 = vmatpush1.bf16.msra.mxu0 0
    %585 = vmatprep.subr.bf16.mxu0 0
    %586 = vmatpush1.bf16.msra.mxu0 0
    %587 = vmatprep.subr.bf16.mxu0 0
    %588 = vmatpush1.bf16.msra.mxu0 0
    %589 = vmatprep.subr.bf16.mxu0 0
    %590 = vmatpush1.bf16.msra.mxu0 0
    %591 = vmatprep.subr.bf16.mxu0 0
    %592 = vmatpush1.bf16.msra.mxu0 0
    %593 = vmatprep.subr.bf16.mxu0 0
    %594 = vmatpush1.bf16.msra.mxu0 0
    %595 = vmatprep.subr.bf16.mxu0 0
    %596 = vmatpush1.bf16.msra.mxu0 0
    %597 = vmatprep.subr.bf16.mxu0 0
    %598 = vmatpush1.bf16.msra.mxu0 0
    %599 = vmatprep.mubr.bf16.mxu0 0
    %600 = vmatmul.mubr.bf16.gmra.mrb[0].mxu0 %v565
    %v601 = vpop.f32.mrb[0].mxu0
    %v602 = vadd.f32 0.0, %v601
    %v603 = vpop.f32.mrb[0].mxu0
    %v604 = vpop.f32.mrb[0].mxu0
    %v605 = vpop.f32.mrb[0].mxu0
    %606 = vdwg.mxu0
    %v607 = vsel %vm473, %v455, 0
    %609 = vmatprep.subr.bf16.mxu0 0
    %610 = vmatpush1.bf16.msra.mxu0 %v470
    %611 = vmatprep.subr.bf16.mxu0 0
    %612 = vmatpush1.bf16.msra.mxu0 %v481
    %613 = vmatprep.subr.bf16.mxu0 0
    %614 = vmatpush1.bf16.msra.mxu0 0
    %615 = vmatprep.subr.bf16.mxu0 0
    %616 = vmatpush1.bf16.msra.mxu0 0
    %617 = vmatprep.subr.bf16.mxu0 0
    %618 = vmatpush1.bf16.msra.mxu0 0
    %619 = vmatprep.subr.bf16.mxu0 0
    %620 = vmatpush1.bf16.msra.mxu0 0
    %621 = vmatprep.subr.bf16.mxu0 0
    %622 = vmatpush1.bf16.msra.mxu0 0
    %623 = vmatprep.subr.bf16.mxu0 0
    %624 = vmatpush1.bf16.msra.mxu0 0
    %625 = vmatprep.subr.bf16.mxu0 0
    %626 = vmatpush1.bf16.msra.mxu0 0
    %627 = vmatprep.subr.bf16.mxu0 0
    %628 = vmatpush1.bf16.msra.mxu0 0
    %629 = vmatprep.subr.bf16.mxu0 0
    %630 = vmatpush1.bf16.msra.mxu0 0
    %631 = vmatprep.subr.bf16.mxu0 0
    %632 = vmatpush1.bf16.msra.mxu0 0
    %633 = vmatprep.subr.bf16.mxu0 0
    %634 = vmatpush1.bf16.msra.mxu0 0
    %635 = vmatprep.subr.bf16.mxu0 0
    %636 = vmatpush1.bf16.msra.mxu0 0
    %637 = vmatprep.subr.bf16.mxu0 0
    %638 = vmatpush1.bf16.msra.mxu0 0
    %639 = vmatprep.subr.bf16.mxu0 0
    %640 = vmatpush1.bf16.msra.mxu0 0
    %641 = vmatprep.mubr.bf16.mxu0 0
    %642 = vmatmul.mubr.bf16.gmra.mrb[0].mxu0 %v607
    %v643 = vpop.f32.mrb[0].mxu0
    %v644 = vadd.f32 0.0, %v643
    %v645 = vpop.f32.mrb[0].mxu0
    %v646 = vpop.f32.mrb[0].mxu0
    %v647 = vpop.f32.mrb[0].mxu0
    %648 = vdwg.mxu0
    %v649 = vsel %vm473, %v457, 0
    %651 = vmatprep.subr.bf16.mxu0 0
    %652 = vmatpush1.bf16.msra.mxu0 %v470
    %653 = vmatprep.subr.bf16.mxu0 0
    %654 = vmatpush1.bf16.msra.mxu0 %v481
    %655 = vmatprep.subr.bf16.mxu0 0
    %656 = vmatpush1.bf16.msra.mxu0 0
    %657 = vmatprep.subr.bf16.mxu0 0
    %658 = vmatpush1.bf16.msra.mxu0 0
    %659 = vmatprep.subr.bf16.mxu0 0
    %660 = vmatpush1.bf16.msra.mxu0 0
    %661 = vmatprep.subr.bf16.mxu0 0
    %662 = vmatpush1.bf16.msra.mxu0 0
    %663 = vmatprep.subr.bf16.mxu0 0
    %664 = vmatpush1.bf16.msra.mxu0 0
    %665 = vmatprep.subr.bf16.mxu0 0
    %666 = vmatpush1.bf16.msra.mxu0 0
    %667 = vmatprep.subr.bf16.mxu0 0
    %668 = vmatpush1.bf16.msra.mxu0 0
    %669 = vmatprep.subr.bf16.mxu0 0
    %670 = vmatpush1.bf16.msra.mxu0 0
    %671 = vmatprep.subr.bf16.mxu0 0
    %672 = vmatpush1.bf16.msra.mxu0 0
    %673 = vmatprep.subr.bf16.mxu0 0
    %674 = vmatpush1.bf16.msra.mxu0 0
    %675 = vmatprep.subr.bf16.mxu0 0
    %676 = vmatpush1.bf16.msra.mxu0 0
    %677 = vmatprep.subr.bf16.mxu0 0
    %678 = vmatpush1.bf16.msra.mxu0 0
    %679 = vmatprep.subr.bf16.mxu0 0
    %680 = vmatpush1.bf16.msra.mxu0 0
    %681 = vmatprep.subr.bf16.mxu0 0
    %682 = vmatpush1.bf16.msra.mxu0 0
    %683 = vmatprep.mubr.bf16.mxu0 0
    %684 = vmatmul.mubr.bf16.gmra.mrb[0].mxu0 %v649
    %v685 = vpop.f32.mrb[0].mxu0
    %v686 = vadd.f32 0.0, %v685
    %v687 = vpop.f32.mrb[0].mxu0
    %v688 = vpop.f32.mrb[0].mxu0
    %v689 = vpop.f32.mrb[0].mxu0
    %690 = vdwg.mxu0
    %v691 = vsel %vm473, %v459, 0
    %693 = vmatprep.subr.bf16.mxu0 0
    %694 = vmatpush1.bf16.msra.mxu0 %v470
    %695 = vmatprep.subr.bf16.mxu0 0
    %696 = vmatpush1.bf16.msra.mxu0 %v481
    %697 = vmatprep.subr.bf16.mxu0 0
    %698 = vmatpush1.bf16.msra.mxu0 0
    %699 = vmatprep.subr.bf16.mxu0 0
    %700 = vmatpush1.bf16.msra.mxu0 0
    %701 = vmatprep.subr.bf16.mxu0 0
    %702 = vmatpush1.bf16.msra.mxu0 0
    %703 = vmatprep.subr.bf16.mxu0 0
    %704 = vmatpush1.bf16.msra.mxu0 0
    %705 = vmatprep.subr.bf16.mxu0 0
    %706 = vmatpush1.bf16.msra.mxu0 0
    %707 = vmatprep.subr.bf16.mxu0 0
    %708 = vmatpush1.bf16.msra.mxu0 0
    %709 = vmatprep.subr.bf16.mxu0 0
    %710 = vmatpush1.bf16.msra.mxu0 0
    %711 = vmatprep.subr.bf16.mxu0 0
    %712 = vmatpush1.bf16.msra.mxu0 0
    %713 = vmatprep.subr.bf16.mxu0 0
    %714 = vmatpush1.bf16.msra.mxu0 0
    %715 = vmatprep.subr.bf16.mxu0 0
    %716 = vmatpush1.bf16.msra.mxu0 0
    %717 = vmatprep.subr.bf16.mxu0 0
    %718 = vmatpush1.bf16.msra.mxu0 0
    %719 = vmatprep.subr.bf16.mxu0 0
    %720 = vmatpush1.bf16.msra.mxu0 0
    %721 = vmatprep.subr.bf16.mxu0 0
    %722 = vmatpush1.bf16.msra.mxu0 0
    %723 = vmatprep.subr.bf16.mxu0 0
    %724 = vmatpush1.bf16.msra.mxu0 0
    %725 = vmatprep.mubr.bf16.mxu0 0
    %726 = vmatmul.mubr.bf16.gmra.mrb[0].mxu0 %v691
    %v727 = vpop.f32.mrb[0].mxu0
    %v728 = vadd.f32 0.0, %v727
    %v729 = vpop.f32.mrb[0].mxu0
    %v730 = vpop.f32.mrb[0].mxu0
    %v731 = vpop.f32.mrb[0].mxu0
    %732 = vdwg.mxu0
    %v733 = vsel %vm473, %v461, 0
    %735 = vmatprep.subr.bf16.mxu0 0
    %736 = vmatpush1.bf16.msra.mxu0 %v470
    %737 = vmatprep.subr.bf16.mxu0 0
    %738 = vmatpush1.bf16.msra.mxu0 %v481
    %739 = vmatprep.subr.bf16.mxu0 0
    %740 = vmatpush1.bf16.msra.mxu0 0
    %741 = vmatprep.subr.bf16.mxu0 0
    %742 = vmatpush1.bf16.msra.mxu0 0
    %743 = vmatprep.subr.bf16.mxu0 0
    %744 = vmatpush1.bf16.msra.mxu0 0
    %745 = vmatprep.subr.bf16.mxu0 0
    %746 = vmatpush1.bf16.msra.mxu0 0
    %747 = vmatprep.subr.bf16.mxu0 0
    %748 = vmatpush1.bf16.msra.mxu0 0
    %749 = vmatprep.subr.bf16.mxu0 0
    %750 = vmatpush1.bf16.msra.mxu0 0
    %751 = vmatprep.subr.bf16.mxu0 0
    %752 = vmatpush1.bf16.msra.mxu0 0
    %753 = vmatprep.subr.bf16.mxu0 0
    %754 = vmatpush1.bf16.msra.mxu0 0
    %755 = vmatprep.subr.bf16.mxu0 0
    %756 = vmatpush1.bf16.msra.mxu0 0
    %757 = vmatprep.subr.bf16.mxu0 0
    %758 = vmatpush1.bf16.msra.mxu0 0
    %759 = vmatprep.subr.bf16.mxu0 0
    %760 = vmatpush1.bf16.msra.mxu0 0
    %761 = vmatprep.subr.bf16.mxu0 0
    %762 = vmatpush1.bf16.msra.mxu0 0
    %763 = vmatprep.subr.bf16.mxu0 0
    %764 = vmatpush1.bf16.msra.mxu0 0
    %765 = vmatprep.subr.bf16.mxu0 0
    %766 = vmatpush1.bf16.msra.mxu0 0
    %767 = vmatprep.mubr.bf16.mxu0 0
    %768 = vmatmul.mubr.bf16.gmra.mrb[0].mxu0 %v733
    %v769 = vpop.f32.mrb[0].mxu0
    %v770 = vadd.f32 0.0, %v769
    %v771 = vpop.f32.mrb[0].mxu0
    %v772 = vpop.f32.mrb[0].mxu0
    %v773 = vpop.f32.mrb[0].mxu0
    %774 = vdwg.mxu0
    %775 = vrot.lane.b32.xlu0 %v97, 125
    %v776 = vpop.permute.xlu0 %775
    %777 = vrot.lane.b32.xlu0 %v98, 125
    %v778 = vpop.permute.xlu0 %777
    %779 = vrot.lane.b32.xlu0 %v99, 125
    %v780 = vpop.permute.xlu0 %779
    %781 = vrot.lane.b32.xlu0 %v100, 125
    %v782 = vpop.permute.xlu0 %781
    %783 = vrot.lane.b32.xlu0 %v101, 125
    %v784 = vpop.permute.xlu0 %783
    %785 = vrot.lane.b32.xlu0 %v102, 125
    %v786 = vpop.permute.xlu0 %785
    %787 = vrot.lane.b32.xlu0 %v103, 125
    %v788 = vpop.permute.xlu0 %787
    %789 = vrot.lane.b32.xlu0 %v110, 3
    %v790 = vpop.permute.xlu0 %789
    %791 = vrot.lane.b32.xlu0 %v117, 3
    %v792 = vpop.permute.xlu0 %791
    %793 = vrot.lane.b32.xlu0 %v124, 3
    %v794 = vpop.permute.xlu0 %793
    %795 = vrot.lane.b32.xlu0 %v131, 3
    %v796 = vpop.permute.xlu0 %795
    %797 = vrot.lane.b32.xlu0 %v138, 3
    %v798 = vpop.permute.xlu0 %797
    %799 = vrot.lane.b32.xlu0 %v145, 3
    %v800 = vpop.permute.xlu0 %799
    %801 = vrot.lane.b32.xlu0 %v152, 3
    %v802 = vpop.permute.xlu0 %801
    %803 = vrot.lane.b32.xlu0 %v181, 6
    %v804 = vpop.permute.xlu0 %803
    %805 = vrot.lane.b32.xlu0 %v182, 6
    %v806 = vpop.permute.xlu0 %805
    %807 = vrot.lane.b32.xlu0 %v183, 6
    %v808 = vpop.permute.xlu0 %807
    %809 = vrot.lane.b32.xlu0 %v184, 6
    %v810 = vpop.permute.xlu0 %809
    %811 = vrot.lane.b32.xlu0 %v185, 6
    %v812 = vpop.permute.xlu0 %811
    %813 = vrot.lane.b32.xlu0 %v186, 6
    %v814 = vpop.permute.xlu0 %813
    %815 = vrot.lane.b32.xlu0 %v187, 6
    %v816 = vpop.permute.xlu0 %815
    %817 = vrot.lane.b32.xlu0 %v208, 12
    %v818 = vpop.permute.xlu0 %817
    %819 = vrot.lane.b32.xlu0 %v215, 12
    %v820 = vpop.permute.xlu0 %819
    %821 = vrot.lane.b32.xlu0 %v222, 12
    %v822 = vpop.permute.xlu0 %821
    %823 = vrot.lane.b32.xlu0 %v229, 12
    %v824 = vpop.permute.xlu0 %823
    %825 = vrot.lane.b32.xlu0 %v236, 12
    %v826 = vpop.permute.xlu0 %825
    %827 = vrot.lane.b32.xlu0 %v243, 12
    %v828 = vpop.permute.xlu0 %827
    %829 = vrot.lane.b32.xlu0 %v250, 12
    %v830 = vpop.permute.xlu0 %829
    %831 = vrot.lane.b32.xlu0 %v279, 15
    %v832 = vpop.permute.xlu0 %831
    %833 = vrot.lane.b32.xlu0 %v280, 15
    %v834 = vpop.permute.xlu0 %833
    %835 = vrot.lane.b32.xlu0 %v281, 15
    %v836 = vpop.permute.xlu0 %835
    %837 = vrot.lane.b32.xlu0 %v282, 15
    %v838 = vpop.permute.xlu0 %837
    %839 = vrot.lane.b32.xlu0 %v283, 15
    %v840 = vpop.permute.xlu0 %839
    %841 = vrot.lane.b32.xlu0 %v284, 15
    %v842 = vpop.permute.xlu0 %841
    %843 = vrot.lane.b32.xlu0 %v285, 15
    %v844 = vpop.permute.xlu0 %843
    %845 = vrot.lane.b32.xlu0 %v306, 21
    %v846 = vpop.permute.xlu0 %845
    %847 = vrot.lane.b32.xlu0 %v313, 21
    %v848 = vpop.permute.xlu0 %847
    %849 = vrot.lane.b32.xlu0 %v320, 21
    %v850 = vpop.permute.xlu0 %849
    %851 = vrot.lane.b32.xlu0 %v327, 21
    %v852 = vpop.permute.xlu0 %851
    %853 = vrot.lane.b32.xlu0 %v334, 21
    %v854 = vpop.permute.xlu0 %853
    %855 = vrot.lane.b32.xlu0 %v341, 21
    %v856 = vpop.permute.xlu0 %855
    %857 = vrot.lane.b32.xlu0 %v348, 21
    %v858 = vpop.permute.xlu0 %857
    %v861 = vsel %vm363, %v776, %v790
    %v864 = vsel %vm363, %v778, %v792
    %v867 = vsel %vm363, %v780, %v794
    %v870 = vsel %vm363, %v782, %v796
    %v873 = vsel %vm363, %v784, %v798
    %v876 = vsel %vm363, %v786, %v800
    %v879 = vsel %vm363, %v788, %v802
    %v880 = vsel %vm371, %v861, %v790
    %v881 = vsel %vm371, %v864, %v792
    %v882 = vsel %vm371, %v867, %v794
    %v883 = vsel %vm371, %v870, %v796
    %v884 = vsel %vm371, %v873, %v798
    %v885 = vsel %vm371, %v876, %v800
    %v886 = vsel %vm371, %v879, %v802
    %v888 = vsel %vm386, %v880, %v804
    %v890 = vsel %vm386, %v881, %v806
    %v892 = vsel %vm386, %v882, %v808
    %v894 = vsel %vm386, %v883, %v810
    %v896 = vsel %vm386, %v884, %v812
    %v898 = vsel %vm386, %v885, %v814
    %v900 = vsel %vm386, %v886, %v816
    %v902 = vsel %vm401, %v888, %v818
    %v904 = vsel %vm401, %v890, %v820
    %v906 = vsel %vm401, %v892, %v822
    %v908 = vsel %vm401, %v894, %v824
    %v910 = vsel %vm401, %v896, %v826
    %v912 = vsel %vm401, %v898, %v828
    %v914 = vsel %vm401, %v900, %v830
    %v915 = vsel %vm409, %v902, %v818
    %v916 = vsel %vm409, %v904, %v820
    %v917 = vsel %vm409, %v906, %v822
    %v918 = vsel %vm409, %v908, %v824
    %v919 = vsel %vm409, %v910, %v826
    %v920 = vsel %vm409, %v912, %v828
    %v921 = vsel %vm409, %v914, %v830
    %v923 = vsel %vm424, %v915, %v832
    %v925 = vsel %vm424, %v916, %v834
    %v927 = vsel %vm424, %v917, %v836
    %v929 = vsel %vm424, %v918, %v838
    %v931 = vsel %vm424, %v919, %v840
    %v933 = vsel %vm424, %v920, %v842
    %v935 = vsel %vm424, %v921, %v844
    %v937 = vsel %vm439, %v923, %v846
    %v939 = vsel %vm439, %v925, %v848
    %v941 = vsel %vm439, %v927, %v850
    %v943 = vsel %vm439, %v929, %v852
    %v945 = vsel %vm439, %v931, %v854
    %v947 = vsel %vm439, %v933, %v856
    %v949 = vsel %vm439, %v935, %v858
    %v950 = vsel %vm447, %v937, %v846
    %v951 = vsel %vm447, %v939, %v848
    %v952 = vsel %vm447, %v941, %v850
    %v953 = vsel %vm447, %v943, %v852
    %v954 = vsel %vm447, %v945, %v854
    %v955 = vsel %vm447, %v947, %v856
    %v956 = vsel %vm447, %v949, %v858
    %v957 = vsel %vm473, %v950, 0
    %959 = vmatprep.subr.bf16.mxu0 0
    %960 = vmatpush1.bf16.msra.mxu0 %v470
    %961 = vmatprep.subr.bf16.mxu0 0
    %962 = vmatpush1.bf16.msra.mxu0 %v481
    %963 = vmatprep.subr.bf16.mxu0 0
    %964 = vmatpush1.bf16.msra.mxu0 0
    %965 = vmatprep.subr.bf16.mxu0 0
    %966 = vmatpush1.bf16.msra.mxu0 0
    %967 = vmatprep.subr.bf16.mxu0 0
    %968 = vmatpush1.bf16.msra.mxu0 0
    %969 = vmatprep.subr.bf16.mxu0 0
    %970 = vmatpush1.bf16.msra.mxu0 0
    %971 = vmatprep.subr.bf16.mxu0 0
    %972 = vmatpush1.bf16.msra.mxu0 0
    %973 = vmatprep.subr.bf16.mxu0 0
    %974 = vmatpush1.bf16.msra.mxu0 0
    %975 = vmatprep.subr.bf16.mxu0 0
    %976 = vmatpush1.bf16.msra.mxu0 0
    %977 = vmatprep.subr.bf16.mxu0 0
    %978 = vmatpush1.bf16.msra.mxu0 0
    %979 = vmatprep.subr.bf16.mxu0 0
    %980 = vmatpush1.bf16.msra.mxu0 0
    %981 = vmatprep.subr.bf16.mxu0 0
    %982 = vmatpush1.bf16.msra.mxu0 0
    %983 = vmatprep.subr.bf16.mxu0 0
    %984 = vmatpush1.bf16.msra.mxu0 0
    %985 = vmatprep.subr.bf16.mxu0 0
    %986 = vmatpush1.bf16.msra.mxu0 0
    %987 = vmatprep.subr.bf16.mxu0 0
    %988 = vmatpush1.bf16.msra.mxu0 0
    %989 = vmatprep.subr.bf16.mxu0 0
    %990 = vmatpush1.bf16.msra.mxu0 0
    %991 = vmatprep.mubr.bf16.mxu0 0
    %992 = vmatmul.mubr.bf16.gmra.mrb[0].mxu0 %v957
    %v993 = vpop.f32.mrb[0].mxu0
    %v994 = vadd.f32 0.0, %v993
    %v995 = vpop.f32.mrb[0].mxu0
    %v996 = vpop.f32.mrb[0].mxu0
    %v997 = vpop.f32.mrb[0].mxu0
    %998 = vdwg.mxu0
    %v999 = vsel %vm473, %v951, 0
    %1001 = vmatprep.subr.bf16.mxu0 0
    %1002 = vmatpush1.bf16.msra.mxu0 %v470
    %1003 = vmatprep.subr.bf16.mxu0 0
    %1004 = vmatpush1.bf16.msra.mxu0 %v481
    %1005 = vmatprep.subr.bf16.mxu0 0
    %1006 = vmatpush1.bf16.msra.mxu0 0
    %1007 = vmatprep.subr.bf16.mxu0 0
    %1008 = vmatpush1.bf16.msra.mxu0 0
    %1009 = vmatprep.subr.bf16.mxu0 0
    %1010 = vmatpush1.bf16.msra.mxu0 0
    %1011 = vmatprep.subr.bf16.mxu0 0
    %1012 = vmatpush1.bf16.msra.mxu0 0
    %1013 = vmatprep.subr.bf16.mxu0 0
    %1014 = vmatpush1.bf16.msra.mxu0 0
    %1015 = vmatprep.subr.bf16.mxu0 0
    %1016 = vmatpush1.bf16.msra.mxu0 0
    %1017 = vmatprep.subr.bf16.mxu0 0
    %1018 = vmatpush1.bf16.msra.mxu0 0
    %1019 = vmatprep.subr.bf16.mxu0 0
    %1020 = vmatpush1.bf16.msra.mxu0 0
    %1021 = vmatprep.subr.bf16.mxu0 0
    %1022 = vmatpush1.bf16.msra.mxu0 0
    %1023 = vmatprep.subr.bf16.mxu0 0
    %1024 = vmatpush1.bf16.msra.mxu0 0
    %1025 = vmatprep.subr.bf16.mxu0 0
    %1026 = vmatpush1.bf16.msra.mxu0 0
    %1027 = vmatprep.subr.bf16.mxu0 0
    %1028 = vmatpush1.bf16.msra.mxu0 0
    %1029 = vmatprep.subr.bf16.mxu0 0
    %1030 = vmatpush1.bf16.msra.mxu0 0
    %1031 = vmatprep.subr.bf16.mxu0 0
    %1032 = vmatpush1.bf16.msra.mxu0 0
    %1033 = vmatprep.mubr.bf16.mxu0 0
    %1034 = vmatmul.mubr.bf16.gmra.mrb[0].mxu0 %v999
    %v1035 = vpop.f32.mrb[0].mxu0
    %v1036 = vadd.f32 0.0, %v1035
    %v1037 = vpop.f32.mrb[0].mxu0
    %v1038 = vpop.f32.mrb[0].mxu0
    %v1039 = vpop.f32.mrb[0].mxu0
    %1040 = vdwg.mxu0
    %v1041 = vsel %vm473, %v952, 0
    %1043 = vmatprep.subr.bf16.mxu0 0
    %1044 = vmatpush1.bf16.msra.mxu0 %v470
    %1045 = vmatprep.subr.bf16.mxu0 0
    %1046 = vmatpush1.bf16.msra.mxu0 %v481
    %1047 = vmatprep.subr.bf16.mxu0 0
    %1048 = vmatpush1.bf16.msra.mxu0 0
    %1049 = vmatprep.subr.bf16.mxu0 0
    %1050 = vmatpush1.bf16.msra.mxu0 0
    %1051 = vmatprep.subr.bf16.mxu0 0
    %1052 = vmatpush1.bf16.msra.mxu0 0
    %1053 = vmatprep.subr.bf16.mxu0 0
    %1054 = vmatpush1.bf16.msra.mxu0 0
    %1055 = vmatprep.subr.bf16.mxu0 0
    %1056 = vmatpush1.bf16.msra.mxu0 0
    %1057 = vmatprep.subr.bf16.mxu0 0
    %1058 = vmatpush1.bf16.msra.mxu0 0
    %1059 = vmatprep.subr.bf16.mxu0 0
    %1060 = vmatpush1.bf16.msra.mxu0 0
    %1061 = vmatprep.subr.bf16.mxu0 0
    %1062 = vmatpush1.bf16.msra.mxu0 0
    %1063 = vmatprep.subr.bf16.mxu0 0
    %1064 = vmatpush1.bf16.msra.mxu0 0
    %1065 = vmatprep.subr.bf16.mxu0 0
    %1066 = vmatpush1.bf16.msra.mxu0 0
    %1067 = vmatprep.subr.bf16.mxu0 0
    %1068 = vmatpush1.bf16.msra.mxu0 0
    %1069 = vmatprep.subr.bf16.mxu0 0
    %1070 = vmatpush1.bf16.msra.mxu0 0
    %1071 = vmatprep.subr.bf16.mxu0 0
    %1072 = vmatpush1.bf16.msra.mxu0 0
    %1073 = vmatprep.subr.bf16.mxu0 0
    %1074 = vmatpush1.bf16.msra.mxu0 0
    %1075 = vmatprep.mubr.bf16.mxu0 0
    %1076 = vmatmul.mubr.bf16.gmra.mrb[0].mxu0 %v1041
    %v1077 = vpop.f32.mrb[0].mxu0
    %v1078 = vadd.f32 0.0, %v1077
    %v1079 = vpop.f32.mrb[0].mxu0
    %v1080 = vpop.f32.mrb[0].mxu0
    %v1081 = vpop.f32.mrb[0].mxu0
    %1082 = vdwg.mxu0
    %v1083 = vsel %vm473, %v953, 0
    %1085 = vmatprep.subr.bf16.mxu0 0
    %1086 = vmatpush1.bf16.msra.mxu0 %v470
    %1087 = vmatprep.subr.bf16.mxu0 0
    %1088 = vmatpush1.bf16.msra.mxu0 %v481
    %1089 = vmatprep.subr.bf16.mxu0 0
    %1090 = vmatpush1.bf16.msra.mxu0 0
    %1091 = vmatprep.subr.bf16.mxu0 0
    %1092 = vmatpush1.bf16.msra.mxu0 0
    %1093 = vmatprep.subr.bf16.mxu0 0
    %1094 = vmatpush1.bf16.msra.mxu0 0
    %1095 = vmatprep.subr.bf16.mxu0 0
    %1096 = vmatpush1.bf16.msra.mxu0 0
    %1097 = vmatprep.subr.bf16.mxu0 0
    %1098 = vmatpush1.bf16.msra.mxu0 0
    %1099 = vmatprep.subr.bf16.mxu0 0
    %1100 = vmatpush1.bf16.msra.mxu0 0
    %1101 = vmatprep.subr.bf16.mxu0 0
    %1102 = vmatpush1.bf16.msra.mxu0 0
    %1103 = vmatprep.subr.bf16.mxu0 0
    %1104 = vmatpush1.bf16.msra.mxu0 0
    %1105 = vmatprep.subr.bf16.mxu0 0
    %1106 = vmatpush1.bf16.msra.mxu0 0
    %1107 = vmatprep.subr.bf16.mxu0 0
    %1108 = vmatpush1.bf16.msra.mxu0 0
    %1109 = vmatprep.subr.bf16.mxu0 0
    %1110 = vmatpush1.bf16.msra.mxu0 0
    %1111 = vmatprep.subr.bf16.mxu0 0
    %1112 = vmatpush1.bf16.msra.mxu0 0
    %1113 = vmatprep.subr.bf16.mxu0 0
    %1114 = vmatpush1.bf16.msra.mxu0 0
    %1115 = vmatprep.subr.bf16.mxu0 0
    %1116 = vmatpush1.bf16.msra.mxu0 0
    %1117 = vmatprep.mubr.bf16.mxu0 0
    %1118 = vmatmul.mubr.bf16.gmra.mrb[0].mxu0 %v1083
    %v1119 = vpop.f32.mrb[0].mxu0
    %v1120 = vadd.f32 0.0, %v1119
    %v1121 = vpop.f32.mrb[0].mxu0
    %v1122 = vpop.f32.mrb[0].mxu0
    %v1123 = vpop.f32.mrb[0].mxu0
    %1124 = vdwg.mxu0
    %v1125 = vsel %vm473, %v954, 0
    %1127 = vmatprep.subr.bf16.mxu0 0
    %1128 = vmatpush1.bf16.msra.mxu0 %v470
    %1129 = vmatprep.subr.bf16.mxu0 0
    %1130 = vmatpush1.bf16.msra.mxu0 %v481
    %1131 = vmatprep.subr.bf16.mxu0 0
    %1132 = vmatpush1.bf16.msra.mxu0 0
    %1133 = vmatprep.subr.bf16.mxu0 0
    %1134 = vmatpush1.bf16.msra.mxu0 0
    %1135 = vmatprep.subr.bf16.mxu0 0
    %1136 = vmatpush1.bf16.msra.mxu0 0
    %1137 = vmatprep.subr.bf16.mxu0 0
    %1138 = vmatpush1.bf16.msra.mxu0 0
    %1139 = vmatprep.subr.bf16.mxu0 0
    %1140 = vmatpush1.bf16.msra.mxu0 0
    %1141 = vmatprep.subr.bf16.mxu0 0
    %1142 = vmatpush1.bf16.msra.mxu0 0
    %1143 = vmatprep.subr.bf16.mxu0 0
    %1144 = vmatpush1.bf16.msra.mxu0 0
    %1145 = vmatprep.subr.bf16.mxu0 0
    %1146 = vmatpush1.bf16.msra.mxu0 0
    %1147 = vmatprep.subr.bf16.mxu0 0
    %1148 = vmatpush1.bf16.msra.mxu0 0
    %1149 = vmatprep.subr.bf16.mxu0 0
    %1150 = vmatpush1.bf16.msra.mxu0 0
    %1151 = vmatprep.subr.bf16.mxu0 0
    %1152 = vmatpush1.bf16.msra.mxu0 0
    %1153 = vmatprep.subr.bf16.mxu0 0
    %1154 = vmatpush1.bf16.msra.mxu0 0
    %1155 = vmatprep.subr.bf16.mxu0 0
    %1156 = vmatpush1.bf16.msra.mxu0 0
    %1157 = vmatprep.subr.bf16.mxu0 0
    %1158 = vmatpush1.bf16.msra.mxu0 0
    %1159 = vmatprep.mubr.bf16.mxu0 0
    %1160 = vmatmul.mubr.bf16.gmra.mrb[0].mxu0 %v1125
    %v1161 = vpop.f32.mrb[0].mxu0
    %v1162 = vadd.f32 0.0, %v1161
    %v1163 = vpop.f32.mrb[0].mxu0
    %v1164 = vpop.f32.mrb[0].mxu0
    %v1165 = vpop.f32.mrb[0].mxu0
    %1166 = vdwg.mxu0
    %v1167 = vsel %vm473, %v955, 0
    %1169 = vmatprep.subr.bf16.mxu0 0
    %1170 = vmatpush1.bf16.msra.mxu0 %v470
    %1171 = vmatprep.subr.bf16.mxu0 0
    %1172 = vmatpush1.bf16.msra.mxu0 %v481
    %1173 = vmatprep.subr.bf16.mxu0 0
    %1174 = vmatpush1.bf16.msra.mxu0 0
    %1175 = vmatprep.subr.bf16.mxu0 0
    %1176 = vmatpush1.bf16.msra.mxu0 0
    %1177 = vmatprep.subr.bf16.mxu0 0
    %1178 = vmatpush1.bf16.msra.mxu0 0
    %1179 = vmatprep.subr.bf16.mxu0 0
    %1180 = vmatpush1.bf16.msra.mxu0 0
    %1181 = vmatprep.subr.bf16.mxu0 0
    %1182 = vmatpush1.bf16.msra.mxu0 0
    %1183 = vmatprep.subr.bf16.mxu0 0
    %1184 = vmatpush1.bf16.msra.mxu0 0
    %1185 = vmatprep.subr.bf16.mxu0 0
    %1186 = vmatpush1.bf16.msra.mxu0 0
    %1187 = vmatprep.subr.bf16.mxu0 0
    %1188 = vmatpush1.bf16.msra.mxu0 0
    %1189 = vmatprep.subr.bf16.mxu0 0
    %1190 = vmatpush1.bf16.msra.mxu0 0
    %1191 = vmatprep.subr.bf16.mxu0 0
    %1192 = vmatpush1.bf16.msra.mxu0 0
    %1193 = vmatprep.subr.bf16.mxu0 0
    %1194 = vmatpush1.bf16.msra.mxu0 0
    %1195 = vmatprep.subr.bf16.mxu0 0
    %1196 = vmatpush1.bf16.msra.mxu0 0
    %1197 = vmatprep.subr.bf16.mxu0 0
    %1198 = vmatpush1.bf16.msra.mxu0 0
    %1199 = vmatprep.subr.bf16.mxu0 0
    %1200 = vmatpush1.bf16.msra.mxu0 0
    %1201 = vmatprep.mubr.bf16.mxu0 0
    %1202 = vmatmul.mubr.bf16.gmra.mrb[0].mxu0 %v1167
    %v1203 = vpop.f32.mrb[0].mxu0
    %v1204 = vadd.f32 0.0, %v1203
    %v1205 = vpop.f32.mrb[0].mxu0
    %v1206 = vpop.f32.mrb[0].mxu0
    %v1207 = vpop.f32.mrb[0].mxu0
    %1208 = vdwg.mxu0
    %v1209 = vsel %vm473, %v956, 0
    %1211 = vmatprep.subr.bf16.mxu0 0
    %1212 = vmatpush1.bf16.msra.mxu0 %v470
    %1213 = vmatprep.subr.bf16.mxu0 0
    %1214 = vmatpush1.bf16.msra.mxu0 %v481
    %1215 = vmatprep.subr.bf16.mxu0 0
    %1216 = vmatpush1.bf16.msra.mxu0 0
    %1217 = vmatprep.subr.bf16.mxu0 0
    %1218 = vmatpush1.bf16.msra.mxu0 0
    %1219 = vmatprep.subr.bf16.mxu0 0
    %1220 = vmatpush1.bf16.msra.mxu0 0
    %1221 = vmatprep.subr.bf16.mxu0 0
    %1222 = vmatpush1.bf16.msra.mxu0 0
    %1223 = vmatprep.subr.bf16.mxu0 0
    %1224 = vmatpush1.bf16.msra.mxu0 0
    %1225 = vmatprep.subr.bf16.mxu0 0
    %1226 = vmatpush1.bf16.msra.mxu0 0
    %1227 = vmatprep.subr.bf16.mxu0 0
    %1228 = vmatpush1.bf16.msra.mxu0 0
    %1229 = vmatprep.subr.bf16.mxu0 0
    %1230 = vmatpush1.bf16.msra.mxu0 0
    %1231 = vmatprep.subr.bf16.mxu0 0
    %1232 = vmatpush1.bf16.msra.mxu0 0
    %1233 = vmatprep.subr.bf16.mxu0 0
    %1234 = vmatpush1.bf16.msra.mxu0 0
    %1235 = vmatprep.subr.bf16.mxu0 0
    %1236 = vmatpush1.bf16.msra.mxu0 0
    %1237 = vmatprep.subr.bf16.mxu0 0
    %1238 = vmatpush1.bf16.msra.mxu0 0
    %1239 = vmatprep.subr.bf16.mxu0 0
    %1240 = vmatpush1.bf16.msra.mxu0 0
    %1241 = vmatprep.subr.bf16.mxu0 0
    %1242 = vmatpush1.bf16.msra.mxu0 0
    %1243 = vmatprep.mubr.bf16.mxu0 0
    %1244 = vmatmul.mubr.bf16.gmra.mrb[0].mxu0 %v1209
    %v1245 = vpop.f32.mrb[0].mxu0
    %v1246 = vadd.f32 0.0, %v1245
    %v1247 = vpop.f32.mrb[0].mxu0
    %v1248 = vpop.f32.mrb[0].mxu0
    %v1249 = vpop.f32.mrb[0].mxu0
    %1250 = vdwg.mxu0
    %v1251 = vmax.f32 %v518, %v994
    %v1252 = vmax.f32 %v560, %v1036
    %v1253 = vmax.f32 %v602, %v1078
    %v1254 = vmax.f32 %v644, %v1120
    %v1255 = vmax.f32 %v686, %v1162
    %v1256 = vmax.f32 %v728, %v1204
    %v1257 = vmax.f32 %v770, %v1246
    %s1258 = scalar_lea.vmem [#allocation2], 12
    %v1259 = vld [vmem:[%s1258] sm:$0xf]
    %v1260 = vld [vmem:[%s1258 + $0x8] sm:$0xf]
    %v1261 = vld [vmem:[%s1258 + $0x10] sm:$0xf]
    %v1262 = vld [vmem:[%s1258 + $0x18] sm:$0xf]
    %v1263 = vld [vmem:[%s1258 + $0x20] sm:$0xf]
    %v1264 = vld [vmem:[%s1258 + $0x28] sm:$0xf]
    %v1265 = vld [vmem:[%s1258 + $0x30] sm:$0xf]
    %1266 = vrot.lane.b32.xlu0 %v208, 6
    %v1267 = vpop.permute.xlu0 %1266
    %1268 = vrot.lane.b32.xlu0 %v215, 6
    %v1269 = vpop.permute.xlu0 %1268
    %1270 = vrot.lane.b32.xlu0 %v222, 6
    %v1271 = vpop.permute.xlu0 %1270
    %1272 = vrot.lane.b32.xlu0 %v229, 6
    %v1273 = vpop.permute.xlu0 %1272
    %1274 = vrot.lane.b32.xlu0 %v236, 6
    %v1275 = vpop.permute.xlu0 %1274
    %1276 = vrot.lane.b32.xlu0 %v243, 6
    %v1277 = vpop.permute.xlu0 %1276
    %1278 = vrot.lane.b32.xlu0 %v250, 6
    %v1279 = vpop.permute.xlu0 %1278
    %1280 = vrot.lane.b32.xlu0 %v279, 9
    %v1281 = vpop.permute.xlu0 %1280
    %1282 = vrot.lane.b32.xlu0 %v280, 9
    %v1283 = vpop.permute.xlu0 %1282
    %1284 = vrot.lane.b32.xlu0 %v281, 9
    %v1285 = vpop.permute.xlu0 %1284
    %1286 = vrot.lane.b32.xlu0 %v282, 9
    %v1287 = vpop.permute.xlu0 %1286
    %1288 = vrot.lane.b32.xlu0 %v283, 9
    %v1289 = vpop.permute.xlu0 %1288
    %1290 = vrot.lane.b32.xlu0 %v284, 9
    %v1291 = vpop.permute.xlu0 %1290
    %1292 = vrot.lane.b32.xlu0 %v285, 9
    %v1293 = vpop.permute.xlu0 %1292
    %1294 = vrot.lane.b32.xlu0 %v306, 15
    %v1295 = vpop.permute.xlu0 %1294
    %1296 = vrot.lane.b32.xlu0 %v313, 15
    %v1297 = vpop.permute.xlu0 %1296
    %1298 = vrot.lane.b32.xlu0 %v320, 15
    %v1299 = vpop.permute.xlu0 %1298
    %1300 = vrot.lane.b32.xlu0 %v327, 15
    %v1301 = vpop.permute.xlu0 %1300
    %1302 = vrot.lane.b32.xlu0 %v334, 15
    %v1303 = vpop.permute.xlu0 %1302
    %1304 = vrot.lane.b32.xlu0 %v341, 15
    %v1305 = vpop.permute.xlu0 %1304
    %1306 = vrot.lane.b32.xlu0 %v348, 15
    %v1307 = vpop.permute.xlu0 %1306
    %v1315 = vunpack.c.l.b16 %v1259
    %v1316 = vunpack.c.l.b16 %v1260
    %v1317 = vunpack.c.l.b16 %v1261
    %v1318 = vunpack.c.l.b16 %v1262
    %v1319 = vunpack.c.l.b16 %v1263
    %v1320 = vunpack.c.l.b16 %v1264
    %v1321 = vunpack.c.l.b16 %v1265
    %v1322 = vpack.c.b16 %v1315, %v1315
    %v1323 = vpack.c.b16 %v1316, %v1316
    %v1324 = vpack.c.b16 %v1317, %v1317
    %v1325 = vpack.c.b16 %v1318, %v1318
    %v1326 = vpack.c.b16 %v1319, %v1319
    %v1327 = vpack.c.b16 %v1320, %v1320
    %v1328 = vpack.c.b16 %v1321, %v1321
    %1329 = vrot.lane.b32.xlu0 %v1322, 18
    %v1330 = vpop.permute.xlu0 %1329
    %1331 = vrot.lane.b32.xlu0 %v1323, 18
    %v1332 = vpop.permute.xlu0 %1331
    %1333 = vrot.lane.b32.xlu0 %v1324, 18
    %v1334 = vpop.permute.xlu0 %1333
    %1335 = vrot.lane.b32.xlu0 %v1325, 18
    %v1336 = vpop.permute.xlu0 %1335
    %1337 = vrot.lane.b32.xlu0 %v1326, 18
    %v1338 = vpop.permute.xlu0 %1337
    %1339 = vrot.lane.b32.xlu0 %v1327, 18
    %v1340 = vpop.permute.xlu0 %1339
    %1341 = vrot.lane.b32.xlu0 %v1328, 18
    %v1342 = vpop.permute.xlu0 %1341
    %v1344 = vshrl.u32 %v1322, 16
    %v1346 = vshll.u32 %v1322, 16
    %v1348 = vrot.slane %v1346, 1
    %v1349 = vor.u32 %v1344, %v1348
    %v1351 = vshrl.u32 %v1323, 16
    %v1353 = vshll.u32 %v1323, 16
    %v1355 = vrot.slane %v1353, 1
    %v1356 = vor.u32 %v1351, %v1355
    %v1358 = vshrl.u32 %v1324, 16
    %v1360 = vshll.u32 %v1324, 16
    %v1362 = vrot.slane %v1360, 1
    %v1363 = vor.u32 %v1358, %v1362
    %v1365 = vshrl.u32 %v1325, 16
    %v1367 = vshll.u32 %v1325, 16
    %v1369 = vrot.slane %v1367, 1
    %v1370 = vor.u32 %v1365, %v1369
    %v1372 = vshrl.u32 %v1326, 16
    %v1374 = vshll.u32 %v1326, 16
    %v1376 = vrot.slane %v1374, 1
    %v1377 = vor.u32 %v1372, %v1376
    %v1379 = vshrl.u32 %v1327, 16
    %v1381 = vshll.u32 %v1327, 16
    %v1383 = vrot.slane %v1381, 1
    %v1384 = vor.u32 %v1379, %v1383
    %v1386 = vshrl.u32 %v1328, 16
    %v1388 = vshll.u32 %v1328, 16
    %v1390 = vrot.slane %v1388, 1
    %v1391 = vor.u32 %v1386, %v1390
    %1392 = vrot.lane.b32.xlu0 %v1349, 24
    %v1393 = vpop.permute.xlu0 %1392
    %1394 = vrot.lane.b32.xlu0 %v1356, 24
    %v1395 = vpop.permute.xlu0 %1394
    %1396 = vrot.lane.b32.xlu0 %v1363, 24
    %v1397 = vpop.permute.xlu0 %1396
    %1398 = vrot.lane.b32.xlu0 %v1370, 24
    %v1399 = vpop.permute.xlu0 %1398
    %1400 = vrot.lane.b32.xlu0 %v1377, 24
    %v1401 = vpop.permute.xlu0 %1400
    %1402 = vrot.lane.b32.xlu0 %v1384, 24
    %v1403 = vpop.permute.xlu0 %1402
    %1404 = vrot.lane.b32.xlu0 %v1391, 24
    %v1405 = vpop.permute.xlu0 %1404
    %v1414 = vsel %vm371, %v68, %v1267
    %v1416 = vsel %vm371, %v69, %v1269
    %v1418 = vsel %vm371, %v70, %v1271
    %v1420 = vsel %vm371, %v71, %v1273
    %v1422 = vsel %vm371, %v72, %v1275
    %v1424 = vsel %vm371, %v73, %v1277
    %v1426 = vsel %vm371, %v74, %v1279
    %v1428 = vsel %vm386, %v1414, %v1281
    %v1430 = vsel %vm386, %v1416, %v1283
    %v1432 = vsel %vm386, %v1418, %v1285
    %v1434 = vsel %vm386, %v1420, %v1287
    %v1436 = vsel %vm386, %v1422, %v1289
    %v1438 = vsel %vm386, %v1424, %v1291
    %v1440 = vsel %vm386, %v1426, %v1293
    %v1441 = vsel %vm401, %v1428, %v1281
    %v1442 = vsel %vm401, %v1430, %v1283
    %v1443 = vsel %vm401, %v1432, %v1285
    %v1444 = vsel %vm401, %v1434, %v1287
    %v1445 = vsel %vm401, %v1436, %v1289
    %v1446 = vsel %vm401, %v1438, %v1291
    %v1447 = vsel %vm401, %v1440, %v1293
    %v1449 = vsel %vm409, %v1441, %v1295
    %v1451 = vsel %vm409, %v1442, %v1297
    %v1453 = vsel %vm409, %v1443, %v1299
    %v1455 = vsel %vm409, %v1444, %v1301
    %v1457 = vsel %vm409, %v1445, %v1303
    %v1459 = vsel %vm409, %v1446, %v1305
    %v1461 = vsel %vm409, %v1447, %v1307
    %v1463 = vsel %vm424, %v1449, %v1330
    %v1465 = vsel %vm424, %v1451, %v1332
    %v1467 = vsel %vm424, %v1453, %v1334
    %v1469 = vsel %vm424, %v1455, %v1336
    %v1471 = vsel %vm424, %v1457, %v1338
    %v1473 = vsel %vm424, %v1459, %v1340
    %v1475 = vsel %vm424, %v1461, %v1342
    %v1476 = vsel %vm439, %v1463, %v1330
    %v1477 = vsel %vm439, %v1465, %v1332
    %v1478 = vsel %vm439, %v1467, %v1334
    %v1479 = vsel %vm439, %v1469, %v1336
    %v1480 = vsel %vm439, %v1471, %v1338
    %v1481 = vsel %vm439, %v1473, %v1340
    %v1482 = vsel %vm439, %v1475, %v1342
    %v1484 = vsel %vm447, %v1476, %v1393
    %v1486 = vsel %vm447, %v1477, %v1395
    %v1488 = vsel %vm447, %v1478, %v1397
    %v1490 = vsel %vm447, %v1479, %v1399
    %v1492 = vsel %vm447, %v1480, %v1401
    %v1494 = vsel %vm447, %v1481, %v1403
    %v1496 = vsel %vm447, %v1482, %v1405
    %v1497 = vsel %vm473, %v1484, 0
    %1499 = vmatprep.subr.bf16.mxu0 0
    %1500 = vmatpush1.bf16.msra.mxu0 %v470
    %1501 = vmatprep.subr.bf16.mxu0 0
    %1502 = vmatpush1.bf16.msra.mxu0 %v481
    %1503 = vmatprep.subr.bf16.mxu0 0
    %1504 = vmatpush1.bf16.msra.mxu0 0
    %1505 = vmatprep.subr.bf16.mxu0 0
    %1506 = vmatpush1.bf16.msra.mxu0 0
    %1507 = vmatprep.subr.bf16.mxu0 0
    %1508 = vmatpush1.bf16.msra.mxu0 0
    %1509 = vmatprep.subr.bf16.mxu0 0
    %1510 = vmatpush1.bf16.msra.mxu0 0
    %1511 = vmatprep.subr.bf16.mxu0 0
    %1512 = vmatpush1.bf16.msra.mxu0 0
    %1513 = vmatprep.subr.bf16.mxu0 0
    %1514 = vmatpush1.bf16.msra.mxu0 0
    %1515 = vmatprep.subr.bf16.mxu0 0
    %1516 = vmatpush1.bf16.msra.mxu0 0
    %1517 = vmatprep.subr.bf16.mxu0 0
    %1518 = vmatpush1.bf16.msra.mxu0 0
    %1519 = vmatprep.subr.bf16.mxu0 0
    %1520 = vmatpush1.bf16.msra.mxu0 0
    %1521 = vmatprep.subr.bf16.mxu0 0
    %1522 = vmatpush1.bf16.msra.mxu0 0
    %1523 = vmatprep.subr.bf16.mxu0 0
    %1524 = vmatpush1.bf16.msra.mxu0 0
    %1525 = vmatprep.subr.bf16.mxu0 0
    %1526 = vmatpush1.bf16.msra.mxu0 0
    %1527 = vmatprep.subr.bf16.mxu0 0
    %1528 = vmatpush1.bf16.msra.mxu0 0
    %1529 = vmatprep.subr.bf16.mxu0 0
    %1530 = vmatpush1.bf16.msra.mxu0 0
    %1531 = vmatprep.mubr.bf16.mxu0 0
    %1532 = vmatmul.mubr.bf16.gmra.mrb[0].mxu0 %v1497
    %v1533 = vpop.f32.mrb[0].mxu0
    %v1534 = vadd.f32 0.0, %v1533
    %v1535 = vpop.f32.mrb[0].mxu0
    %v1536 = vpop.f32.mrb[0].mxu0
    %v1537 = vpop.f32.mrb[0].mxu0
    %1538 = vdwg.mxu0
    %v1539 = vsel %vm473, %v1486, 0
    %1541 = vmatprep.subr.bf16.mxu0 0
    %1542 = vmatpush1.bf16.msra.mxu0 %v470
    %1543 = vmatprep.subr.bf16.mxu0 0
    %1544 = vmatpush1.bf16.msra.mxu0 %v481
    %1545 = vmatprep.subr.bf16.mxu0 0
    %1546 = vmatpush1.bf16.msra.mxu0 0
    %1547 = vmatprep.subr.bf16.mxu0 0
    %1548 = vmatpush1.bf16.msra.mxu0 0
    %1549 = vmatprep.subr.bf16.mxu0 0
    %1550 = vmatpush1.bf16.msra.mxu0 0
    %1551 = vmatprep.subr.bf16.mxu0 0
    %1552 = vmatpush1.bf16.msra.mxu0 0
    %1553 = vmatprep.subr.bf16.mxu0 0
    %1554 = vmatpush1.bf16.msra.mxu0 0
    %1555 = vmatprep.subr.bf16.mxu0 0
    %1556 = vmatpush1.bf16.msra.mxu0 0
    %1557 = vmatprep.subr.bf16.mxu0 0
    %1558 = vmatpush1.bf16.msra.mxu0 0
    %1559 = vmatprep.subr.bf16.mxu0 0
    %1560 = vmatpush1.bf16.msra.mxu0 0
    %1561 = vmatprep.subr.bf16.mxu0 0
    %1562 = vmatpush1.bf16.msra.mxu0 0
    %1563 = vmatprep.subr.bf16.mxu0 0
    %1564 = vmatpush1.bf16.msra.mxu0 0
    %1565 = vmatprep.subr.bf16.mxu0 0
    %1566 = vmatpush1.bf16.msra.mxu0 0
    %1567 = vmatprep.subr.bf16.mxu0 0
    %1568 = vmatpush1.bf16.msra.mxu0 0
    %1569 = vmatprep.subr.bf16.mxu0 0
    %1570 = vmatpush1.bf16.msra.mxu0 0
    %1571 = vmatprep.subr.bf16.mxu0 0
    %1572 = vmatpush1.bf16.msra.mxu0 0
    %1573 = vmatprep.mubr.bf16.mxu0 0
    %1574 = vmatmul.mubr.bf16.gmra.mrb[0].mxu0 %v1539
    %v1575 = vpop.f32.mrb[0].mxu0
    %v1576 = vadd.f32 0.0, %v1575
    %v1577 = vpop.f32.mrb[0].mxu0
    %v1578 = vpop.f32.mrb[0].mxu0
    %v1579 = vpop.f32.mrb[0].mxu0
    %1580 = vdwg.mxu0
    %v1581 = vsel %vm473, %v1488, 0
    %1583 = vmatprep.subr.bf16.mxu0 0
    %1584 = vmatpush1.bf16.msra.mxu0 %v470
    %1585 = vmatprep.subr.bf16.mxu0 0
    %1586 = vmatpush1.bf16.msra.mxu0 %v481
    %1587 = vmatprep.subr.bf16.mxu0 0
    %1588 = vmatpush1.bf16.msra.mxu0 0
    %1589 = vmatprep.subr.bf16.mxu0 0
    %1590 = vmatpush1.bf16.msra.mxu0 0
    %1591 = vmatprep.subr.bf16.mxu0 0
    %1592 = vmatpush1.bf16.msra.mxu0 0
    %1593 = vmatprep.subr.bf16.mxu0 0
    %1594 = vmatpush1.bf16.msra.mxu0 0
    %1595 = vmatprep.subr.bf16.mxu0 0
    %1596 = vmatpush1.bf16.msra.mxu0 0
    %1597 = vmatprep.subr.bf16.mxu0 0
    %1598 = vmatpush1.bf16.msra.mxu0 0
    %1599 = vmatprep.subr.bf16.mxu0 0
    %1600 = vmatpush1.bf16.msra.mxu0 0
    %1601 = vmatprep.subr.bf16.mxu0 0
    %1602 = vmatpush1.bf16.msra.mxu0 0
    %1603 = vmatprep.subr.bf16.mxu0 0
    %1604 = vmatpush1.bf16.msra.mxu0 0
    %1605 = vmatprep.subr.bf16.mxu0 0
    %1606 = vmatpush1.bf16.msra.mxu0 0
    %1607 = vmatprep.subr.bf16.mxu0 0
    %1608 = vmatpush1.bf16.msra.mxu0 0
    %1609 = vmatprep.subr.bf16.mxu0 0
    %1610 = vmatpush1.bf16.msra.mxu0 0
    %1611 = vmatprep.subr.bf16.mxu0 0
    %1612 = vmatpush1.bf16.msra.mxu0 0
    %1613 = vmatprep.subr.bf16.mxu0 0
    %1614 = vmatpush1.bf16.msra.mxu0 0
    %1615 = vmatprep.mubr.bf16.mxu0 0
    %1616 = vmatmul.mubr.bf16.gmra.mrb[0].mxu0 %v1581
    %v1617 = vpop.f32.mrb[0].mxu0
    %v1618 = vadd.f32 0.0, %v1617
    %v1619 = vpop.f32.mrb[0].mxu0
    %v1620 = vpop.f32.mrb[0].mxu0
    %v1621 = vpop.f32.mrb[0].mxu0
    %1622 = vdwg.mxu0
    %v1623 = vsel %vm473, %v1490, 0
    %1625 = vmatprep.subr.bf16.mxu0 0
    %1626 = vmatpush1.bf16.msra.mxu0 %v470
    %1627 = vmatprep.subr.bf16.mxu0 0
    %1628 = vmatpush1.bf16.msra.mxu0 %v481
    %1629 = vmatprep.subr.bf16.mxu0 0
    %1630 = vmatpush1.bf16.msra.mxu0 0
    %1631 = vmatprep.subr.bf16.mxu0 0
    %1632 = vmatpush1.bf16.msra.mxu0 0
    %1633 = vmatprep.subr.bf16.mxu0 0
    %1634 = vmatpush1.bf16.msra.mxu0 0
    %1635 = vmatprep.subr.bf16.mxu0 0
    %1636 = vmatpush1.bf16.msra.mxu0 0
    %1637 = vmatprep.subr.bf16.mxu0 0
    %1638 = vmatpush1.bf16.msra.mxu0 0
    %1639 = vmatprep.subr.bf16.mxu0 0
    %1640 = vmatpush1.bf16.msra.mxu0 0
    %1641 = vmatprep.subr.bf16.mxu0 0
    %1642 = vmatpush1.bf16.msra.mxu0 0
    %1643 = vmatprep.subr.bf16.mxu0 0
    %1644 = vmatpush1.bf16.msra.mxu0 0
    %1645 = vmatprep.subr.bf16.mxu0 0
    %1646 = vmatpush1.bf16.msra.mxu0 0
    %1647 = vmatprep.subr.bf16.mxu0 0
    %1648 = vmatpush1.bf16.msra.mxu0 0
    %1649 = vmatprep.subr.bf16.mxu0 0
    %1650 = vmatpush1.bf16.msra.mxu0 0
    %1651 = vmatprep.subr.bf16.mxu0 0
    %1652 = vmatpush1.bf16.msra.mxu0 0
    %1653 = vmatprep.subr.bf16.mxu0 0
    %1654 = vmatpush1.bf16.msra.mxu0 0
    %1655 = vmatprep.subr.bf16.mxu0 0
    %1656 = vmatpush1.bf16.msra.mxu0 0
    %1657 = vmatprep.mubr.bf16.mxu0 0
    %1658 = vmatmul.mubr.bf16.gmra.mrb[0].mxu0 %v1623
    %v1659 = vpop.f32.mrb[0].mxu0
    %v1660 = vadd.f32 0.0, %v1659
    %v1661 = vpop.f32.mrb[0].mxu0
    %v1662 = vpop.f32.mrb[0].mxu0
    %v1663 = vpop.f32.mrb[0].mxu0
    %1664 = vdwg.mxu0
    %v1665 = vsel %vm473, %v1492, 0
    %1667 = vmatprep.subr.bf16.mxu0 0
    %1668 = vmatpush1.bf16.msra.mxu0 %v470
    %1669 = vmatprep.subr.bf16.mxu0 0
    %1670 = vmatpush1.bf16.msra.mxu0 %v481
    %1671 = vmatprep.subr.bf16.mxu0 0
    %1672 = vmatpush1.bf16.msra.mxu0 0
    %1673 = vmatprep.subr.bf16.mxu0 0
    %1674 = vmatpush1.bf16.msra.mxu0 0
    %1675 = vmatprep.subr.bf16.mxu0 0
    %1676 = vmatpush1.bf16.msra.mxu0 0
    %1677 = vmatprep.subr.bf16.mxu0 0
    %1678 = vmatpush1.bf16.msra.mxu0 0
    %1679 = vmatprep.subr.bf16.mxu0 0
    %1680 = vmatpush1.bf16.msra.mxu0 0
    %1681 = vmatprep.subr.bf16.mxu0 0
    %1682 = vmatpush1.bf16.msra.mxu0 0
    %1683 = vmatprep.subr.bf16.mxu0 0
    %1684 = vmatpush1.bf16.msra.mxu0 0
    %1685 = vmatprep.subr.bf16.mxu0 0
    %1686 = vmatpush1.bf16.msra.mxu0 0
    %1687 = vmatprep.subr.bf16.mxu0 0
    %1688 = vmatpush1.bf16.msra.mxu0 0
    %1689 = vmatprep.subr.bf16.mxu0 0
    %1690 = vmatpush1.bf16.msra.mxu0 0
    %1691 = vmatprep.subr.bf16.mxu0 0
    %1692 = vmatpush1.bf16.msra.mxu0 0
    %1693 = vmatprep.subr.bf16.mxu0 0
    %1694 = vmatpush1.bf16.msra.mxu0 0
    %1695 = vmatprep.subr.bf16.mxu0 0
    %1696 = vmatpush1.bf16.msra.mxu0 0
    %1697 = vmatprep.subr.bf16.mxu0 0
    %1698 = vmatpush1.bf16.msra.mxu0 0
    %1699 = vmatprep.mubr.bf16.mxu0 0
    %1700 = vmatmul.mubr.bf16.gmra.mrb[0].mxu0 %v1665
    %v1701 = vpop.f32.mrb[0].mxu0
    %v1702 = vadd.f32 0.0, %v1701
    %v1703 = vpop.f32.mrb[0].mxu0
    %v1704 = vpop.f32.mrb[0].mxu0
    %v1705 = vpop.f32.mrb[0].mxu0
    %1706 = vdwg.mxu0
    %v1707 = vsel %vm473, %v1494, 0
    %1709 = vmatprep.subr.bf16.mxu0 0
    %1710 = vmatpush1.bf16.msra.mxu0 %v470
    %1711 = vmatprep.subr.bf16.mxu0 0
    %1712 = vmatpush1.bf16.msra.mxu0 %v481
    %1713 = vmatprep.subr.bf16.mxu0 0
    %1714 = vmatpush1.bf16.msra.mxu0 0
    %1715 = vmatprep.subr.bf16.mxu0 0
    %1716 = vmatpush1.bf16.msra.mxu0 0
    %1717 = vmatprep.subr.bf16.mxu0 0
    %1718 = vmatpush1.bf16.msra.mxu0 0
    %1719 = vmatprep.subr.bf16.mxu0 0
    %1720 = vmatpush1.bf16.msra.mxu0 0
    %1721 = vmatprep.subr.bf16.mxu0 0
    %1722 = vmatpush1.bf16.msra.mxu0 0
    %1723 = vmatprep.subr.bf16.mxu0 0
    %1724 = vmatpush1.bf16.msra.mxu0 0
    %1725 = vmatprep.subr.bf16.mxu0 0
    %1726 = vmatpush1.bf16.msra.mxu0 0
    %1727 = vmatprep.subr.bf16.mxu0 0
    %1728 = vmatpush1.bf16.msra.mxu0 0
    %1729 = vmatprep.subr.bf16.mxu0 0
    %1730 = vmatpush1.bf16.msra.mxu0 0
    %1731 = vmatprep.subr.bf16.mxu0 0
    %1732 = vmatpush1.bf16.msra.mxu0 0
    %1733 = vmatprep.subr.bf16.mxu0 0
    %1734 = vmatpush1.bf16.msra.mxu0 0
    %1735 = vmatprep.subr.bf16.mxu0 0
    %1736 = vmatpush1.bf16.msra.mxu0 0
    %1737 = vmatprep.subr.bf16.mxu0 0
    %1738 = vmatpush1.bf16.msra.mxu0 0
    %1739 = vmatprep.subr.bf16.mxu0 0
    %1740 = vmatpush1.bf16.msra.mxu0 0
    %1741 = vmatprep.mubr.bf16.mxu0 0
    %1742 = vmatmul.mubr.bf16.gmra.mrb[0].mxu0 %v1707
    %v1743 = vpop.f32.mrb[0].mxu0
    %v1744 = vadd.f32 0.0, %v1743
    %v1745 = vpop.f32.mrb[0].mxu0
    %v1746 = vpop.f32.mrb[0].mxu0
    %v1747 = vpop.f32.mrb[0].mxu0
    %1748 = vdwg.mxu0
    %v1749 = vsel %vm473, %v1496, 0
    %1751 = vmatprep.subr.bf16.mxu0 0
    %1752 = vmatpush1.bf16.msra.mxu0 %v470
    %1753 = vmatprep.subr.bf16.mxu0 0
    %1754 = vmatpush1.bf16.msra.mxu0 %v481
    %1755 = vmatprep.subr.bf16.mxu0 0
    %1756 = vmatpush1.bf16.msra.mxu0 0
    %1757 = vmatprep.subr.bf16.mxu0 0
    %1758 = vmatpush1.bf16.msra.mxu0 0
    %1759 = vmatprep.subr.bf16.mxu0 0
    %1760 = vmatpush1.bf16.msra.mxu0 0
    %1761 = vmatprep.subr.bf16.mxu0 0
    %1762 = vmatpush1.bf16.msra.mxu0 0
    %1763 = vmatprep.subr.bf16.mxu0 0
    %1764 = vmatpush1.bf16.msra.mxu0 0
    %1765 = vmatprep.subr.bf16.mxu0 0
    %1766 = vmatpush1.bf16.msra.mxu0 0
    %1767 = vmatprep.subr.bf16.mxu0 0
    %1768 = vmatpush1.bf16.msra.mxu0 0
    %1769 = vmatprep.subr.bf16.mxu0 0
    %1770 = vmatpush1.bf16.msra.mxu0 0
    %1771 = vmatprep.subr.bf16.mxu0 0
    %1772 = vmatpush1.bf16.msra.mxu0 0
    %1773 = vmatprep.subr.bf16.mxu0 0
    %1774 = vmatpush1.bf16.msra.mxu0 0
    %1775 = vmatprep.subr.bf16.mxu0 0
    %1776 = vmatpush1.bf16.msra.mxu0 0
    %1777 = vmatprep.subr.bf16.mxu0 0
    %1778 = vmatpush1.bf16.msra.mxu0 0
    %1779 = vmatprep.subr.bf16.mxu0 0
    %1780 = vmatpush1.bf16.msra.mxu0 0
    %1781 = vmatprep.subr.bf16.mxu0 0
    %1782 = vmatpush1.bf16.msra.mxu0 0
    %1783 = vmatprep.mubr.bf16.mxu0 0
    %1784 = vmatmul.mubr.bf16.gmra.mrb[0].mxu0 %v1749
    %v1785 = vpop.f32.mrb[0].mxu0
    %v1786 = vadd.f32 0.0, %v1785
    %v1787 = vpop.f32.mrb[0].mxu0
    %v1788 = vpop.f32.mrb[0].mxu0
    %v1789 = vpop.f32.mrb[0].mxu0
    %1790 = vdwg.mxu0
    %v1791 = vmax.f32 %v1251, %v1534
    %v1792 = vmax.f32 %v1252, %v1576
    %v1793 = vmax.f32 %v1253, %v1618
    %v1794 = vmax.f32 %v1254, %v1660
    %v1795 = vmax.f32 %v1255, %v1702
    %v1796 = vmax.f32 %v1256, %v1744
    %v1797 = vmax.f32 %v1257, %v1786
    %1798 = vrot.lane.b32.xlu0 %v181, 125
    %v1799 = vpop.permute.xlu0 %1798
    %1800 = vrot.lane.b32.xlu0 %v182, 125
    %v1801 = vpop.permute.xlu0 %1800
    %1802 = vrot.lane.b32.xlu0 %v183, 125
    %v1803 = vpop.permute.xlu0 %1802
    %1804 = vrot.lane.b32.xlu0 %v184, 125
    %v1805 = vpop.permute.xlu0 %1804
    %1806 = vrot.lane.b32.xlu0 %v185, 125
    %v1807 = vpop.permute.xlu0 %1806
    %1808 = vrot.lane.b32.xlu0 %v186, 125
    %v1809 = vpop.permute.xlu0 %1808
    %1810 = vrot.lane.b32.xlu0 %v187, 125
    %v1811 = vpop.permute.xlu0 %1810
    %1812 = vrot.lane.b32.xlu0 %v208, 3
    %v1813 = vpop.permute.xlu0 %1812
    %1814 = vrot.lane.b32.xlu0 %v215, 3
    %v1815 = vpop.permute.xlu0 %1814
    %1816 = vrot.lane.b32.xlu0 %v222, 3
    %v1817 = vpop.permute.xlu0 %1816
    %1818 = vrot.lane.b32.xlu0 %v229, 3
    %v1819 = vpop.permute.xlu0 %1818
    %1820 = vrot.lane.b32.xlu0 %v236, 3
    %v1821 = vpop.permute.xlu0 %1820
    %1822 = vrot.lane.b32.xlu0 %v243, 3
    %v1823 = vpop.permute.xlu0 %1822
    %1824 = vrot.lane.b32.xlu0 %v250, 3
    %v1825 = vpop.permute.xlu0 %1824
    %1826 = vrot.lane.b32.xlu0 %v279, 6
    %v1827 = vpop.permute.xlu0 %1826
    %1828 = vrot.lane.b32.xlu0 %v280, 6
    %v1829 = vpop.permute.xlu0 %1828
    %1830 = vrot.lane.b32.xlu0 %v281, 6
    %v1831 = vpop.permute.xlu0 %1830
    %1832 = vrot.lane.b32.xlu0 %v282, 6
    %v1833 = vpop.permute.xlu0 %1832
    %1834 = vrot.lane.b32.xlu0 %v283, 6
    %v1835 = vpop.permute.xlu0 %1834
    %1836 = vrot.lane.b32.xlu0 %v284, 6
    %v1837 = vpop.permute.xlu0 %1836
    %1838 = vrot.lane.b32.xlu0 %v285, 6
    %v1839 = vpop.permute.xlu0 %1838
    %1840 = vrot.lane.b32.xlu0 %v306, 12
    %v1841 = vpop.permute.xlu0 %1840
    %1842 = vrot.lane.b32.xlu0 %v313, 12
    %v1843 = vpop.permute.xlu0 %1842
    %1844 = vrot.lane.b32.xlu0 %v320, 12
    %v1845 = vpop.permute.xlu0 %1844
    %1846 = vrot.lane.b32.xlu0 %v327, 12
    %v1847 = vpop.permute.xlu0 %1846
    %1848 = vrot.lane.b32.xlu0 %v334, 12
    %v1849 = vpop.permute.xlu0 %1848
    %1850 = vrot.lane.b32.xlu0 %v341, 12
    %v1851 = vpop.permute.xlu0 %1850
    %1852 = vrot.lane.b32.xlu0 %v348, 12
    %v1853 = vpop.permute.xlu0 %1852
    %1854 = vrot.lane.b32.xlu0 %v1322, 15
    %v1855 = vpop.permute.xlu0 %1854
    %1856 = vrot.lane.b32.xlu0 %v1323, 15
    %v1857 = vpop.permute.xlu0 %1856
    %1858 = vrot.lane.b32.xlu0 %v1324, 15
    %v1859 = vpop.permute.xlu0 %1858
    %1860 = vrot.lane.b32.xlu0 %v1325, 15
    %v1861 = vpop.permute.xlu0 %1860
    %1862 = vrot.lane.b32.xlu0 %v1326, 15
    %v1863 = vpop.permute.xlu0 %1862
    %1864 = vrot.lane.b32.xlu0 %v1327, 15
    %v1865 = vpop.permute.xlu0 %1864
    %1866 = vrot.lane.b32.xlu0 %v1328, 15
    %v1867 = vpop.permute.xlu0 %1866
    %1868 = vrot.lane.b32.xlu0 %v1349, 21
    %v1869 = vpop.permute.xlu0 %1868
    %1870 = vrot.lane.b32.xlu0 %v1356, 21
    %v1871 = vpop.permute.xlu0 %1870
    %1872 = vrot.lane.b32.xlu0 %v1363, 21
    %v1873 = vpop.permute.xlu0 %1872
    %1874 = vrot.lane.b32.xlu0 %v1370, 21
    %v1875 = vpop.permute.xlu0 %1874
    %1876 = vrot.lane.b32.xlu0 %v1377, 21
    %v1877 = vpop.permute.xlu0 %1876
    %1878 = vrot.lane.b32.xlu0 %v1384, 21
    %v1879 = vpop.permute.xlu0 %1878
    %1880 = vrot.lane.b32.xlu0 %v1391, 21
    %v1881 = vpop.permute.xlu0 %1880
    %v1884 = vsel %vm363, %v1799, %v1813
    %v1887 = vsel %vm363, %v1801, %v1815
    %v1890 = vsel %vm363, %v1803, %v1817
    %v1893 = vsel %vm363, %v1805, %v1819
    %v1896 = vsel %vm363, %v1807, %v1821
    %v1899 = vsel %vm363, %v1809, %v1823
    %v1902 = vsel %vm363, %v1811, %v1825
    %v1903 = vsel %vm371, %v1884, %v1813
    %v1904 = vsel %vm371, %v1887, %v1815
    %v1905 = vsel %vm371, %v1890, %v1817
    %v1906 = vsel %vm371, %v1893, %v1819
    %v1907 = vsel %vm371, %v1896, %v1821
    %v1908 = vsel %vm371, %v1899, %v1823
    %v1909 = vsel %vm371, %v1902, %v1825
    %v1911 = vsel %vm386, %v1903, %v1827
    %v1913 = vsel %vm386, %v1904, %v1829
    %v1915 = vsel %vm386, %v1905, %v1831
    %v1917 = vsel %vm386, %v1906, %v1833
    %v1919 = vsel %vm386, %v1907, %v1835
    %v1921 = vsel %vm386, %v1908, %v1837
    %v1923 = vsel %vm386, %v1909, %v1839
    %v1925 = vsel %vm401, %v1911, %v1841
    %v1927 = vsel %vm401, %v1913, %v1843
    %v1929 = vsel %vm401, %v1915, %v1845
    %v1931 = vsel %vm401, %v1917, %v1847
    %v1933 = vsel %vm401, %v1919, %v1849
    %v1935 = vsel %vm401, %v1921, %v1851
    %v1937 = vsel %vm401, %v1923, %v1853
    %v1938 = vsel %vm409, %v1925, %v1841
    %v1939 = vsel %vm409, %v1927, %v1843
    %v1940 = vsel %vm409, %v1929, %v1845
    %v1941 = vsel %vm409, %v1931, %v1847
    %v1942 = vsel %vm409, %v1933, %v1849
    %v1943 = vsel %vm409, %v1935, %v1851
    %v1944 = vsel %vm409, %v1937, %v1853
    %v1946 = vsel %vm424, %v1938, %v1855
    %v1948 = vsel %vm424, %v1939, %v1857
    %v1950 = vsel %vm424, %v1940, %v1859
    %v1952 = vsel %vm424, %v1941, %v1861
    %v1954 = vsel %vm424, %v1942, %v1863
    %v1956 = vsel %vm424, %v1943, %v1865
    %v1958 = vsel %vm424, %v1944, %v1867
    %v1960 = vsel %vm439, %v1946, %v1869
    %v1962 = vsel %vm439, %v1948, %v1871
    %v1964 = vsel %vm439, %v1950, %v1873
    %v1966 = vsel %vm439, %v1952, %v1875
    %v1968 = vsel %vm439, %v1954, %v1877
    %v1970 = vsel %vm439, %v1956, %v1879
    %v1972 = vsel %vm439, %v1958, %v1881
    %v1973 = vsel %vm447, %v1960, %v1869
    %v1974 = vsel %vm447, %v1962, %v1871
    %v1975 = vsel %vm447, %v1964, %v1873
    %v1976 = vsel %vm447, %v1966, %v1875
    %v1977 = vsel %vm447, %v1968, %v1877
    %v1978 = vsel %vm447, %v1970, %v1879
    %v1979 = vsel %vm447, %v1972, %v1881
    %v1980 = vsel %vm473, %v1973, 0
    %1982 = vmatprep.subr.bf16.mxu0 0
    %1983 = vmatpush1.bf16.msra.mxu0 %v470
    %1984 = vmatprep.subr.bf16.mxu0 0
    %1985 = vmatpush1.bf16.msra.mxu0 %v481
    %1986 = vmatprep.subr.bf16.mxu0 0
    %1987 = vmatpush1.bf16.msra.mxu0 0
    %1988 = vmatprep.subr.bf16.mxu0 0
    %1989 = vmatpush1.bf16.msra.mxu0 0
    %1990 = vmatprep.subr.bf16.mxu0 0
    %1991 = vmatpush1.bf16.msra.mxu0 0
    %1992 = vmatprep.subr.bf16.mxu0 0
    %1993 = vmatpush1.bf16.msra.mxu0 0
    %1994 = vmatprep.subr.bf16.mxu0 0
    %1995 = vmatpush1.bf16.msra.mxu0 0
    %1996 = vmatprep.subr.bf16.mxu0 0
    %1997 = vmatpush1.bf16.msra.mxu0 0
    %1998 = vmatprep.subr.bf16.mxu0 0
    %1999 = vmatpush1.bf16.msra.mxu0 0
    %2000 = vmatprep.subr.bf16.mxu0 0
    %2001 = vmatpush1.bf16.msra.mxu0 0
    %2002 = vmatprep.subr.bf16.mxu0 0
    %2003 = vmatpush1.bf16.msra.mxu0 0
    %2004 = vmatprep.subr.bf16.mxu0 0
    %2005 = vmatpush1.bf16.msra.mxu0 0
    %2006 = vmatprep.subr.bf16.mxu0 0
    %2007 = vmatpush1.bf16.msra.mxu0 0
    %2008 = vmatprep.subr.bf16.mxu0 0
    %2009 = vmatpush1.bf16.msra.mxu0 0
    %2010 = vmatprep.subr.bf16.mxu0 0
    %2011 = vmatpush1.bf16.msra.mxu0 0
    %2012 = vmatprep.subr.bf16.mxu0 0
    %2013 = vmatpush1.bf16.msra.mxu0 0
    %2014 = vmatprep.mubr.bf16.mxu0 0
    %2015 = vmatmul.mubr.bf16.gmra.mrb[0].mxu0 %v1980
    %v2016 = vpop.f32.mrb[0].mxu0
    %v2017 = vadd.f32 0.0, %v2016
    %v2018 = vpop.f32.mrb[0].mxu0
    %v2019 = vpop.f32.mrb[0].mxu0
    %v2020 = vpop.f32.mrb[0].mxu0
    %2021 = vdwg.mxu0
    %v2022 = vsel %vm473, %v1974, 0
    %2024 = vmatprep.subr.bf16.mxu0 0
    %2025 = vmatpush1.bf16.msra.mxu0 %v470
    %2026 = vmatprep.subr.bf16.mxu0 0
    %2027 = vmatpush1.bf16.msra.mxu0 %v481
    %2028 = vmatprep.subr.bf16.mxu0 0
    %2029 = vmatpush1.bf16.msra.mxu0 0
    %2030 = vmatprep.subr.bf16.mxu0 0
    %2031 = vmatpush1.bf16.msra.mxu0 0
    %2032 = vmatprep.subr.bf16.mxu0 0
    %2033 = vmatpush1.bf16.msra.mxu0 0
    %2034 = vmatprep.subr.bf16.mxu0 0
    %2035 = vmatpush1.bf16.msra.mxu0 0
    %2036 = vmatprep.subr.bf16.mxu0 0
    %2037 = vmatpush1.bf16.msra.mxu0 0
    %2038 = vmatprep.subr.bf16.mxu0 0
    %2039 = vmatpush1.bf16.msra.mxu0 0
    %2040 = vmatprep.subr.bf16.mxu0 0
    %2041 = vmatpush1.bf16.msra.mxu0 0
    %2042 = vmatprep.subr.bf16.mxu0 0
    %2043 = vmatpush1.bf16.msra.mxu0 0
    %2044 = vmatprep.subr.bf16.mxu0 0
    %2045 = vmatpush1.bf16.msra.mxu0 0
    %2046 = vmatprep.subr.bf16.mxu0 0
    %2047 = vmatpush1.bf16.msra.mxu0 0
    %2048 = vmatprep.subr.bf16.mxu0 0
    %2049 = vmatpush1.bf16.msra.mxu0 0
    %2050 = vmatprep.subr.bf16.mxu0 0
    %2051 = vmatpush1.bf16.msra.mxu0 0
    %2052 = vmatprep.subr.bf16.mxu0 0
    %2053 = vmatpush1.bf16.msra.mxu0 0
    %2054 = vmatprep.subr.bf16.mxu0 0
    %2055 = vmatpush1.bf16.msra.mxu0 0
    %2056 = vmatprep.mubr.bf16.mxu0 0
    %2057 = vmatmul.mubr.bf16.gmra.mrb[0].mxu0 %v2022
    %v2058 = vpop.f32.mrb[0].mxu0
    %v2059 = vadd.f32 0.0, %v2058
    %v2060 = vpop.f32.mrb[0].mxu0
    %v2061 = vpop.f32.mrb[0].mxu0
    %v2062 = vpop.f32.mrb[0].mxu0
    %2063 = vdwg.mxu0
    %v2064 = vsel %vm473, %v1975, 0
    %2066 = vmatprep.subr.bf16.mxu0 0
    %2067 = vmatpush1.bf16.msra.mxu0 %v470
    %2068 = vmatprep.subr.bf16.mxu0 0
    %2069 = vmatpush1.bf16.msra.mxu0 %v481
    %2070 = vmatprep.subr.bf16.mxu0 0
    %2071 = vmatpush1.bf16.msra.mxu0 0
    %2072 = vmatprep.subr.bf16.mxu0 0
    %2073 = vmatpush1.bf16.msra.mxu0 0
    %2074 = vmatprep.subr.bf16.mxu0 0
    %2075 = vmatpush1.bf16.msra.mxu0 0
    %2076 = vmatprep.subr.bf16.mxu0 0
    %2077 = vmatpush1.bf16.msra.mxu0 0
    %2078 = vmatprep.subr.bf16.mxu0 0
    %2079 = vmatpush1.bf16.msra.mxu0 0
    %2080 = vmatprep.subr.bf16.mxu0 0
    %2081 = vmatpush1.bf16.msra.mxu0 0
    %2082 = vmatprep.subr.bf16.mxu0 0
    %2083 = vmatpush1.bf16.msra.mxu0 0
    %2084 = vmatprep.subr.bf16.mxu0 0
    %2085 = vmatpush1.bf16.msra.mxu0 0
    %2086 = vmatprep.subr.bf16.mxu0 0
    %2087 = vmatpush1.bf16.msra.mxu0 0
    %2088 = vmatprep.subr.bf16.mxu0 0
    %2089 = vmatpush1.bf16.msra.mxu0 0
    %2090 = vmatprep.subr.bf16.mxu0 0
    %2091 = vmatpush1.bf16.msra.mxu0 0
    %2092 = vmatprep.subr.bf16.mxu0 0
    %2093 = vmatpush1.bf16.msra.mxu0 0
    %2094 = vmatprep.subr.bf16.mxu0 0
    %2095 = vmatpush1.bf16.msra.mxu0 0
    %2096 = vmatprep.subr.bf16.mxu0 0
    %2097 = vmatpush1.bf16.msra.mxu0 0
    %2098 = vmatprep.mubr.bf16.mxu0 0
    %2099 = vmatmul.mubr.bf16.gmra.mrb[0].mxu0 %v2064
    %v2100 = vpop.f32.mrb[0].mxu0
    %v2101 = vadd.f32 0.0, %v2100
    %v2102 = vpop.f32.mrb[0].mxu0
    %v2103 = vpop.f32.mrb[0].mxu0
    %v2104 = vpop.f32.mrb[0].mxu0
    %2105 = vdwg.mxu0
    %v2106 = vsel %vm473, %v1976, 0
    %2108 = vmatprep.subr.bf16.mxu0 0
    %2109 = vmatpush1.bf16.msra.mxu0 %v470
    %2110 = vmatprep.subr.bf16.mxu0 0
    %2111 = vmatpush1.bf16.msra.mxu0 %v481
    %2112 = vmatprep.subr.bf16.mxu0 0
    %2113 = vmatpush1.bf16.msra.mxu0 0
    %2114 = vmatprep.subr.bf16.mxu0 0
    %2115 = vmatpush1.bf16.msra.mxu0 0
    %2116 = vmatprep.subr.bf16.mxu0 0
    %2117 = vmatpush1.bf16.msra.mxu0 0
    %2118 = vmatprep.subr.bf16.mxu0 0
    %2119 = vmatpush1.bf16.msra.mxu0 0
    %2120 = vmatprep.subr.bf16.mxu0 0
    %2121 = vmatpush1.bf16.msra.mxu0 0
    %2122 = vmatprep.subr.bf16.mxu0 0
    %2123 = vmatpush1.bf16.msra.mxu0 0
    %2124 = vmatprep.subr.bf16.mxu0 0
    %2125 = vmatpush1.bf16.msra.mxu0 0
    %2126 = vmatprep.subr.bf16.mxu0 0
    %2127 = vmatpush1.bf16.msra.mxu0 0
    %2128 = vmatprep.subr.bf16.mxu0 0
    %2129 = vmatpush1.bf16.msra.mxu0 0
    %2130 = vmatprep.subr.bf16.mxu0 0
    %2131 = vmatpush1.bf16.msra.mxu0 0
    %2132 = vmatprep.subr.bf16.mxu0 0
    %2133 = vmatpush1.bf16.msra.mxu0 0
    %2134 = vmatprep.subr.bf16.mxu0 0
    %2135 = vmatpush1.bf16.msra.mxu0 0
    %2136 = vmatprep.subr.bf16.mxu0 0
    %2137 = vmatpush1.bf16.msra.mxu0 0
    %2138 = vmatprep.subr.bf16.mxu0 0
    %2139 = vmatpush1.bf16.msra.mxu0 0
    %2140 = vmatprep.mubr.bf16.mxu0 0
    %2141 = vmatmul.mubr.bf16.gmra.mrb[0].mxu0 %v2106
    %v2142 = vpop.f32.mrb[0].mxu0
    %v2143 = vadd.f32 0.0, %v2142
    %v2144 = vpop.f32.mrb[0].mxu0
    %v2145 = vpop.f32.mrb[0].mxu0
    %v2146 = vpop.f32.mrb[0].mxu0
    %2147 = vdwg.mxu0
    %v2148 = vsel %vm473, %v1977, 0
    %2150 = vmatprep.subr.bf16.mxu0 0
    %2151 = vmatpush1.bf16.msra.mxu0 %v470
    %2152 = vmatprep.subr.bf16.mxu0 0
    %2153 = vmatpush1.bf16.msra.mxu0 %v481
    %2154 = vmatprep.subr.bf16.mxu0 0
    %2155 = vmatpush1.bf16.msra.mxu0 0
    %2156 = vmatprep.subr.bf16.mxu0 0
    %2157 = vmatpush1.bf16.msra.mxu0 0
    %2158 = vmatprep.subr.bf16.mxu0 0
    %2159 = vmatpush1.bf16.msra.mxu0 0
    %2160 = vmatprep.subr.bf16.mxu0 0
    %2161 = vmatpush1.bf16.msra.mxu0 0
    %2162 = vmatprep.subr.bf16.mxu0 0
    %2163 = vmatpush1.bf16.msra.mxu0 0
    %2164 = vmatprep.subr.bf16.mxu0 0
    %2165 = vmatpush1.bf16.msra.mxu0 0
    %2166 = vmatprep.subr.bf16.mxu0 0
    %2167 = vmatpush1.bf16.msra.mxu0 0
    %2168 = vmatprep.subr.bf16.mxu0 0
    %2169 = vmatpush1.bf16.msra.mxu0 0
    %2170 = vmatprep.subr.bf16.mxu0 0
    %2171 = vmatpush1.bf16.msra.mxu0 0
    %2172 = vmatprep.subr.bf16.mxu0 0
    %2173 = vmatpush1.bf16.msra.mxu0 0
    %2174 = vmatprep.subr.bf16.mxu0 0
    %2175 = vmatpush1.bf16.msra.mxu0 0
    %2176 = vmatprep.subr.bf16.mxu0 0
    %2177 = vmatpush1.bf16.msra.mxu0 0
    %2178 = vmatprep.subr.bf16.mxu0 0
    %2179 = vmatpush1.bf16.msra.mxu0 0
    %2180 = vmatprep.subr.bf16.mxu0 0
    %2181 = vmatpush1.bf16.msra.mxu0 0
    %2182 = vmatprep.mubr.bf16.mxu0 0
    %2183 = vmatmul.mubr.bf16.gmra.mrb[0].mxu0 %v2148
    %v2184 = vpop.f32.mrb[0].mxu0
    %v2185 = vadd.f32 0.0, %v2184
    %v2186 = vpop.f32.mrb[0].mxu0
    %v2187 = vpop.f32.mrb[0].mxu0
    %v2188 = vpop.f32.mrb[0].mxu0
    %2189 = vdwg.mxu0
    %v2190 = vsel %vm473, %v1978, 0
    %2192 = vmatprep.subr.bf16.mxu0 0
    %2193 = vmatpush1.bf16.msra.mxu0 %v470
    %2194 = vmatprep.subr.bf16.mxu0 0
    %2195 = vmatpush1.bf16.msra.mxu0 %v481
    %2196 = vmatprep.subr.bf16.mxu0 0
    %2197 = vmatpush1.bf16.msra.mxu0 0
    %2198 = vmatprep.subr.bf16.mxu0 0
    %2199 = vmatpush1.bf16.msra.mxu0 0
    %2200 = vmatprep.subr.bf16.mxu0 0
    %2201 = vmatpush1.bf16.msra.mxu0 0
    %2202 = vmatprep.subr.bf16.mxu0 0
    %2203 = vmatpush1.bf16.msra.mxu0 0
    %2204 = vmatprep.subr.bf16.mxu0 0
    %2205 = vmatpush1.bf16.msra.mxu0 0
    %2206 = vmatprep.subr.bf16.mxu0 0
    %2207 = vmatpush1.bf16.msra.mxu0 0
    %2208 = vmatprep.subr.bf16.mxu0 0
    %2209 = vmatpush1.bf16.msra.mxu0 0
    %2210 = vmatprep.subr.bf16.mxu0 0
    %2211 = vmatpush1.bf16.msra.mxu0 0
    %2212 = vmatprep.subr.bf16.mxu0 0
    %2213 = vmatpush1.bf16.msra.mxu0 0
    %2214 = vmatprep.subr.bf16.mxu0 0
    %2215 = vmatpush1.bf16.msra.mxu0 0
    %2216 = vmatprep.subr.bf16.mxu0 0
    %2217 = vmatpush1.bf16.msra.mxu0 0
    %2218 = vmatprep.subr.bf16.mxu0 0
    %2219 = vmatpush1.bf16.msra.mxu0 0
    %2220 = vmatprep.subr.bf16.mxu0 0
    %2221 = vmatpush1.bf16.msra.mxu0 0
    %2222 = vmatprep.subr.bf16.mxu0 0
    %2223 = vmatpush1.bf16.msra.mxu0 0
    %2224 = vmatprep.mubr.bf16.mxu0 0
    %2225 = vmatmul.mubr.bf16.gmra.mrb[0].mxu0 %v2190
    %v2226 = vpop.f32.mrb[0].mxu0
    %v2227 = vadd.f32 0.0, %v2226
    %v2228 = vpop.f32.mrb[0].mxu0
    %v2229 = vpop.f32.mrb[0].mxu0
    %v2230 = vpop.f32.mrb[0].mxu0
    %2231 = vdwg.mxu0
    %v2232 = vsel %vm473, %v1979, 0
    %2234 = vmatprep.subr.bf16.mxu0 0
    %2235 = vmatpush1.bf16.msra.mxu0 %v470
    %2236 = vmatprep.subr.bf16.mxu0 0
    %2237 = vmatpush1.bf16.msra.mxu0 %v481
    %2238 = vmatprep.subr.bf16.mxu0 0
    %2239 = vmatpush1.bf16.msra.mxu0 0
    %2240 = vmatprep.subr.bf16.mxu0 0
    %2241 = vmatpush1.bf16.msra.mxu0 0
    %2242 = vmatprep.subr.bf16.mxu0 0
    %2243 = vmatpush1.bf16.msra.mxu0 0
    %2244 = vmatprep.subr.bf16.mxu0 0
    %2245 = vmatpush1.bf16.msra.mxu0 0
    %2246 = vmatprep.subr.bf16.mxu0 0
    %2247 = vmatpush1.bf16.msra.mxu0 0
    %2248 = vmatprep.subr.bf16.mxu0 0
    %2249 = vmatpush1.bf16.msra.mxu0 0
    %2250 = vmatprep.subr.bf16.mxu0 0
    %2251 = vmatpush1.bf16.msra.mxu0 0
    %2252 = vmatprep.subr.bf16.mxu0 0
    %2253 = vmatpush1.bf16.msra.mxu0 0
    %2254 = vmatprep.subr.bf16.mxu0 0
    %2255 = vmatpush1.bf16.msra.mxu0 0
    %2256 = vmatprep.subr.bf16.mxu0 0
    %2257 = vmatpush1.bf16.msra.mxu0 0
    %2258 = vmatprep.subr.bf16.mxu0 0
    %2259 = vmatpush1.bf16.msra.mxu0 0
    %2260 = vmatprep.subr.bf16.mxu0 0
    %2261 = vmatpush1.bf16.msra.mxu0 0
    %2262 = vmatprep.subr.bf16.mxu0 0
    %2263 = vmatpush1.bf16.msra.mxu0 0
    %2264 = vmatprep.subr.bf16.mxu0 0
    %2265 = vmatpush1.bf16.msra.mxu0 0
    %2266 = vmatprep.mubr.bf16.mxu0 0
    %2267 = vmatmul.mubr.bf16.gmra.mrb[0].mxu0 %v2232
    %v2268 = vpop.f32.mrb[0].mxu0
    %v2269 = vadd.f32 0.0, %v2268
    %v2270 = vpop.f32.mrb[0].mxu0
    %v2271 = vpop.f32.mrb[0].mxu0
    %v2272 = vpop.f32.mrb[0].mxu0
    %2273 = vdwg.mxu0
    %v2274 = vmax.f32 %v1791, %v2017
    %v2275 = vmax.f32 %v1792, %v2059
    %v2276 = vmax.f32 %v1793, %v2101
    %v2277 = vmax.f32 %v1794, %v2143
    %v2278 = vmax.f32 %v1795, %v2185
    %v2279 = vmax.f32 %v1796, %v2227
    %v2280 = vmax.f32 %v1797, %v2269
    %v2282 = vlaneseq
    %v2283 = vshrl.u32 %v2282, 7
    %v2284 = vsub.s32 0, %v2283
    %v2285 = vrot.slane %v59, %v2284
    %v2287 = vadd.f32 %v2274, %v2285
    %v2288 = vadd.f32 %v2275, %v2285
    %v2289 = vadd.f32 %v2276, %v2285
    %v2290 = vadd.f32 %v2277, %v2285
    %v2291 = vadd.f32 %v2278, %v2285
    %v2292 = vadd.f32 %v2279, %v2285
    %v2293 = vadd.f32 %v2280, %v2285
    %v2294 = vmax.f32 %v2287, 0.0
    %v2295 = vmax.f32 %v2288, 0.0
    %v2296 = vmax.f32 %v2289, 0.0
    %v2297 = vmax.f32 %v2290, 0.0
    %v2298 = vmax.f32 %v2291, 0.0
    %v2299 = vmax.f32 %v2292, 0.0
    %v2300 = vmax.f32 %v2293, 0.0
    %v2301 = vpack.c.bf16 %v2294, %v2294
    %v2302 = vpack.c.bf16 %v2295, %v2295
    %v2303 = vpack.c.bf16 %v2296, %v2296
    %v2304 = vpack.c.bf16 %v2297, %v2297
    %v2305 = vpack.c.bf16 %v2298, %v2298
    %v2306 = vpack.c.bf16 %v2299, %v2299
    %v2307 = vpack.c.bf16 %v2300, %v2300
    %vm2308 = vcmask 125952
    %vm2309 = vsmask.f32 3328
    %vm2310 = vmand %vm2308, %vm2309
    %v2311 = vld [vmem:[#allocation8] sm:$0xf]
    %v2312 = vsel %vm2310, %v2301, %v2311
    %2313 = vst [vmem:[#allocation8] sm:$0xf] %v2312
    %v2314 = vld [vmem:[#allocation8 + $0x4] sm:$0xf]
    %v2315 = vsel %vm2310, %v2302, %v2314
    %2316 = vst [vmem:[#allocation8 + $0x4] sm:$0xf] %v2315
    %v2317 = vld [vmem:[#allocation8 + $0x8] sm:$0xf]
    %v2318 = vsel %vm2310, %v2303, %v2317
    %2319 = vst [vmem:[#allocation8 + $0x8] sm:$0xf] %v2318
    %v2320 = vld [vmem:[#allocation8 + $0xc] sm:$0xf]
    %v2321 = vsel %vm2310, %v2304, %v2320
    %2322 = vst [vmem:[#allocation8 + $0xc] sm:$0xf] %v2321
    %v2323 = vld [vmem:[#allocation8 + $0x10] sm:$0xf]
    %v2324 = vsel %vm2310, %v2305, %v2323
    %2325 = vst [vmem:[#allocation8 + $0x10] sm:$0xf] %v2324
    %v2326 = vld [vmem:[#allocation8 + $0x14] sm:$0xf]
    %v2327 = vsel %vm2310, %v2306, %v2326
    %2328 = vst [vmem:[#allocation8 + $0x14] sm:$0xf] %v2327
    %v2329 = vld [vmem:[#allocation8 + $0x18] sm:$0xf]
    %v2330 = vsel %vm2310, %v2307, %v2329
    %2331 = vst [vmem:[#allocation8 + $0x18] sm:$0xf] %v2330
    %s2332 = scalar_lea.vmem [#allocation2], 64
    %v2333 = vld [vmem:[%s2332] sm:$0xf]
    %v2334 = vld [vmem:[%s2332 + $0x8] sm:$0xf]
    %v2335 = vld [vmem:[%s2332 + $0x10] sm:$0xf]
    %v2336 = vld [vmem:[%s2332 + $0x18] sm:$0xf]
    %v2337 = vld [vmem:[%s2332 + $0x20] sm:$0xf]
    %v2338 = vld [vmem:[%s2332 + $0x28] sm:$0xf]
    %v2339 = vld [vmem:[%s2332 + $0x30] sm:$0xf]
    %s2340 = scalar_lea.vmem [#allocation2], 68
    %v2341 = vld [vmem:[%s2340] sm:$0xf]
    %v2342 = vld [vmem:[%s2340 + $0x8] sm:$0xf]
    %v2343 = vld [vmem:[%s2340 + $0x10] sm:$0xf]
    %v2344 = vld [vmem:[%s2340 + $0x18] sm:$0xf]
    %v2345 = vld [vmem:[%s2340 + $0x20] sm:$0xf]
    %v2346 = vld [vmem:[%s2340 + $0x28] sm:$0xf]
    %v2347 = vld [vmem:[%s2340 + $0x30] sm:$0xf]
    %s2348 = scalar_lea.vmem [#allocation2], 72
    %v2349 = vld [vmem:[%s2348] sm:$0xf]
    %v2350 = vld [vmem:[%s2348 + $0x8] sm:$0xf]
    %v2351 = vld [vmem:[%s2348 + $0x10] sm:$0xf]
    %v2352 = vld [vmem:[%s2348 + $0x18] sm:$0xf]
    %v2353 = vld [vmem:[%s2348 + $0x20] sm:$0xf]
    %v2354 = vld [vmem:[%s2348 + $0x28] sm:$0xf]
    %v2355 = vld [vmem:[%s2348 + $0x30] sm:$0xf]
    %v2363 = vunpack.c.l.b16 %v2333
    %v2364 = vunpack.c.l.b16 %v2334
    %v2365 = vunpack.c.l.b16 %v2335
    %v2366 = vunpack.c.l.b16 %v2336
    %v2367 = vunpack.c.l.b16 %v2337
    %v2368 = vunpack.c.l.b16 %v2338
    %v2369 = vunpack.c.l.b16 %v2339
    %v2370 = vpack.c.b16 %v2363, %v2363
    %v2371 = vpack.c.b16 %v2364, %v2364
    %v2372 = vpack.c.b16 %v2365, %v2365
    %v2373 = vpack.c.b16 %v2366, %v2366
    %v2374 = vpack.c.b16 %v2367, %v2367
    %v2375 = vpack.c.b16 %v2368, %v2368
    %v2376 = vpack.c.b16 %v2369, %v2369
    %v2378 = vshrl.u32 %v2370, 16
    %v2380 = vshll.u32 %v2370, 16
    %v2382 = vrot.slane %v2380, 1
    %v2383 = vor.u32 %v2378, %v2382
    %v2385 = vshrl.u32 %v2371, 16
    %v2387 = vshll.u32 %v2371, 16
    %v2389 = vrot.slane %v2387, 1
    %v2390 = vor.u32 %v2385, %v2389
    %v2392 = vshrl.u32 %v2372, 16
    %v2394 = vshll.u32 %v2372, 16
    %v2396 = vrot.slane %v2394, 1
    %v2397 = vor.u32 %v2392, %v2396
    %v2399 = vshrl.u32 %v2373, 16
    %v2401 = vshll.u32 %v2373, 16
    %v2403 = vrot.slane %v2401, 1
    %v2404 = vor.u32 %v2399, %v2403
    %v2406 = vshrl.u32 %v2374, 16
    %v2408 = vshll.u32 %v2374, 16
    %v2410 = vrot.slane %v2408, 1
    %v2411 = vor.u32 %v2406, %v2410
    %v2413 = vshrl.u32 %v2375, 16
    %v2415 = vshll.u32 %v2375, 16
    %v2417 = vrot.slane %v2415, 1
    %v2418 = vor.u32 %v2413, %v2417
    %v2420 = vshrl.u32 %v2376, 16
    %v2422 = vshll.u32 %v2376, 16
    %v2424 = vrot.slane %v2422, 1
    %v2425 = vor.u32 %v2420, %v2424
    %2426 = vrot.lane.b32.xlu0 %v2383, 6
    %v2427 = vpop.permute.xlu0 %2426
    %2428 = vrot.lane.b32.xlu0 %v2390, 6
    %v2429 = vpop.permute.xlu0 %2428
    %2430 = vrot.lane.b32.xlu0 %v2397, 6
    %v2431 = vpop.permute.xlu0 %2430
    %2432 = vrot.lane.b32.xlu0 %v2404, 6
    %v2433 = vpop.permute.xlu0 %2432
    %2434 = vrot.lane.b32.xlu0 %v2411, 6
    %v2435 = vpop.permute.xlu0 %2434
    %2436 = vrot.lane.b32.xlu0 %v2418, 6
    %v2437 = vpop.permute.xlu0 %2436
    %2438 = vrot.lane.b32.xlu0 %v2425, 6
    %v2439 = vpop.permute.xlu0 %2438
    %v2447 = vunpack.c.l.b16 %v2341
    %v2448 = vunpack.c.l.b16 %v2342
    %v2449 = vunpack.c.l.b16 %v2343
    %v2450 = vunpack.c.l.b16 %v2344
    %v2451 = vunpack.c.l.b16 %v2345
    %v2452 = vunpack.c.l.b16 %v2346
    %v2453 = vunpack.c.l.b16 %v2347
    %v2454 = vpack.c.b16 %v2447, %v2447
    %v2455 = vpack.c.b16 %v2448, %v2448
    %v2456 = vpack.c.b16 %v2449, %v2449
    %v2457 = vpack.c.b16 %v2450, %v2450
    %v2458 = vpack.c.b16 %v2451, %v2451
    %v2459 = vpack.c.b16 %v2452, %v2452
    %v2460 = vpack.c.b16 %v2453, %v2453
    %2461 = vrot.lane.b32.xlu0 %v2454, 9
    %v2462 = vpop.permute.xlu0 %2461
    %2463 = vrot.lane.b32.xlu0 %v2455, 9
    %v2464 = vpop.permute.xlu0 %2463
    %2465 = vrot.lane.b32.xlu0 %v2456, 9
    %v2466 = vpop.permute.xlu0 %2465
    %2467 = vrot.lane.b32.xlu0 %v2457, 9
    %v2468 = vpop.permute.xlu0 %2467
    %2469 = vrot.lane.b32.xlu0 %v2458, 9
    %v2470 = vpop.permute.xlu0 %2469
    %2471 = vrot.lane.b32.xlu0 %v2459, 9
    %v2472 = vpop.permute.xlu0 %2471
    %2473 = vrot.lane.b32.xlu0 %v2460, 9
    %v2474 = vpop.permute.xlu0 %2473
    %v2476 = vshrl.u32 %v2454, 16
    %v2478 = vshll.u32 %v2454, 16
    %v2480 = vrot.slane %v2478, 1
    %v2481 = vor.u32 %v2476, %v2480
    %v2483 = vshrl.u32 %v2455, 16
    %v2485 = vshll.u32 %v2455, 16
    %v2487 = vrot.slane %v2485, 1
    %v2488 = vor.u32 %v2483, %v2487
    %v2490 = vshrl.u32 %v2456, 16
    %v2492 = vshll.u32 %v2456, 16
    %v2494 = vrot.slane %v2492, 1
    %v2495 = vor.u32 %v2490, %v2494
    %v2497 = vshrl.u32 %v2457, 16
    %v2499 = vshll.u32 %v2457, 16
    %v2501 = vrot.slane %v2499, 1
    %v2502 = vor.u32 %v2497, %v2501
    %v2504 = vshrl.u32 %v2458, 16
    %v2506 = vshll.u32 %v2458, 16
    %v2508 = vrot.slane %v2506, 1
    %v2509 = vor.u32 %v2504, %v2508
    %v2511 = vshrl.u32 %v2459, 16
    %v2513 = vshll.u32 %v2459, 16
    %v2515 = vrot.slane %v2513, 1
    %v2516 = vor.u32 %v2511, %v2515
    %v2518 = vshrl.u32 %v2460, 16
    %v2520 = vshll.u32 %v2460, 16
    %v2522 = vrot.slane %v2520, 1
    %v2523 = vor.u32 %v2518, %v2522
    %2524 = vrot.lane.b32.xlu0 %v2481, 15
    %v2525 = vpop.permute.xlu0 %2524
    %2526 = vrot.lane.b32.xlu0 %v2488, 15
    %v2527 = vpop.permute.xlu0 %2526
    %2528 = vrot.lane.b32.xlu0 %v2495, 15
    %v2529 = vpop.permute.xlu0 %2528
    %2530 = vrot.lane.b32.xlu0 %v2502, 15
    %v2531 = vpop.permute.xlu0 %2530
    %2532 = vrot.lane.b32.xlu0 %v2509, 15
    %v2533 = vpop.permute.xlu0 %2532
    %2534 = vrot.lane.b32.xlu0 %v2516, 15
    %v2535 = vpop.permute.xlu0 %2534
    %2536 = vrot.lane.b32.xlu0 %v2523, 15
    %v2537 = vpop.permute.xlu0 %2536
    %v2545 = vunpack.c.l.b16 %v2349
    %v2546 = vunpack.c.l.b16 %v2350
    %v2547 = vunpack.c.l.b16 %v2351
    %v2548 = vunpack.c.l.b16 %v2352
    %v2549 = vunpack.c.l.b16 %v2353
    %v2550 = vunpack.c.l.b16 %v2354
    %v2551 = vunpack.c.l.b16 %v2355
    %v2552 = vpack.c.b16 %v2545, %v2545
    %v2553 = vpack.c.b16 %v2546, %v2546
    %v2554 = vpack.c.b16 %v2547, %v2547
    %v2555 = vpack.c.b16 %v2548, %v2548
    %v2556 = vpack.c.b16 %v2549, %v2549
    %v2557 = vpack.c.b16 %v2550, %v2550
    %v2558 = vpack.c.b16 %v2551, %v2551
    %2559 = vrot.lane.b32.xlu0 %v2552, 18
    %v2560 = vpop.permute.xlu0 %2559
    %2561 = vrot.lane.b32.xlu0 %v2553, 18
    %v2562 = vpop.permute.xlu0 %2561
    %2563 = vrot.lane.b32.xlu0 %v2554, 18
    %v2564 = vpop.permute.xlu0 %2563
    %2565 = vrot.lane.b32.xlu0 %v2555, 18
    %v2566 = vpop.permute.xlu0 %2565
    %2567 = vrot.lane.b32.xlu0 %v2556, 18
    %v2568 = vpop.permute.xlu0 %2567
    %2569 = vrot.lane.b32.xlu0 %v2557, 18
    %v2570 = vpop.permute.xlu0 %2569
    %2571 = vrot.lane.b32.xlu0 %v2558, 18
    %v2572 = vpop.permute.xlu0 %2571
    %v2574 = vshrl.u32 %v2552, 16
    %v2576 = vshll.u32 %v2552, 16
    %v2578 = vrot.slane %v2576, 1
    %v2579 = vor.u32 %v2574, %v2578
    %v2581 = vshrl.u32 %v2553, 16
    %v2583 = vshll.u32 %v2553, 16
    %v2585 = vrot.slane %v2583, 1
    %v2586 = vor.u32 %v2581, %v2585
    %v2588 = vshrl.u32 %v2554, 16
    %v2590 = vshll.u32 %v2554, 16
    %v2592 = vrot.slane %v2590, 1
    %v2593 = vor.u32 %v2588, %v2592
    %v2595 = vshrl.u32 %v2555, 16
    %v2597 = vshll.u32 %v2555, 16
    %v2599 = vrot.slane %v2597, 1
    %v2600 = vor.u32 %v2595, %v2599
    %v2602 = vshrl.u32 %v2556, 16
    %v2604 = vshll.u32 %v2556, 16
    %v2606 = vrot.slane %v2604, 1
    %v2607 = vor.u32 %v2602, %v2606
    %v2609 = vshrl.u32 %v2557, 16
    %v2611 = vshll.u32 %v2557, 16
    %v2613 = vrot.slane %v2611, 1
    %v2614 = vor.u32 %v2609, %v2613
    %v2616 = vshrl.u32 %v2558, 16
    %v2618 = vshll.u32 %v2558, 16
    %v2620 = vrot.slane %v2618, 1
    %v2621 = vor.u32 %v2616, %v2620
    %2622 = vrot.lane.b32.xlu0 %v2579, 24
    %v2623 = vpop.permute.xlu0 %2622
    %2624 = vrot.lane.b32.xlu0 %v2586, 24
    %v2625 = vpop.permute.xlu0 %2624
    %2626 = vrot.lane.b32.xlu0 %v2593, 24
    %v2627 = vpop.permute.xlu0 %2626
    %2628 = vrot.lane.b32.xlu0 %v2600, 24
    %v2629 = vpop.permute.xlu0 %2628
    %2630 = vrot.lane.b32.xlu0 %v2607, 24
    %v2631 = vpop.permute.xlu0 %2630
    %2632 = vrot.lane.b32.xlu0 %v2614, 24
    %v2633 = vpop.permute.xlu0 %2632
    %2634 = vrot.lane.b32.xlu0 %v2621, 24
    %v2635 = vpop.permute.xlu0 %2634
    %v2644 = vsel %vm371, %v2333, %v2427
    %v2646 = vsel %vm371, %v2334, %v2429
    %v2648 = vsel %vm371, %v2335, %v2431
    %v2650 = vsel %vm371, %v2336, %v2433
    %v2652 = vsel %vm371, %v2337, %v2435
    %v2654 = vsel %vm371, %v2338, %v2437
    %v2656 = vsel %vm371, %v2339, %v2439
    %v2658 = vsel %vm386, %v2644, %v2462
    %v2660 = vsel %vm386, %v2646, %v2464
    %v2662 = vsel %vm386, %v2648, %v2466
    %v2664 = vsel %vm386, %v2650, %v2468
    %v2666 = vsel %vm386, %v2652, %v2470
    %v2668 = vsel %vm386, %v2654, %v2472
    %v2670 = vsel %vm386, %v2656, %v2474
    %v2671 = vsel %vm401, %v2658, %v2462
    %v2672 = vsel %vm401, %v2660, %v2464
    %v2673 = vsel %vm401, %v2662, %v2466
    %v2674 = vsel %vm401, %v2664, %v2468
    %v2675 = vsel %vm401, %v2666, %v2470
    %v2676 = vsel %vm401, %v2668, %v2472
    %v2677 = vsel %vm401, %v2670, %v2474
    %v2679 = vsel %vm409, %v2671, %v2525
    %v2681 = vsel %vm409, %v2672, %v2527
    %v2683 = vsel %vm409, %v2673, %v2529
    %v2685 = vsel %vm409, %v2674, %v2531
    %v2687 = vsel %vm409, %v2675, %v2533
    %v2689 = vsel %vm409, %v2676, %v2535
    %v2691 = vsel %vm409, %v2677, %v2537
    %v2693 = vsel %vm424, %v2679, %v2560
    %v2695 = vsel %vm424, %v2681, %v2562
    %v2697 = vsel %vm424, %v2683, %v2564
    %v2699 = vsel %vm424, %v2685, %v2566
    %v2701 = vsel %vm424, %v2687, %v2568
    %v2703 = vsel %vm424, %v2689, %v2570
    %v2705 = vsel %vm424, %v2691, %v2572
    %v2706 = vsel %vm439, %v2693, %v2560
    %v2707 = vsel %vm439, %v2695, %v2562
    %v2708 = vsel %vm439, %v2697, %v2564
    %v2709 = vsel %vm439, %v2699, %v2566
    %v2710 = vsel %vm439, %v2701, %v2568
    %v2711 = vsel %vm439, %v2703, %v2570
    %v2712 = vsel %vm439, %v2705, %v2572
    %v2714 = vsel %vm447, %v2706, %v2623
    %v2716 = vsel %vm447, %v2707, %v2625
    %v2718 = vsel %vm447, %v2708, %v2627
    %v2720 = vsel %vm447, %v2709, %v2629
    %v2722 = vsel %vm447, %v2710, %v2631
    %v2724 = vsel %vm447, %v2711, %v2633
    %v2726 = vsel %vm447, %v2712, %v2635
    %v2727 = vsel %vm473, %v2714, 0
    %2729 = vmatprep.subr.bf16.mxu0 0
    %2730 = vmatpush1.bf16.msra.mxu0 %v470
    %2731 = vmatprep.subr.bf16.mxu0 0
    %2732 = vmatpush1.bf16.msra.mxu0 %v481
    %2733 = vmatprep.subr.bf16.mxu0 0
    %2734 = vmatpush1.bf16.msra.mxu0 0
    %2735 = vmatprep.subr.bf16.mxu0 0
    %2736 = vmatpush1.bf16.msra.mxu0 0
    %2737 = vmatprep.subr.bf16.mxu0 0
    %2738 = vmatpush1.bf16.msra.mxu0 0
    %2739 = vmatprep.subr.bf16.mxu0 0
    %2740 = vmatpush1.bf16.msra.mxu0 0
    %2741 = vmatprep.subr.bf16.mxu0 0
    %2742 = vmatpush1.bf16.msra.mxu0 0
    %2743 = vmatprep.subr.bf16.mxu0 0
    %2744 = vmatpush1.bf16.msra.mxu0 0
    %2745 = vmatprep.subr.bf16.mxu0 0
    %2746 = vmatpush1.bf16.msra.mxu0 0
    %2747 = vmatprep.subr.bf16.mxu0 0
    %2748 = vmatpush1.bf16.msra.mxu0 0
    %2749 = vmatprep.subr.bf16.mxu0 0
    %2750 = vmatpush1.bf16.msra.mxu0 0
    %2751 = vmatprep.subr.bf16.mxu0 0
    %2752 = vmatpush1.bf16.msra.mxu0 0
    %2753 = vmatprep.subr.bf16.mxu0 0
    %2754 = vmatpush1.bf16.msra.mxu0 0
    %2755 = vmatprep.subr.bf16.mxu0 0
    %2756 = vmatpush1.bf16.msra.mxu0 0
    %2757 = vmatprep.subr.bf16.mxu0 0
    %2758 = vmatpush1.bf16.msra.mxu0 0
    %2759 = vmatprep.subr.bf16.mxu0 0
    %2760 = vmatpush1.bf16.msra.mxu0 0
    %2761 = vmatprep.mubr.bf16.mxu0 0
    %2762 = vmatmul.mubr.bf16.gmra.mrb[0].mxu0 %v2727
    %v2763 = vpop.f32.mrb[0].mxu0
    %v2764 = vadd.f32 0.0, %v2763
    %v2765 = vpop.f32.mrb[0].mxu0
    %v2766 = vpop.f32.mrb[0].mxu0
    %v2767 = vpop.f32.mrb[0].mxu0
    %2768 = vdwg.mxu0
    %v2769 = vsel %vm473, %v2716, 0
    %2771 = vmatprep.subr.bf16.mxu0 0
    %2772 = vmatpush1.bf16.msra.mxu0 %v470
    %2773 = vmatprep.subr.bf16.mxu0 0
    %2774 = vmatpush1.bf16.msra.mxu0 %v481
    %2775 = vmatprep.subr.bf16.mxu0 0
    %2776 = vmatpush1.bf16.msra.mxu0 0
    %2777 = vmatprep.subr.bf16.mxu0 0
    %2778 = vmatpush1.bf16.msra.mxu0 0
    %2779 = vmatprep.subr.bf16.mxu0 0
    %2780 = vmatpush1.bf16.msra.mxu0 0
    %2781 = vmatprep.subr.bf16.mxu0 0
    %2782 = vmatpush1.bf16.msra.mxu0 0
    %2783 = vmatprep.subr.bf16.mxu0 0
    %2784 = vmatpush1.bf16.msra.mxu0 0
    %2785 = vmatprep.subr.bf16.mxu0 0
    %2786 = vmatpush1.bf16.msra.mxu0 0
    %2787 = vmatprep.subr.bf16.mxu0 0
    %2788 = vmatpush1.bf16.msra.mxu0 0
    %2789 = vmatprep.subr.bf16.mxu0 0
    %2790 = vmatpush1.bf16.msra.mxu0 0
    %2791 = vmatprep.subr.bf16.mxu0 0
    %2792 = vmatpush1.bf16.msra.mxu0 0
    %2793 = vmatprep.subr.bf16.mxu0 0
    %2794 = vmatpush1.bf16.msra.mxu0 0
    %2795 = vmatprep.subr.bf16.mxu0 0
    %2796 = vmatpush1.bf16.msra.mxu0 0
    %2797 = vmatprep.subr.bf16.mxu0 0
    %2798 = vmatpush1.bf16.msra.mxu0 0
    %2799 = vmatprep.subr.bf16.mxu0 0
    %2800 = vmatpush1.bf16.msra.mxu0 0
    %2801 = vmatprep.subr.bf16.mxu0 0
    %2802 = vmatpush1.bf16.msra.mxu0 0
    %2803 = vmatprep.mubr.bf16.mxu0 0
    %2804 = vmatmul.mubr.bf16.gmra.mrb[0].mxu0 %v2769
    %v2805 = vpop.f32.mrb[0].mxu0
    %v2806 = vadd.f32 0.0, %v2805
    %v2807 = vpop.f32.mrb[0].mxu0
    %v2808 = vpop.f32.mrb[0].mxu0
    %v2809 = vpop.f32.mrb[0].mxu0
    %2810 = vdwg.mxu0
    %v2811 = vsel %vm473, %v2718, 0
    %2813 = vmatprep.subr.bf16.mxu0 0
    %2814 = vmatpush1.bf16.msra.mxu0 %v470
    %2815 = vmatprep.subr.bf16.mxu0 0
    %2816 = vmatpush1.bf16.msra.mxu0 %v481
    %2817 = vmatprep.subr.bf16.mxu0 0
    %2818 = vmatpush1.bf16.msra.mxu0 0
    %2819 = vmatprep.subr.bf16.mxu0 0
    %2820 = vmatpush1.bf16.msra.mxu0 0
    %2821 = vmatprep.subr.bf16.mxu0 0
    %2822 = vmatpush1.bf16.msra.mxu0 0
    %2823 = vmatprep.subr.bf16.mxu0 0
    %2824 = vmatpush1.bf16.msra.mxu0 0
    %2825 = vmatprep.subr.bf16.mxu0 0
    %2826 = vmatpush1.bf16.msra.mxu0 0
    %2827 = vmatprep.subr.bf16.mxu0 0
    %2828 = vmatpush1.bf16.msra.mxu0 0
    %2829 = vmatprep.subr.bf16.mxu0 0
    %2830 = vmatpush1.bf16.msra.mxu0 0
    %2831 = vmatprep.subr.bf16.mxu0 0
    %2832 = vmatpush1.bf16.msra.mxu0 0
    %2833 = vmatprep.subr.bf16.mxu0 0
    %2834 = vmatpush1.bf16.msra.mxu0 0
    %2835 = vmatprep.subr.bf16.mxu0 0
    %2836 = vmatpush1.bf16.msra.mxu0 0
    %2837 = vmatprep.subr.bf16.mxu0 0
    %2838 = vmatpush1.bf16.msra.mxu0 0
    %2839 = vmatprep.subr.bf16.mxu0 0
    %2840 = vmatpush1.bf16.msra.mxu0 0
    %2841 = vmatprep.subr.bf16.mxu0 0
    %2842 = vmatpush1.bf16.msra.mxu0 0
    %2843 = vmatprep.subr.bf16.mxu0 0
    %2844 = vmatpush1.bf16.msra.mxu0 0
    %2845 = vmatprep.mubr.bf16.mxu0 0
    %2846 = vmatmul.mubr.bf16.gmra.mrb[0].mxu0 %v2811
    %v2847 = vpop.f32.mrb[0].mxu0
    %v2848 = vadd.f32 0.0, %v2847
    %v2849 = vpop.f32.mrb[0].mxu0
    %v2850 = vpop.f32.mrb[0].mxu0
    %v2851 = vpop.f32.mrb[0].mxu0
    %2852 = vdwg.mxu0
    %v2853 = vsel %vm473, %v2720, 0
    %2855 = vmatprep.subr.bf16.mxu0 0
    %2856 = vmatpush1.bf16.msra.mxu0 %v470
    %2857 = vmatprep.subr.bf16.mxu0 0
    %2858 = vmatpush1.bf16.msra.mxu0 %v481
    %2859 = vmatprep.subr.bf16.mxu0 0
    %2860 = vmatpush1.bf16.msra.mxu0 0
    %2861 = vmatprep.subr.bf16.mxu0 0
    %2862 = vmatpush1.bf16.msra.mxu0 0
    %2863 = vmatprep.subr.bf16.mxu0 0
    %2864 = vmatpush1.bf16.msra.mxu0 0
    %2865 = vmatprep.subr.bf16.mxu0 0
    %2866 = vmatpush1.bf16.msra.mxu0 0
    %2867 = vmatprep.subr.bf16.mxu0 0
    %2868 = vmatpush1.bf16.msra.mxu0 0
    %2869 = vmatprep.subr.bf16.mxu0 0
    %2870 = vmatpush1.bf16.msra.mxu0 0
    %2871 = vmatprep.subr.bf16.mxu0 0
    %2872 = vmatpush1.bf16.msra.mxu0 0
    %2873 = vmatprep.subr.bf16.mxu0 0
    %2874 = vmatpush1.bf16.msra.mxu0 0
    %2875 = vmatprep.subr.bf16.mxu0 0
    %2876 = vmatpush1.bf16.msra.mxu0 0
    %2877 = vmatprep.subr.bf16.mxu0 0
    %2878 = vmatpush1.bf16.msra.mxu0 0
    %2879 = vmatprep.subr.bf16.mxu0 0
    %2880 = vmatpush1.bf16.msra.mxu0 0
    %2881 = vmatprep.subr.bf16.mxu0 0
    %2882 = vmatpush1.bf16.msra.mxu0 0
    %2883 = vmatprep.subr.bf16.mxu0 0
    %2884 = vmatpush1.bf16.msra.mxu0 0
    %2885 = vmatprep.subr.bf16.mxu0 0
    %2886 = vmatpush1.bf16.msra.mxu0 0
    %2887 = vmatprep.mubr.bf16.mxu0 0
    %2888 = vmatmul.mubr.bf16.gmra.mrb[0].mxu0 %v2853
    %v2889 = vpop.f32.mrb[0].mxu0
    %v2890 = vadd.f32 0.0, %v2889
    %v2891 = vpop.f32.mrb[0].mxu0
    %v2892 = vpop.f32.mrb[0].mxu0
    %v2893 = vpop.f32.mrb[0].mxu0
    %2894 = vdwg.mxu0
    %v2895 = vsel %vm473, %v2722, 0
    %2897 = vmatprep.subr.bf16.mxu0 0
    %2898 = vmatpush1.bf16.msra.mxu0 %v470
    %2899 = vmatprep.subr.bf16.mxu0 0
    %2900 = vmatpush1.bf16.msra.mxu0 %v481
    %2901 = vmatprep.subr.bf16.mxu0 0
    %2902 = vmatpush1.bf16.msra.mxu0 0
    %2903 = vmatprep.subr.bf16.mxu0 0
    %2904 = vmatpush1.bf16.msra.mxu0 0
    %2905 = vmatprep.subr.bf16.mxu0 0
    %2906 = vmatpush1.bf16.msra.mxu0 0
    %2907 = vmatprep.subr.bf16.mxu0 0
    %2908 = vmatpush1.bf16.msra.mxu0 0
    %2909 = vmatprep.subr.bf16.mxu0 0
    %2910 = vmatpush1.bf16.msra.mxu0 0
    %2911 = vmatprep.subr.bf16.mxu0 0
    %2912 = vmatpush1.bf16.msra.mxu0 0
    %2913 = vmatprep.subr.bf16.mxu0 0
    %2914 = vmatpush1.bf16.msra.mxu0 0
    %2915 = vmatprep.subr.bf16.mxu0 0
    %2916 = vmatpush1.bf16.msra.mxu0 0
    %2917 = vmatprep.subr.bf16.mxu0 0
    %2918 = vmatpush1.bf16.msra.mxu0 0
    %2919 = vmatprep.subr.bf16.mxu0 0
    %2920 = vmatpush1.bf16.msra.mxu0 0
    %2921 = vmatprep.subr.bf16.mxu0 0
    %2922 = vmatpush1.bf16.msra.mxu0 0
    %2923 = vmatprep.subr.bf16.mxu0 0
    %2924 = vmatpush1.bf16.msra.mxu0 0
    %2925 = vmatprep.subr.bf16.mxu0 0
    %2926 = vmatpush1.bf16.msra.mxu0 0
    %2927 = vmatprep.subr.bf16.mxu0 0
    %2928 = vmatpush1.bf16.msra.mxu0 0
    %2929 = vmatprep.mubr.bf16.mxu0 0
    %2930 = vmatmul.mubr.bf16.gmra.mrb[0].mxu0 %v2895
    %v2931 = vpop.f32.mrb[0].mxu0
    %v2932 = vadd.f32 0.0, %v2931
    %v2933 = vpop.f32.mrb[0].mxu0
    %v2934 = vpop.f32.mrb[0].mxu0
    %v2935 = vpop.f32.mrb[0].mxu0
    %2936 = vdwg.mxu0
    %v2937 = vsel %vm473, %v2724, 0
    %2939 = vmatprep.subr.bf16.mxu0 0
    %2940 = vmatpush1.bf16.msra.mxu0 %v470
    %2941 = vmatprep.subr.bf16.mxu0 0
    %2942 = vmatpush1.bf16.msra.mxu0 %v481
    %2943 = vmatprep.subr.bf16.mxu0 0
    %2944 = vmatpush1.bf16.msra.mxu0 0
    %2945 = vmatprep.subr.bf16.mxu0 0
    %2946 = vmatpush1.bf16.msra.mxu0 0
    %2947 = vmatprep.subr.bf16.mxu0 0
    %2948 = vmatpush1.bf16.msra.mxu0 0
    %2949 = vmatprep.subr.bf16.mxu0 0
    %2950 = vmatpush1.bf16.msra.mxu0 0
    %2951 = vmatprep.subr.bf16.mxu0 0
    %2952 = vmatpush1.bf16.msra.mxu0 0
    %2953 = vmatprep.subr.bf16.mxu0 0
    %2954 = vmatpush1.bf16.msra.mxu0 0
    %2955 = vmatprep.subr.bf16.mxu0 0
    %2956 = vmatpush1.bf16.msra.mxu0 0
    %2957 = vmatprep.subr.bf16.mxu0 0
    %2958 = vmatpush1.bf16.msra.mxu0 0
    %2959 = vmatprep.subr.bf16.mxu0 0
    %2960 = vmatpush1.bf16.msra.mxu0 0
    %2961 = vmatprep.subr.bf16.mxu0 0
    %2962 = vmatpush1.bf16.msra.mxu0 0
    %2963 = vmatprep.subr.bf16.mxu0 0
    %2964 = vmatpush1.bf16.msra.mxu0 0
    %2965 = vmatprep.subr.bf16.mxu0 0
    %2966 = vmatpush1.bf16.msra.mxu0 0
    %2967 = vmatprep.subr.bf16.mxu0 0
    %2968 = vmatpush1.bf16.msra.mxu0 0
    %2969 = vmatprep.subr.bf16.mxu0 0
    %2970 = vmatpush1.bf16.msra.mxu0 0
    %2971 = vmatprep.mubr.bf16.mxu0 0
    %2972 = vmatmul.mubr.bf16.gmra.mrb[0].mxu0 %v2937
    %v2973 = vpop.f32.mrb[0].mxu0
    %v2974 = vadd.f32 0.0, %v2973
    %v2975 = vpop.f32.mrb[0].mxu0
    %v2976 = vpop.f32.mrb[0].mxu0
    %v2977 = vpop.f32.mrb[0].mxu0
    %2978 = vdwg.mxu0
    %v2979 = vsel %vm473, %v2726, 0
    %2981 = vmatprep.subr.bf16.mxu0 0
    %2982 = vmatpush1.bf16.msra.mxu0 %v470
    %2983 = vmatprep.subr.bf16.mxu0 0
    %2984 = vmatpush1.bf16.msra.mxu0 %v481
    %2985 = vmatprep.subr.bf16.mxu0 0
    %2986 = vmatpush1.bf16.msra.mxu0 0
    %2987 = vmatprep.subr.bf16.mxu0 0
    %2988 = vmatpush1.bf16.msra.mxu0 0
    %2989 = vmatprep.subr.bf16.mxu0 0
    %2990 = vmatpush1.bf16.msra.mxu0 0
    %2991 = vmatprep.subr.bf16.mxu0 0
    %2992 = vmatpush1.bf16.msra.mxu0 0
    %2993 = vmatprep.subr.bf16.mxu0 0
    %2994 = vmatpush1.bf16.msra.mxu0 0
    %2995 = vmatprep.subr.bf16.mxu0 0
    %2996 = vmatpush1.bf16.msra.mxu0 0
    %2997 = vmatprep.subr.bf16.mxu0 0
    %2998 = vmatpush1.bf16.msra.mxu0 0
    %2999 = vmatprep.subr.bf16.mxu0 0
    %3000 = vmatpush1.bf16.msra.mxu0 0
    %3001 = vmatprep.subr.bf16.mxu0 0
    %3002 = vmatpush1.bf16.msra.mxu0 0
    %3003 = vmatprep.subr.bf16.mxu0 0
    %3004 = vmatpush1.bf16.msra.mxu0 0
    %3005 = vmatprep.subr.bf16.mxu0 0
    %3006 = vmatpush1.bf16.msra.mxu0 0
    %3007 = vmatprep.subr.bf16.mxu0 0
    %3008 = vmatpush1.bf16.msra.mxu0 0
    %3009 = vmatprep.subr.bf16.mxu0 0
    %3010 = vmatpush1.bf16.msra.mxu0 0
    %3011 = vmatprep.subr.bf16.mxu0 0
    %3012 = vmatpush1.bf16.msra.mxu0 0
    %3013 = vmatprep.mubr.bf16.mxu0 0
    %3014 = vmatmul.mubr.bf16.gmra.mrb[0].mxu0 %v2979
    %v3015 = vpop.f32.mrb[0].mxu0
    %v3016 = vadd.f32 0.0, %v3015
    %v3017 = vpop.f32.mrb[0].mxu0
    %v3018 = vpop.f32.mrb[0].mxu0
    %v3019 = vpop.f32.mrb[0].mxu0
    %3020 = vdwg.mxu0
    %3021 = vrot.lane.b32.xlu0 %v2370, 125
    %v3022 = vpop.permute.xlu0 %3021
    %3023 = vrot.lane.b32.xlu0 %v2371, 125
    %v3024 = vpop.permute.xlu0 %3023
    %3025 = vrot.lane.b32.xlu0 %v2372, 125
    %v3026 = vpop.permute.xlu0 %3025
    %3027 = vrot.lane.b32.xlu0 %v2373, 125
    %v3028 = vpop.permute.xlu0 %3027
    %3029 = vrot.lane.b32.xlu0 %v2374, 125
    %v3030 = vpop.permute.xlu0 %3029
    %3031 = vrot.lane.b32.xlu0 %v2375, 125
    %v3032 = vpop.permute.xlu0 %3031
    %3033 = vrot.lane.b32.xlu0 %v2376, 125
    %v3034 = vpop.permute.xlu0 %3033
    %3035 = vrot.lane.b32.xlu0 %v2383, 3
    %v3036 = vpop.permute.xlu0 %3035
    %3037 = vrot.lane.b32.xlu0 %v2390, 3
    %v3038 = vpop.permute.xlu0 %3037
    %3039 = vrot.lane.b32.xlu0 %v2397, 3
    %v3040 = vpop.permute.xlu0 %3039
    %3041 = vrot.lane.b32.xlu0 %v2404, 3
    %v3042 = vpop.permute.xlu0 %3041
    %3043 = vrot.lane.b32.xlu0 %v2411, 3
    %v3044 = vpop.permute.xlu0 %3043
    %3045 = vrot.lane.b32.xlu0 %v2418, 3
    %v3046 = vpop.permute.xlu0 %3045
    %3047 = vrot.lane.b32.xlu0 %v2425, 3
    %v3048 = vpop.permute.xlu0 %3047
    %3049 = vrot.lane.b32.xlu0 %v2454, 6
    %v3050 = vpop.permute.xlu0 %3049
    %3051 = vrot.lane.b32.xlu0 %v2455, 6
    %v3052 = vpop.permute.xlu0 %3051
    %3053 = vrot.lane.b32.xlu0 %v2456, 6
    %v3054 = vpop.permute.xlu0 %3053
    %3055 = vrot.lane.b32.xlu0 %v2457, 6
    %v3056 = vpop.permute.xlu0 %3055
    %3057 = vrot.lane.b32.xlu0 %v2458, 6
    %v3058 = vpop.permute.xlu0 %3057
    %3059 = vrot.lane.b32.xlu0 %v2459, 6
    %v3060 = vpop.permute.xlu0 %3059
    %3061 = vrot.lane.b32.xlu0 %v2460, 6
    %v3062 = vpop.permute.xlu0 %3061
    %3063 = vrot.lane.b32.xlu0 %v2481, 12
    %v3064 = vpop.permute.xlu0 %3063
    %3065 = vrot.lane.b32.xlu0 %v2488, 12
    %v3066 = vpop.permute.xlu0 %3065
    %3067 = vrot.lane.b32.xlu0 %v2495, 12
    %v3068 = vpop.permute.xlu0 %3067
    %3069 = vrot.lane.b32.xlu0 %v2502, 12
    %v3070 = vpop.permute.xlu0 %3069
    %3071 = vrot.lane.b32.xlu0 %v2509, 12
    %v3072 = vpop.permute.xlu0 %3071
    %3073 = vrot.lane.b32.xlu0 %v2516, 12
    %v3074 = vpop.permute.xlu0 %3073
    %3075 = vrot.lane.b32.xlu0 %v2523, 12
    %v3076 = vpop.permute.xlu0 %3075
    %3077 = vrot.lane.b32.xlu0 %v2552, 15
    %v3078 = vpop.permute.xlu0 %3077
    %3079 = vrot.lane.b32.xlu0 %v2553, 15
    %v3080 = vpop.permute.xlu0 %3079
    %3081 = vrot.lane.b32.xlu0 %v2554, 15
    %v3082 = vpop.permute.xlu0 %3081
    %3083 = vrot.lane.b32.xlu0 %v2555, 15
    %v3084 = vpop.permute.xlu0 %3083
    %3085 = vrot.lane.b32.xlu0 %v2556, 15
    %v3086 = vpop.permute.xlu0 %3085
    %3087 = vrot.lane.b32.xlu0 %v2557, 15
    %v3088 = vpop.permute.xlu0 %3087
    %3089 = vrot.lane.b32.xlu0 %v2558, 15
    %v3090 = vpop.permute.xlu0 %3089
    %3091 = vrot.lane.b32.xlu0 %v2579, 21
    %v3092 = vpop.permute.xlu0 %3091
    %3093 = vrot.lane.b32.xlu0 %v2586, 21
    %v3094 = vpop.permute.xlu0 %3093
    %3095 = vrot.lane.b32.xlu0 %v2593, 21
    %v3096 = vpop.permute.xlu0 %3095
    %3097 = vrot.lane.b32.xlu0 %v2600, 21
    %v3098 = vpop.permute.xlu0 %3097
    %3099 = vrot.lane.b32.xlu0 %v2607, 21
    %v3100 = vpop.permute.xlu0 %3099
    %3101 = vrot.lane.b32.xlu0 %v2614, 21
    %v3102 = vpop.permute.xlu0 %3101
    %3103 = vrot.lane.b32.xlu0 %v2621, 21
    %v3104 = vpop.permute.xlu0 %3103
    %v3107 = vsel %vm363, %v3022, %v3036
    %v3110 = vsel %vm363, %v3024, %v3038
    %v3113 = vsel %vm363, %v3026, %v3040
    %v3116 = vsel %vm363, %v3028, %v3042
    %v3119 = vsel %vm363, %v3030, %v3044
    %v3122 = vsel %vm363, %v3032, %v3046
    %v3125 = vsel %vm363, %v3034, %v3048
    %v3126 = vsel %vm371, %v3107, %v3036
    %v3127 = vsel %vm371, %v3110, %v3038
    %v3128 = vsel %vm371, %v3113, %v3040
    %v3129 = vsel %vm371, %v3116, %v3042
    %v3130 = vsel %vm371, %v3119, %v3044
    %v3131 = vsel %vm371, %v3122, %v3046
    %v3132 = vsel %vm371, %v3125, %v3048
    %v3134 = vsel %vm386, %v3126, %v3050
    %v3136 = vsel %vm386, %v3127, %v3052
    %v3138 = vsel %vm386, %v3128, %v3054
    %v3140 = vsel %vm386, %v3129, %v3056
    %v3142 = vsel %vm386, %v3130, %v3058
    %v3144 = vsel %vm386, %v3131, %v3060
    %v3146 = vsel %vm386, %v3132, %v3062
    %v3148 = vsel %vm401, %v3134, %v3064
    %v3150 = vsel %vm401, %v3136, %v3066
    %v3152 = vsel %vm401, %v3138, %v3068
    %v3154 = vsel %vm401, %v3140, %v3070
    %v3156 = vsel %vm401, %v3142, %v3072
    %v3158 = vsel %vm401, %v3144, %v3074
    %v3160 = vsel %vm401, %v3146, %v3076
    %v3161 = vsel %vm409, %v3148, %v3064
    %v3162 = vsel %vm409, %v3150, %v3066
    %v3163 = vsel %vm409, %v3152, %v3068
    %v3164 = vsel %vm409, %v3154, %v3070
    %v3165 = vsel %vm409, %v3156, %v3072
    %v3166 = vsel %vm409, %v3158, %v3074
    %v3167 = vsel %vm409, %v3160, %v3076
    %v3169 = vsel %vm424, %v3161, %v3078
    %v3171 = vsel %vm424, %v3162, %v3080
    %v3173 = vsel %vm424, %v3163, %v3082
    %v3175 = vsel %vm424, %v3164, %v3084
    %v3177 = vsel %vm424, %v3165, %v3086
    %v3179 = vsel %vm424, %v3166, %v3088
    %v3181 = vsel %vm424, %v3167, %v3090
    %v3183 = vsel %vm439, %v3169, %v3092
    %v3185 = vsel %vm439, %v3171, %v3094
    %v3187 = vsel %vm439, %v3173, %v3096
    %v3189 = vsel %vm439, %v3175, %v3098
    %v3191 = vsel %vm439, %v3177, %v3100
    %v3193 = vsel %vm439, %v3179, %v3102
    %v3195 = vsel %vm439, %v3181, %v3104
    %v3196 = vsel %vm447, %v3183, %v3092
    %v3197 = vsel %vm447, %v3185, %v3094
    %v3198 = vsel %vm447, %v3187, %v3096
    %v3199 = vsel %vm447, %v3189, %v3098
    %v3200 = vsel %vm447, %v3191, %v3100
    %v3201 = vsel %vm447, %v3193, %v3102
    %v3202 = vsel %vm447, %v3195, %v3104
    %v3203 = vsel %vm473, %v3196, 0
    %3205 = vmatprep.subr.bf16.mxu0 0
    %3206 = vmatpush1.bf16.msra.mxu0 %v470
    %3207 = vmatprep.subr.bf16.mxu0 0
    %3208 = vmatpush1.bf16.msra.mxu0 %v481
    %3209 = vmatprep.subr.bf16.mxu0 0
    %3210 = vmatpush1.bf16.msra.mxu0 0
    %3211 = vmatprep.subr.bf16.mxu0 0
    %3212 = vmatpush1.bf16.msra.mxu0 0
    %3213 = vmatprep.subr.bf16.mxu0 0
    %3214 = vmatpush1.bf16.msra.mxu0 0
    %3215 = vmatprep.subr.bf16.mxu0 0
    %3216 = vmatpush1.bf16.msra.mxu0 0
    %3217 = vmatprep.subr.bf16.mxu0 0
    %3218 = vmatpush1.bf16.msra.mxu0 0
    %3219 = vmatprep.subr.bf16.mxu0 0
    %3220 = vmatpush1.bf16.msra.mxu0 0
    %3221 = vmatprep.subr.bf16.mxu0 0
    %3222 = vmatpush1.bf16.msra.mxu0 0
    %3223 = vmatprep.subr.bf16.mxu0 0
    %3224 = vmatpush1.bf16.msra.mxu0 0
    %3225 = vmatprep.subr.bf16.mxu0 0
    %3226 = vmatpush1.bf16.msra.mxu0 0
    %3227 = vmatprep.subr.bf16.mxu0 0
    %3228 = vmatpush1.bf16.msra.mxu0 0
    %3229 = vmatprep.subr.bf16.mxu0 0
    %3230 = vmatpush1.bf16.msra.mxu0 0
    %3231 = vmatprep.subr.bf16.mxu0 0
    %3232 = vmatpush1.bf16.msra.mxu0 0
    %3233 = vmatprep.subr.bf16.mxu0 0
    %3234 = vmatpush1.bf16.msra.mxu0 0
    %3235 = vmatprep.subr.bf16.mxu0 0
    %3236 = vmatpush1.bf16.msra.mxu0 0
    %3237 = vmatprep.mubr.bf16.mxu0 0
    %3238 = vmatmul.mubr.bf16.gmra.mrb[0].mxu0 %v3203
    %v3239 = vpop.f32.mrb[0].mxu0
    %v3240 = vadd.f32 0.0, %v3239
    %v3241 = vpop.f32.mrb[0].mxu0
    %v3242 = vpop.f32.mrb[0].mxu0
    %v3243 = vpop.f32.mrb[0].mxu0
    %3244 = vdwg.mxu0
    %v3245 = vsel %vm473, %v3197, 0
    %3247 = vmatprep.subr.bf16.mxu0 0
    %3248 = vmatpush1.bf16.msra.mxu0 %v470
    %3249 = vmatprep.subr.bf16.mxu0 0
    %3250 = vmatpush1.bf16.msra.mxu0 %v481
    %3251 = vmatprep.subr.bf16.mxu0 0
    %3252 = vmatpush1.bf16.msra.mxu0 0
    %3253 = vmatprep.subr.bf16.mxu0 0
    %3254 = vmatpush1.bf16.msra.mxu0 0
    %3255 = vmatprep.subr.bf16.mxu0 0
    %3256 = vmatpush1.bf16.msra.mxu0 0
    %3257 = vmatprep.subr.bf16.mxu0 0
    %3258 = vmatpush1.bf16.msra.mxu0 0
    %3259 = vmatprep.subr.bf16.mxu0 0
    %3260 = vmatpush1.bf16.msra.mxu0 0
    %3261 = vmatprep.subr.bf16.mxu0 0
    %3262 = vmatpush1.bf16.msra.mxu0 0
    %3263 = vmatprep.subr.bf16.mxu0 0
    %3264 = vmatpush1.bf16.msra.mxu0 0
    %3265 = vmatprep.subr.bf16.mxu0 0
    %3266 = vmatpush1.bf16.msra.mxu0 0
    %3267 = vmatprep.subr.bf16.mxu0 0
    %3268 = vmatpush1.bf16.msra.mxu0 0
    %3269 = vmatprep.subr.bf16.mxu0 0
    %3270 = vmatpush1.bf16.msra.mxu0 0
    %3271 = vmatprep.subr.bf16.mxu0 0
    %3272 = vmatpush1.bf16.msra.mxu0 0
    %3273 = vmatprep.subr.bf16.mxu0 0
    %3274 = vmatpush1.bf16.msra.mxu0 0
    %3275 = vmatprep.subr.bf16.mxu0 0
    %3276 = vmatpush1.bf16.msra.mxu0 0
    %3277 = vmatprep.subr.bf16.mxu0 0
    %3278 = vmatpush1.bf16.msra.mxu0 0
    %3279 = vmatprep.mubr.bf16.mxu0 0
    %3280 = vmatmul.mubr.bf16.gmra.mrb[0].mxu0 %v3245
    %v3281 = vpop.f32.mrb[0].mxu0
    %v3282 = vadd.f32 0.0, %v3281
    %v3283 = vpop.f32.mrb[0].mxu0
    %v3284 = vpop.f32.mrb[0].mxu0
    %v3285 = vpop.f32.mrb[0].mxu0
    %3286 = vdwg.mxu0
    %v3287 = vsel %vm473, %v3198, 0
    %3289 = vmatprep.subr.bf16.mxu0 0
    %3290 = vmatpush1.bf16.msra.mxu0 %v470
    %3291 = vmatprep.subr.bf16.mxu0 0
    %3292 = vmatpush1.bf16.msra.mxu0 %v481
    %3293 = vmatprep.subr.bf16.mxu0 0
    %3294 = vmatpush1.bf16.msra.mxu0 0
    %3295 = vmatprep.subr.bf16.mxu0 0
    %3296 = vmatpush1.bf16.msra.mxu0 0
    %3297 = vmatprep.subr.bf16.mxu0 0
    %3298 = vmatpush1.bf16.msra.mxu0 0
    %3299 = vmatprep.subr.bf16.mxu0 0
    %3300 = vmatpush1.bf16.msra.mxu0 0
    %3301 = vmatprep.subr.bf16.mxu0 0
    %3302 = vmatpush1.bf16.msra.mxu0 0
    %3303 = vmatprep.subr.bf16.mxu0 0
    %3304 = vmatpush1.bf16.msra.mxu0 0
    %3305 = vmatprep.subr.bf16.mxu0 0
    %3306 = vmatpush1.bf16.msra.mxu0 0
    %3307 = vmatprep.subr.bf16.mxu0 0
    %3308 = vmatpush1.bf16.msra.mxu0 0
    %3309 = vmatprep.subr.bf16.mxu0 0
    %3310 = vmatpush1.bf16.msra.mxu0 0
    %3311 = vmatprep.subr.bf16.mxu0 0
    %3312 = vmatpush1.bf16.msra.mxu0 0
    %3313 = vmatprep.subr.bf16.mxu0 0
    %3314 = vmatpush1.bf16.msra.mxu0 0
    %3315 = vmatprep.subr.bf16.mxu0 0
    %3316 = vmatpush1.bf16.msra.mxu0 0
    %3317 = vmatprep.subr.bf16.mxu0 0
    %3318 = vmatpush1.bf16.msra.mxu0 0
    %3319 = vmatprep.subr.bf16.mxu0 0
    %3320 = vmatpush1.bf16.msra.mxu0 0
    %3321 = vmatprep.mubr.bf16.mxu0 0
    %3322 = vmatmul.mubr.bf16.gmra.mrb[0].mxu0 %v3287
    %v3323 = vpop.f32.mrb[0].mxu0
    %v3324 = vadd.f32 0.0, %v3323
    %v3325 = vpop.f32.mrb[0].mxu0
    %v3326 = vpop.f32.mrb[0].mxu0
    %v3327 = vpop.f32.mrb[0].mxu0
    %3328 = vdwg.mxu0
    %v3329 = vsel %vm473, %v3199, 0
    %3331 = vmatprep.subr.bf16.mxu0 0
    %3332 = vmatpush1.bf16.msra.mxu0 %v470
    %3333 = vmatprep.subr.bf16.mxu0 0
    %3334 = vmatpush1.bf16.msra.mxu0 %v481
    %3335 = vmatprep.subr.bf16.mxu0 0
    %3336 = vmatpush1.bf16.msra.mxu0 0
    %3337 = vmatprep.subr.bf16.mxu0 0
    %3338 = vmatpush1.bf16.msra.mxu0 0
    %3339 = vmatprep.subr.bf16.mxu0 0
    %3340 = vmatpush1.bf16.msra.mxu0 0
    %3341 = vmatprep.subr.bf16.mxu0 0
    %3342 = vmatpush1.bf16.msra.mxu0 0
    %3343 = vmatprep.subr.bf16.mxu0 0
    %3344 = vmatpush1.bf16.msra.mxu0 0
    %3345 = vmatprep.subr.bf16.mxu0 0
    %3346 = vmatpush1.bf16.msra.mxu0 0
    %3347 = vmatprep.subr.bf16.mxu0 0
    %3348 = vmatpush1.bf16.msra.mxu0 0
    %3349 = vmatprep.subr.bf16.mxu0 0
    %3350 = vmatpush1.bf16.msra.mxu0 0
    %3351 = vmatprep.subr.bf16.mxu0 0
    %3352 = vmatpush1.bf16.msra.mxu0 0
    %3353 = vmatprep.subr.bf16.mxu0 0
    %3354 = vmatpush1.bf16.msra.mxu0 0
    %3355 = vmatprep.subr.bf16.mxu0 0
    %3356 = vmatpush1.bf16.msra.mxu0 0
    %3357 = vmatprep.subr.bf16.mxu0 0
    %3358 = vmatpush1.bf16.msra.mxu0 0
    %3359 = vmatprep.subr.bf16.mxu0 0
    %3360 = vmatpush1.bf16.msra.mxu0 0
    %3361 = vmatprep.subr.bf16.mxu0 0
    %3362 = vmatpush1.bf16.msra.mxu0 0
    %3363 = vmatprep.mubr.bf16.mxu0 0
    %3364 = vmatmul.mubr.bf16.gmra.mrb[0].mxu0 %v3329
    %v3365 = vpop.f32.mrb[0].mxu0
    %v3366 = vadd.f32 0.0, %v3365
    %v3367 = vpop.f32.mrb[0].mxu0
    %v3368 = vpop.f32.mrb[0].mxu0
    %v3369 = vpop.f32.mrb[0].mxu0
    %3370 = vdwg.mxu0
    %v3371 = vsel %vm473, %v3200, 0
    %3373 = vmatprep.subr.bf16.mxu0 0
    %3374 = vmatpush1.bf16.msra.mxu0 %v470
    %3375 = vmatprep.subr.bf16.mxu0 0
    %3376 = vmatpush1.bf16.msra.mxu0 %v481
    %3377 = vmatprep.subr.bf16.mxu0 0
    %3378 = vmatpush1.bf16.msra.mxu0 0
    %3379 = vmatprep.subr.bf16.mxu0 0
    %3380 = vmatpush1.bf16.msra.mxu0 0
    %3381 = vmatprep.subr.bf16.mxu0 0
    %3382 = vmatpush1.bf16.msra.mxu0 0
    %3383 = vmatprep.subr.bf16.mxu0 0
    %3384 = vmatpush1.bf16.msra.mxu0 0
    %3385 = vmatprep.subr.bf16.mxu0 0
    %3386 = vmatpush1.bf16.msra.mxu0 0
    %3387 = vmatprep.subr.bf16.mxu0 0
    %3388 = vmatpush1.bf16.msra.mxu0 0
    %3389 = vmatprep.subr.bf16.mxu0 0
    %3390 = vmatpush1.bf16.msra.mxu0 0
    %3391 = vmatprep.subr.bf16.mxu0 0
    %3392 = vmatpush1.bf16.msra.mxu0 0
    %3393 = vmatprep.subr.bf16.mxu0 0
    %3394 = vmatpush1.bf16.msra.mxu0 0
    %3395 = vmatprep.subr.bf16.mxu0 0
    %3396 = vmatpush1.bf16.msra.mxu0 0
    %3397 = vmatprep.subr.bf16.mxu0 0
    %3398 = vmatpush1.bf16.msra.mxu0 0
    %3399 = vmatprep.subr.bf16.mxu0 0
    %3400 = vmatpush1.bf16.msra.mxu0 0
    %3401 = vmatprep.subr.bf16.mxu0 0
    %3402 = vmatpush1.bf16.msra.mxu0 0
    %3403 = vmatprep.subr.bf16.mxu0 0
    %3404 = vmatpush1.bf16.msra.mxu0 0
    %3405 = vmatprep.mubr.bf16.mxu0 0
    %3406 = vmatmul.mubr.bf16.gmra.mrb[0].mxu0 %v3371
    %v3407 = vpop.f32.mrb[0].mxu0
    %v3408 = vadd.f32 0.0, %v3407
    %v3409 = vpop.f32.mrb[0].mxu0
    %v3410 = vpop.f32.mrb[0].mxu0
    %v3411 = vpop.f32.mrb[0].mxu0
    %3412 = vdwg.mxu0
    %v3413 = vsel %vm473, %v3201, 0
    %3415 = vmatprep.subr.bf16.mxu0 0
    %3416 = vmatpush1.bf16.msra.mxu0 %v470
    %3417 = vmatprep.subr.bf16.mxu0 0
    %3418 = vmatpush1.bf16.msra.mxu0 %v481
    %3419 = vmatprep.subr.bf16.mxu0 0
    %3420 = vmatpush1.bf16.msra.mxu0 0
    %3421 = vmatprep.subr.bf16.mxu0 0
    %3422 = vmatpush1.bf16.msra.mxu0 0
    %3423 = vmatprep.subr.bf16.mxu0 0
    %3424 = vmatpush1.bf16.msra.mxu0 0
    %3425 = vmatprep.subr.bf16.mxu0 0
    %3426 = vmatpush1.bf16.msra.mxu0 0
    %3427 = vmatprep.subr.bf16.mxu0 0
    %3428 = vmatpush1.bf16.msra.mxu0 0
    %3429 = vmatprep.subr.bf16.mxu0 0
    %3430 = vmatpush1.bf16.msra.mxu0 0
    %3431 = vmatprep.subr.bf16.mxu0 0
    %3432 = vmatpush1.bf16.msra.mxu0 0
    %3433 = vmatprep.subr.bf16.mxu0 0
    %3434 = vmatpush1.bf16.msra.mxu0 0
    %3435 = vmatprep.subr.bf16.mxu0 0
    %3436 = vmatpush1.bf16.msra.mxu0 0
    %3437 = vmatprep.subr.bf16.mxu0 0
    %3438 = vmatpush1.bf16.msra.mxu0 0
    %3439 = vmatprep.subr.bf16.mxu0 0
    %3440 = vmatpush1.bf16.msra.mxu0 0
    %3441 = vmatprep.subr.bf16.mxu0 0
    %3442 = vmatpush1.bf16.msra.mxu0 0
    %3443 = vmatprep.subr.bf16.mxu0 0
    %3444 = vmatpush1.bf16.msra.mxu0 0
    %3445 = vmatprep.subr.bf16.mxu0 0
    %3446 = vmatpush1.bf16.msra.mxu0 0
    %3447 = vmatprep.mubr.bf16.mxu0 0
    %3448 = vmatmul.mubr.bf16.gmra.mrb[0].mxu0 %v3413
    %v3449 = vpop.f32.mrb[0].mxu0
    %v3450 = vadd.f32 0.0, %v3449
    %v3451 = vpop.f32.mrb[0].mxu0
    %v3452 = vpop.f32.mrb[0].mxu0
    %v3453 = vpop.f32.mrb[0].mxu0
    %3454 = vdwg.mxu0
    %v3455 = vsel %vm473, %v3202, 0
    %3457 = vmatprep.subr.bf16.mxu0 0
    %3458 = vmatpush1.bf16.msra.mxu0 %v470
    %3459 = vmatprep.subr.bf16.mxu0 0
    %3460 = vmatpush1.bf16.msra.mxu0 %v481
    %3461 = vmatprep.subr.bf16.mxu0 0
    %3462 = vmatpush1.bf16.msra.mxu0 0
    %3463 = vmatprep.subr.bf16.mxu0 0
    %3464 = vmatpush1.bf16.msra.mxu0 0
    %3465 = vmatprep.subr.bf16.mxu0 0
    %3466 = vmatpush1.bf16.msra.mxu0 0
    %3467 = vmatprep.subr.bf16.mxu0 0
    %3468 = vmatpush1.bf16.msra.mxu0 0
    %3469 = vmatprep.subr.bf16.mxu0 0
    %3470 = vmatpush1.bf16.msra.mxu0 0
    %3471 = vmatprep.subr.bf16.mxu0 0
    %3472 = vmatpush1.bf16.msra.mxu0 0
    %3473 = vmatprep.subr.bf16.mxu0 0
    %3474 = vmatpush1.bf16.msra.mxu0 0
    %3475 = vmatprep.subr.bf16.mxu0 0
    %3476 = vmatpush1.bf16.msra.mxu0 0
    %3477 = vmatprep.subr.bf16.mxu0 0
    %3478 = vmatpush1.bf16.msra.mxu0 0
    %3479 = vmatprep.subr.bf16.mxu0 0
    %3480 = vmatpush1.bf16.msra.mxu0 0
    %3481 = vmatprep.subr.bf16.mxu0 0
    %3482 = vmatpush1.bf16.msra.mxu0 0
    %3483 = vmatprep.subr.bf16.mxu0 0
    %3484 = vmatpush1.bf16.msra.mxu0 0
    %3485 = vmatprep.subr.bf16.mxu0 0
    %3486 = vmatpush1.bf16.msra.mxu0 0
    %3487 = vmatprep.subr.bf16.mxu0 0
    %3488 = vmatpush1.bf16.msra.mxu0 0
    %3489 = vmatprep.mubr.bf16.mxu0 0
    %3490 = vmatmul.mubr.bf16.gmra.mrb[0].mxu0 %v3455
    %v3491 = vpop.f32.mrb[0].mxu0
    %v3492 = vadd.f32 0.0, %v3491
    %v3493 = vpop.f32.mrb[0].mxu0
    %v3494 = vpop.f32.mrb[0].mxu0
    %v3495 = vpop.f32.mrb[0].mxu0
    %3496 = vdwg.mxu0
    %v3497 = vmax.f32 %v2764, %v3240
    %v3498 = vmax.f32 %v2806, %v3282
    %v3499 = vmax.f32 %v2848, %v3324
    %v3500 = vmax.f32 %v2890, %v3366
    %v3501 = vmax.f32 %v2932, %v3408
    %v3502 = vmax.f32 %v2974, %v3450
    %v3503 = vmax.f32 %v3016, %v3492
    %s3504 = scalar_lea.vmem [#allocation2], 76
    %v3505 = vld [vmem:[%s3504] sm:$0xf]
    %v3506 = vld [vmem:[%s3504 + $0x8] sm:$0xf]
    %v3507 = vld [vmem:[%s3504 + $0x10] sm:$0xf]
    %v3508 = vld [vmem:[%s3504 + $0x18] sm:$0xf]
    %v3509 = vld [vmem:[%s3504 + $0x20] sm:$0xf]
    %v3510 = vld [vmem:[%s3504 + $0x28] sm:$0xf]
    %v3511 = vld [vmem:[%s3504 + $0x30] sm:$0xf]
    %3512 = vrot.lane.b32.xlu0 %v2481, 6
    %v3513 = vpop.permute.xlu0 %3512
    %3514 = vrot.lane.b32.xlu0 %v2488, 6
    %v3515 = vpop.permute.xlu0 %3514
    %3516 = vrot.lane.b32.xlu0 %v2495, 6
    %v3517 = vpop.permute.xlu0 %3516
    %3518 = vrot.lane.b32.xlu0 %v2502, 6
    %v3519 = vpop.permute.xlu0 %3518
    %3520 = vrot.lane.b32.xlu0 %v2509, 6
    %v3521 = vpop.permute.xlu0 %3520
    %3522 = vrot.lane.b32.xlu0 %v2516, 6
    %v3523 = vpop.permute.xlu0 %3522
    %3524 = vrot.lane.b32.xlu0 %v2523, 6
    %v3525 = vpop.permute.xlu0 %3524
    %3526 = vrot.lane.b32.xlu0 %v2552, 9
    %v3527 = vpop.permute.xlu0 %3526
    %3528 = vrot.lane.b32.xlu0 %v2553, 9
    %v3529 = vpop.permute.xlu0 %3528
    %3530 = vrot.lane.b32.xlu0 %v2554, 9
    %v3531 = vpop.permute.xlu0 %3530
    %3532 = vrot.lane.b32.xlu0 %v2555, 9
    %v3533 = vpop.permute.xlu0 %3532
    %3534 = vrot.lane.b32.xlu0 %v2556, 9
    %v3535 = vpop.permute.xlu0 %3534
    %3536 = vrot.lane.b32.xlu0 %v2557, 9
    %v3537 = vpop.permute.xlu0 %3536
    %3538 = vrot.lane.b32.xlu0 %v2558, 9
    %v3539 = vpop.permute.xlu0 %3538
    %3540 = vrot.lane.b32.xlu0 %v2579, 15
    %v3541 = vpop.permute.xlu0 %3540
    %3542 = vrot.lane.b32.xlu0 %v2586, 15
    %v3543 = vpop.permute.xlu0 %3542
    %3544 = vrot.lane.b32.xlu0 %v2593, 15
    %v3545 = vpop.permute.xlu0 %3544
    %3546 = vrot.lane.b32.xlu0 %v2600, 15
    %v3547 = vpop.permute.xlu0 %3546
    %3548 = vrot.lane.b32.xlu0 %v2607, 15
    %v3549 = vpop.permute.xlu0 %3548
    %3550 = vrot.lane.b32.xlu0 %v2614, 15
    %v3551 = vpop.permute.xlu0 %3550
    %3552 = vrot.lane.b32.xlu0 %v2621, 15
    %v3553 = vpop.permute.xlu0 %3552
    %v3561 = vunpack.c.l.b16 %v3505
    %v3562 = vunpack.c.l.b16 %v3506
    %v3563 = vunpack.c.l.b16 %v3507
    %v3564 = vunpack.c.l.b16 %v3508
    %v3565 = vunpack.c.l.b16 %v3509
    %v3566 = vunpack.c.l.b16 %v3510
    %v3567 = vunpack.c.l.b16 %v3511
    %v3568 = vpack.c.b16 %v3561, %v3561
    %v3569 = vpack.c.b16 %v3562, %v3562
    %v3570 = vpack.c.b16 %v3563, %v3563
    %v3571 = vpack.c.b16 %v3564, %v3564
    %v3572 = vpack.c.b16 %v3565, %v3565
    %v3573 = vpack.c.b16 %v3566, %v3566
    %v3574 = vpack.c.b16 %v3567, %v3567
    %3575 = vrot.lane.b32.xlu0 %v3568, 18
    %v3576 = vpop.permute.xlu0 %3575
    %3577 = vrot.lane.b32.xlu0 %v3569, 18
    %v3578 = vpop.permute.xlu0 %3577
    %3579 = vrot.lane.b32.xlu0 %v3570, 18
    %v3580 = vpop.permute.xlu0 %3579
    %3581 = vrot.lane.b32.xlu0 %v3571, 18
    %v3582 = vpop.permute.xlu0 %3581
    %3583 = vrot.lane.b32.xlu0 %v3572, 18
    %v3584 = vpop.permute.xlu0 %3583
    %3585 = vrot.lane.b32.xlu0 %v3573, 18
    %v3586 = vpop.permute.xlu0 %3585
    %3587 = vrot.lane.b32.xlu0 %v3574, 18
    %v3588 = vpop.permute.xlu0 %3587
    %v3590 = vshrl.u32 %v3568, 16
    %v3592 = vshll.u32 %v3568, 16
    %v3594 = vrot.slane %v3592, 1
    %v3595 = vor.u32 %v3590, %v3594
    %v3597 = vshrl.u32 %v3569, 16
    %v3599 = vshll.u32 %v3569, 16
    %v3601 = vrot.slane %v3599, 1
    %v3602 = vor.u32 %v3597, %v3601
    %v3604 = vshrl.u32 %v3570, 16
    %v3606 = vshll.u32 %v3570, 16
    %v3608 = vrot.slane %v3606, 1
    %v3609 = vor.u32 %v3604, %v3608
    %v3611 = vshrl.u32 %v3571, 16
    %v3613 = vshll.u32 %v3571, 16
    %v3615 = vrot.slane %v3613, 1
    %v3616 = vor.u32 %v3611, %v3615
    %v3618 = vshrl.u32 %v3572, 16
    %v3620 = vshll.u32 %v3572, 16
    %v3622 = vrot.slane %v3620, 1
    %v3623 = vor.u32 %v3618, %v3622
    %v3625 = vshrl.u32 %v3573, 16
    %v3627 = vshll.u32 %v3573, 16
    %v3629 = vrot.slane %v3627, 1
    %v3630 = vor.u32 %v3625, %v3629
    %v3632 = vshrl.u32 %v3574, 16
    %v3634 = vshll.u32 %v3574, 16
    %v3636 = vrot.slane %v3634, 1
    %v3637 = vor.u32 %v3632, %v3636
    %3638 = vrot.lane.b32.xlu0 %v3595, 24
    %v3639 = vpop.permute.xlu0 %3638
    %3640 = vrot.lane.b32.xlu0 %v3602, 24
    %v3641 = vpop.permute.xlu0 %3640
    %3642 = vrot.lane.b32.xlu0 %v3609, 24
    %v3643 = vpop.permute.xlu0 %3642
    %3644 = vrot.lane.b32.xlu0 %v3616, 24
    %v3645 = vpop.permute.xlu0 %3644
    %3646 = vrot.lane.b32.xlu0 %v3623, 24
    %v3647 = vpop.permute.xlu0 %3646
    %3648 = vrot.lane.b32.xlu0 %v3630, 24
    %v3649 = vpop.permute.xlu0 %3648
    %3650 = vrot.lane.b32.xlu0 %v3637, 24
    %v3651 = vpop.permute.xlu0 %3650
    %v3660 = vsel %vm371, %v2341, %v3513
    %v3662 = vsel %vm371, %v2342, %v3515
    %v3664 = vsel %vm371, %v2343, %v3517
    %v3666 = vsel %vm371, %v2344, %v3519
    %v3668 = vsel %vm371, %v2345, %v3521
    %v3670 = vsel %vm371, %v2346, %v3523
    %v3672 = vsel %vm371, %v2347, %v3525
    %v3674 = vsel %vm386, %v3660, %v3527
    %v3676 = vsel %vm386, %v3662, %v3529
    %v3678 = vsel %vm386, %v3664, %v3531
    %v3680 = vsel %vm386, %v3666, %v3533
    %v3682 = vsel %vm386, %v3668, %v3535
    %v3684 = vsel %vm386, %v3670, %v3537
    %v3686 = vsel %vm386, %v3672, %v3539
    %v3687 = vsel %vm401, %v3674, %v3527
    %v3688 = vsel %vm401, %v3676, %v3529
    %v3689 = vsel %vm401, %v3678, %v3531
    %v3690 = vsel %vm401, %v3680, %v3533
    %v3691 = vsel %vm401, %v3682, %v3535
    %v3692 = vsel %vm401, %v3684, %v3537
    %v3693 = vsel %vm401, %v3686, %v3539
    %v3695 = vsel %vm409, %v3687, %v3541
    %v3697 = vsel %vm409, %v3688, %v3543
    %v3699 = vsel %vm409, %v3689, %v3545
    %v3701 = vsel %vm409, %v3690, %v3547
    %v3703 = vsel %vm409, %v3691, %v3549
    %v3705 = vsel %vm409, %v3692, %v3551
    %v3707 = vsel %vm409, %v3693, %v3553
    %v3709 = vsel %vm424, %v3695, %v3576
    %v3711 = vsel %vm424, %v3697, %v3578
    %v3713 = vsel %vm424, %v3699, %v3580
    %v3715 = vsel %vm424, %v3701, %v3582
    %v3717 = vsel %vm424, %v3703, %v3584
    %v3719 = vsel %vm424, %v3705, %v3586
    %v3721 = vsel %vm424, %v3707, %v3588
    %v3722 = vsel %vm439, %v3709, %v3576
    %v3723 = vsel %vm439, %v3711, %v3578
    %v3724 = vsel %vm439, %v3713, %v3580
    %v3725 = vsel %vm439, %v3715, %v3582
    %v3726 = vsel %vm439, %v3717, %v3584
    %v3727 = vsel %vm439, %v3719, %v3586
    %v3728 = vsel %vm439, %v3721, %v3588
    %v3730 = vsel %vm447, %v3722, %v3639
    %v3732 = vsel %vm447, %v3723, %v3641
    %v3734 = vsel %vm447, %v3724, %v3643
    %v3736 = vsel %vm447, %v3725, %v3645
    %v3738 = vsel %vm447, %v3726, %v3647
    %v3740 = vsel %vm447, %v3727, %v3649
    %v3742 = vsel %vm447, %v3728, %v3651
    %v3743 = vsel %vm473, %v3730, 0
    %3745 = vmatprep.subr.bf16.mxu0 0
    %3746 = vmatpush1.bf16.msra.mxu0 %v470
    %3747 = vmatprep.subr.bf16.mxu0 0
    %3748 = vmatpush1.bf16.msra.mxu0 %v481
    %3749 = vmatprep.subr.bf16.mxu0 0
    %3750 = vmatpush1.bf16.msra.mxu0 0
    %3751 = vmatprep.subr.bf16.mxu0 0
    %3752 = vmatpush1.bf16.msra.mxu0 0
    %3753 = vmatprep.subr.bf16.mxu0 0
    %3754 = vmatpush1.bf16.msra.mxu0 0
    %3755 = vmatprep.subr.bf16.mxu0 0
    %3756 = vmatpush1.bf16.msra.mxu0 0
    %3757 = vmatprep.subr.bf16.mxu0 0
    %3758 = vmatpush1.bf16.msra.mxu0 0
    %3759 = vmatprep.subr.bf16.mxu0 0
    %3760 = vmatpush1.bf16.msra.mxu0 0
    %3761 = vmatprep.subr.bf16.mxu0 0
    %3762 = vmatpush1.bf16.msra.mxu0 0
    %3763 = vmatprep.subr.bf16.mxu0 0
    %3764 = vmatpush1.bf16.msra.mxu0 0
    %3765 = vmatprep.subr.bf16.mxu0 0
    %3766 = vmatpush1.bf16.msra.mxu0 0
    %3767 = vmatprep.subr.bf16.mxu0 0
    %3768 = vmatpush1.bf16.msra.mxu0 0
    %3769 = vmatprep.subr.bf16.mxu0 0
    %3770 = vmatpush1.bf16.msra.mxu0 0
    %3771 = vmatprep.subr.bf16.mxu0 0
    %3772 = vmatpush1.bf16.msra.mxu0 0
    %3773 = vmatprep.subr.bf16.mxu0 0
    %3774 = vmatpush1.bf16.msra.mxu0 0
    %3775 = vmatprep.subr.bf16.mxu0 0
    %3776 = vmatpush1.bf16.msra.mxu0 0
    %3777 = vmatprep.mubr.bf16.mxu0 0
    %3778 = vmatmul.mubr.bf16.gmra.mrb[0].mxu0 %v3743
    %v3779 = vpop.f32.mrb[0].mxu0
    %v3780 = vadd.f32 0.0, %v3779
    %v3781 = vpop.f32.mrb[0].mxu0
    %v3782 = vpop.f32.mrb[0].mxu0
    %v3783 = vpop.f32.mrb[0].mxu0
    %3784 = vdwg.mxu0
    %v3785 = vsel %vm473, %v3732, 0
    %3787 = vmatprep.subr.bf16.mxu0 0
    %3788 = vmatpush1.bf16.msra.mxu0 %v470
    %3789 = vmatprep.subr.bf16.mxu0 0
    %3790 = vmatpush1.bf16.msra.mxu0 %v481
    %3791 = vmatprep.subr.bf16.mxu0 0
    %3792 = vmatpush1.bf16.msra.mxu0 0
    %3793 = vmatprep.subr.bf16.mxu0 0
    %3794 = vmatpush1.bf16.msra.mxu0 0
    %3795 = vmatprep.subr.bf16.mxu0 0
    %3796 = vmatpush1.bf16.msra.mxu0 0
    %3797 = vmatprep.subr.bf16.mxu0 0
    %3798 = vmatpush1.bf16.msra.mxu0 0
    %3799 = vmatprep.subr.bf16.mxu0 0
    %3800 = vmatpush1.bf16.msra.mxu0 0
    %3801 = vmatprep.subr.bf16.mxu0 0
    %3802 = vmatpush1.bf16.msra.mxu0 0
    %3803 = vmatprep.subr.bf16.mxu0 0
    %3804 = vmatpush1.bf16.msra.mxu0 0
    %3805 = vmatprep.subr.bf16.mxu0 0
    %3806 = vmatpush1.bf16.msra.mxu0 0
    %3807 = vmatprep.subr.bf16.mxu0 0
    %3808 = vmatpush1.bf16.msra.mxu0 0
    %3809 = vmatprep.subr.bf16.mxu0 0
    %3810 = vmatpush1.bf16.msra.mxu0 0
    %3811 = vmatprep.subr.bf16.mxu0 0
    %3812 = vmatpush1.bf16.msra.mxu0 0
    %3813 = vmatprep.subr.bf16.mxu0 0
    %3814 = vmatpush1.bf16.msra.mxu0 0
    %3815 = vmatprep.subr.bf16.mxu0 0
    %3816 = vmatpush1.bf16.msra.mxu0 0
    %3817 = vmatprep.subr.bf16.mxu0 0
    %3818 = vmatpush1.bf16.msra.mxu0 0
    %3819 = vmatprep.mubr.bf16.mxu0 0
    %3820 = vmatmul.mubr.bf16.gmra.mrb[0].mxu0 %v3785
    %v3821 = vpop.f32.mrb[0].mxu0
    %v3822 = vadd.f32 0.0, %v3821
    %v3823 = vpop.f32.mrb[0].mxu0
    %v3824 = vpop.f32.mrb[0].mxu0
    %v3825 = vpop.f32.mrb[0].mxu0
    %3826 = vdwg.mxu0
    %v3827 = vsel %vm473, %v3734, 0
    %3829 = vmatprep.subr.bf16.mxu0 0
    %3830 = vmatpush1.bf16.msra.mxu0 %v470
    %3831 = vmatprep.subr.bf16.mxu0 0
    %3832 = vmatpush1.bf16.msra.mxu0 %v481
    %3833 = vmatprep.subr.bf16.mxu0 0
    %3834 = vmatpush1.bf16.msra.mxu0 0
    %3835 = vmatprep.subr.bf16.mxu0 0
    %3836 = vmatpush1.bf16.msra.mxu0 0
    %3837 = vmatprep.subr.bf16.mxu0 0
    %3838 = vmatpush1.bf16.msra.mxu0 0
    %3839 = vmatprep.subr.bf16.mxu0 0
    %3840 = vmatpush1.bf16.msra.mxu0 0
    %3841 = vmatprep.subr.bf16.mxu0 0
    %3842 = vmatpush1.bf16.msra.mxu0 0
    %3843 = vmatprep.subr.bf16.mxu0 0
    %3844 = vmatpush1.bf16.msra.mxu0 0
    %3845 = vmatprep.subr.bf16.mxu0 0
    %3846 = vmatpush1.bf16.msra.mxu0 0
    %3847 = vmatprep.subr.bf16.mxu0 0
    %3848 = vmatpush1.bf16.msra.mxu0 0
    %3849 = vmatprep.subr.bf16.mxu0 0
    %3850 = vmatpush1.bf16.msra.mxu0 0
    %3851 = vmatprep.subr.bf16.mxu0 0
    %3852 = vmatpush1.bf16.msra.mxu0 0
    %3853 = vmatprep.subr.bf16.mxu0 0
    %3854 = vmatpush1.bf16.msra.mxu0 0
    %3855 = vmatprep.subr.bf16.mxu0 0
    %3856 = vmatpush1.bf16.msra.mxu0 0
    %3857 = vmatprep.subr.bf16.mxu0 0
    %3858 = vmatpush1.bf16.msra.mxu0 0
    %3859 = vmatprep.subr.bf16.mxu0 0
    %3860 = vmatpush1.bf16.msra.mxu0 0
    %3861 = vmatprep.mubr.bf16.mxu0 0
    %3862 = vmatmul.mubr.bf16.gmra.mrb[0].mxu0 %v3827
    %v3863 = vpop.f32.mrb[0].mxu0
    %v3864 = vadd.f32 0.0, %v3863
    %v3865 = vpop.f32.mrb[0].mxu0
    %v3866 = vpop.f32.mrb[0].mxu0
    %v3867 = vpop.f32.mrb[0].mxu0
    %3868 = vdwg.mxu0
    %v3869 = vsel %vm473, %v3736, 0
    %3871 = vmatprep.subr.bf16.mxu0 0
    %3872 = vmatpush1.bf16.msra.mxu0 %v470
    %3873 = vmatprep.subr.bf16.mxu0 0
    %3874 = vmatpush1.bf16.msra.mxu0 %v481
    %3875 = vmatprep.subr.bf16.mxu0 0
    %3876 = vmatpush1.bf16.msra.mxu0 0
    %3877 = vmatprep.subr.bf16.mxu0 0
    %3878 = vmatpush1.bf16.msra.mxu0 0
    %3879 = vmatprep.subr.bf16.mxu0 0
    %3880 = vmatpush1.bf16.msra.mxu0 0
    %3881 = vmatprep.subr.bf16.mxu0 0
    %3882 = vmatpush1.bf16.msra.mxu0 0
    %3883 = vmatprep.subr.bf16.mxu0 0
    %3884 = vmatpush1.bf16.msra.mxu0 0
    %3885 = vmatprep.subr.bf16.mxu0 0
    %3886 = vmatpush1.bf16.msra.mxu0 0
    %3887 = vmatprep.subr.bf16.mxu0 0
    %3888 = vmatpush1.bf16.msra.mxu0 0
    %3889 = vmatprep.subr.bf16.mxu0 0
    %3890 = vmatpush1.bf16.msra.mxu0 0
    %3891 = vmatprep.subr.bf16.mxu0 0
    %3892 = vmatpush1.bf16.msra.mxu0 0
    %3893 = vmatprep.subr.bf16.mxu0 0
    %3894 = vmatpush1.bf16.msra.mxu0 0
    %3895 = vmatprep.subr.bf16.mxu0 0
    %3896 = vmatpush1.bf16.msra.mxu0 0
    %3897 = vmatprep.subr.bf16.mxu0 0
    %3898 = vmatpush1.bf16.msra.mxu0 0
    %3899 = vmatprep.subr.bf16.mxu0 0
    %3900 = vmatpush1.bf16.msra.mxu0 0
    %3901 = vmatprep.subr.bf16.mxu0 0
    %3902 = vmatpush1.bf16.msra.mxu0 0
    %3903 = vmatprep.mubr.bf16.mxu0 0
    %3904 = vmatmul.mubr.bf16.gmra.mrb[0].mxu0 %v3869
    %v3905 = vpop.f32.mrb[0].mxu0
    %v3906 = vadd.f32 0.0, %v3905
    %v3907 = vpop.f32.mrb[0].mxu0
    %v3908 = vpop.f32.mrb[0].mxu0
    %v3909 = vpop.f32.mrb[0].mxu0
    %3910 = vdwg.mxu0
    %v3911 = vsel %vm473, %v3738, 0
    %3913 = vmatprep.subr.bf16.mxu0 0
    %3914 = vmatpush1.bf16.msra.mxu0 %v470
    %3915 = vmatprep.subr.bf16.mxu0 0
    %3916 = vmatpush1.bf16.msra.mxu0 %v481
    %3917 = vmatprep.subr.bf16.mxu0 0
    %3918 = vmatpush1.bf16.msra.mxu0 0
    %3919 = vmatprep.subr.bf16.mxu0 0
    %3920 = vmatpush1.bf16.msra.mxu0 0
    %3921 = vmatprep.subr.bf16.mxu0 0
    %3922 = vmatpush1.bf16.msra.mxu0 0
    %3923 = vmatprep.subr.bf16.mxu0 0
    %3924 = vmatpush1.bf16.msra.mxu0 0
    %3925 = vmatprep.subr.bf16.mxu0 0
    %3926 = vmatpush1.bf16.msra.mxu0 0
    %3927 = vmatprep.subr.bf16.mxu0 0
    %3928 = vmatpush1.bf16.msra.mxu0 0
    %3929 = vmatprep.subr.bf16.mxu0 0
    %3930 = vmatpush1.bf16.msra.mxu0 0
    %3931 = vmatprep.subr.bf16.mxu0 0
    %3932 = vmatpush1.bf16.msra.mxu0 0
    %3933 = vmatprep.subr.bf16.mxu0 0
    %3934 = vmatpush1.bf16.msra.mxu0 0
    %3935 = vmatprep.subr.bf16.mxu0 0
    %3936 = vmatpush1.bf16.msra.mxu0 0
    %3937 = vmatprep.subr.bf16.mxu0 0
    %3938 = vmatpush1.bf16.msra.mxu0 0
    %3939 = vmatprep.subr.bf16.mxu0 0
    %3940 = vmatpush1.bf16.msra.mxu0 0
    %3941 = vmatprep.subr.bf16.mxu0 0
    %3942 = vmatpush1.bf16.msra.mxu0 0
    %3943 = vmatprep.subr.bf16.mxu0 0
    %3944 = vmatpush1.bf16.msra.mxu0 0
    %3945 = vmatprep.mubr.bf16.mxu0 0
    %3946 = vmatmul.mubr.bf16.gmra.mrb[0].mxu0 %v3911
    %v3947 = vpop.f32.mrb[0].mxu0
    %v3948 = vadd.f32 0.0, %v3947
    %v3949 = vpop.f32.mrb[0].mxu0
    %v3950 = vpop.f32.mrb[0].mxu0
    %v3951 = vpop.f32.mrb[0].mxu0
    %3952 = vdwg.mxu0
    %v3953 = vsel %vm473, %v3740, 0
    %3955 = vmatprep.subr.bf16.mxu0 0
    %3956 = vmatpush1.bf16.msra.mxu0 %v470
    %3957 = vmatprep.subr.bf16.mxu0 0
    %3958 = vmatpush1.bf16.msra.mxu0 %v481
    %3959 = vmatprep.subr.bf16.mxu0 0
    %3960 = vmatpush1.bf16.msra.mxu0 0
    %3961 = vmatprep.subr.bf16.mxu0 0
    %3962 = vmatpush1.bf16.msra.mxu0 0
    %3963 = vmatprep.subr.bf16.mxu0 0
    %3964 = vmatpush1.bf16.msra.mxu0 0
    %3965 = vmatprep.subr.bf16.mxu0 0
    %3966 = vmatpush1.bf16.msra.mxu0 0
    %3967 = vmatprep.subr.bf16.mxu0 0
    %3968 = vmatpush1.bf16.msra.mxu0 0
    %3969 = vmatprep.subr.bf16.mxu0 0
    %3970 = vmatpush1.bf16.msra.mxu0 0
    %3971 = vmatprep.subr.bf16.mxu0 0
    %3972 = vmatpush1.bf16.msra.mxu0 0
    %3973 = vmatprep.subr.bf16.mxu0 0
    %3974 = vmatpush1.bf16.msra.mxu0 0
    %3975 = vmatprep.subr.bf16.mxu0 0
    %3976 = vmatpush1.bf16.msra.mxu0 0
    %3977 = vmatprep.subr.bf16.mxu0 0
    %3978 = vmatpush1.bf16.msra.mxu0 0
    %3979 = vmatprep.subr.bf16.mxu0 0
    %3980 = vmatpush1.bf16.msra.mxu0 0
    %3981 = vmatprep.subr.bf16.mxu0 0
    %3982 = vmatpush1.bf16.msra.mxu0 0
    %3983 = vmatprep.subr.bf16.mxu0 0
    %3984 = vmatpush1.bf16.msra.mxu0 0
    %3985 = vmatprep.subr.bf16.mxu0 0
    %3986 = vmatpush1.bf16.msra.mxu0 0
    %3987 = vmatprep.mubr.bf16.mxu0 0
    %3988 = vmatmul.mubr.bf16.gmra.mrb[0].mxu0 %v3953
    %v3989 = vpop.f32.mrb[0].mxu0
    %v3990 = vadd.f32 0.0, %v3989
    %v3991 = vpop.f32.mrb[0].mxu0
    %v3992 = vpop.f32.mrb[0].mxu0
    %v3993 = vpop.f32.mrb[0].mxu0
    %3994 = vdwg.mxu0
    %v3995 = vsel %vm473, %v3742, 0
    %3997 = vmatprep.subr.bf16.mxu0 0
    %3998 = vmatpush1.bf16.msra.mxu0 %v470
    %3999 = vmatprep.subr.bf16.mxu0 0
    %4000 = vmatpush1.bf16.msra.mxu0 %v481
    %4001 = vmatprep.subr.bf16.mxu0 0
    %4002 = vmatpush1.bf16.msra.mxu0 0
    %4003 = vmatprep.subr.bf16.mxu0 0
    %4004 = vmatpush1.bf16.msra.mxu0 0
    %4005 = vmatprep.subr.bf16.mxu0 0
    %4006 = vmatpush1.bf16.msra.mxu0 0
    %4007 = vmatprep.subr.bf16.mxu0 0
    %4008 = vmatpush1.bf16.msra.mxu0 0
    %4009 = vmatprep.subr.bf16.mxu0 0
    %4010 = vmatpush1.bf16.msra.mxu0 0
    %4011 = vmatprep.subr.bf16.mxu0 0
    %4012 = vmatpush1.bf16.msra.mxu0 0
    %4013 = vmatprep.subr.bf16.mxu0 0
    %4014 = vmatpush1.bf16.msra.mxu0 0
    %4015 = vmatprep.subr.bf16.mxu0 0
    %4016 = vmatpush1.bf16.msra.mxu0 0
    %4017 = vmatprep.subr.bf16.mxu0 0
    %4018 = vmatpush1.bf16.msra.mxu0 0
    %4019 = vmatprep.subr.bf16.mxu0 0
    %4020 = vmatpush1.bf16.msra.mxu0 0
    %4021 = vmatprep.subr.bf16.mxu0 0
    %4022 = vmatpush1.bf16.msra.mxu0 0
    %4023 = vmatprep.subr.bf16.mxu0 0
    %4024 = vmatpush1.bf16.msra.mxu0 0
    %4025 = vmatprep.subr.bf16.mxu0 0
    %4026 = vmatpush1.bf16.msra.mxu0 0
    %4027 = vmatprep.subr.bf16.mxu0 0
    %4028 = vmatpush1.bf16.msra.mxu0 0
    %4029 = vmatprep.mubr.bf16.mxu0 0
    %4030 = vmatmul.mubr.bf16.gmra.mrb[0].mxu0 %v3995
    %v4031 = vpop.f32.mrb[0].mxu0
    %v4032 = vadd.f32 0.0, %v4031
    %v4033 = vpop.f32.mrb[0].mxu0
    %v4034 = vpop.f32.mrb[0].mxu0
    %v4035 = vpop.f32.mrb[0].mxu0
    %4036 = vdwg.mxu0
    %v4037 = vmax.f32 %v3497, %v3780
    %v4038 = vmax.f32 %v3498, %v3822
    %v4039 = vmax.f32 %v3499, %v3864
    %v4040 = vmax.f32 %v3500, %v3906
    %v4041 = vmax.f32 %v3501, %v3948
    %v4042 = vmax.f32 %v3502, %v3990
    %v4043 = vmax.f32 %v3503, %v4032
    %4044 = vrot.lane.b32.xlu0 %v2454, 125
    %v4045 = vpop.permute.xlu0 %4044
    %4046 = vrot.lane.b32.xlu0 %v2455, 125
    %v4047 = vpop.permute.xlu0 %4046
    %4048 = vrot.lane.b32.xlu0 %v2456, 125
    %v4049 = vpop.permute.xlu0 %4048
    %4050 = vrot.lane.b32.xlu0 %v2457, 125
    %v4051 = vpop.permute.xlu0 %4050
    %4052 = vrot.lane.b32.xlu0 %v2458, 125
    %v4053 = vpop.permute.xlu0 %4052
    %4054 = vrot.lane.b32.xlu0 %v2459, 125
    %v4055 = vpop.permute.xlu0 %4054
    %4056 = vrot.lane.b32.xlu0 %v2460, 125
    %v4057 = vpop.permute.xlu0 %4056
    %4058 = vrot.lane.b32.xlu0 %v2481, 3
    %v4059 = vpop.permute.xlu0 %4058
    %4060 = vrot.lane.b32.xlu0 %v2488, 3
    %v4061 = vpop.permute.xlu0 %4060
    %4062 = vrot.lane.b32.xlu0 %v2495, 3
    %v4063 = vpop.permute.xlu0 %4062
    %4064 = vrot.lane.b32.xlu0 %v2502, 3
    %v4065 = vpop.permute.xlu0 %4064
    %4066 = vrot.lane.b32.xlu0 %v2509, 3
    %v4067 = vpop.permute.xlu0 %4066
    %4068 = vrot.lane.b32.xlu0 %v2516, 3
    %v4069 = vpop.permute.xlu0 %4068
    %4070 = vrot.lane.b32.xlu0 %v2523, 3
    %v4071 = vpop.permute.xlu0 %4070
    %4072 = vrot.lane.b32.xlu0 %v2552, 6
    %v4073 = vpop.permute.xlu0 %4072
    %4074 = vrot.lane.b32.xlu0 %v2553, 6
    %v4075 = vpop.permute.xlu0 %4074
    %4076 = vrot.lane.b32.xlu0 %v2554, 6
    %v4077 = vpop.permute.xlu0 %4076
    %4078 = vrot.lane.b32.xlu0 %v2555, 6
    %v4079 = vpop.permute.xlu0 %4078
    %4080 = vrot.lane.b32.xlu0 %v2556, 6
    %v4081 = vpop.permute.xlu0 %4080
    %4082 = vrot.lane.b32.xlu0 %v2557, 6
    %v4083 = vpop.permute.xlu0 %4082
    %4084 = vrot.lane.b32.xlu0 %v2558, 6
    %v4085 = vpop.permute.xlu0 %4084
    %4086 = vrot.lane.b32.xlu0 %v2579, 12
    %v4087 = vpop.permute.xlu0 %4086
    %4088 = vrot.lane.b32.xlu0 %v2586, 12
    %v4089 = vpop.permute.xlu0 %4088
    %4090 = vrot.lane.b32.xlu0 %v2593, 12
    %v4091 = vpop.permute.xlu0 %4090
    %4092 = vrot.lane.b32.xlu0 %v2600, 12
    %v4093 = vpop.permute.xlu0 %4092
    %4094 = vrot.lane.b32.xlu0 %v2607, 12
    %v4095 = vpop.permute.xlu0 %4094
    %4096 = vrot.lane.b32.xlu0 %v2614, 12
    %v4097 = vpop.permute.xlu0 %4096
    %4098 = vrot.lane.b32.xlu0 %v2621, 12
    %v4099 = vpop.permute.xlu0 %4098
    %4100 = vrot.lane.b32.xlu0 %v3568, 15
    %v4101 = vpop.permute.xlu0 %4100
    %4102 = vrot.lane.b32.xlu0 %v3569, 15
    %v4103 = vpop.permute.xlu0 %4102
    %4104 = vrot.lane.b32.xlu0 %v3570, 15
    %v4105 = vpop.permute.xlu0 %4104
    %4106 = vrot.lane.b32.xlu0 %v3571, 15
    %v4107 = vpop.permute.xlu0 %4106
    %4108 = vrot.lane.b32.xlu0 %v3572, 15
    %v4109 = vpop.permute.xlu0 %4108
    %4110 = vrot.lane.b32.xlu0 %v3573, 15
    %v4111 = vpop.permute.xlu0 %4110
    %4112 = vrot.lane.b32.xlu0 %v3574, 15
    %v4113 = vpop.permute.xlu0 %4112
    %4114 = vrot.lane.b32.xlu0 %v3595, 21
    %v4115 = vpop.permute.xlu0 %4114
    %4116 = vrot.lane.b32.xlu0 %v3602, 21
    %v4117 = vpop.permute.xlu0 %4116
    %4118 = vrot.lane.b32.xlu0 %v3609, 21
    %v4119 = vpop.permute.xlu0 %4118
    %4120 = vrot.lane.b32.xlu0 %v3616, 21
    %v4121 = vpop.permute.xlu0 %4120
    %4122 = vrot.lane.b32.xlu0 %v3623, 21
    %v4123 = vpop.permute.xlu0 %4122
    %4124 = vrot.lane.b32.xlu0 %v3630, 21
    %v4125 = vpop.permute.xlu0 %4124
    %4126 = vrot.lane.b32.xlu0 %v3637, 21
    %v4127 = vpop.permute.xlu0 %4126
    %v4130 = vsel %vm363, %v4045, %v4059
    %v4133 = vsel %vm363, %v4047, %v4061
    %v4136 = vsel %vm363, %v4049, %v4063
    %v4139 = vsel %vm363, %v4051, %v4065
    %v4142 = vsel %vm363, %v4053, %v4067
    %v4145 = vsel %vm363, %v4055, %v4069
    %v4148 = vsel %vm363, %v4057, %v4071
    %v4149 = vsel %vm371, %v4130, %v4059
    %v4150 = vsel %vm371, %v4133, %v4061
    %v4151 = vsel %vm371, %v4136, %v4063
    %v4152 = vsel %vm371, %v4139, %v4065
    %v4153 = vsel %vm371, %v4142, %v4067
    %v4154 = vsel %vm371, %v4145, %v4069
    %v4155 = vsel %vm371, %v4148, %v4071
    %v4157 = vsel %vm386, %v4149, %v4073
    %v4159 = vsel %vm386, %v4150, %v4075
    %v4161 = vsel %vm386, %v4151, %v4077
    %v4163 = vsel %vm386, %v4152, %v4079
    %v4165 = vsel %vm386, %v4153, %v4081
    %v4167 = vsel %vm386, %v4154, %v4083
    %v4169 = vsel %vm386, %v4155, %v4085
    %v4171 = vsel %vm401, %v4157, %v4087
    %v4173 = vsel %vm401, %v4159, %v4089
    %v4175 = vsel %vm401, %v4161, %v4091
    %v4177 = vsel %vm401, %v4163, %v4093
    %v4179 = vsel %vm401, %v4165, %v4095
    %v4181 = vsel %vm401, %v4167, %v4097
    %v4183 = vsel %vm401, %v4169, %v4099
    %v4184 = vsel %vm409, %v4171, %v4087
    %v4185 = vsel %vm409, %v4173, %v4089
    %v4186 = vsel %vm409, %v4175, %v4091
    %v4187 = vsel %vm409, %v4177, %v4093
    %v4188 = vsel %vm409, %v4179, %v4095
    %v4189 = vsel %vm409, %v4181, %v4097
    %v4190 = vsel %vm409, %v4183, %v4099
    %v4192 = vsel %vm424, %v4184, %v4101
    %v4194 = vsel %vm424, %v4185, %v4103
    %v4196 = vsel %vm424, %v4186, %v4105
    %v4198 = vsel %vm424, %v4187, %v4107
    %v4200 = vsel %vm424, %v4188, %v4109
    %v4202 = vsel %vm424, %v4189, %v4111
    %v4204 = vsel %vm424, %v4190, %v4113
    %v4206 = vsel %vm439, %v4192, %v4115
    %v4208 = vsel %vm439, %v4194, %v4117
    %v4210 = vsel %vm439, %v4196, %v4119
    %v4212 = vsel %vm439, %v4198, %v4121
    %v4214 = vsel %vm439, %v4200, %v4123
    %v4216 = vsel %vm439, %v4202, %v4125
    %v4218 = vsel %vm439, %v4204, %v4127
    %v4219 = vsel %vm447, %v4206, %v4115
    %v4220 = vsel %vm447, %v4208, %v4117
    %v4221 = vsel %vm447, %v4210, %v4119
    %v4222 = vsel %vm447, %v4212, %v4121
    %v4223 = vsel %vm447, %v4214, %v4123
    %v4224 = vsel %vm447, %v4216, %v4125
    %v4225 = vsel %vm447, %v4218, %v4127
    %v4226 = vsel %vm473, %v4219, 0
    %4228 = vmatprep.subr.bf16.mxu0 0
    %4229 = vmatpush1.bf16.msra.mxu0 %v470
    %4230 = vmatprep.subr.bf16.mxu0 0
    %4231 = vmatpush1.bf16.msra.mxu0 %v481
    %4232 = vmatprep.subr.bf16.mxu0 0
    %4233 = vmatpush1.bf16.msra.mxu0 0
    %4234 = vmatprep.subr.bf16.mxu0 0
    %4235 = vmatpush1.bf16.msra.mxu0 0
    %4236 = vmatprep.subr.bf16.mxu0 0
    %4237 = vmatpush1.bf16.msra.mxu0 0
    %4238 = vmatprep.subr.bf16.mxu0 0
    %4239 = vmatpush1.bf16.msra.mxu0 0
    %4240 = vmatprep.subr.bf16.mxu0 0
    %4241 = vmatpush1.bf16.msra.mxu0 0
    %4242 = vmatprep.subr.bf16.mxu0 0
    %4243 = vmatpush1.bf16.msra.mxu0 0
    %4244 = vmatprep.subr.bf16.mxu0 0
    %4245 = vmatpush1.bf16.msra.mxu0 0
    %4246 = vmatprep.subr.bf16.mxu0 0
    %4247 = vmatpush1.bf16.msra.mxu0 0
    %4248 = vmatprep.subr.bf16.mxu0 0
    %4249 = vmatpush1.bf16.msra.mxu0 0
    %4250 = vmatprep.subr.bf16.mxu0 0
    %4251 = vmatpush1.bf16.msra.mxu0 0
    %4252 = vmatprep.subr.bf16.mxu0 0
    %4253 = vmatpush1.bf16.msra.mxu0 0
    %4254 = vmatprep.subr.bf16.mxu0 0
    %4255 = vmatpush1.bf16.msra.mxu0 0
    %4256 = vmatprep.subr.bf16.mxu0 0
    %4257 = vmatpush1.bf16.msra.mxu0 0
    %4258 = vmatprep.subr.bf16.mxu0 0
    %4259 = vmatpush1.bf16.msra.mxu0 0
    %4260 = vmatprep.mubr.bf16.mxu0 0
    %4261 = vmatmul.mubr.bf16.gmra.mrb[0].mxu0 %v4226
    %v4262 = vpop.f32.mrb[0].mxu0
    %v4263 = vadd.f32 0.0, %v4262
    %v4264 = vpop.f32.mrb[0].mxu0
    %v4265 = vpop.f32.mrb[0].mxu0
    %v4266 = vpop.f32.mrb[0].mxu0
    %4267 = vdwg.mxu0
    %v4268 = vsel %vm473, %v4220, 0
    %4270 = vmatprep.subr.bf16.mxu0 0
    %4271 = vmatpush1.bf16.msra.mxu0 %v470
    %4272 = vmatprep.subr.bf16.mxu0 0
    %4273 = vmatpush1.bf16.msra.mxu0 %v481
    %4274 = vmatprep.subr.bf16.mxu0 0
    %4275 = vmatpush1.bf16.msra.mxu0 0
    %4276 = vmatprep.subr.bf16.mxu0 0
    %4277 = vmatpush1.bf16.msra.mxu0 0
    %4278 = vmatprep.subr.bf16.mxu0 0
    %4279 = vmatpush1.bf16.msra.mxu0 0
    %4280 = vmatprep.subr.bf16.mxu0 0
    %4281 = vmatpush1.bf16.msra.mxu0 0
    %4282 = vmatprep.subr.bf16.mxu0 0
    %4283 = vmatpush1.bf16.msra.mxu0 0
    %4284 = vmatprep.subr.bf16.mxu0 0
    %4285 = vmatpush1.bf16.msra.mxu0 0
    %4286 = vmatprep.subr.bf16.mxu0 0
    %4287 = vmatpush1.bf16.msra.mxu0 0
    %4288 = vmatprep.subr.bf16.mxu0 0
    %4289 = vmatpush1.bf16.msra.mxu0 0
    %4290 = vmatprep.subr.bf16.mxu0 0
    %4291 = vmatpush1.bf16.msra.mxu0 0
    %4292 = vmatprep.subr.bf16.mxu0 0
    %4293 = vmatpush1.bf16.msra.mxu0 0
    %4294 = vmatprep.subr.bf16.mxu0 0
    %4295 = vmatpush1.bf16.msra.mxu0 0
    %4296 = vmatprep.subr.bf16.mxu0 0
    %4297 = vmatpush1.bf16.msra.mxu0 0
    %4298 = vmatprep.subr.bf16.mxu0 0
    %4299 = vmatpush1.bf16.msra.mxu0 0
    %4300 = vmatprep.subr.bf16.mxu0 0
    %4301 = vmatpush1.bf16.msra.mxu0 0
    %4302 = vmatprep.mubr.bf16.mxu0 0
    %4303 = vmatmul.mubr.bf16.gmra.mrb[0].mxu0 %v4268
    %v4304 = vpop.f32.mrb[0].mxu0
    %v4305 = vadd.f32 0.0, %v4304
    %v4306 = vpop.f32.mrb[0].mxu0
    %v4307 = vpop.f32.mrb[0].mxu0
    %v4308 = vpop.f32.mrb[0].mxu0
    %4309 = vdwg.mxu0
    %v4310 = vsel %vm473, %v4221, 0
    %4312 = vmatprep.subr.bf16.mxu0 0
    %4313 = vmatpush1.bf16.msra.mxu0 %v470
    %4314 = vmatprep.subr.bf16.mxu0 0
    %4315 = vmatpush1.bf16.msra.mxu0 %v481
    %4316 = vmatprep.subr.bf16.mxu0 0
    %4317 = vmatpush1.bf16.msra.mxu0 0
    %4318 = vmatprep.subr.bf16.mxu0 0
    %4319 = vmatpush1.bf16.msra.mxu0 0
    %4320 = vmatprep.subr.bf16.mxu0 0
    %4321 = vmatpush1.bf16.msra.mxu0 0
    %4322 = vmatprep.subr.bf16.mxu0 0
    %4323 = vmatpush1.bf16.msra.mxu0 0
    %4324 = vmatprep.subr.bf16.mxu0 0
    %4325 = vmatpush1.bf16.msra.mxu0 0
    %4326 = vmatprep.subr.bf16.mxu0 0
    %4327 = vmatpush1.bf16.msra.mxu0 0
    %4328 = vmatprep.subr.bf16.mxu0 0
    %4329 = vmatpush1.bf16.msra.mxu0 0
    %4330 = vmatprep.subr.bf16.mxu0 0
    %4331 = vmatpush1.bf16.msra.mxu0 0
    %4332 = vmatprep.subr.bf16.mxu0 0
    %4333 = vmatpush1.bf16.msra.mxu0 0
    %4334 = vmatprep.subr.bf16.mxu0 0
    %4335 = vmatpush1.bf16.msra.mxu0 0
    %4336 = vmatprep.subr.bf16.mxu0 0
    %4337 = vmatpush1.bf16.msra.mxu0 0
    %4338 = vmatprep.subr.bf16.mxu0 0
    %4339 = vmatpush1.bf16.msra.mxu0 0
    %4340 = vmatprep.subr.bf16.mxu0 0
    %4341 = vmatpush1.bf16.msra.mxu0 0
    %4342 = vmatprep.subr.bf16.mxu0 0
    %4343 = vmatpush1.bf16.msra.mxu0 0
    %4344 = vmatprep.mubr.bf16.mxu0 0
    %4345 = vmatmul.mubr.bf16.gmra.mrb[0].mxu0 %v4310
    %v4346 = vpop.f32.mrb[0].mxu0
    %v4347 = vadd.f32 0.0, %v4346
    %v4348 = vpop.f32.mrb[0].mxu0
    %v4349 = vpop.f32.mrb[0].mxu0
    %v4350 = vpop.f32.mrb[0].mxu0
    %4351 = vdwg.mxu0
    %v4352 = vsel %vm473, %v4222, 0
    %4354 = vmatprep.subr.bf16.mxu0 0
    %4355 = vmatpush1.bf16.msra.mxu0 %v470
    %4356 = vmatprep.subr.bf16.mxu0 0
    %4357 = vmatpush1.bf16.msra.mxu0 %v481
    %4358 = vmatprep.subr.bf16.mxu0 0
    %4359 = vmatpush1.bf16.msra.mxu0 0
    %4360 = vmatprep.subr.bf16.mxu0 0
    %4361 = vmatpush1.bf16.msra.mxu0 0
    %4362 = vmatprep.subr.bf16.mxu0 0
    %4363 = vmatpush1.bf16.msra.mxu0 0
    %4364 = vmatprep.subr.bf16.mxu0 0
    %4365 = vmatpush1.bf16.msra.mxu0 0
    %4366 = vmatprep.subr.bf16.mxu0 0
    %4367 = vmatpush1.bf16.msra.mxu0 0
    %4368 = vmatprep.subr.bf16.mxu0 0
    %4369 = vmatpush1.bf16.msra.mxu0 0
    %4370 = vmatprep.subr.bf16.mxu0 0
    %4371 = vmatpush1.bf16.msra.mxu0 0
    %4372 = vmatprep.subr.bf16.mxu0 0
    %4373 = vmatpush1.bf16.msra.mxu0 0
    %4374 = vmatprep.subr.bf16.mxu0 0
    %4375 = vmatpush1.bf16.msra.mxu0 0
    %4376 = vmatprep.subr.bf16.mxu0 0
    %4377 = vmatpush1.bf16.msra.mxu0 0
    %4378 = vmatprep.subr.bf16.mxu0 0
    %4379 = vmatpush1.bf16.msra.mxu0 0
    %4380 = vmatprep.subr.bf16.mxu0 0
    %4381 = vmatpush1.bf16.msra.mxu0 0
    %4382 = vmatprep.subr.bf16.mxu0 0
    %4383 = vmatpush1.bf16.msra.mxu0 0
    %4384 = vmatprep.subr.bf16.mxu0 0
    %4385 = vmatpush1.bf16.msra.mxu0 0
    %4386 = vmatprep.mubr.bf16.mxu0 0
    %4387 = vmatmul.mubr.bf16.gmra.mrb[0].mxu0 %v4352
    %v4388 = vpop.f32.mrb[0].mxu0
    %v4389 = vadd.f32 0.0, %v4388
    %v4390 = vpop.f32.mrb[0].mxu0
    %v4391 = vpop.f32.mrb[0].mxu0
    %v4392 = vpop.f32.mrb[0].mxu0
    %4393 = vdwg.mxu0
    %v4394 = vsel %vm473, %v4223, 0
    %4396 = vmatprep.subr.bf16.mxu0 0
    %4397 = vmatpush1.bf16.msra.mxu0 %v470
    %4398 = vmatprep.subr.bf16.mxu0 0
    %4399 = vmatpush1.bf16.msra.mxu0 %v481
    %4400 = vmatprep.subr.bf16.mxu0 0
    %4401 = vmatpush1.bf16.msra.mxu0 0
    %4402 = vmatprep.subr.bf16.mxu0 0
    %4403 = vmatpush1.bf16.msra.mxu0 0
    %4404 = vmatprep.subr.bf16.mxu0 0
    %4405 = vmatpush1.bf16.msra.mxu0 0
    %4406 = vmatprep.subr.bf16.mxu0 0
    %4407 = vmatpush1.bf16.msra.mxu0 0
    %4408 = vmatprep.subr.bf16.mxu0 0
    %4409 = vmatpush1.bf16.msra.mxu0 0
    %4410 = vmatprep.subr.bf16.mxu0 0
    %4411 = vmatpush1.bf16.msra.mxu0 0
    %4412 = vmatprep.subr.bf16.mxu0 0
    %4413 = vmatpush1.bf16.msra.mxu0 0
    %4414 = vmatprep.subr.bf16.mxu0 0
    %4415 = vmatpush1.bf16.msra.mxu0 0
    %4416 = vmatprep.subr.bf16.mxu0 0
    %4417 = vmatpush1.bf16.msra.mxu0 0
    %4418 = vmatprep.subr.bf16.mxu0 0
    %4419 = vmatpush1.bf16.msra.mxu0 0
    %4420 = vmatprep.subr.bf16.mxu0 0
    %4421 = vmatpush1.bf16.msra.mxu0 0
    %4422 = vmatprep.subr.bf16.mxu0 0
    %4423 = vmatpush1.bf16.msra.mxu0 0
    %4424 = vmatprep.subr.bf16.mxu0 0
    %4425 = vmatpush1.bf16.msra.mxu0 0
    %4426 = vmatprep.subr.bf16.mxu0 0
    %4427 = vmatpush1.bf16.msra.mxu0 0
    %4428 = vmatprep.mubr.bf16.mxu0 0
    %4429 = vmatmul.mubr.bf16.gmra.mrb[0].mxu0 %v4394
    %v4430 = vpop.f32.mrb[0].mxu0
    %v4431 = vadd.f32 0.0, %v4430
    %v4432 = vpop.f32.mrb[0].mxu0
    %v4433 = vpop.f32.mrb[0].mxu0
    %v4434 = vpop.f32.mrb[0].mxu0
    %4435 = vdwg.mxu0
    %v4436 = vsel %vm473, %v4224, 0
    %4438 = vmatprep.subr.bf16.mxu0 0
    %4439 = vmatpush1.bf16.msra.mxu0 %v470
    %4440 = vmatprep.subr.bf16.mxu0 0
    %4441 = vmatpush1.bf16.msra.mxu0 %v481
    %4442 = vmatprep.subr.bf16.mxu0 0
    %4443 = vmatpush1.bf16.msra.mxu0 0
    %4444 = vmatprep.subr.bf16.mxu0 0
    %4445 = vmatpush1.bf16.msra.mxu0 0
    %4446 = vmatprep.subr.bf16.mxu0 0
    %4447 = vmatpush1.bf16.msra.mxu0 0
    %4448 = vmatprep.subr.bf16.mxu0 0
    %4449 = vmatpush1.bf16.msra.mxu0 0
    %4450 = vmatprep.subr.bf16.mxu0 0
    %4451 = vmatpush1.bf16.msra.mxu0 0
    %4452 = vmatprep.subr.bf16.mxu0 0
    %4453 = vmatpush1.bf16.msra.mxu0 0
    %4454 = vmatprep.subr.bf16.mxu0 0
    %4455 = vmatpush1.bf16.msra.mxu0 0
    %4456 = vmatprep.subr.bf16.mxu0 0
    %4457 = vmatpush1.bf16.msra.mxu0 0
    %4458 = vmatprep.subr.bf16.mxu0 0
    %4459 = vmatpush1.bf16.msra.mxu0 0
    %4460 = vmatprep.subr.bf16.mxu0 0
    %4461 = vmatpush1.bf16.msra.mxu0 0
    %4462 = vmatprep.subr.bf16.mxu0 0
    %4463 = vmatpush1.bf16.msra.mxu0 0
    %4464 = vmatprep.subr.bf16.mxu0 0
    %4465 = vmatpush1.bf16.msra.mxu0 0
    %4466 = vmatprep.subr.bf16.mxu0 0
    %4467 = vmatpush1.bf16.msra.mxu0 0
    %4468 = vmatprep.subr.bf16.mxu0 0
    %4469 = vmatpush1.bf16.msra.mxu0 0
    %4470 = vmatprep.mubr.bf16.mxu0 0
    %4471 = vmatmul.mubr.bf16.gmra.mrb[0].mxu0 %v4436
    %v4472 = vpop.f32.mrb[0].mxu0
    %v4473 = vadd.f32 0.0, %v4472
    %v4474 = vpop.f32.mrb[0].mxu0
    %v4475 = vpop.f32.mrb[0].mxu0
    %v4476 = vpop.f32.mrb[0].mxu0
    %4477 = vdwg.mxu0
    %v4478 = vsel %vm473, %v4225, 0
    %4480 = vmatprep.subr.bf16.mxu0 0
    %4481 = vmatpush1.bf16.msra.mxu0 %v470
    %4482 = vmatprep.subr.bf16.mxu0 0
    %4483 = vmatpush1.bf16.msra.mxu0 %v481
    %4484 = vmatprep.subr.bf16.mxu0 0
    %4485 = vmatpush1.bf16.msra.mxu0 0
    %4486 = vmatprep.subr.bf16.mxu0 0
    %4487 = vmatpush1.bf16.msra.mxu0 0
    %4488 = vmatprep.subr.bf16.mxu0 0
    %4489 = vmatpush1.bf16.msra.mxu0 0
    %4490 = vmatprep.subr.bf16.mxu0 0
    %4491 = vmatpush1.bf16.msra.mxu0 0
    %4492 = vmatprep.subr.bf16.mxu0 0
    %4493 = vmatpush1.bf16.msra.mxu0 0
    %4494 = vmatprep.subr.bf16.mxu0 0
    %4495 = vmatpush1.bf16.msra.mxu0 0
    %4496 = vmatprep.subr.bf16.mxu0 0
    %4497 = vmatpush1.bf16.msra.mxu0 0
    %4498 = vmatprep.subr.bf16.mxu0 0
    %4499 = vmatpush1.bf16.msra.mxu0 0
    %4500 = vmatprep.subr.bf16.mxu0 0
    %4501 = vmatpush1.bf16.msra.mxu0 0
    %4502 = vmatprep.subr.bf16.mxu0 0
    %4503 = vmatpush1.bf16.msra.mxu0 0
    %4504 = vmatprep.subr.bf16.mxu0 0
    %4505 = vmatpush1.bf16.msra.mxu0 0
    %4506 = vmatprep.subr.bf16.mxu0 0
    %4507 = vmatpush1.bf16.msra.mxu0 0
    %4508 = vmatprep.subr.bf16.mxu0 0
    %4509 = vmatpush1.bf16.msra.mxu0 0
    %4510 = vmatprep.subr.bf16.mxu0 0
    %4511 = vmatpush1.bf16.msra.mxu0 0
    %4512 = vmatprep.mubr.bf16.mxu0 0
    %4513 = vmatmul.mubr.bf16.gmra.mrb[0].mxu0 %v4478
    %v4514 = vpop.f32.mrb[0].mxu0
    %v4515 = vadd.f32 0.0, %v4514
    %v4516 = vpop.f32.mrb[0].mxu0
    %v4517 = vpop.f32.mrb[0].mxu0
    %v4518 = vpop.f32.mrb[0].mxu0
    %4519 = vdwg.mxu0
    %v4520 = vmax.f32 %v4037, %v4263
    %v4521 = vmax.f32 %v4038, %v4305
    %v4522 = vmax.f32 %v4039, %v4347
    %v4523 = vmax.f32 %v4040, %v4389
    %v4524 = vmax.f32 %v4041, %v4431
    %v4525 = vmax.f32 %v4042, %v4473
    %v4526 = vmax.f32 %v4043, %v4515
    %v4527 = vadd.f32 %v4520, %v2285
    %v4528 = vadd.f32 %v4521, %v2285
    %v4529 = vadd.f32 %v4522, %v2285
    %v4530 = vadd.f32 %v4523, %v2285
    %v4531 = vadd.f32 %v4524, %v2285
    %v4532 = vadd.f32 %v4525, %v2285
    %v4533 = vadd.f32 %v4526, %v2285
    %v4534 = vmax.f32 %v4527, 0.0
    %v4535 = vmax.f32 %v4528, 0.0
    %v4536 = vmax.f32 %v4529, 0.0
    %v4537 = vmax.f32 %v4530, 0.0
    %v4538 = vmax.f32 %v4531, 0.0
    %v4539 = vmax.f32 %v4532, 0.0
    %v4540 = vmax.f32 %v4533, 0.0
    %v4541 = vpack.c.bf16 %v4534, %v4534
    %v4542 = vpack.c.bf16 %v4535, %v4535
    %v4543 = vpack.c.bf16 %v4536, %v4536
    %v4544 = vpack.c.bf16 %v4537, %v4537
    %v4545 = vpack.c.bf16 %v4538, %v4538
    %v4546 = vpack.c.bf16 %v4539, %v4539
    %v4547 = vpack.c.bf16 %v4540, %v4540
    %s4548 = scalar_lea.vmem [#allocation8], 28
    %v4549 = vld [vmem:[%s4548] sm:$0xf]
    %v4550 = vsel %vm2310, %v4541, %v4549
    %4551 = vst [vmem:[%s4548] sm:$0xf] %v4550
    %v4552 = vld [vmem:[%s4548 + $0x4] sm:$0xf]
    %v4553 = vsel %vm2310, %v4542, %v4552
    %4554 = vst [vmem:[%s4548 + $0x4] sm:$0xf] %v4553
    %v4555 = vld [vmem:[%s4548 + $0x8] sm:$0xf]
    %v4556 = vsel %vm2310, %v4543, %v4555
    %4557 = vst [vmem:[%s4548 + $0x8] sm:$0xf] %v4556
    %v4558 = vld [vmem:[%s4548 + $0xc] sm:$0xf]
    %v4559 = vsel %vm2310, %v4544, %v4558
    %4560 = vst [vmem:[%s4548 + $0xc] sm:$0xf] %v4559
    %v4561 = vld [vmem:[%s4548 + $0x10] sm:$0xf]
    %v4562 = vsel %vm2310, %v4545, %v4561
    %4563 = vst [vmem:[%s4548 + $0x10] sm:$0xf] %v4562
    %v4564 = vld [vmem:[%s4548 + $0x14] sm:$0xf]
    %v4565 = vsel %vm2310, %v4546, %v4564
    %4566 = vst [vmem:[%s4548 + $0x14] sm:$0xf] %v4565
    %v4567 = vld [vmem:[%s4548 + $0x18] sm:$0xf]
    %v4568 = vsel %vm2310, %v4547, %v4567
    %4569 = vst [vmem:[%s4548 + $0x18] sm:$0xf] %v4568
    // Predicated region
    $region26: #{forward.3} parent=1 // pred_check
      _
    $region27: #{forward.3} parent=1 // pred_check_branch
      %4571 = sbr.rel (0) target = $region29
    $region28: #{forward.3} parent=1 // pred_region
      %s4573 = ssub.s32 896, 896
      %4574 = vsyncadd [#allocation4], %s4573
      %s4575 = sshll.u32 [#allocation8], 4
      %s4576 = int_to_ptr.vmem [resolvable:$true] %s4575
      %4581 = dma.vmem_to_hbm [thread:$0]  %s4576, 896, %s3, [#allocation4], 64, 64, 4
    $region29: #{forward.3} parent=1 // pred_fallthru
      _
    // Predicated region
    $region30: #{forward.3} parent=1 // pred_check
      _
    $region31: #{forward.3} parent=1 // pred_check_branch
      %4583 = sbr.rel (0) target = $region33
    $region32: #{forward.3} parent=1 // pred_region
      %4584 = dma.done [#allocation4], 896
    $region33: #{forward.3} parent=1 // pred_fallthru
      _
    %4585 = vsyncpa [#allocation3], 1
    %4586 = vsyncpa [#allocation6], 1
    %4587 = vsyncpa [#allocation4], 1

</llo_original>
